<compile_context>
chip_gen: v7x
topology: tpu7x:2x2x1
jax: 0.10.0
libtpu: 0.0.40
codegen_flags: <defaults>
</compile_context>

<pallas_src>
import functools

import jax
import jax.numpy as jnp
from jax.experimental import pallas as pl
from jax.experimental.pallas import tpu as pltpu


def _convlstm_kernel(zp_ref, c_ref, w_ref, cell_ref, hide_ref, col_ref,
                     *, B, H, W, Cpad, Cout):
    """Whole batch in one invocation (grid=(1,)).

    zp_ref  : (B, H+2, W+2, Cpad) bf16  zero-padded concat(xt, hide_t_1, 1, 0...)
    c_ref   : (M, Cout)           f32   cell_t_1, M = B*H*W
    w_ref   : (9*Cpad, 4*Cout)    bf16  fused conv weights (+bias row), gates i|f|o|g along N
    cell_ref, hide_ref : (M, Cout) f32  outputs
    col_ref : (M, 9*Cpad)         bf16  VMEM im2col scratch
    """
    HW = H * W

    # ---- im2col gather: 9 shifted taps per batch element -> scratch --------
    for b in range(B):                       # static, fully unrolled
        for k in range(9):
            dy, dx = k // 3, k % 3
            tap = zp_ref[b, dy:dy + H, dx:dx + W, :].reshape(HW, Cpad)
            col_ref[b * HW:(b + 1) * HW, k * Cpad:(k + 1) * Cpad] = tap

    # ---- one fused matmul: taps+bias along K, 4 gates (i|f|o|g) along N ----
    pre = jnp.dot(col_ref[...], w_ref[...],
                  preferred_element_type=jnp.float32)      # (M, 4*Cout) f32

    # ---- gate nonlinearities in one full-width pass ------------------------
    col_id = jax.lax.broadcasted_iota(jnp.int32, pre.shape, 1)
    act = jnp.where(col_id < 3 * Cout, jax.nn.sigmoid(pre), jnp.tanh(pre))

    it = act[:, 0 * Cout:1 * Cout]
    ft = act[:, 1 * Cout:2 * Cout]
    ot = act[:, 2 * Cout:3 * Cout]
    gt = act[:, 3 * Cout:4 * Cout]

    # ---- cell update, single (M, Cout) layout end-to-end -------------------
    c_prev = c_ref[...]
    cell_t = ft * c_prev + it * gt
    hide_t = ot * jnp.tanh(cell_t)

    cell_ref[...] = cell_t
    hide_ref[...] = hide_t


def conv_lstm_forward(xt, cell_t_1, hide_t_1, wx, wh, bx):
    """Single ConvLSTM step.  NHWC activations.

    xt        : (B, H, W, in_c+ngf) f32
    cell_t_1  : (B, H, W, ngf)      f32
    hide_t_1  : (B, H, W, ngf)      f32
    wx        : (4, 9, in_c+ngf, ngf)  x-conv weights (i, f, o, g)
    wh        : (4, 9, ngf, ngf)       h-conv weights (i, f, o, g)
    bx        : (4, ngf)               x-conv biases  (i, f, o, g)
    Returns (cell_t, hide_t), each (B, H, W, ngf) f32.
    """
    B, H, W, Cx = xt.shape
    Ch = hide_t_1.shape[-1]
    Cout = wx.shape[-1]
    C = Cx + Ch
    N = 4 * Cout
    Hp, Wp = H + 2, W + 2
    M = B * H * W
    Cpad = -((C + 1) // -128) * 128          # fused channels + bias channel, lane aligned

    # Static layout assumptions (module default ngf=32 -> 4*ngf = 128).
    assert N % 128 == 0, "4*ngf must be a multiple of 128 for the fused gate layout"
    assert M % 8 == 0, "B*H*W must be a multiple of 8 (sublane tiling)"
    assert wx.shape == (4, 9, Cx, Cout) and wh.shape == (4, 9, Ch, Cout)
    assert bx.shape == (4, Cout)
    assert hide_t_1.shape == (B, H, W, Ch) and cell_t_1.shape == (B, H, W, Cout)

    # ---- parameter prep (hoist out of any recurrent loop in real use) ------
    # (4, 9, Cin, Cout) -> (9, Cin, 4*Cout): gates fused along N; x- and h-
    # weights concatenated along K; bias folded into the ones-channel row of
    # the center tap; K zero-padded to Cpad per tap.
    w_x = jnp.transpose(wx, (1, 2, 0, 3)).reshape(9, Cx, N)
    w_h = jnp.transpose(wh, (1, 2, 0, 3)).reshape(9, Ch, N)
    w_cat = jnp.concatenate([w_x, w_h], axis=1)                       # (9, C, N)
    bias_row = jnp.zeros((9, 1, N), jnp.float32).at[4, 0].set(bx.reshape(N))
    k_pad = jnp.zeros((9, Cpad - C - 1, N), jnp.float32)
    w_full = jnp.concatenate([w_cat, bias_row, k_pad], axis=1)        # (9, Cpad, N)
    w_full = w_full.reshape(9 * Cpad, N).astype(jnp.bfloat16)

    # ---- input prep: concat x/h channels, ones channel (bias), zero-pad to
    #      Cpad, spatial zero-pad once, bf16 for the MXU ----------------------
    z = jnp.concatenate(
        [xt, hide_t_1,
         jnp.ones((B, H, W, 1), xt.dtype),                 # bias channel (index C)
         jnp.zeros((B, H, W, Cpad - C - 1), xt.dtype)],
        axis=-1)
    zp = jnp.pad(z, ((0, 0), (1, 1), (1, 1), (0, 0))).astype(jnp.bfloat16)

    # Cell state presented as (M, Cout): contiguous -> free reshape, and the
    # kernel keeps this layout end-to-end (no lane-width-changing relayouts).
    c_in = cell_t_1.reshape(M, Cout)

    kernel = functools.partial(_convlstm_kernel,
                               B=B, H=H, W=W, Cpad=Cpad, Cout=Cout)

    cell_t, hide_t = pl.pallas_call(
        kernel,
        out_shape=(jax.ShapeDtypeStruct((M, Cout), jnp.float32),
                   jax.ShapeDtypeStruct((M, Cout), jnp.float32)),
        grid_spec=pltpu.PrefetchScalarGridSpec(
            num_scalar_prefetch=0,
            grid=(1,),                                   # batch folded into M
            in_specs=[
                pl.BlockSpec((B, Hp, Wp, Cpad), lambda i: (0, 0, 0, 0)),
                pl.BlockSpec((M, Cout), lambda i: (0, 0)),
                pl.BlockSpec((9 * Cpad, N), lambda i: (0, 0)),
            ],
            out_specs=[
                pl.BlockSpec((M, Cout), lambda i: (0, 0)),
                pl.BlockSpec((M, Cout), lambda i: (0, 0)),
            ],
            scratch_shapes=[pltpu.VMEM((M, 9 * Cpad), jnp.bfloat16)],
        ),
        compiler_params=pltpu.CompilerParams(
            dimension_semantics=("arbitrary",)),
    )(zp, c_in, w_full)

    return (cell_t.reshape(B, H, W, Cout), hide_t.reshape(B, H, W, Cout))


def _reference(xt, cell, hide, wx, wh, bx):
    """Pure-JAX reference using lax.conv (NHWC / HWIO) at highest precision."""
    def conv(x, w9):
        w = w9.reshape(3, 3, w9.shape[1], w9.shape[2])
        return jax.lax.conv_general_dilated(
            x, w, (1, 1), 'SAME',
            dimension_numbers=('NHWC', 'HWIO', 'NHWC'),
            precision=jax.lax.Precision.HIGHEST)

    it = jax.nn.sigmoid(conv(xt, wx[0]) + bx[0] + conv(hide, wh[0]))
    ft = jax.nn.sigmoid(conv(xt, wx[1]) + bx[1] + conv(hide, wh[1]))
    ot = jax.nn.sigmoid(conv(xt, wx[2]) + bx[2] + conv(hide, wh[2]))
    gt = jnp.tanh(conv(xt, wx[3]) + bx[3] + conv(hide, wh[3]))
    cell_t = ft * cell + it * gt
    hide_t = ot * jnp.tanh(cell_t)
    return cell_t, hide_t


if __name__ == "__main__":
    in_c, ngf = 5, 32
    B, H, W = 2, 16, 16
    Cx = in_c + ngf                      # the module's xt already has in_c+ngf channels

    key = jax.random.PRNGKey(0)
    k0, k1, k2, k3, k4, k5 = jax.random.split(key, 6)

    xt = jax.random.normal(k0, (B, H, W, Cx), jnp.float32)
    cell_t_1 = jax.random.normal(k1, (B, H, W, ngf), jnp.float32)
    hide_t_1 = jax.random.normal(k2, (B, H, W, ngf), jnp.float32)

    # deterministic synthetic parameters (gate order i, f, o, g)
    wx = jax.random.normal(k3, (4, 9, Cx, ngf), jnp.float32) * 0.05
    wh = jax.random.normal(k4, (4, 9, ngf, ngf), jnp.float32) * 0.05
    bx = jax.random.normal(k5, (4, ngf), jnp.float32) * 0.05

    cell_t, hide_t = jax.block_until_ready(
        conv_lstm_forward(xt, cell_t_1, hide_t_1, wx, wh, bx))

    c_ref, h_ref = _reference(xt, cell_t_1, hide_t_1, wx, wh, bx)
    assert cell_t.shape == (B, H, W, ngf) and hide_t.shape == (B, H, W, ngf)
    # Kernel uses bf16 MXU operands (f32 accumulation, bias folded into bf16
    # weights); reference is f32 HIGHEST precision, so tolerance covers the
    # bf16 input rounding.  Intentional precision drop — fine for inference.
    assert jnp.allclose(cell_t, c_ref, atol=5e-2, rtol=2e-2)
    assert jnp.allclose(hide_t, h_ref, atol=5e-2, rtol=2e-2)

    print("KERNEL_OK")
</pallas_src>

<mosaic_0001>
module attributes {stable_mosaic.version = 11 : i64} {
  func.func @_convlstm_kernel(%arg0: i32, %arg1: memref<2x18x18x128xbf16, #tpu.memory_space<vmem>>, %arg2: memref<512x32xf32, #tpu.memory_space<vmem>>, %arg3: memref<1152x128xbf16, #tpu.memory_space<vmem>>, %arg4: memref<512x32xf32, #tpu.memory_space<vmem>>, %arg5: memref<512x32xf32, #tpu.memory_space<vmem>>, %arg6: memref<512x1152xbf16, #tpu.memory_space<vmem>>) attributes {dimension_semantics = [#tpu.dimension_semantics<arbitrary>], iteration_bounds = array<i64: 1>, scalar_prefetch = 0 : i64, scratch_operands = 1 : i64, tpu.core_type = #tpu.core_type<tc>, window_params = [{pipeline_mode = #tpu.pipeline_mode<synchronous>, transform_indices = @transform_0, window_bounds = array<i64: 2, 18, 18, 128>}, {pipeline_mode = #tpu.pipeline_mode<synchronous>, transform_indices = @transform_1, window_bounds = array<i64: 512, 32>}, {pipeline_mode = #tpu.pipeline_mode<synchronous>, transform_indices = @transform_2, window_bounds = array<i64: 1152, 128>}, {pipeline_mode = #tpu.pipeline_mode<synchronous>, transform_indices = @transform_3, window_bounds = array<i64: 512, 32>}, {pipeline_mode = #tpu.pipeline_mode<synchronous>, transform_indices = @transform_4, window_bounds = array<i64: 512, 32>}]} {
    %c0 = arith.constant 0 : index
    %c0_0 = arith.constant 0 : index
    %c0_1 = arith.constant 0 : index
    %c0_2 = arith.constant 0 : index
    %0 = vector.load %arg1[%c0, %c0_0, %c0_1, %c0_2] : memref<2x18x18x128xbf16, #tpu.memory_space<vmem>>, vector<1x16x16x128xbf16>
    %1 = vector.shape_cast %0 : vector<1x16x16x128xbf16> to vector<16x16x128xbf16>
    %2 = vector.shape_cast %1 : vector<16x16x128xbf16> to vector<256x128xbf16>
    %c0_3 = arith.constant 0 : index
    %c0_4 = arith.constant 0 : index
    %3 = vector.load %arg6[%c0_3, %c0_4] : memref<512x1152xbf16, #tpu.memory_space<vmem>>, vector<256x128xbf16>
    tpu.vector_store %arg6[%c0_3, %c0_4], %2 {strides = array<i32>} : memref<512x1152xbf16, #tpu.memory_space<vmem>>, vector<256x128xbf16>,
    %c0_5 = arith.constant 0 : index
    %c0_6 = arith.constant 0 : index
    %c1 = arith.constant 1 : index
    %c0_7 = arith.constant 0 : index
    %4 = vector.load %arg1[%c0_5, %c0_6, %c1, %c0_7] : memref<2x18x18x128xbf16, #tpu.memory_space<vmem>>, vector<1x16x16x128xbf16>
    %5 = vector.shape_cast %4 : vector<1x16x16x128xbf16> to vector<16x16x128xbf16>
    %6 = vector.shape_cast %5 : vector<16x16x128xbf16> to vector<256x128xbf16>
    %c0_8 = arith.constant 0 : index
    %c128 = arith.constant 128 : index
    %7 = vector.load %arg6[%c0_8, %c128] : memref<512x1152xbf16, #tpu.memory_space<vmem>>, vector<256x128xbf16>
    tpu.vector_store %arg6[%c0_8, %c128], %6 {strides = array<i32>} : memref<512x1152xbf16, #tpu.memory_space<vmem>>, vector<256x128xbf16>,
    %c0_9 = arith.constant 0 : index
    %c0_10 = arith.constant 0 : index
    %c2 = arith.constant 2 : index
    %c0_11 = arith.constant 0 : index
    %8 = vector.load %arg1[%c0_9, %c0_10, %c2, %c0_11] : memref<2x18x18x128xbf16, #tpu.memory_space<vmem>>, vector<1x16x16x128xbf16>
    %9 = vector.shape_cast %8 : vector<1x16x16x128xbf16> to vector<16x16x128xbf16>
    %10 = vector.shape_cast %9 : vector<16x16x128xbf16> to vector<256x128xbf16>
    %c0_12 = arith.constant 0 : index
    %c256 = arith.constant 256 : index
    %11 = vector.load %arg6[%c0_12, %c256] : memref<512x1152xbf16, #tpu.memory_space<vmem>>, vector<256x128xbf16>
    tpu.vector_store %arg6[%c0_12, %c256], %10 {strides = array<i32>} : memref<512x1152xbf16, #tpu.memory_space<vmem>>, vector<256x128xbf16>,
    %c0_13 = arith.constant 0 : index
    %c1_14 = arith.constant 1 : index
    %c0_15 = arith.constant 0 : index
    %c0_16 = arith.constant 0 : index
    %12 = vector.load %arg1[%c0_13, %c1_14, %c0_15, %c0_16] : memref<2x18x18x128xbf16, #tpu.memory_space<vmem>>, vector<1x16x16x128xbf16>
    %13 = vector.shape_cast %12 : vector<1x16x16x128xbf16> to vector<16x16x128xbf16>
    %14 = vector.shape_cast %13 : vector<16x16x128xbf16> to vector<256x128xbf16>
    %c0_17 = arith.constant 0 : index
    %c384 = arith.constant 384 : index
    %15 = vector.load %arg6[%c0_17, %c384] : memref<512x1152xbf16, #tpu.memory_space<vmem>>, vector<256x128xbf16>
    tpu.vector_store %arg6[%c0_17, %c384], %14 {strides = array<i32>} : memref<512x1152xbf16, #tpu.memory_space<vmem>>, vector<256x128xbf16>,
    %c0_18 = arith.constant 0 : index
    %c1_19 = arith.constant 1 : index
    %c1_20 = arith.constant 1 : index
    %c0_21 = arith.constant 0 : index
    %16 = vector.load %arg1[%c0_18, %c1_19, %c1_20, %c0_21] : memref<2x18x18x128xbf16, #tpu.memory_space<vmem>>, vector<1x16x16x128xbf16>
    %17 = vector.shape_cast %16 : vector<1x16x16x128xbf16> to vector<16x16x128xbf16>
    %18 = vector.shape_cast %17 : vector<16x16x128xbf16> to vector<256x128xbf16>
    %c0_22 = arith.constant 0 : index
    %c512 = arith.constant 512 : index
    %19 = vector.load %arg6[%c0_22, %c512] : memref<512x1152xbf16, #tpu.memory_space<vmem>>, vector<256x128xbf16>
    tpu.vector_store %arg6[%c0_22, %c512], %18 {strides = array<i32>} : memref<512x1152xbf16, #tpu.memory_space<vmem>>, vector<256x128xbf16>,
    %c0_23 = arith.constant 0 : index
    %c1_24 = arith.constant 1 : index
    %c2_25 = arith.constant 2 : index
    %c0_26 = arith.constant 0 : index
    %20 = vector.load %arg1[%c0_23, %c1_24, %c2_25, %c0_26] : memref<2x18x18x128xbf16, #tpu.memory_space<vmem>>, vector<1x16x16x128xbf16>
    %21 = vector.shape_cast %20 : vector<1x16x16x128xbf16> to vector<16x16x128xbf16>
    %22 = vector.shape_cast %21 : vector<16x16x128xbf16> to vector<256x128xbf16>
    %c0_27 = arith.constant 0 : index
    %c640 = arith.constant 640 : index
    %23 = vector.load %arg6[%c0_27, %c640] : memref<512x1152xbf16, #tpu.memory_space<vmem>>, vector<256x128xbf16>
    tpu.vector_store %arg6[%c0_27, %c640], %22 {strides = array<i32>} : memref<512x1152xbf16, #tpu.memory_space<vmem>>, vector<256x128xbf16>,
    %c0_28 = arith.constant 0 : index
    %c2_29 = arith.constant 2 : index
    %c0_30 = arith.constant 0 : index
    %c0_31 = arith.constant 0 : index
    %24 = vector.load %arg1[%c0_28, %c2_29, %c0_30, %c0_31] : memref<2x18x18x128xbf16, #tpu.memory_space<vmem>>, vector<1x16x16x128xbf16>
    %25 = vector.shape_cast %24 : vector<1x16x16x128xbf16> to vector<16x16x128xbf16>
    %26 = vector.shape_cast %25 : vector<16x16x128xbf16> to vector<256x128xbf16>
    %c0_32 = arith.constant 0 : index
    %c768 = arith.constant 768 : index
    %27 = vector.load %arg6[%c0_32, %c768] : memref<512x1152xbf16, #tpu.memory_space<vmem>>, vector<256x128xbf16>
    tpu.vector_store %arg6[%c0_32, %c768], %26 {strides = array<i32>} : memref<512x1152xbf16, #tpu.memory_space<vmem>>, vector<256x128xbf16>,
    %c0_33 = arith.constant 0 : index
    %c2_34 = arith.constant 2 : index
    %c1_35 = arith.constant 1 : index
    %c0_36 = arith.constant 0 : index
    %28 = vector.load %arg1[%c0_33, %c2_34, %c1_35, %c0_36] : memref<2x18x18x128xbf16, #tpu.memory_space<vmem>>, vector<1x16x16x128xbf16>
    %29 = vector.shape_cast %28 : vector<1x16x16x128xbf16> to vector<16x16x128xbf16>
    %30 = vector.shape_cast %29 : vector<16x16x128xbf16> to vector<256x128xbf16>
    %c0_37 = arith.constant 0 : index
    %c896 = arith.constant 896 : index
    %31 = vector.load %arg6[%c0_37, %c896] : memref<512x1152xbf16, #tpu.memory_space<vmem>>, vector<256x128xbf16>
    tpu.vector_store %arg6[%c0_37, %c896], %30 {strides = array<i32>} : memref<512x1152xbf16, #tpu.memory_space<vmem>>, vector<256x128xbf16>,
    %c0_38 = arith.constant 0 : index
    %c2_39 = arith.constant 2 : index
    %c2_40 = arith.constant 2 : index
    %c0_41 = arith.constant 0 : index
    %32 = vector.load %arg1[%c0_38, %c2_39, %c2_40, %c0_41] : memref<2x18x18x128xbf16, #tpu.memory_space<vmem>>, vector<1x16x16x128xbf16>
    %33 = vector.shape_cast %32 : vector<1x16x16x128xbf16> to vector<16x16x128xbf16>
    %34 = vector.shape_cast %33 : vector<16x16x128xbf16> to vector<256x128xbf16>
    %c0_42 = arith.constant 0 : index
    %c1024 = arith.constant 1024 : index
    %35 = vector.load %arg6[%c0_42, %c1024] : memref<512x1152xbf16, #tpu.memory_space<vmem>>, vector<256x128xbf16>
    tpu.vector_store %arg6[%c0_42, %c1024], %34 {strides = array<i32>} : memref<512x1152xbf16, #tpu.memory_space<vmem>>, vector<256x128xbf16>,
    %c1_43 = arith.constant 1 : index
    %c0_44 = arith.constant 0 : index
    %c0_45 = arith.constant 0 : index
    %c0_46 = arith.constant 0 : index
    %36 = vector.load %arg1[%c1_43, %c0_44, %c0_45, %c0_46] : memref<2x18x18x128xbf16, #tpu.memory_space<vmem>>, vector<1x16x16x128xbf16>
    %37 = vector.shape_cast %36 : vector<1x16x16x128xbf16> to vector<16x16x128xbf16>
    %38 = vector.shape_cast %37 : vector<16x16x128xbf16> to vector<256x128xbf16>
    %c256_47 = arith.constant 256 : index
    %c0_48 = arith.constant 0 : index
    %39 = vector.load %arg6[%c256_47, %c0_48] : memref<512x1152xbf16, #tpu.memory_space<vmem>>, vector<256x128xbf16>
    tpu.vector_store %arg6[%c256_47, %c0_48], %38 {strides = array<i32>} : memref<512x1152xbf16, #tpu.memory_space<vmem>>, vector<256x128xbf16>,
    %c1_49 = arith.constant 1 : index
    %c0_50 = arith.constant 0 : index
    %c1_51 = arith.constant 1 : index
    %c0_52 = arith.constant 0 : index
    %40 = vector.load %arg1[%c1_49, %c0_50, %c1_51, %c0_52] : memref<2x18x18x128xbf16, #tpu.memory_space<vmem>>, vector<1x16x16x128xbf16>
    %41 = vector.shape_cast %40 : vector<1x16x16x128xbf16> to vector<16x16x128xbf16>
    %42 = vector.shape_cast %41 : vector<16x16x128xbf16> to vector<256x128xbf16>
    %c256_53 = arith.constant 256 : index
    %c128_54 = arith.constant 128 : index
    %43 = vector.load %arg6[%c256_53, %c128_54] : memref<512x1152xbf16, #tpu.memory_space<vmem>>, vector<256x128xbf16>
    tpu.vector_store %arg6[%c256_53, %c128_54], %42 {strides = array<i32>} : memref<512x1152xbf16, #tpu.memory_space<vmem>>, vector<256x128xbf16>,
    %c1_55 = arith.constant 1 : index
    %c0_56 = arith.constant 0 : index
    %c2_57 = arith.constant 2 : index
    %c0_58 = arith.constant 0 : index
    %44 = vector.load %arg1[%c1_55, %c0_56, %c2_57, %c0_58] : memref<2x18x18x128xbf16, #tpu.memory_space<vmem>>, vector<1x16x16x128xbf16>
    %45 = vector.shape_cast %44 : vector<1x16x16x128xbf16> to vector<16x16x128xbf16>
    %46 = vector.shape_cast %45 : vector<16x16x128xbf16> to vector<256x128xbf16>
    %c256_59 = arith.constant 256 : index
    %c256_60 = arith.constant 256 : index
    %47 = vector.load %arg6[%c256_59, %c256_60] : memref<512x1152xbf16, #tpu.memory_space<vmem>>, vector<256x128xbf16>
    tpu.vector_store %arg6[%c256_59, %c256_60], %46 {strides = array<i32>} : memref<512x1152xbf16, #tpu.memory_space<vmem>>, vector<256x128xbf16>,
    %c1_61 = arith.constant 1 : index
    %c1_62 = arith.constant 1 : index
    %c0_63 = arith.constant 0 : index
    %c0_64 = arith.constant 0 : index
    %48 = vector.load %arg1[%c1_61, %c1_62, %c0_63, %c0_64] : memref<2x18x18x128xbf16, #tpu.memory_space<vmem>>, vector<1x16x16x128xbf16>
    %49 = vector.shape_cast %48 : vector<1x16x16x128xbf16> to vector<16x16x128xbf16>
    %50 = vector.shape_cast %49 : vector<16x16x128xbf16> to vector<256x128xbf16>
    %c256_65 = arith.constant 256 : index
    %c384_66 = arith.constant 384 : index
    %51 = vector.load %arg6[%c256_65, %c384_66] : memref<512x1152xbf16, #tpu.memory_space<vmem>>, vector<256x128xbf16>
    tpu.vector_store %arg6[%c256_65, %c384_66], %50 {strides = array<i32>} : memref<512x1152xbf16, #tpu.memory_space<vmem>>, vector<256x128xbf16>,
    %c1_67 = arith.constant 1 : index
    %c1_68 = arith.constant 1 : index
    %c1_69 = arith.constant 1 : index
    %c0_70 = arith.constant 0 : index
    %52 = vector.load %arg1[%c1_67, %c1_68, %c1_69, %c0_70] : memref<2x18x18x128xbf16, #tpu.memory_space<vmem>>, vector<1x16x16x128xbf16>
    %53 = vector.shape_cast %52 : vector<1x16x16x128xbf16> to vector<16x16x128xbf16>
    %54 = vector.shape_cast %53 : vector<16x16x128xbf16> to vector<256x128xbf16>
    %c256_71 = arith.constant 256 : index
    %c512_72 = arith.constant 512 : index
    %55 = vector.load %arg6[%c256_71, %c512_72] : memref<512x1152xbf16, #tpu.memory_space<vmem>>, vector<256x128xbf16>
    tpu.vector_store %arg6[%c256_71, %c512_72], %54 {strides = array<i32>} : memref<512x1152xbf16, #tpu.memory_space<vmem>>, vector<256x128xbf16>,
    %c1_73 = arith.constant 1 : index
    %c1_74 = arith.constant 1 : index
    %c2_75 = arith.constant 2 : index
    %c0_76 = arith.constant 0 : index
    %56 = vector.load %arg1[%c1_73, %c1_74, %c2_75, %c0_76] : memref<2x18x18x128xbf16, #tpu.memory_space<vmem>>, vector<1x16x16x128xbf16>
    %57 = vector.shape_cast %56 : vector<1x16x16x128xbf16> to vector<16x16x128xbf16>
    %58 = vector.shape_cast %57 : vector<16x16x128xbf16> to vector<256x128xbf16>
    %c256_77 = arith.constant 256 : index
    %c640_78 = arith.constant 640 : index
    %59 = vector.load %arg6[%c256_77, %c640_78] : memref<512x1152xbf16, #tpu.memory_space<vmem>>, vector<256x128xbf16>
    tpu.vector_store %arg6[%c256_77, %c640_78], %58 {strides = array<i32>} : memref<512x1152xbf16, #tpu.memory_space<vmem>>, vector<256x128xbf16>,
    %c1_79 = arith.constant 1 : index
    %c2_80 = arith.constant 2 : index
    %c0_81 = arith.constant 0 : index
    %c0_82 = arith.constant 0 : index
    %60 = vector.load %arg1[%c1_79, %c2_80, %c0_81, %c0_82] : memref<2x18x18x128xbf16, #tpu.memory_space<vmem>>, vector<1x16x16x128xbf16>
    %61 = vector.shape_cast %60 : vector<1x16x16x128xbf16> to vector<16x16x128xbf16>
    %62 = vector.shape_cast %61 : vector<16x16x128xbf16> to vector<256x128xbf16>
    %c256_83 = arith.constant 256 : index
    %c768_84 = arith.constant 768 : index
    %63 = vector.load %arg6[%c256_83, %c768_84] : memref<512x1152xbf16, #tpu.memory_space<vmem>>, vector<256x128xbf16>
    tpu.vector_store %arg6[%c256_83, %c768_84], %62 {strides = array<i32>} : memref<512x1152xbf16, #tpu.memory_space<vmem>>, vector<256x128xbf16>,
    %c1_85 = arith.constant 1 : index
    %c2_86 = arith.constant 2 : index
    %c1_87 = arith.constant 1 : index
    %c0_88 = arith.constant 0 : index
    %64 = vector.load %arg1[%c1_85, %c2_86, %c1_87, %c0_88] : memref<2x18x18x128xbf16, #tpu.memory_space<vmem>>, vector<1x16x16x128xbf16>
    %65 = vector.shape_cast %64 : vector<1x16x16x128xbf16> to vector<16x16x128xbf16>
    %66 = vector.shape_cast %65 : vector<16x16x128xbf16> to vector<256x128xbf16>
    %c256_89 = arith.constant 256 : index
    %c896_90 = arith.constant 896 : index
    %67 = vector.load %arg6[%c256_89, %c896_90] : memref<512x1152xbf16, #tpu.memory_space<vmem>>, vector<256x128xbf16>
    tpu.vector_store %arg6[%c256_89, %c896_90], %66 {strides = array<i32>} : memref<512x1152xbf16, #tpu.memory_space<vmem>>, vector<256x128xbf16>,
    %c1_91 = arith.constant 1 : index
    %c2_92 = arith.constant 2 : index
    %c2_93 = arith.constant 2 : index
    %c0_94 = arith.constant 0 : index
    %68 = vector.load %arg1[%c1_91, %c2_92, %c2_93, %c0_94] : memref<2x18x18x128xbf16, #tpu.memory_space<vmem>>, vector<1x16x16x128xbf16>
    %69 = vector.shape_cast %68 : vector<1x16x16x128xbf16> to vector<16x16x128xbf16>
    %70 = vector.shape_cast %69 : vector<16x16x128xbf16> to vector<256x128xbf16>
    %c256_95 = arith.constant 256 : index
    %c1024_96 = arith.constant 1024 : index
    %71 = vector.load %arg6[%c256_95, %c1024_96] : memref<512x1152xbf16, #tpu.memory_space<vmem>>, vector<256x128xbf16>
    tpu.vector_store %arg6[%c256_95, %c1024_96], %70 {strides = array<i32>} : memref<512x1152xbf16, #tpu.memory_space<vmem>>, vector<256x128xbf16>,
    %c0_97 = arith.constant 0 : index
    %c0_98 = arith.constant 0 : index
    %72 = vector.load %arg6[%c0_97, %c0_98] : memref<512x1152xbf16, #tpu.memory_space<vmem>>, vector<512x1152xbf16>
    %c0_99 = arith.constant 0 : index
    %c0_100 = arith.constant 0 : index
    %73 = vector.load %arg3[%c0_99, %c0_100] : memref<1152x128xbf16, #tpu.memory_space<vmem>>, vector<1152x128xbf16>
    %cst = arith.constant dense<0.000000e+00> : vector<512x128xf32>
    %74 = tpu.matmul %72, %73, %cst {dimension_numbers = #tpu.dot_dimension_numbers<[1], [0], [0], [1], [0, 0, 1, 1], [], []>} : vector<512x1152xbf16>, vector<1152x128xbf16>, vector<512x128xf32> -> vector<512x128xf32>
    %75 = tpu.iota {dimensions = array<i32: 1>} : vector<512x128xi32>
    %c96_i32 = arith.constant 96 : i32
    %76 = vector.broadcast %c96_i32 : i32 to vector<512x128xi32>
    %77 = arith.cmpi slt, %75, %76 : vector<512x128xi32>
    %78 = arith.negf %74 : vector<512x128xf32>
    %79 = math.exp %78 : vector<512x128xf32>
    %cst_101 = arith.constant 1.000000e+00 : f32
    %80 = vector.broadcast %cst_101 : f32 to vector<512x128xf32>
    %81 = arith.addf %80, %79 : vector<512x128xf32>
    %82 = arith.divf %80, %81 : vector<512x128xf32>
    %83 = math.tanh %74 : vector<512x128xf32>
    %84 = arith.select %77, %82, %83 : vector<512x128xi1>, vector<512x128xf32>
    %85 = vector.extract_strided_slice %84 {offsets = [0, 0], sizes = [512, 32], strides = [1, 1]} : vector<512x128xf32> to vector<512x32xf32>
    %86 = vector.extract_strided_slice %84 {offsets = [0, 32], sizes = [512, 32], strides = [1, 1]} : vector<512x128xf32> to vector<512x32xf32>
    %87 = vector.extract_strided_slice %84 {offsets = [0, 64], sizes = [512, 32], strides = [1, 1]} : vector<512x128xf32> to vector<512x32xf32>
    %88 = vector.extract_strided_slice %84 {offsets = [0, 96], sizes = [512, 32], strides = [1, 1]} : vector<512x128xf32> to vector<512x32xf32>
    %c0_102 = arith.constant 0 : index
    %c0_103 = arith.constant 0 : index
    %89 = vector.load %arg2[%c0_102, %c0_103] : memref<512x32xf32, #tpu.memory_space<vmem>>, vector<512x32xf32>
    %90 = arith.mulf %86, %89 : vector<512x32xf32>
    %91 = arith.mulf %85, %88 : vector<512x32xf32>
    %92 = arith.addf %90, %91 : vector<512x32xf32>
    %93 = math.tanh %92 : vector<512x32xf32>
    %94 = arith.mulf %87, %93 : vector<512x32xf32>
    %c0_104 = arith.constant 0 : index
    %c0_105 = arith.constant 0 : index
    %95 = vector.load %arg4[%c0_104, %c0_105] : memref<512x32xf32, #tpu.memory_space<vmem>>, vector<512x32xf32>
    tpu.vector_store %arg4[%c0_104, %c0_105], %92 {strides = array<i32>} : memref<512x32xf32, #tpu.memory_space<vmem>>, vector<512x32xf32>,
    %c0_106 = arith.constant 0 : index
    %c0_107 = arith.constant 0 : index
    %96 = vector.load %arg5[%c0_106, %c0_107] : memref<512x32xf32, #tpu.memory_space<vmem>>, vector<512x32xf32>
    tpu.vector_store %arg5[%c0_106, %c0_107], %94 {strides = array<i32>} : memref<512x32xf32, #tpu.memory_space<vmem>>, vector<512x32xf32>,
    return
  }
  func.func @transform_0(%arg0: i32) -> (i32, i32, i32, i32) {
    %c0_i32 = arith.constant 0 : i32
    %c0_i32_0 = arith.constant 0 : i32
    %c0_i32_1 = arith.constant 0 : i32
    %c0_i32_2 = arith.constant 0 : i32
    %c0_i32_3 = arith.constant 0 : i32
    return %c0_i32, %c0_i32_0, %c0_i32_1, %c0_i32_2 : i32, i32, i32, i32
  }
  func.func @transform_1(%arg0: i32) -> (i32, i32) {
    %c0_i32 = arith.constant 0 : i32
    %c0_i32_0 = arith.constant 0 : i32
    %c0_i32_1 = arith.constant 0 : i32
    return %c0_i32, %c0_i32_0 : i32, i32
  }
  func.func @transform_2(%arg0: i32) -> (i32, i32) {
    %c0_i32 = arith.constant 0 : i32
    %c0_i32_0 = arith.constant 0 : i32
    %c0_i32_1 = arith.constant 0 : i32
    return %c0_i32, %c0_i32_0 : i32, i32
  }
  func.func @transform_3(%arg0: i32) -> (i32, i32) {
    %c0_i32 = arith.constant 0 : i32
    %c0_i32_0 = arith.constant 0 : i32
    %c0_i32_1 = arith.constant 0 : i32
    return %c0_i32, %c0_i32_0 : i32, i32
  }
  func.func @transform_4(%arg0: i32) -> (i32, i32) {
    %c0_i32 = arith.constant 0 : i32
    %c0_i32_0 = arith.constant 0 : i32
    %c0_i32_1 = arith.constant 0 : i32
    return %c0_i32, %c0_i32_0 : i32, i32
  }
}

</mosaic_0001>

<llo_original>
// kernel: tpu_custom_call.1
$region0: #{tpu_custom_call.1}
  #allocation0 [shape = 'u32[]', space=smem, size = 0x4, offset = 0x4, fixed_abs, tag = 'smem constant byte address 0x4 - core index']
  #allocation1 [shape = 'u32[144,128]{1,0:T(1,128)}', space=vmem, size = 0x12000, scoped, tag = 'internal scratch']
  #allocation2 [shape = 'bf16[512,1152]{1,0:T(16,128)(2,1)}', space=vmem, size = 0x120000, scoped, tag = 'scratch operand']
  %s0 = inlined_call_operand.vmem [shape: bf16[2,18,18,128], index: 0, kind: input, shape index: {}]
  %s1 = inlined_call_operand.vmem [shape: f32[512,32], index: 1, kind: input, shape index: {}]
  %s2 = inlined_call_operand.vmem [shape: bf16[1152,128], index: 2, kind: input, shape index: {}]
  %s3 = inlined_call_operand.vmem [shape: f32[512,32], index: 3, kind: output, shape index: {0}]
  %s4 = inlined_call_operand.vmem [shape: f32[512,32], index: 4, kind: output, shape index: {1}]
  %5 = xla_tuple %s3, %s4
  %s6 = sld [smem:[#allocation0]]
  $region30: #{tpu_custom_call.1} parent=0
    _
  %s8 = ssub.s32 1, %s6
  %s9 = scalar_select 0, %s8, %s6
  // Predicated region
  $region2: #{tpu_custom_call.1} parent=0 // pred_check
    _
  $region3: #{tpu_custom_call.1} parent=0 // pred_check_branch
    %11 = sbr.rel (0) target = $region5
  $region4: #{tpu_custom_call.1} parent=0 // pred_region
    _
  $region5: #{tpu_custom_call.1} parent=0 // pred_fallthru
    _
  // Predicated region
  $region6: #{tpu_custom_call.1} parent=0 // pred_check
    _
  $region7: #{tpu_custom_call.1} parent=0 // pred_check_branch
    %13 = sbr.rel (0) target = $region9
  $region8: #{tpu_custom_call.1} parent=0 // pred_region
    _
  $region9: #{tpu_custom_call.1} parent=0 // pred_fallthru
    _
  // Predicated region
  $region10: #{tpu_custom_call.1} parent=0 // pred_check
    _
  $region11: #{tpu_custom_call.1} parent=0 // pred_check_branch
    %15 = sbr.rel (0) target = $region13
  $region12: #{tpu_custom_call.1} parent=0 // pred_region
    _
  $region13: #{tpu_custom_call.1} parent=0 // pred_fallthru
    _
  %v17 = vld [vmem:[%s0] sm:$0xf]
  %v18 = vld [vmem:[%s0 + $0x4] sm:$0xf]
  %v19 = vld [vmem:[%s0 + $0xc] sm:$0xf]
  %v20 = vld [vmem:[%s0 + $0x10] sm:$0xf]
  %v21 = vld [vmem:[%s0 + $0x18] sm:$0xf]
  %v22 = vld [vmem:[%s0 + $0x1c] sm:$0xf]
  %v23 = vld [vmem:[%s0 + $0x24] sm:$0xf]
  %v24 = vld [vmem:[%s0 + $0x28] sm:$0xf]
  %v25 = vld [vmem:[%s0 + $0x30] sm:$0xf]
  %v26 = vld [vmem:[%s0 + $0x34] sm:$0xf]
  %v27 = vld [vmem:[%s0 + $0x3c] sm:$0xf]
  %v28 = vld [vmem:[%s0 + $0x40] sm:$0xf]
  %v29 = vld [vmem:[%s0 + $0x48] sm:$0xf]
  %v30 = vld [vmem:[%s0 + $0x4c] sm:$0xf]
  %v31 = vld [vmem:[%s0 + $0x54] sm:$0xf]
  %v32 = vld [vmem:[%s0 + $0x58] sm:$0xf]
  %v33 = vld [vmem:[%s0 + $0x60] sm:$0xf]
  %v34 = vld [vmem:[%s0 + $0x64] sm:$0xf]
  %v35 = vld [vmem:[%s0 + $0x6c] sm:$0xf]
  %v36 = vld [vmem:[%s0 + $0x70] sm:$0xf]
  %v37 = vld [vmem:[%s0 + $0x78] sm:$0xf]
  %v38 = vld [vmem:[%s0 + $0x7c] sm:$0xf]
  %v39 = vld [vmem:[%s0 + $0x84] sm:$0xf]
  %v40 = vld [vmem:[%s0 + $0x88] sm:$0xf]
  %v41 = vld [vmem:[%s0 + $0x90] sm:$0xf]
  %v42 = vld [vmem:[%s0 + $0x94] sm:$0xf]
  %v43 = vld [vmem:[%s0 + $0x9c] sm:$0xf]
  %v44 = vld [vmem:[%s0 + $0xa0] sm:$0xf]
  %v45 = vld [vmem:[%s0 + $0xa8] sm:$0xf]
  %v46 = vld [vmem:[%s0 + $0xac] sm:$0xf]
  %v47 = vld [vmem:[%s0 + $0xb4] sm:$0xf]
  %v48 = vld [vmem:[%s0 + $0xb8] sm:$0xf]
  %v81 = vunpack.c.l.b16 %v17
  %v82 = vunpack.c.l.b16 %v18
  %v83 = vunpack.c.l.b16 %v19
  %v84 = vunpack.c.l.b16 %v20
  %v85 = vunpack.c.l.b16 %v21
  %v86 = vunpack.c.l.b16 %v22
  %v87 = vunpack.c.l.b16 %v23
  %v88 = vunpack.c.l.b16 %v24
  %v89 = vunpack.c.l.b16 %v25
  %v90 = vunpack.c.l.b16 %v26
  %v91 = vunpack.c.l.b16 %v27
  %v92 = vunpack.c.l.b16 %v28
  %v93 = vunpack.c.l.b16 %v29
  %v94 = vunpack.c.l.b16 %v30
  %v95 = vunpack.c.l.b16 %v31
  %v96 = vunpack.c.l.b16 %v32
  %v97 = vunpack.c.l.b16 %v33
  %v98 = vunpack.c.l.b16 %v34
  %v99 = vunpack.c.l.b16 %v35
  %v100 = vunpack.c.l.b16 %v36
  %v101 = vunpack.c.l.b16 %v37
  %v102 = vunpack.c.l.b16 %v38
  %v103 = vunpack.c.l.b16 %v39
  %v104 = vunpack.c.l.b16 %v40
  %v105 = vunpack.c.l.b16 %v41
  %v106 = vunpack.c.l.b16 %v42
  %v107 = vunpack.c.l.b16 %v43
  %v108 = vunpack.c.l.b16 %v44
  %v109 = vunpack.c.l.b16 %v45
  %v110 = vunpack.c.l.b16 %v46
  %v111 = vunpack.c.l.b16 %v47
  %v112 = vunpack.c.l.b16 %v48
  %v113 = vpack.c.b16 %v82, %v81
  %v114 = vpack.c.b16 %v84, %v83
  %v115 = vpack.c.b16 %v86, %v85
  %v116 = vpack.c.b16 %v88, %v87
  %v117 = vpack.c.b16 %v90, %v89
  %v118 = vpack.c.b16 %v92, %v91
  %v119 = vpack.c.b16 %v94, %v93
  %v120 = vpack.c.b16 %v96, %v95
  %v121 = vpack.c.b16 %v98, %v97
  %v122 = vpack.c.b16 %v100, %v99
  %v123 = vpack.c.b16 %v102, %v101
  %v124 = vpack.c.b16 %v104, %v103
  %v125 = vpack.c.b16 %v106, %v105
  %v126 = vpack.c.b16 %v108, %v107
  %v127 = vpack.c.b16 %v110, %v109
  %v128 = vpack.c.b16 %v112, %v111
  %145 = vst [vmem:[#allocation2] sm:$0xff] %v113
  %146 = vst [vmem:[#allocation2 + $0x48] sm:$0xff] %v114
  %147 = vst [vmem:[#allocation2 + $0x90] sm:$0xff] %v115
  %148 = vst [vmem:[#allocation2 + $0xd8] sm:$0xff] %v116
  %149 = vst [vmem:[#allocation2 + $0x120] sm:$0xff] %v117
  %150 = vst [vmem:[#allocation2 + $0x168] sm:$0xff] %v118
  %151 = vst [vmem:[#allocation2 + $0x1b0] sm:$0xff] %v119
  %152 = vst [vmem:[#allocation2 + $0x1f8] sm:$0xff] %v120
  %153 = vst [vmem:[#allocation2 + $0x240] sm:$0xff] %v121
  %154 = vst [vmem:[#allocation2 + $0x288] sm:$0xff] %v122
  %155 = vst [vmem:[#allocation2 + $0x2d0] sm:$0xff] %v123
  %156 = vst [vmem:[#allocation2 + $0x318] sm:$0xff] %v124
  %157 = vst [vmem:[#allocation2 + $0x360] sm:$0xff] %v125
  %158 = vst [vmem:[#allocation2 + $0x3a8] sm:$0xff] %v126
  %159 = vst [vmem:[#allocation2 + $0x3f0] sm:$0xff] %v127
  %160 = vst [vmem:[#allocation2 + $0x438] sm:$0xff] %v128
  %v161 = vld [vmem:[%s0] sm:$0xf]
  %v162 = vld [vmem:[%s0 + $0x4] sm:$0xf]
  %v163 = vld [vmem:[%s0 + $0x8] sm:$0x1]
  %v164 = vld [vmem:[%s0 + $0xc] sm:$0xf]
  %v165 = vld [vmem:[%s0 + $0x10] sm:$0xf]
  %v166 = vld [vmem:[%s0 + $0x14] sm:$0x1]
  %v167 = vld [vmem:[%s0 + $0x18] sm:$0xf]
  %v168 = vld [vmem:[%s0 + $0x1c] sm:$0xf]
  %v169 = vld [vmem:[%s0 + $0x20] sm:$0x1]
  %v170 = vld [vmem:[%s0 + $0x24] sm:$0xf]
  %v171 = vld [vmem:[%s0 + $0x28] sm:$0xf]
  %v172 = vld [vmem:[%s0 + $0x2c] sm:$0x1]
  %v173 = vld [vmem:[%s0 + $0x30] sm:$0xf]
  %v174 = vld [vmem:[%s0 + $0x34] sm:$0xf]
  %v175 = vld [vmem:[%s0 + $0x38] sm:$0x1]
  %v176 = vld [vmem:[%s0 + $0x3c] sm:$0xf]
  %v177 = vld [vmem:[%s0 + $0x40] sm:$0xf]
  %v178 = vld [vmem:[%s0 + $0x44] sm:$0x1]
  %v179 = vld [vmem:[%s0 + $0x48] sm:$0xf]
  %v180 = vld [vmem:[%s0 + $0x4c] sm:$0xf]
  %v181 = vld [vmem:[%s0 + $0x50] sm:$0x1]
  %v182 = vld [vmem:[%s0 + $0x54] sm:$0xf]
  %v183 = vld [vmem:[%s0 + $0x58] sm:$0xf]
  %v184 = vld [vmem:[%s0 + $0x5c] sm:$0x1]
  %v185 = vld [vmem:[%s0 + $0x60] sm:$0xf]
  %v186 = vld [vmem:[%s0 + $0x64] sm:$0xf]
  %v187 = vld [vmem:[%s0 + $0x68] sm:$0x1]
  %v188 = vld [vmem:[%s0 + $0x6c] sm:$0xf]
  %v189 = vld [vmem:[%s0 + $0x70] sm:$0xf]
  %v190 = vld [vmem:[%s0 + $0x74] sm:$0x1]
  %v191 = vld [vmem:[%s0 + $0x78] sm:$0xf]
  %v192 = vld [vmem:[%s0 + $0x7c] sm:$0xf]
  %v193 = vld [vmem:[%s0 + $0x80] sm:$0x1]
  %v194 = vld [vmem:[%s0 + $0x84] sm:$0xf]
  %v195 = vld [vmem:[%s0 + $0x88] sm:$0xf]
  %v196 = vld [vmem:[%s0 + $0x8c] sm:$0x1]
  %v197 = vld [vmem:[%s0 + $0x90] sm:$0xf]
  %v198 = vld [vmem:[%s0 + $0x94] sm:$0xf]
  %v199 = vld [vmem:[%s0 + $0x98] sm:$0x1]
  %v200 = vld [vmem:[%s0 + $0x9c] sm:$0xf]
  %v201 = vld [vmem:[%s0 + $0xa0] sm:$0xf]
  %v202 = vld [vmem:[%s0 + $0xa4] sm:$0x1]
  %v203 = vld [vmem:[%s0 + $0xa8] sm:$0xf]
  %v204 = vld [vmem:[%s0 + $0xac] sm:$0xf]
  %v205 = vld [vmem:[%s0 + $0xb0] sm:$0x1]
  %v206 = vld [vmem:[%s0 + $0xb4] sm:$0xf]
  %v207 = vld [vmem:[%s0 + $0xb8] sm:$0xf]
  %v208 = vld [vmem:[%s0 + $0xbc] sm:$0x1]
  %vm209 = vsmask.f32 3328
  %vm210 = vsmask.f32 7440
  %vm211 = vmor %vm209, %vm210
  %v213 = vshrl.u32 %v161, 16
  %v215 = vrot.slane %v213, 4
  %v216 = vshll.u32 %v161, 16
  %v218 = vrot.slane %v216, 5
  %v219 = vor.u32 %v215, %v218
  %v220 = vrot.slane %v219, 4
  %v222 = vshll.u32 %v162, 16
  %v224 = vrot.slane %v222, 5
  %v225 = vsel %vm211, %v220, %v224
  %v226 = vshrl.u32 %v162, 16
  %v228 = vrot.slane %v226, 4
  %v229 = vor.u32 %v228, %v224
  %v230 = vrot.slane %v229, 4
  %v232 = vshll.u32 %v163, 16
  %v234 = vrot.slane %v232, 5
  %v235 = vsel %vm211, %v230, %v234
  %v237 = vshrl.u32 %v164, 16
  %v239 = vrot.slane %v237, 4
  %v240 = vshll.u32 %v164, 16
  %v242 = vrot.slane %v240, 5
  %v243 = vor.u32 %v239, %v242
  %v244 = vrot.slane %v243, 4
  %v246 = vshll.u32 %v165, 16
  %v248 = vrot.slane %v246, 5
  %v249 = vsel %vm211, %v244, %v248
  %v250 = vshrl.u32 %v165, 16
  %v252 = vrot.slane %v250, 4
  %v253 = vor.u32 %v252, %v248
  %v254 = vrot.slane %v253, 4
  %v256 = vshll.u32 %v166, 16
  %v258 = vrot.slane %v256, 5
  %v259 = vsel %vm211, %v254, %v258
  %v261 = vshrl.u32 %v167, 16
  %v263 = vrot.slane %v261, 4
  %v264 = vshll.u32 %v167, 16
  %v266 = vrot.slane %v264, 5
  %v267 = vor.u32 %v263, %v266
  %v268 = vrot.slane %v267, 4
  %v270 = vshll.u32 %v168, 16
  %v272 = vrot.slane %v270, 5
  %v273 = vsel %vm211, %v268, %v272
  %v274 = vshrl.u32 %v168, 16
  %v276 = vrot.slane %v274, 4
  %v277 = vor.u32 %v276, %v272
  %v278 = vrot.slane %v277, 4
  %v280 = vshll.u32 %v169, 16
  %v282 = vrot.slane %v280, 5
  %v283 = vsel %vm211, %v278, %v282
  %v285 = vshrl.u32 %v170, 16
  %v287 = vrot.slane %v285, 4
  %v288 = vshll.u32 %v170, 16
  %v290 = vrot.slane %v288, 5
  %v291 = vor.u32 %v287, %v290
  %v292 = vrot.slane %v291, 4
  %v294 = vshll.u32 %v171, 16
  %v296 = vrot.slane %v294, 5
  %v297 = vsel %vm211, %v292, %v296
  %v298 = vshrl.u32 %v171, 16
  %v300 = vrot.slane %v298, 4
  %v301 = vor.u32 %v300, %v296
  %v302 = vrot.slane %v301, 4
  %v304 = vshll.u32 %v172, 16
  %v306 = vrot.slane %v304, 5
  %v307 = vsel %vm211, %v302, %v306
  %v309 = vshrl.u32 %v173, 16
  %v311 = vrot.slane %v309, 4
  %v312 = vshll.u32 %v173, 16
  %v314 = vrot.slane %v312, 5
  %v315 = vor.u32 %v311, %v314
  %v316 = vrot.slane %v315, 4
  %v318 = vshll.u32 %v174, 16
  %v320 = vrot.slane %v318, 5
  %v321 = vsel %vm211, %v316, %v320
  %v322 = vshrl.u32 %v174, 16
  %v324 = vrot.slane %v322, 4
  %v325 = vor.u32 %v324, %v320
  %v326 = vrot.slane %v325, 4
  %v328 = vshll.u32 %v175, 16
  %v330 = vrot.slane %v328, 5
  %v331 = vsel %vm211, %v326, %v330
  %v333 = vshrl.u32 %v176, 16
  %v335 = vrot.slane %v333, 4
  %v336 = vshll.u32 %v176, 16
  %v338 = vrot.slane %v336, 5
  %v339 = vor.u32 %v335, %v338
  %v340 = vrot.slane %v339, 4
  %v342 = vshll.u32 %v177, 16
  %v344 = vrot.slane %v342, 5
  %v345 = vsel %vm211, %v340, %v344
  %v346 = vshrl.u32 %v177, 16
  %v348 = vrot.slane %v346, 4
  %v349 = vor.u32 %v348, %v344
  %v350 = vrot.slane %v349, 4
  %v352 = vshll.u32 %v178, 16
  %v354 = vrot.slane %v352, 5
  %v355 = vsel %vm211, %v350, %v354
  %v357 = vshrl.u32 %v179, 16
  %v359 = vrot.slane %v357, 4
  %v360 = vshll.u32 %v179, 16
  %v362 = vrot.slane %v360, 5
  %v363 = vor.u32 %v359, %v362
  %v364 = vrot.slane %v363, 4
  %v366 = vshll.u32 %v180, 16
  %v368 = vrot.slane %v366, 5
  %v369 = vsel %vm211, %v364, %v368
  %v370 = vshrl.u32 %v180, 16
  %v372 = vrot.slane %v370, 4
  %v373 = vor.u32 %v372, %v368
  %v374 = vrot.slane %v373, 4
  %v376 = vshll.u32 %v181, 16
  %v378 = vrot.slane %v376, 5
  %v379 = vsel %vm211, %v374, %v378
  %v381 = vshrl.u32 %v182, 16
  %v383 = vrot.slane %v381, 4
  %v384 = vshll.u32 %v182, 16
  %v386 = vrot.slane %v384, 5
  %v387 = vor.u32 %v383, %v386
  %v388 = vrot.slane %v387, 4
  %v390 = vshll.u32 %v183, 16
  %v392 = vrot.slane %v390, 5
  %v393 = vsel %vm211, %v388, %v392
  %v394 = vshrl.u32 %v183, 16
  %v396 = vrot.slane %v394, 4
  %v397 = vor.u32 %v396, %v392
  %v398 = vrot.slane %v397, 4
  %v400 = vshll.u32 %v184, 16
  %v402 = vrot.slane %v400, 5
  %v403 = vsel %vm211, %v398, %v402
  %v405 = vshrl.u32 %v185, 16
  %v407 = vrot.slane %v405, 4
  %v408 = vshll.u32 %v185, 16
  %v410 = vrot.slane %v408, 5
  %v411 = vor.u32 %v407, %v410
  %v412 = vrot.slane %v411, 4
  %v414 = vshll.u32 %v186, 16
  %v416 = vrot.slane %v414, 5
  %v417 = vsel %vm211, %v412, %v416
  %v418 = vshrl.u32 %v186, 16
  %v420 = vrot.slane %v418, 4
  %v421 = vor.u32 %v420, %v416
  %v422 = vrot.slane %v421, 4
  %v424 = vshll.u32 %v187, 16
  %v426 = vrot.slane %v424, 5
  %v427 = vsel %vm211, %v422, %v426
  %v429 = vshrl.u32 %v188, 16
  %v431 = vrot.slane %v429, 4
  %v432 = vshll.u32 %v188, 16
  %v434 = vrot.slane %v432, 5
  %v435 = vor.u32 %v431, %v434
  %v436 = vrot.slane %v435, 4
  %v438 = vshll.u32 %v189, 16
  %v440 = vrot.slane %v438, 5
  %v441 = vsel %vm211, %v436, %v440
  %v442 = vshrl.u32 %v189, 16
  %v444 = vrot.slane %v442, 4
  %v445 = vor.u32 %v444, %v440
  %v446 = vrot.slane %v445, 4
  %v448 = vshll.u32 %v190, 16
  %v450 = vrot.slane %v448, 5
  %v451 = vsel %vm211, %v446, %v450
  %v453 = vshrl.u32 %v191, 16
  %v455 = vrot.slane %v453, 4
  %v456 = vshll.u32 %v191, 16
  %v458 = vrot.slane %v456, 5
  %v459 = vor.u32 %v455, %v458
  %v460 = vrot.slane %v459, 4
  %v462 = vshll.u32 %v192, 16
  %v464 = vrot.slane %v462, 5
  %v465 = vsel %vm211, %v460, %v464
  %v466 = vshrl.u32 %v192, 16
  %v468 = vrot.slane %v466, 4
  %v469 = vor.u32 %v468, %v464
  %v470 = vrot.slane %v469, 4
  %v472 = vshll.u32 %v193, 16
  %v474 = vrot.slane %v472, 5
  %v475 = vsel %vm211, %v470, %v474
  %v477 = vshrl.u32 %v194, 16
  %v479 = vrot.slane %v477, 4
  %v480 = vshll.u32 %v194, 16
  %v482 = vrot.slane %v480, 5
  %v483 = vor.u32 %v479, %v482
  %v484 = vrot.slane %v483, 4
  %v486 = vshll.u32 %v195, 16
  %v488 = vrot.slane %v486, 5
  %v489 = vsel %vm211, %v484, %v488
  %v490 = vshrl.u32 %v195, 16
  %v492 = vrot.slane %v490, 4
  %v493 = vor.u32 %v492, %v488
  %v494 = vrot.slane %v493, 4
  %v496 = vshll.u32 %v196, 16
  %v498 = vrot.slane %v496, 5
  %v499 = vsel %vm211, %v494, %v498
  %v501 = vshrl.u32 %v197, 16
  %v503 = vrot.slane %v501, 4
  %v504 = vshll.u32 %v197, 16
  %v506 = vrot.slane %v504, 5
  %v507 = vor.u32 %v503, %v506
  %v508 = vrot.slane %v507, 4
  %v510 = vshll.u32 %v198, 16
  %v512 = vrot.slane %v510, 5
  %v513 = vsel %vm211, %v508, %v512
  %v514 = vshrl.u32 %v198, 16
  %v516 = vrot.slane %v514, 4
  %v517 = vor.u32 %v516, %v512
  %v518 = vrot.slane %v517, 4
  %v520 = vshll.u32 %v199, 16
  %v522 = vrot.slane %v520, 5
  %v523 = vsel %vm211, %v518, %v522
  %v525 = vshrl.u32 %v200, 16
  %v527 = vrot.slane %v525, 4
  %v528 = vshll.u32 %v200, 16
  %v530 = vrot.slane %v528, 5
  %v531 = vor.u32 %v527, %v530
  %v532 = vrot.slane %v531, 4
  %v534 = vshll.u32 %v201, 16
  %v536 = vrot.slane %v534, 5
  %v537 = vsel %vm211, %v532, %v536
  %v538 = vshrl.u32 %v201, 16
  %v540 = vrot.slane %v538, 4
  %v541 = vor.u32 %v540, %v536
  %v542 = vrot.slane %v541, 4
  %v544 = vshll.u32 %v202, 16
  %v546 = vrot.slane %v544, 5
  %v547 = vsel %vm211, %v542, %v546
  %v549 = vshrl.u32 %v203, 16
  %v551 = vrot.slane %v549, 4
  %v552 = vshll.u32 %v203, 16
  %v554 = vrot.slane %v552, 5
  %v555 = vor.u32 %v551, %v554
  %v556 = vrot.slane %v555, 4
  %v558 = vshll.u32 %v204, 16
  %v560 = vrot.slane %v558, 5
  %v561 = vsel %vm211, %v556, %v560
  %v562 = vshrl.u32 %v204, 16
  %v564 = vrot.slane %v562, 4
  %v565 = vor.u32 %v564, %v560
  %v566 = vrot.slane %v565, 4
  %v568 = vshll.u32 %v205, 16
  %v570 = vrot.slane %v568, 5
  %v571 = vsel %vm211, %v566, %v570
  %v573 = vshrl.u32 %v206, 16
  %v575 = vrot.slane %v573, 4
  %v576 = vshll.u32 %v206, 16
  %v578 = vrot.slane %v576, 5
  %v579 = vor.u32 %v575, %v578
  %v580 = vrot.slane %v579, 4
  %v582 = vshll.u32 %v207, 16
  %v584 = vrot.slane %v582, 5
  %v585 = vsel %vm211, %v580, %v584
  %v586 = vshrl.u32 %v207, 16
  %v588 = vrot.slane %v586, 4
  %v589 = vor.u32 %v588, %v584
  %v590 = vrot.slane %v589, 4
  %v592 = vshll.u32 %v208, 16
  %v594 = vrot.slane %v592, 5
  %v595 = vsel %vm211, %v590, %v594
  %v596 = vunpack.c.l.b16 %v225
  %v597 = vunpack.c.l.b16 %v235
  %v598 = vunpack.c.l.b16 %v249
  %v599 = vunpack.c.l.b16 %v259
  %v600 = vunpack.c.l.b16 %v273
  %v601 = vunpack.c.l.b16 %v283
  %v602 = vunpack.c.l.b16 %v297
  %v603 = vunpack.c.l.b16 %v307
  %v604 = vunpack.c.l.b16 %v321
  %v605 = vunpack.c.l.b16 %v331
  %v606 = vunpack.c.l.b16 %v345
  %v607 = vunpack.c.l.b16 %v355
  %v608 = vunpack.c.l.b16 %v369
  %v609 = vunpack.c.l.b16 %v379
  %v610 = vunpack.c.l.b16 %v393
  %v611 = vunpack.c.l.b16 %v403
  %v612 = vunpack.c.l.b16 %v417
  %v613 = vunpack.c.l.b16 %v427
  %v614 = vunpack.c.l.b16 %v441
  %v615 = vunpack.c.l.b16 %v451
  %v616 = vunpack.c.l.b16 %v465
  %v617 = vunpack.c.l.b16 %v475
  %v618 = vunpack.c.l.b16 %v489
  %v619 = vunpack.c.l.b16 %v499
  %v620 = vunpack.c.l.b16 %v513
  %v621 = vunpack.c.l.b16 %v523
  %v622 = vunpack.c.l.b16 %v537
  %v623 = vunpack.c.l.b16 %v547
  %v624 = vunpack.c.l.b16 %v561
  %v625 = vunpack.c.l.b16 %v571
  %v626 = vunpack.c.l.b16 %v585
  %v627 = vunpack.c.l.b16 %v595
  %v628 = vpack.c.b16 %v597, %v596
  %v629 = vpack.c.b16 %v599, %v598
  %v630 = vpack.c.b16 %v601, %v600
  %v631 = vpack.c.b16 %v603, %v602
  %v632 = vpack.c.b16 %v605, %v604
  %v633 = vpack.c.b16 %v607, %v606
  %v634 = vpack.c.b16 %v609, %v608
  %v635 = vpack.c.b16 %v611, %v610
  %v636 = vpack.c.b16 %v613, %v612
  %v637 = vpack.c.b16 %v615, %v614
  %v638 = vpack.c.b16 %v617, %v616
  %v639 = vpack.c.b16 %v619, %v618
  %v640 = vpack.c.b16 %v621, %v620
  %v641 = vpack.c.b16 %v623, %v622
  %v642 = vpack.c.b16 %v625, %v624
  %v643 = vpack.c.b16 %v627, %v626
  %660 = vst [vmem:[#allocation2 + $0x8] sm:$0xff] %v628
  %661 = vst [vmem:[#allocation2 + $0x50] sm:$0xff] %v629
  %662 = vst [vmem:[#allocation2 + $0x98] sm:$0xff] %v630
  %663 = vst [vmem:[#allocation2 + $0xe0] sm:$0xff] %v631
  %664 = vst [vmem:[#allocation2 + $0x128] sm:$0xff] %v632
  %665 = vst [vmem:[#allocation2 + $0x170] sm:$0xff] %v633
  %666 = vst [vmem:[#allocation2 + $0x1b8] sm:$0xff] %v634
  %667 = vst [vmem:[#allocation2 + $0x200] sm:$0xff] %v635
  %668 = vst [vmem:[#allocation2 + $0x248] sm:$0xff] %v636
  %669 = vst [vmem:[#allocation2 + $0x290] sm:$0xff] %v637
  %670 = vst [vmem:[#allocation2 + $0x2d8] sm:$0xff] %v638
  %671 = vst [vmem:[#allocation2 + $0x320] sm:$0xff] %v639
  %672 = vst [vmem:[#allocation2 + $0x368] sm:$0xff] %v640
  %673 = vst [vmem:[#allocation2 + $0x3b0] sm:$0xff] %v641
  %674 = vst [vmem:[#allocation2 + $0x3f8] sm:$0xff] %v642
  %675 = vst [vmem:[#allocation2 + $0x440] sm:$0xff] %v643
  %v676 = vld [vmem:[%s0] sm:$0xe]
  %v677 = vld [vmem:[%s0 + $0x4] sm:$0xf]
  %v678 = vld [vmem:[%s0 + $0x8] sm:$0x1]
  %v679 = vld [vmem:[%s0 + $0xc] sm:$0xe]
  %v680 = vld [vmem:[%s0 + $0x10] sm:$0xf]
  %v681 = vld [vmem:[%s0 + $0x14] sm:$0x1]
  %v682 = vld [vmem:[%s0 + $0x18] sm:$0xe]
  %v683 = vld [vmem:[%s0 + $0x1c] sm:$0xf]
  %v684 = vld [vmem:[%s0 + $0x20] sm:$0x1]
  %v685 = vld [vmem:[%s0 + $0x24] sm:$0xe]
  %v686 = vld [vmem:[%s0 + $0x28] sm:$0xf]
  %v687 = vld [vmem:[%s0 + $0x2c] sm:$0x1]
  %v688 = vld [vmem:[%s0 + $0x30] sm:$0xe]
  %v689 = vld [vmem:[%s0 + $0x34] sm:$0xf]
  %v690 = vld [vmem:[%s0 + $0x38] sm:$0x1]
  %v691 = vld [vmem:[%s0 + $0x3c] sm:$0xe]
  %v692 = vld [vmem:[%s0 + $0x40] sm:$0xf]
  %v693 = vld [vmem:[%s0 + $0x44] sm:$0x1]
  %v694 = vld [vmem:[%s0 + $0x48] sm:$0xe]
  %v695 = vld [vmem:[%s0 + $0x4c] sm:$0xf]
  %v696 = vld [vmem:[%s0 + $0x50] sm:$0x1]
  %v697 = vld [vmem:[%s0 + $0x54] sm:$0xe]
  %v698 = vld [vmem:[%s0 + $0x58] sm:$0xf]
  %v699 = vld [vmem:[%s0 + $0x5c] sm:$0x1]
  %v700 = vld [vmem:[%s0 + $0x60] sm:$0xe]
  %v701 = vld [vmem:[%s0 + $0x64] sm:$0xf]
  %v702 = vld [vmem:[%s0 + $0x68] sm:$0x1]
  %v703 = vld [vmem:[%s0 + $0x6c] sm:$0xe]
  %v704 = vld [vmem:[%s0 + $0x70] sm:$0xf]
  %v705 = vld [vmem:[%s0 + $0x74] sm:$0x1]
  %v706 = vld [vmem:[%s0 + $0x78] sm:$0xe]
  %v707 = vld [vmem:[%s0 + $0x7c] sm:$0xf]
  %v708 = vld [vmem:[%s0 + $0x80] sm:$0x1]
  %v709 = vld [vmem:[%s0 + $0x84] sm:$0xe]
  %v710 = vld [vmem:[%s0 + $0x88] sm:$0xf]
  %v711 = vld [vmem:[%s0 + $0x8c] sm:$0x1]
  %v712 = vld [vmem:[%s0 + $0x90] sm:$0xe]
  %v713 = vld [vmem:[%s0 + $0x94] sm:$0xf]
  %v714 = vld [vmem:[%s0 + $0x98] sm:$0x1]
  %v715 = vld [vmem:[%s0 + $0x9c] sm:$0xe]
  %v716 = vld [vmem:[%s0 + $0xa0] sm:$0xf]
  %v717 = vld [vmem:[%s0 + $0xa4] sm:$0x1]
  %v718 = vld [vmem:[%s0 + $0xa8] sm:$0xe]
  %v719 = vld [vmem:[%s0 + $0xac] sm:$0xf]
  %v720 = vld [vmem:[%s0 + $0xb0] sm:$0x1]
  %v721 = vld [vmem:[%s0 + $0xb4] sm:$0xe]
  %v722 = vld [vmem:[%s0 + $0xb8] sm:$0xf]
  %v723 = vld [vmem:[%s0 + $0xbc] sm:$0x1]
  %vm772 = vcmask 1042432
  %vm773 = vcmask 1046532
  %vm774 = vmor %vm772, %vm773
  %v775 = vrot.slane %v676, 5
  %v776 = vrot.slane %v775, 4
  %v777 = vrot.slane %v677, 5
  %v778 = vsel %vm774, %v776, %v777
  %v779 = vrot.slane %v777, 4
  %v780 = vrot.slane %v678, 5
  %v781 = vsel %vm774, %v779, %v780
  %v782 = vrot.slane %v679, 5
  %v783 = vrot.slane %v782, 4
  %v784 = vrot.slane %v680, 5
  %v785 = vsel %vm774, %v783, %v784
  %v786 = vrot.slane %v784, 4
  %v787 = vrot.slane %v681, 5
  %v788 = vsel %vm774, %v786, %v787
  %v789 = vrot.slane %v682, 5
  %v790 = vrot.slane %v789, 4
  %v791 = vrot.slane %v683, 5
  %v792 = vsel %vm774, %v790, %v791
  %v793 = vrot.slane %v791, 4
  %v794 = vrot.slane %v684, 5
  %v795 = vsel %vm774, %v793, %v794
  %v796 = vrot.slane %v685, 5
  %v797 = vrot.slane %v796, 4
  %v798 = vrot.slane %v686, 5
  %v799 = vsel %vm774, %v797, %v798
  %v800 = vrot.slane %v798, 4
  %v801 = vrot.slane %v687, 5
  %v802 = vsel %vm774, %v800, %v801
  %v803 = vrot.slane %v688, 5
  %v804 = vrot.slane %v803, 4
  %v805 = vrot.slane %v689, 5
  %v806 = vsel %vm774, %v804, %v805
  %v807 = vrot.slane %v805, 4
  %v808 = vrot.slane %v690, 5
  %v809 = vsel %vm774, %v807, %v808
  %v810 = vrot.slane %v691, 5
  %v811 = vrot.slane %v810, 4
  %v812 = vrot.slane %v692, 5
  %v813 = vsel %vm774, %v811, %v812
  %v814 = vrot.slane %v812, 4
  %v815 = vrot.slane %v693, 5
  %v816 = vsel %vm774, %v814, %v815
  %v817 = vrot.slane %v694, 5
  %v818 = vrot.slane %v817, 4
  %v819 = vrot.slane %v695, 5
  %v820 = vsel %vm774, %v818, %v819
  %v821 = vrot.slane %v819, 4
  %v822 = vrot.slane %v696, 5
  %v823 = vsel %vm774, %v821, %v822
  %v824 = vrot.slane %v697, 5
  %v825 = vrot.slane %v824, 4
  %v826 = vrot.slane %v698, 5
  %v827 = vsel %vm774, %v825, %v826
  %v828 = vrot.slane %v826, 4
  %v829 = vrot.slane %v699, 5
  %v830 = vsel %vm774, %v828, %v829
  %v831 = vrot.slane %v700, 5
  %v832 = vrot.slane %v831, 4
  %v833 = vrot.slane %v701, 5
  %v834 = vsel %vm774, %v832, %v833
  %v835 = vrot.slane %v833, 4
  %v836 = vrot.slane %v702, 5
  %v837 = vsel %vm774, %v835, %v836
  %v838 = vrot.slane %v703, 5
  %v839 = vrot.slane %v838, 4
  %v840 = vrot.slane %v704, 5
  %v841 = vsel %vm774, %v839, %v840
  %v842 = vrot.slane %v840, 4
  %v843 = vrot.slane %v705, 5
  %v844 = vsel %vm774, %v842, %v843
  %v845 = vrot.slane %v706, 5
  %v846 = vrot.slane %v845, 4
  %v847 = vrot.slane %v707, 5
  %v848 = vsel %vm774, %v846, %v847
  %v849 = vrot.slane %v847, 4
  %v850 = vrot.slane %v708, 5
  %v851 = vsel %vm774, %v849, %v850
  %v852 = vrot.slane %v709, 5
  %v853 = vrot.slane %v852, 4
  %v854 = vrot.slane %v710, 5
  %v855 = vsel %vm774, %v853, %v854
  %v856 = vrot.slane %v854, 4
  %v857 = vrot.slane %v711, 5
  %v858 = vsel %vm774, %v856, %v857
  %v859 = vrot.slane %v712, 5
  %v860 = vrot.slane %v859, 4
  %v861 = vrot.slane %v713, 5
  %v862 = vsel %vm774, %v860, %v861
  %v863 = vrot.slane %v861, 4
  %v864 = vrot.slane %v714, 5
  %v865 = vsel %vm774, %v863, %v864
  %v866 = vrot.slane %v715, 5
  %v867 = vrot.slane %v866, 4
  %v868 = vrot.slane %v716, 5
  %v869 = vsel %vm774, %v867, %v868
  %v870 = vrot.slane %v868, 4
  %v871 = vrot.slane %v717, 5
  %v872 = vsel %vm774, %v870, %v871
  %v873 = vrot.slane %v718, 5
  %v874 = vrot.slane %v873, 4
  %v875 = vrot.slane %v719, 5
  %v876 = vsel %vm774, %v874, %v875
  %v877 = vrot.slane %v875, 4
  %v878 = vrot.slane %v720, 5
  %v879 = vsel %vm774, %v877, %v878
  %v880 = vrot.slane %v721, 5
  %v881 = vrot.slane %v880, 4
  %v882 = vrot.slane %v722, 5
  %v883 = vsel %vm774, %v881, %v882
  %v884 = vrot.slane %v882, 4
  %v885 = vrot.slane %v723, 5
  %v886 = vsel %vm774, %v884, %v885
  %v887 = vunpack.c.l.b16 %v778
  %v888 = vunpack.c.l.b16 %v781
  %v889 = vunpack.c.l.b16 %v785
  %v890 = vunpack.c.l.b16 %v788
  %v891 = vunpack.c.l.b16 %v792
  %v892 = vunpack.c.l.b16 %v795
  %v893 = vunpack.c.l.b16 %v799
  %v894 = vunpack.c.l.b16 %v802
  %v895 = vunpack.c.l.b16 %v806
  %v896 = vunpack.c.l.b16 %v809
  %v897 = vunpack.c.l.b16 %v813
  %v898 = vunpack.c.l.b16 %v816
  %v899 = vunpack.c.l.b16 %v820
  %v900 = vunpack.c.l.b16 %v823
  %v901 = vunpack.c.l.b16 %v827
  %v902 = vunpack.c.l.b16 %v830
  %v903 = vunpack.c.l.b16 %v834
  %v904 = vunpack.c.l.b16 %v837
  %v905 = vunpack.c.l.b16 %v841
  %v906 = vunpack.c.l.b16 %v844
  %v907 = vunpack.c.l.b16 %v848
  %v908 = vunpack.c.l.b16 %v851
  %v909 = vunpack.c.l.b16 %v855
  %v910 = vunpack.c.l.b16 %v858
  %v911 = vunpack.c.l.b16 %v862
  %v912 = vunpack.c.l.b16 %v865
  %v913 = vunpack.c.l.b16 %v869
  %v914 = vunpack.c.l.b16 %v872
  %v915 = vunpack.c.l.b16 %v876
  %v916 = vunpack.c.l.b16 %v879
  %v917 = vunpack.c.l.b16 %v883
  %v918 = vunpack.c.l.b16 %v886
  %v919 = vpack.c.b16 %v888, %v887
  %v920 = vpack.c.b16 %v890, %v889
  %v921 = vpack.c.b16 %v892, %v891
  %v922 = vpack.c.b16 %v894, %v893
  %v923 = vpack.c.b16 %v896, %v895
  %v924 = vpack.c.b16 %v898, %v897
  %v925 = vpack.c.b16 %v900, %v899
  %v926 = vpack.c.b16 %v902, %v901
  %v927 = vpack.c.b16 %v904, %v903
  %v928 = vpack.c.b16 %v906, %v905
  %v929 = vpack.c.b16 %v908, %v907
  %v930 = vpack.c.b16 %v910, %v909
  %v931 = vpack.c.b16 %v912, %v911
  %v932 = vpack.c.b16 %v914, %v913
  %v933 = vpack.c.b16 %v916, %v915
  %v934 = vpack.c.b16 %v918, %v917
  %951 = vst [vmem:[#allocation2 + $0x10] sm:$0xff] %v919
  %952 = vst [vmem:[#allocation2 + $0x58] sm:$0xff] %v920
  %953 = vst [vmem:[#allocation2 + $0xa0] sm:$0xff] %v921
  %954 = vst [vmem:[#allocation2 + $0xe8] sm:$0xff] %v922
  %955 = vst [vmem:[#allocation2 + $0x130] sm:$0xff] %v923
  %956 = vst [vmem:[#allocation2 + $0x178] sm:$0xff] %v924
  %957 = vst [vmem:[#allocation2 + $0x1c0] sm:$0xff] %v925
  %958 = vst [vmem:[#allocation2 + $0x208] sm:$0xff] %v926
  %959 = vst [vmem:[#allocation2 + $0x250] sm:$0xff] %v927
  %960 = vst [vmem:[#allocation2 + $0x298] sm:$0xff] %v928
  %961 = vst [vmem:[#allocation2 + $0x2e0] sm:$0xff] %v929
  %962 = vst [vmem:[#allocation2 + $0x328] sm:$0xff] %v930
  %963 = vst [vmem:[#allocation2 + $0x370] sm:$0xff] %v931
  %964 = vst [vmem:[#allocation2 + $0x3b8] sm:$0xff] %v932
  %965 = vst [vmem:[#allocation2 + $0x400] sm:$0xff] %v933
  %966 = vst [vmem:[#allocation2 + $0x448] sm:$0xff] %v934
  %s967 = scalar_lea.vmem %s0, 12
  %v968 = vld [vmem:[%s967] sm:$0xf]
  %v969 = vld [vmem:[%s967 + $0x4] sm:$0xf]
  %v970 = vld [vmem:[%s967 + $0xc] sm:$0xf]
  %v971 = vld [vmem:[%s967 + $0x10] sm:$0xf]
  %v972 = vld [vmem:[%s967 + $0x18] sm:$0xf]
  %v973 = vld [vmem:[%s967 + $0x1c] sm:$0xf]
  %v974 = vld [vmem:[%s967 + $0x24] sm:$0xf]
  %v975 = vld [vmem:[%s967 + $0x28] sm:$0xf]
  %v976 = vld [vmem:[%s967 + $0x30] sm:$0xf]
  %v977 = vld [vmem:[%s967 + $0x34] sm:$0xf]
  %v978 = vld [vmem:[%s967 + $0x3c] sm:$0xf]
  %v979 = vld [vmem:[%s967 + $0x40] sm:$0xf]
  %v980 = vld [vmem:[%s967 + $0x48] sm:$0xf]
  %v981 = vld [vmem:[%s967 + $0x4c] sm:$0xf]
  %v982 = vld [vmem:[%s967 + $0x54] sm:$0xf]
  %v983 = vld [vmem:[%s967 + $0x58] sm:$0xf]
  %v984 = vld [vmem:[%s967 + $0x60] sm:$0xf]
  %v985 = vld [vmem:[%s967 + $0x64] sm:$0xf]
  %v986 = vld [vmem:[%s967 + $0x6c] sm:$0xf]
  %v987 = vld [vmem:[%s967 + $0x70] sm:$0xf]
  %v988 = vld [vmem:[%s967 + $0x78] sm:$0xf]
  %v989 = vld [vmem:[%s967 + $0x7c] sm:$0xf]
  %v990 = vld [vmem:[%s967 + $0x84] sm:$0xf]
  %v991 = vld [vmem:[%s967 + $0x88] sm:$0xf]
  %v992 = vld [vmem:[%s967 + $0x90] sm:$0xf]
  %v993 = vld [vmem:[%s967 + $0x94] sm:$0xf]
  %v994 = vld [vmem:[%s967 + $0x9c] sm:$0xf]
  %v995 = vld [vmem:[%s967 + $0xa0] sm:$0xf]
  %v996 = vld [vmem:[%s967 + $0xa8] sm:$0xf]
  %v997 = vld [vmem:[%s967 + $0xac] sm:$0xf]
  %v998 = vld [vmem:[%s967 + $0xb4] sm:$0xf]
  %v999 = vld [vmem:[%s967 + $0xb8] sm:$0xf]
  %v1032 = vunpack.c.l.b16 %v968
  %v1033 = vunpack.c.l.b16 %v969
  %v1034 = vunpack.c.l.b16 %v970
  %v1035 = vunpack.c.l.b16 %v971
  %v1036 = vunpack.c.l.b16 %v972
  %v1037 = vunpack.c.l.b16 %v973
  %v1038 = vunpack.c.l.b16 %v974
  %v1039 = vunpack.c.l.b16 %v975
  %v1040 = vunpack.c.l.b16 %v976
  %v1041 = vunpack.c.l.b16 %v977
  %v1042 = vunpack.c.l.b16 %v978
  %v1043 = vunpack.c.l.b16 %v979
  %v1044 = vunpack.c.l.b16 %v980
  %v1045 = vunpack.c.l.b16 %v981
  %v1046 = vunpack.c.l.b16 %v982
  %v1047 = vunpack.c.l.b16 %v983
  %v1048 = vunpack.c.l.b16 %v984
  %v1049 = vunpack.c.l.b16 %v985
  %v1050 = vunpack.c.l.b16 %v986
  %v1051 = vunpack.c.l.b16 %v987
  %v1052 = vunpack.c.l.b16 %v988
  %v1053 = vunpack.c.l.b16 %v989
  %v1054 = vunpack.c.l.b16 %v990
  %v1055 = vunpack.c.l.b16 %v991
  %v1056 = vunpack.c.l.b16 %v992
  %v1057 = vunpack.c.l.b16 %v993
  %v1058 = vunpack.c.l.b16 %v994
  %v1059 = vunpack.c.l.b16 %v995
  %v1060 = vunpack.c.l.b16 %v996
  %v1061 = vunpack.c.l.b16 %v997
  %v1062 = vunpack.c.l.b16 %v998
  %v1063 = vunpack.c.l.b16 %v999
  %v1064 = vpack.c.b16 %v1033, %v1032
  %v1065 = vpack.c.b16 %v1035, %v1034
  %v1066 = vpack.c.b16 %v1037, %v1036
  %v1067 = vpack.c.b16 %v1039, %v1038
  %v1068 = vpack.c.b16 %v1041, %v1040
  %v1069 = vpack.c.b16 %v1043, %v1042
  %v1070 = vpack.c.b16 %v1045, %v1044
  %v1071 = vpack.c.b16 %v1047, %v1046
  %v1072 = vpack.c.b16 %v1049, %v1048
  %v1073 = vpack.c.b16 %v1051, %v1050
  %v1074 = vpack.c.b16 %v1053, %v1052
  %v1075 = vpack.c.b16 %v1055, %v1054
  %v1076 = vpack.c.b16 %v1057, %v1056
  %v1077 = vpack.c.b16 %v1059, %v1058
  %v1078 = vpack.c.b16 %v1061, %v1060
  %v1079 = vpack.c.b16 %v1063, %v1062
  %1096 = vst [vmem:[#allocation2 + $0x18] sm:$0xff] %v1064
  %1097 = vst [vmem:[#allocation2 + $0x60] sm:$0xff] %v1065
  %1098 = vst [vmem:[#allocation2 + $0xa8] sm:$0xff] %v1066
  %1099 = vst [vmem:[#allocation2 + $0xf0] sm:$0xff] %v1067
  %1100 = vst [vmem:[#allocation2 + $0x138] sm:$0xff] %v1068
  %1101 = vst [vmem:[#allocation2 + $0x180] sm:$0xff] %v1069
  %1102 = vst [vmem:[#allocation2 + $0x1c8] sm:$0xff] %v1070
  %1103 = vst [vmem:[#allocation2 + $0x210] sm:$0xff] %v1071
  %1104 = vst [vmem:[#allocation2 + $0x258] sm:$0xff] %v1072
  %1105 = vst [vmem:[#allocation2 + $0x2a0] sm:$0xff] %v1073
  %1106 = vst [vmem:[#allocation2 + $0x2e8] sm:$0xff] %v1074
  %1107 = vst [vmem:[#allocation2 + $0x330] sm:$0xff] %v1075
  %1108 = vst [vmem:[#allocation2 + $0x378] sm:$0xff] %v1076
  %1109 = vst [vmem:[#allocation2 + $0x3c0] sm:$0xff] %v1077
  %1110 = vst [vmem:[#allocation2 + $0x408] sm:$0xff] %v1078
  %1111 = vst [vmem:[#allocation2 + $0x450] sm:$0xff] %v1079
  %v1112 = vld [vmem:[%s967] sm:$0xf]
  %v1113 = vld [vmem:[%s967 + $0x4] sm:$0xf]
  %v1114 = vld [vmem:[%s967 + $0x8] sm:$0x1]
  %v1115 = vld [vmem:[%s967 + $0xc] sm:$0xf]
  %v1116 = vld [vmem:[%s967 + $0x10] sm:$0xf]
  %v1117 = vld [vmem:[%s967 + $0x14] sm:$0x1]
  %v1118 = vld [vmem:[%s967 + $0x18] sm:$0xf]
  %v1119 = vld [vmem:[%s967 + $0x1c] sm:$0xf]
  %v1120 = vld [vmem:[%s967 + $0x20] sm:$0x1]
  %v1121 = vld [vmem:[%s967 + $0x24] sm:$0xf]
  %v1122 = vld [vmem:[%s967 + $0x28] sm:$0xf]
  %v1123 = vld [vmem:[%s967 + $0x2c] sm:$0x1]
  %v1124 = vld [vmem:[%s967 + $0x30] sm:$0xf]
  %v1125 = vld [vmem:[%s967 + $0x34] sm:$0xf]
  %v1126 = vld [vmem:[%s967 + $0x38] sm:$0x1]
  %v1127 = vld [vmem:[%s967 + $0x3c] sm:$0xf]
  %v1128 = vld [vmem:[%s967 + $0x40] sm:$0xf]
  %v1129 = vld [vmem:[%s967 + $0x44] sm:$0x1]
  %v1130 = vld [vmem:[%s967 + $0x48] sm:$0xf]
  %v1131 = vld [vmem:[%s967 + $0x4c] sm:$0xf]
  %v1132 = vld [vmem:[%s967 + $0x50] sm:$0x1]
  %v1133 = vld [vmem:[%s967 + $0x54] sm:$0xf]
  %v1134 = vld [vmem:[%s967 + $0x58] sm:$0xf]
  %v1135 = vld [vmem:[%s967 + $0x5c] sm:$0x1]
  %v1136 = vld [vmem:[%s967 + $0x60] sm:$0xf]
  %v1137 = vld [vmem:[%s967 + $0x64] sm:$0xf]
  %v1138 = vld [vmem:[%s967 + $0x68] sm:$0x1]
  %v1139 = vld [vmem:[%s967 + $0x6c] sm:$0xf]
  %v1140 = vld [vmem:[%s967 + $0x70] sm:$0xf]
  %v1141 = vld [vmem:[%s967 + $0x74] sm:$0x1]
  %v1142 = vld [vmem:[%s967 + $0x78] sm:$0xf]
  %v1143 = vld [vmem:[%s967 + $0x7c] sm:$0xf]
  %v1144 = vld [vmem:[%s967 + $0x80] sm:$0x1]
  %v1145 = vld [vmem:[%s967 + $0x84] sm:$0xf]
  %v1146 = vld [vmem:[%s967 + $0x88] sm:$0xf]
  %v1147 = vld [vmem:[%s967 + $0x8c] sm:$0x1]
  %v1148 = vld [vmem:[%s967 + $0x90] sm:$0xf]
  %v1149 = vld [vmem:[%s967 + $0x94] sm:$0xf]
  %v1150 = vld [vmem:[%s967 + $0x98] sm:$0x1]
  %v1151 = vld [vmem:[%s967 + $0x9c] sm:$0xf]
  %v1152 = vld [vmem:[%s967 + $0xa0] sm:$0xf]
  %v1153 = vld [vmem:[%s967 + $0xa4] sm:$0x1]
  %v1154 = vld [vmem:[%s967 + $0xa8] sm:$0xf]
  %v1155 = vld [vmem:[%s967 + $0xac] sm:$0xf]
  %v1156 = vld [vmem:[%s967 + $0xb0] sm:$0x1]
  %v1157 = vld [vmem:[%s967 + $0xb4] sm:$0xf]
  %v1158 = vld [vmem:[%s967 + $0xb8] sm:$0xf]
  %v1159 = vld [vmem:[%s967 + $0xbc] sm:$0x1]
  %v1161 = vshrl.u32 %v1112, 16
  %v1163 = vrot.slane %v1161, 4
  %v1164 = vshll.u32 %v1112, 16
  %v1166 = vrot.slane %v1164, 5
  %v1167 = vor.u32 %v1163, %v1166
  %v1168 = vrot.slane %v1167, 4
  %v1170 = vshll.u32 %v1113, 16
  %v1172 = vrot.slane %v1170, 5
  %v1173 = vsel %vm211, %v1168, %v1172
  %v1174 = vshrl.u32 %v1113, 16
  %v1176 = vrot.slane %v1174, 4
  %v1177 = vor.u32 %v1176, %v1172
  %v1178 = vrot.slane %v1177, 4
  %v1180 = vshll.u32 %v1114, 16
  %v1182 = vrot.slane %v1180, 5
  %v1183 = vsel %vm211, %v1178, %v1182
  %v1185 = vshrl.u32 %v1115, 16
  %v1187 = vrot.slane %v1185, 4
  %v1188 = vshll.u32 %v1115, 16
  %v1190 = vrot.slane %v1188, 5
  %v1191 = vor.u32 %v1187, %v1190
  %v1192 = vrot.slane %v1191, 4
  %v1194 = vshll.u32 %v1116, 16
  %v1196 = vrot.slane %v1194, 5
  %v1197 = vsel %vm211, %v1192, %v1196
  %v1198 = vshrl.u32 %v1116, 16
  %v1200 = vrot.slane %v1198, 4
  %v1201 = vor.u32 %v1200, %v1196
  %v1202 = vrot.slane %v1201, 4
  %v1204 = vshll.u32 %v1117, 16
  %v1206 = vrot.slane %v1204, 5
  %v1207 = vsel %vm211, %v1202, %v1206
  %v1209 = vshrl.u32 %v1118, 16
  %v1211 = vrot.slane %v1209, 4
  %v1212 = vshll.u32 %v1118, 16
  %v1214 = vrot.slane %v1212, 5
  %v1215 = vor.u32 %v1211, %v1214
  %v1216 = vrot.slane %v1215, 4
  %v1218 = vshll.u32 %v1119, 16
  %v1220 = vrot.slane %v1218, 5
  %v1221 = vsel %vm211, %v1216, %v1220
  %v1222 = vshrl.u32 %v1119, 16
  %v1224 = vrot.slane %v1222, 4
  %v1225 = vor.u32 %v1224, %v1220
  %v1226 = vrot.slane %v1225, 4
  %v1228 = vshll.u32 %v1120, 16
  %v1230 = vrot.slane %v1228, 5
  %v1231 = vsel %vm211, %v1226, %v1230
  %v1233 = vshrl.u32 %v1121, 16
  %v1235 = vrot.slane %v1233, 4
  %v1236 = vshll.u32 %v1121, 16
  %v1238 = vrot.slane %v1236, 5
  %v1239 = vor.u32 %v1235, %v1238
  %v1240 = vrot.slane %v1239, 4
  %v1242 = vshll.u32 %v1122, 16
  %v1244 = vrot.slane %v1242, 5
  %v1245 = vsel %vm211, %v1240, %v1244
  %v1246 = vshrl.u32 %v1122, 16
  %v1248 = vrot.slane %v1246, 4
  %v1249 = vor.u32 %v1248, %v1244
  %v1250 = vrot.slane %v1249, 4
  %v1252 = vshll.u32 %v1123, 16
  %v1254 = vrot.slane %v1252, 5
  %v1255 = vsel %vm211, %v1250, %v1254
  %v1257 = vshrl.u32 %v1124, 16
  %v1259 = vrot.slane %v1257, 4
  %v1260 = vshll.u32 %v1124, 16
  %v1262 = vrot.slane %v1260, 5
  %v1263 = vor.u32 %v1259, %v1262
  %v1264 = vrot.slane %v1263, 4
  %v1266 = vshll.u32 %v1125, 16
  %v1268 = vrot.slane %v1266, 5
  %v1269 = vsel %vm211, %v1264, %v1268
  %v1270 = vshrl.u32 %v1125, 16
  %v1272 = vrot.slane %v1270, 4
  %v1273 = vor.u32 %v1272, %v1268
  %v1274 = vrot.slane %v1273, 4
  %v1276 = vshll.u32 %v1126, 16
  %v1278 = vrot.slane %v1276, 5
  %v1279 = vsel %vm211, %v1274, %v1278
  %v1281 = vshrl.u32 %v1127, 16
  %v1283 = vrot.slane %v1281, 4
  %v1284 = vshll.u32 %v1127, 16
  %v1286 = vrot.slane %v1284, 5
  %v1287 = vor.u32 %v1283, %v1286
  %v1288 = vrot.slane %v1287, 4
  %v1290 = vshll.u32 %v1128, 16
  %v1292 = vrot.slane %v1290, 5
  %v1293 = vsel %vm211, %v1288, %v1292
  %v1294 = vshrl.u32 %v1128, 16
  %v1296 = vrot.slane %v1294, 4
  %v1297 = vor.u32 %v1296, %v1292
  %v1298 = vrot.slane %v1297, 4
  %v1300 = vshll.u32 %v1129, 16
  %v1302 = vrot.slane %v1300, 5
  %v1303 = vsel %vm211, %v1298, %v1302
  %v1305 = vshrl.u32 %v1130, 16
  %v1307 = vrot.slane %v1305, 4
  %v1308 = vshll.u32 %v1130, 16
  %v1310 = vrot.slane %v1308, 5
  %v1311 = vor.u32 %v1307, %v1310
  %v1312 = vrot.slane %v1311, 4
  %v1314 = vshll.u32 %v1131, 16
  %v1316 = vrot.slane %v1314, 5
  %v1317 = vsel %vm211, %v1312, %v1316
  %v1318 = vshrl.u32 %v1131, 16
  %v1320 = vrot.slane %v1318, 4
  %v1321 = vor.u32 %v1320, %v1316
  %v1322 = vrot.slane %v1321, 4
  %v1324 = vshll.u32 %v1132, 16
  %v1326 = vrot.slane %v1324, 5
  %v1327 = vsel %vm211, %v1322, %v1326
  %v1329 = vshrl.u32 %v1133, 16
  %v1331 = vrot.slane %v1329, 4
  %v1332 = vshll.u32 %v1133, 16
  %v1334 = vrot.slane %v1332, 5
  %v1335 = vor.u32 %v1331, %v1334
  %v1336 = vrot.slane %v1335, 4
  %v1338 = vshll.u32 %v1134, 16
  %v1340 = vrot.slane %v1338, 5
  %v1341 = vsel %vm211, %v1336, %v1340
  %v1342 = vshrl.u32 %v1134, 16
  %v1344 = vrot.slane %v1342, 4
  %v1345 = vor.u32 %v1344, %v1340
  %v1346 = vrot.slane %v1345, 4
  %v1348 = vshll.u32 %v1135, 16
  %v1350 = vrot.slane %v1348, 5
  %v1351 = vsel %vm211, %v1346, %v1350
  %v1353 = vshrl.u32 %v1136, 16
  %v1355 = vrot.slane %v1353, 4
  %v1356 = vshll.u32 %v1136, 16
  %v1358 = vrot.slane %v1356, 5
  %v1359 = vor.u32 %v1355, %v1358
  %v1360 = vrot.slane %v1359, 4
  %v1362 = vshll.u32 %v1137, 16
  %v1364 = vrot.slane %v1362, 5
  %v1365 = vsel %vm211, %v1360, %v1364
  %v1366 = vshrl.u32 %v1137, 16
  %v1368 = vrot.slane %v1366, 4
  %v1369 = vor.u32 %v1368, %v1364
  %v1370 = vrot.slane %v1369, 4
  %v1372 = vshll.u32 %v1138, 16
  %v1374 = vrot.slane %v1372, 5
  %v1375 = vsel %vm211, %v1370, %v1374
  %v1377 = vshrl.u32 %v1139, 16
  %v1379 = vrot.slane %v1377, 4
  %v1380 = vshll.u32 %v1139, 16
  %v1382 = vrot.slane %v1380, 5
  %v1383 = vor.u32 %v1379, %v1382
  %v1384 = vrot.slane %v1383, 4
  %v1386 = vshll.u32 %v1140, 16
  %v1388 = vrot.slane %v1386, 5
  %v1389 = vsel %vm211, %v1384, %v1388
  %v1390 = vshrl.u32 %v1140, 16
  %v1392 = vrot.slane %v1390, 4
  %v1393 = vor.u32 %v1392, %v1388
  %v1394 = vrot.slane %v1393, 4
  %v1396 = vshll.u32 %v1141, 16
  %v1398 = vrot.slane %v1396, 5
  %v1399 = vsel %vm211, %v1394, %v1398
  %v1401 = vshrl.u32 %v1142, 16
  %v1403 = vrot.slane %v1401, 4
  %v1404 = vshll.u32 %v1142, 16
  %v1406 = vrot.slane %v1404, 5
  %v1407 = vor.u32 %v1403, %v1406
  %v1408 = vrot.slane %v1407, 4
  %v1410 = vshll.u32 %v1143, 16
  %v1412 = vrot.slane %v1410, 5
  %v1413 = vsel %vm211, %v1408, %v1412
  %v1414 = vshrl.u32 %v1143, 16
  %v1416 = vrot.slane %v1414, 4
  %v1417 = vor.u32 %v1416, %v1412
  %v1418 = vrot.slane %v1417, 4
  %v1420 = vshll.u32 %v1144, 16
  %v1422 = vrot.slane %v1420, 5
  %v1423 = vsel %vm211, %v1418, %v1422
  %v1425 = vshrl.u32 %v1145, 16
  %v1427 = vrot.slane %v1425, 4
  %v1428 = vshll.u32 %v1145, 16
  %v1430 = vrot.slane %v1428, 5
  %v1431 = vor.u32 %v1427, %v1430
  %v1432 = vrot.slane %v1431, 4
  %v1434 = vshll.u32 %v1146, 16
  %v1436 = vrot.slane %v1434, 5
  %v1437 = vsel %vm211, %v1432, %v1436
  %v1438 = vshrl.u32 %v1146, 16
  %v1440 = vrot.slane %v1438, 4
  %v1441 = vor.u32 %v1440, %v1436
  %v1442 = vrot.slane %v1441, 4
  %v1444 = vshll.u32 %v1147, 16
  %v1446 = vrot.slane %v1444, 5
  %v1447 = vsel %vm211, %v1442, %v1446
  %v1449 = vshrl.u32 %v1148, 16
  %v1451 = vrot.slane %v1449, 4
  %v1452 = vshll.u32 %v1148, 16
  %v1454 = vrot.slane %v1452, 5
  %v1455 = vor.u32 %v1451, %v1454
  %v1456 = vrot.slane %v1455, 4
  %v1458 = vshll.u32 %v1149, 16
  %v1460 = vrot.slane %v1458, 5
  %v1461 = vsel %vm211, %v1456, %v1460
  %v1462 = vshrl.u32 %v1149, 16
  %v1464 = vrot.slane %v1462, 4
  %v1465 = vor.u32 %v1464, %v1460
  %v1466 = vrot.slane %v1465, 4
  %v1468 = vshll.u32 %v1150, 16
  %v1470 = vrot.slane %v1468, 5
  %v1471 = vsel %vm211, %v1466, %v1470
  %v1473 = vshrl.u32 %v1151, 16
  %v1475 = vrot.slane %v1473, 4
  %v1476 = vshll.u32 %v1151, 16
  %v1478 = vrot.slane %v1476, 5
  %v1479 = vor.u32 %v1475, %v1478
  %v1480 = vrot.slane %v1479, 4
  %v1482 = vshll.u32 %v1152, 16
  %v1484 = vrot.slane %v1482, 5
  %v1485 = vsel %vm211, %v1480, %v1484
  %v1486 = vshrl.u32 %v1152, 16
  %v1488 = vrot.slane %v1486, 4
  %v1489 = vor.u32 %v1488, %v1484
  %v1490 = vrot.slane %v1489, 4
  %v1492 = vshll.u32 %v1153, 16
  %v1494 = vrot.slane %v1492, 5
  %v1495 = vsel %vm211, %v1490, %v1494
  %v1497 = vshrl.u32 %v1154, 16
  %v1499 = vrot.slane %v1497, 4
  %v1500 = vshll.u32 %v1154, 16
  %v1502 = vrot.slane %v1500, 5
  %v1503 = vor.u32 %v1499, %v1502
  %v1504 = vrot.slane %v1503, 4
  %v1506 = vshll.u32 %v1155, 16
  %v1508 = vrot.slane %v1506, 5
  %v1509 = vsel %vm211, %v1504, %v1508
  %v1510 = vshrl.u32 %v1155, 16
  %v1512 = vrot.slane %v1510, 4
  %v1513 = vor.u32 %v1512, %v1508
  %v1514 = vrot.slane %v1513, 4
  %v1516 = vshll.u32 %v1156, 16
  %v1518 = vrot.slane %v1516, 5
  %v1519 = vsel %vm211, %v1514, %v1518
  %v1521 = vshrl.u32 %v1157, 16
  %v1523 = vrot.slane %v1521, 4
  %v1524 = vshll.u32 %v1157, 16
  %v1526 = vrot.slane %v1524, 5
  %v1527 = vor.u32 %v1523, %v1526
  %v1528 = vrot.slane %v1527, 4
  %v1530 = vshll.u32 %v1158, 16
  %v1532 = vrot.slane %v1530, 5
  %v1533 = vsel %vm211, %v1528, %v1532
  %v1534 = vshrl.u32 %v1158, 16
  %v1536 = vrot.slane %v1534, 4
  %v1537 = vor.u32 %v1536, %v1532
  %v1538 = vrot.slane %v1537, 4
  %v1540 = vshll.u32 %v1159, 16
  %v1542 = vrot.slane %v1540, 5
  %v1543 = vsel %vm211, %v1538, %v1542
  %v1544 = vunpack.c.l.b16 %v1173
  %v1545 = vunpack.c.l.b16 %v1183
  %v1546 = vunpack.c.l.b16 %v1197
  %v1547 = vunpack.c.l.b16 %v1207
  %v1548 = vunpack.c.l.b16 %v1221
  %v1549 = vunpack.c.l.b16 %v1231
  %v1550 = vunpack.c.l.b16 %v1245
  %v1551 = vunpack.c.l.b16 %v1255
  %v1552 = vunpack.c.l.b16 %v1269
  %v1553 = vunpack.c.l.b16 %v1279
  %v1554 = vunpack.c.l.b16 %v1293
  %v1555 = vunpack.c.l.b16 %v1303
  %v1556 = vunpack.c.l.b16 %v1317
  %v1557 = vunpack.c.l.b16 %v1327
  %v1558 = vunpack.c.l.b16 %v1341
  %v1559 = vunpack.c.l.b16 %v1351
  %v1560 = vunpack.c.l.b16 %v1365
  %v1561 = vunpack.c.l.b16 %v1375
  %v1562 = vunpack.c.l.b16 %v1389
  %v1563 = vunpack.c.l.b16 %v1399
  %v1564 = vunpack.c.l.b16 %v1413
  %v1565 = vunpack.c.l.b16 %v1423
  %v1566 = vunpack.c.l.b16 %v1437
  %v1567 = vunpack.c.l.b16 %v1447
  %v1568 = vunpack.c.l.b16 %v1461
  %v1569 = vunpack.c.l.b16 %v1471
  %v1570 = vunpack.c.l.b16 %v1485
  %v1571 = vunpack.c.l.b16 %v1495
  %v1572 = vunpack.c.l.b16 %v1509
  %v1573 = vunpack.c.l.b16 %v1519
  %v1574 = vunpack.c.l.b16 %v1533
  %v1575 = vunpack.c.l.b16 %v1543
  %v1576 = vpack.c.b16 %v1545, %v1544
  %v1577 = vpack.c.b16 %v1547, %v1546
  %v1578 = vpack.c.b16 %v1549, %v1548
  %v1579 = vpack.c.b16 %v1551, %v1550
  %v1580 = vpack.c.b16 %v1553, %v1552
  %v1581 = vpack.c.b16 %v1555, %v1554
  %v1582 = vpack.c.b16 %v1557, %v1556
  %v1583 = vpack.c.b16 %v1559, %v1558
  %v1584 = vpack.c.b16 %v1561, %v1560
  %v1585 = vpack.c.b16 %v1563, %v1562
  %v1586 = vpack.c.b16 %v1565, %v1564
  %v1587 = vpack.c.b16 %v1567, %v1566
  %v1588 = vpack.c.b16 %v1569, %v1568
  %v1589 = vpack.c.b16 %v1571, %v1570
  %v1590 = vpack.c.b16 %v1573, %v1572
  %v1591 = vpack.c.b16 %v1575, %v1574
  %1608 = vst [vmem:[#allocation2 + $0x20] sm:$0xff] %v1576
  %1609 = vst [vmem:[#allocation2 + $0x68] sm:$0xff] %v1577
  %1610 = vst [vmem:[#allocation2 + $0xb0] sm:$0xff] %v1578
  %1611 = vst [vmem:[#allocation2 + $0xf8] sm:$0xff] %v1579
  %1612 = vst [vmem:[#allocation2 + $0x140] sm:$0xff] %v1580
  %1613 = vst [vmem:[#allocation2 + $0x188] sm:$0xff] %v1581
  %1614 = vst [vmem:[#allocation2 + $0x1d0] sm:$0xff] %v1582
  %1615 = vst [vmem:[#allocation2 + $0x218] sm:$0xff] %v1583
  %1616 = vst [vmem:[#allocation2 + $0x260] sm:$0xff] %v1584
  %1617 = vst [vmem:[#allocation2 + $0x2a8] sm:$0xff] %v1585
  %1618 = vst [vmem:[#allocation2 + $0x2f0] sm:$0xff] %v1586
  %1619 = vst [vmem:[#allocation2 + $0x338] sm:$0xff] %v1587
  %1620 = vst [vmem:[#allocation2 + $0x380] sm:$0xff] %v1588
  %1621 = vst [vmem:[#allocation2 + $0x3c8] sm:$0xff] %v1589
  %1622 = vst [vmem:[#allocation2 + $0x410] sm:$0xff] %v1590
  %1623 = vst [vmem:[#allocation2 + $0x458] sm:$0xff] %v1591
  %v1624 = vld [vmem:[%s967] sm:$0xe]
  %v1625 = vld [vmem:[%s967 + $0x4] sm:$0xf]
  %v1626 = vld [vmem:[%s967 + $0x8] sm:$0x1]
  %v1627 = vld [vmem:[%s967 + $0xc] sm:$0xe]
  %v1628 = vld [vmem:[%s967 + $0x10] sm:$0xf]
  %v1629 = vld [vmem:[%s967 + $0x14] sm:$0x1]
  %v1630 = vld [vmem:[%s967 + $0x18] sm:$0xe]
  %v1631 = vld [vmem:[%s967 + $0x1c] sm:$0xf]
  %v1632 = vld [vmem:[%s967 + $0x20] sm:$0x1]
  %v1633 = vld [vmem:[%s967 + $0x24] sm:$0xe]
  %v1634 = vld [vmem:[%s967 + $0x28] sm:$0xf]
  %v1635 = vld [vmem:[%s967 + $0x2c] sm:$0x1]
  %v1636 = vld [vmem:[%s967 + $0x30] sm:$0xe]
  %v1637 = vld [vmem:[%s967 + $0x34] sm:$0xf]
  %v1638 = vld [vmem:[%s967 + $0x38] sm:$0x1]
  %v1639 = vld [vmem:[%s967 + $0x3c] sm:$0xe]
  %v1640 = vld [vmem:[%s967 + $0x40] sm:$0xf]
  %v1641 = vld [vmem:[%s967 + $0x44] sm:$0x1]
  %v1642 = vld [vmem:[%s967 + $0x48] sm:$0xe]
  %v1643 = vld [vmem:[%s967 + $0x4c] sm:$0xf]
  %v1644 = vld [vmem:[%s967 + $0x50] sm:$0x1]
  %v1645 = vld [vmem:[%s967 + $0x54] sm:$0xe]
  %v1646 = vld [vmem:[%s967 + $0x58] sm:$0xf]
  %v1647 = vld [vmem:[%s967 + $0x5c] sm:$0x1]
  %v1648 = vld [vmem:[%s967 + $0x60] sm:$0xe]
  %v1649 = vld [vmem:[%s967 + $0x64] sm:$0xf]
  %v1650 = vld [vmem:[%s967 + $0x68] sm:$0x1]
  %v1651 = vld [vmem:[%s967 + $0x6c] sm:$0xe]
  %v1652 = vld [vmem:[%s967 + $0x70] sm:$0xf]
  %v1653 = vld [vmem:[%s967 + $0x74] sm:$0x1]
  %v1654 = vld [vmem:[%s967 + $0x78] sm:$0xe]
  %v1655 = vld [vmem:[%s967 + $0x7c] sm:$0xf]
  %v1656 = vld [vmem:[%s967 + $0x80] sm:$0x1]
  %v1657 = vld [vmem:[%s967 + $0x84] sm:$0xe]
  %v1658 = vld [vmem:[%s967 + $0x88] sm:$0xf]
  %v1659 = vld [vmem:[%s967 + $0x8c] sm:$0x1]
  %v1660 = vld [vmem:[%s967 + $0x90] sm:$0xe]
  %v1661 = vld [vmem:[%s967 + $0x94] sm:$0xf]
  %v1662 = vld [vmem:[%s967 + $0x98] sm:$0x1]
  %v1663 = vld [vmem:[%s967 + $0x9c] sm:$0xe]
  %v1664 = vld [vmem:[%s967 + $0xa0] sm:$0xf]
  %v1665 = vld [vmem:[%s967 + $0xa4] sm:$0x1]
  %v1666 = vld [vmem:[%s967 + $0xa8] sm:$0xe]
  %v1667 = vld [vmem:[%s967 + $0xac] sm:$0xf]
  %v1668 = vld [vmem:[%s967 + $0xb0] sm:$0x1]
  %v1669 = vld [vmem:[%s967 + $0xb4] sm:$0xe]
  %v1670 = vld [vmem:[%s967 + $0xb8] sm:$0xf]
  %v1671 = vld [vmem:[%s967 + $0xbc] sm:$0x1]
  %v1720 = vrot.slane %v1624, 5
  %v1721 = vrot.slane %v1720, 4
  %v1722 = vrot.slane %v1625, 5
  %v1723 = vsel %vm774, %v1721, %v1722
  %v1724 = vrot.slane %v1722, 4
  %v1725 = vrot.slane %v1626, 5
  %v1726 = vsel %vm774, %v1724, %v1725
  %v1727 = vrot.slane %v1627, 5
  %v1728 = vrot.slane %v1727, 4
  %v1729 = vrot.slane %v1628, 5
  %v1730 = vsel %vm774, %v1728, %v1729
  %v1731 = vrot.slane %v1729, 4
  %v1732 = vrot.slane %v1629, 5
  %v1733 = vsel %vm774, %v1731, %v1732
  %v1734 = vrot.slane %v1630, 5
  %v1735 = vrot.slane %v1734, 4
  %v1736 = vrot.slane %v1631, 5
  %v1737 = vsel %vm774, %v1735, %v1736
  %v1738 = vrot.slane %v1736, 4
  %v1739 = vrot.slane %v1632, 5
  %v1740 = vsel %vm774, %v1738, %v1739
  %v1741 = vrot.slane %v1633, 5
  %v1742 = vrot.slane %v1741, 4
  %v1743 = vrot.slane %v1634, 5
  %v1744 = vsel %vm774, %v1742, %v1743
  %v1745 = vrot.slane %v1743, 4
  %v1746 = vrot.slane %v1635, 5
  %v1747 = vsel %vm774, %v1745, %v1746
  %v1748 = vrot.slane %v1636, 5
  %v1749 = vrot.slane %v1748, 4
  %v1750 = vrot.slane %v1637, 5
  %v1751 = vsel %vm774, %v1749, %v1750
  %v1752 = vrot.slane %v1750, 4
  %v1753 = vrot.slane %v1638, 5
  %v1754 = vsel %vm774, %v1752, %v1753
  %v1755 = vrot.slane %v1639, 5
  %v1756 = vrot.slane %v1755, 4
  %v1757 = vrot.slane %v1640, 5
  %v1758 = vsel %vm774, %v1756, %v1757
  %v1759 = vrot.slane %v1757, 4
  %v1760 = vrot.slane %v1641, 5
  %v1761 = vsel %vm774, %v1759, %v1760
  %v1762 = vrot.slane %v1642, 5
  %v1763 = vrot.slane %v1762, 4
  %v1764 = vrot.slane %v1643, 5
  %v1765 = vsel %vm774, %v1763, %v1764
  %v1766 = vrot.slane %v1764, 4
  %v1767 = vrot.slane %v1644, 5
  %v1768 = vsel %vm774, %v1766, %v1767
  %v1769 = vrot.slane %v1645, 5
  %v1770 = vrot.slane %v1769, 4
  %v1771 = vrot.slane %v1646, 5
  %v1772 = vsel %vm774, %v1770, %v1771
  %v1773 = vrot.slane %v1771, 4
  %v1774 = vrot.slane %v1647, 5
  %v1775 = vsel %vm774, %v1773, %v1774
  %v1776 = vrot.slane %v1648, 5
  %v1777 = vrot.slane %v1776, 4
  %v1778 = vrot.slane %v1649, 5
  %v1779 = vsel %vm774, %v1777, %v1778
  %v1780 = vrot.slane %v1778, 4
  %v1781 = vrot.slane %v1650, 5
  %v1782 = vsel %vm774, %v1780, %v1781
  %v1783 = vrot.slane %v1651, 5
  %v1784 = vrot.slane %v1783, 4
  %v1785 = vrot.slane %v1652, 5
  %v1786 = vsel %vm774, %v1784, %v1785
  %v1787 = vrot.slane %v1785, 4
  %v1788 = vrot.slane %v1653, 5
  %v1789 = vsel %vm774, %v1787, %v1788
  %v1790 = vrot.slane %v1654, 5
  %v1791 = vrot.slane %v1790, 4
  %v1792 = vrot.slane %v1655, 5
  %v1793 = vsel %vm774, %v1791, %v1792
  %v1794 = vrot.slane %v1792, 4
  %v1795 = vrot.slane %v1656, 5
  %v1796 = vsel %vm774, %v1794, %v1795
  %v1797 = vrot.slane %v1657, 5
  %v1798 = vrot.slane %v1797, 4
  %v1799 = vrot.slane %v1658, 5
  %v1800 = vsel %vm774, %v1798, %v1799
  %v1801 = vrot.slane %v1799, 4
  %v1802 = vrot.slane %v1659, 5
  %v1803 = vsel %vm774, %v1801, %v1802
  %v1804 = vrot.slane %v1660, 5
  %v1805 = vrot.slane %v1804, 4
  %v1806 = vrot.slane %v1661, 5
  %v1807 = vsel %vm774, %v1805, %v1806
  %v1808 = vrot.slane %v1806, 4
  %v1809 = vrot.slane %v1662, 5
  %v1810 = vsel %vm774, %v1808, %v1809
  %v1811 = vrot.slane %v1663, 5
  %v1812 = vrot.slane %v1811, 4
  %v1813 = vrot.slane %v1664, 5
  %v1814 = vsel %vm774, %v1812, %v1813
  %v1815 = vrot.slane %v1813, 4
  %v1816 = vrot.slane %v1665, 5
  %v1817 = vsel %vm774, %v1815, %v1816
  %v1818 = vrot.slane %v1666, 5
  %v1819 = vrot.slane %v1818, 4
  %v1820 = vrot.slane %v1667, 5
  %v1821 = vsel %vm774, %v1819, %v1820
  %v1822 = vrot.slane %v1820, 4
  %v1823 = vrot.slane %v1668, 5
  %v1824 = vsel %vm774, %v1822, %v1823
  %v1825 = vrot.slane %v1669, 5
  %v1826 = vrot.slane %v1825, 4
  %v1827 = vrot.slane %v1670, 5
  %v1828 = vsel %vm774, %v1826, %v1827
  %v1829 = vrot.slane %v1827, 4
  %v1830 = vrot.slane %v1671, 5
  %v1831 = vsel %vm774, %v1829, %v1830
  %v1832 = vunpack.c.l.b16 %v1723
  %v1833 = vunpack.c.l.b16 %v1726
  %v1834 = vunpack.c.l.b16 %v1730
  %v1835 = vunpack.c.l.b16 %v1733
  %v1836 = vunpack.c.l.b16 %v1737
  %v1837 = vunpack.c.l.b16 %v1740
  %v1838 = vunpack.c.l.b16 %v1744
  %v1839 = vunpack.c.l.b16 %v1747
  %v1840 = vunpack.c.l.b16 %v1751
  %v1841 = vunpack.c.l.b16 %v1754
  %v1842 = vunpack.c.l.b16 %v1758
  %v1843 = vunpack.c.l.b16 %v1761
  %v1844 = vunpack.c.l.b16 %v1765
  %v1845 = vunpack.c.l.b16 %v1768
  %v1846 = vunpack.c.l.b16 %v1772
  %v1847 = vunpack.c.l.b16 %v1775
  %v1848 = vunpack.c.l.b16 %v1779
  %v1849 = vunpack.c.l.b16 %v1782
  %v1850 = vunpack.c.l.b16 %v1786
  %v1851 = vunpack.c.l.b16 %v1789
  %v1852 = vunpack.c.l.b16 %v1793
  %v1853 = vunpack.c.l.b16 %v1796
  %v1854 = vunpack.c.l.b16 %v1800
  %v1855 = vunpack.c.l.b16 %v1803
  %v1856 = vunpack.c.l.b16 %v1807
  %v1857 = vunpack.c.l.b16 %v1810
  %v1858 = vunpack.c.l.b16 %v1814
  %v1859 = vunpack.c.l.b16 %v1817
  %v1860 = vunpack.c.l.b16 %v1821
  %v1861 = vunpack.c.l.b16 %v1824
  %v1862 = vunpack.c.l.b16 %v1828
  %v1863 = vunpack.c.l.b16 %v1831
  %v1864 = vpack.c.b16 %v1833, %v1832
  %v1865 = vpack.c.b16 %v1835, %v1834
  %v1866 = vpack.c.b16 %v1837, %v1836
  %v1867 = vpack.c.b16 %v1839, %v1838
  %v1868 = vpack.c.b16 %v1841, %v1840
  %v1869 = vpack.c.b16 %v1843, %v1842
  %v1870 = vpack.c.b16 %v1845, %v1844
  %v1871 = vpack.c.b16 %v1847, %v1846
  %v1872 = vpack.c.b16 %v1849, %v1848
  %v1873 = vpack.c.b16 %v1851, %v1850
  %v1874 = vpack.c.b16 %v1853, %v1852
  %v1875 = vpack.c.b16 %v1855, %v1854
  %v1876 = vpack.c.b16 %v1857, %v1856
  %v1877 = vpack.c.b16 %v1859, %v1858
  %v1878 = vpack.c.b16 %v1861, %v1860
  %v1879 = vpack.c.b16 %v1863, %v1862
  %1896 = vst [vmem:[#allocation2 + $0x28] sm:$0xff] %v1864
  %1897 = vst [vmem:[#allocation2 + $0x70] sm:$0xff] %v1865
  %1898 = vst [vmem:[#allocation2 + $0xb8] sm:$0xff] %v1866
  %1899 = vst [vmem:[#allocation2 + $0x100] sm:$0xff] %v1867
  %1900 = vst [vmem:[#allocation2 + $0x148] sm:$0xff] %v1868
  %1901 = vst [vmem:[#allocation2 + $0x190] sm:$0xff] %v1869
  %1902 = vst [vmem:[#allocation2 + $0x1d8] sm:$0xff] %v1870
  %1903 = vst [vmem:[#allocation2 + $0x220] sm:$0xff] %v1871
  %1904 = vst [vmem:[#allocation2 + $0x268] sm:$0xff] %v1872
  %1905 = vst [vmem:[#allocation2 + $0x2b0] sm:$0xff] %v1873
  %1906 = vst [vmem:[#allocation2 + $0x2f8] sm:$0xff] %v1874
  %1907 = vst [vmem:[#allocation2 + $0x340] sm:$0xff] %v1875
  %1908 = vst [vmem:[#allocation2 + $0x388] sm:$0xff] %v1876
  %1909 = vst [vmem:[#allocation2 + $0x3d0] sm:$0xff] %v1877
  %1910 = vst [vmem:[#allocation2 + $0x418] sm:$0xff] %v1878
  %1911 = vst [vmem:[#allocation2 + $0x460] sm:$0xff] %v1879
  %s1912 = scalar_lea.vmem %s0, 24
  %v1913 = vld [vmem:[%s1912] sm:$0xf]
  %v1914 = vld [vmem:[%s1912 + $0x4] sm:$0xf]
  %v1915 = vld [vmem:[%s1912 + $0xc] sm:$0xf]
  %v1916 = vld [vmem:[%s1912 + $0x10] sm:$0xf]
  %v1917 = vld [vmem:[%s1912 + $0x18] sm:$0xf]
  %v1918 = vld [vmem:[%s1912 + $0x1c] sm:$0xf]
  %v1919 = vld [vmem:[%s1912 + $0x24] sm:$0xf]
  %v1920 = vld [vmem:[%s1912 + $0x28] sm:$0xf]
  %v1921 = vld [vmem:[%s1912 + $0x30] sm:$0xf]
  %v1922 = vld [vmem:[%s1912 + $0x34] sm:$0xf]
  %v1923 = vld [vmem:[%s1912 + $0x3c] sm:$0xf]
  %v1924 = vld [vmem:[%s1912 + $0x40] sm:$0xf]
  %v1925 = vld [vmem:[%s1912 + $0x48] sm:$0xf]
  %v1926 = vld [vmem:[%s1912 + $0x4c] sm:$0xf]
  %v1927 = vld [vmem:[%s1912 + $0x54] sm:$0xf]
  %v1928 = vld [vmem:[%s1912 + $0x58] sm:$0xf]
  %v1929 = vld [vmem:[%s1912 + $0x60] sm:$0xf]
  %v1930 = vld [vmem:[%s1912 + $0x64] sm:$0xf]
  %v1931 = vld [vmem:[%s1912 + $0x6c] sm:$0xf]
  %v1932 = vld [vmem:[%s1912 + $0x70] sm:$0xf]
  %v1933 = vld [vmem:[%s1912 + $0x78] sm:$0xf]
  %v1934 = vld [vmem:[%s1912 + $0x7c] sm:$0xf]
  %v1935 = vld [vmem:[%s1912 + $0x84] sm:$0xf]
  %v1936 = vld [vmem:[%s1912 + $0x88] sm:$0xf]
  %v1937 = vld [vmem:[%s1912 + $0x90] sm:$0xf]
  %v1938 = vld [vmem:[%s1912 + $0x94] sm:$0xf]
  %v1939 = vld [vmem:[%s1912 + $0x9c] sm:$0xf]
  %v1940 = vld [vmem:[%s1912 + $0xa0] sm:$0xf]
  %v1941 = vld [vmem:[%s1912 + $0xa8] sm:$0xf]
  %v1942 = vld [vmem:[%s1912 + $0xac] sm:$0xf]
  %v1943 = vld [vmem:[%s1912 + $0xb4] sm:$0xf]
  %v1944 = vld [vmem:[%s1912 + $0xb8] sm:$0xf]
  %v1977 = vunpack.c.l.b16 %v1913
  %v1978 = vunpack.c.l.b16 %v1914
  %v1979 = vunpack.c.l.b16 %v1915
  %v1980 = vunpack.c.l.b16 %v1916
  %v1981 = vunpack.c.l.b16 %v1917
  %v1982 = vunpack.c.l.b16 %v1918
  %v1983 = vunpack.c.l.b16 %v1919
  %v1984 = vunpack.c.l.b16 %v1920
  %v1985 = vunpack.c.l.b16 %v1921
  %v1986 = vunpack.c.l.b16 %v1922
  %v1987 = vunpack.c.l.b16 %v1923
  %v1988 = vunpack.c.l.b16 %v1924
  %v1989 = vunpack.c.l.b16 %v1925
  %v1990 = vunpack.c.l.b16 %v1926
  %v1991 = vunpack.c.l.b16 %v1927
  %v1992 = vunpack.c.l.b16 %v1928
  %v1993 = vunpack.c.l.b16 %v1929
  %v1994 = vunpack.c.l.b16 %v1930
  %v1995 = vunpack.c.l.b16 %v1931
  %v1996 = vunpack.c.l.b16 %v1932
  %v1997 = vunpack.c.l.b16 %v1933
  %v1998 = vunpack.c.l.b16 %v1934
  %v1999 = vunpack.c.l.b16 %v1935
  %v2000 = vunpack.c.l.b16 %v1936
  %v2001 = vunpack.c.l.b16 %v1937
  %v2002 = vunpack.c.l.b16 %v1938
  %v2003 = vunpack.c.l.b16 %v1939
  %v2004 = vunpack.c.l.b16 %v1940
  %v2005 = vunpack.c.l.b16 %v1941
  %v2006 = vunpack.c.l.b16 %v1942
  %v2007 = vunpack.c.l.b16 %v1943
  %v2008 = vunpack.c.l.b16 %v1944
  %v2009 = vpack.c.b16 %v1978, %v1977
  %v2010 = vpack.c.b16 %v1980, %v1979
  %v2011 = vpack.c.b16 %v1982, %v1981
  %v2012 = vpack.c.b16 %v1984, %v1983
  %v2013 = vpack.c.b16 %v1986, %v1985
  %v2014 = vpack.c.b16 %v1988, %v1987
  %v2015 = vpack.c.b16 %v1990, %v1989
  %v2016 = vpack.c.b16 %v1992, %v1991
  %v2017 = vpack.c.b16 %v1994, %v1993
  %v2018 = vpack.c.b16 %v1996, %v1995
  %v2019 = vpack.c.b16 %v1998, %v1997
  %v2020 = vpack.c.b16 %v2000, %v1999
  %v2021 = vpack.c.b16 %v2002, %v2001
  %v2022 = vpack.c.b16 %v2004, %v2003
  %v2023 = vpack.c.b16 %v2006, %v2005
  %v2024 = vpack.c.b16 %v2008, %v2007
  %2041 = vst [vmem:[#allocation2 + $0x30] sm:$0xff] %v2009
  %2042 = vst [vmem:[#allocation2 + $0x78] sm:$0xff] %v2010
  %2043 = vst [vmem:[#allocation2 + $0xc0] sm:$0xff] %v2011
  %2044 = vst [vmem:[#allocation2 + $0x108] sm:$0xff] %v2012
  %2045 = vst [vmem:[#allocation2 + $0x150] sm:$0xff] %v2013
  %2046 = vst [vmem:[#allocation2 + $0x198] sm:$0xff] %v2014
  %2047 = vst [vmem:[#allocation2 + $0x1e0] sm:$0xff] %v2015
  %2048 = vst [vmem:[#allocation2 + $0x228] sm:$0xff] %v2016
  %2049 = vst [vmem:[#allocation2 + $0x270] sm:$0xff] %v2017
  %2050 = vst [vmem:[#allocation2 + $0x2b8] sm:$0xff] %v2018
  %2051 = vst [vmem:[#allocation2 + $0x300] sm:$0xff] %v2019
  %2052 = vst [vmem:[#allocation2 + $0x348] sm:$0xff] %v2020
  %2053 = vst [vmem:[#allocation2 + $0x390] sm:$0xff] %v2021
  %2054 = vst [vmem:[#allocation2 + $0x3d8] sm:$0xff] %v2022
  %2055 = vst [vmem:[#allocation2 + $0x420] sm:$0xff] %v2023
  %2056 = vst [vmem:[#allocation2 + $0x468] sm:$0xff] %v2024
  %v2057 = vld [vmem:[%s1912] sm:$0xf]
  %v2058 = vld [vmem:[%s1912 + $0x4] sm:$0xf]
  %v2059 = vld [vmem:[%s1912 + $0x8] sm:$0x1]
  %v2060 = vld [vmem:[%s1912 + $0xc] sm:$0xf]
  %v2061 = vld [vmem:[%s1912 + $0x10] sm:$0xf]
  %v2062 = vld [vmem:[%s1912 + $0x14] sm:$0x1]
  %v2063 = vld [vmem:[%s1912 + $0x18] sm:$0xf]
  %v2064 = vld [vmem:[%s1912 + $0x1c] sm:$0xf]
  %v2065 = vld [vmem:[%s1912 + $0x20] sm:$0x1]
  %v2066 = vld [vmem:[%s1912 + $0x24] sm:$0xf]
  %v2067 = vld [vmem:[%s1912 + $0x28] sm:$0xf]
  %v2068 = vld [vmem:[%s1912 + $0x2c] sm:$0x1]
  %v2069 = vld [vmem:[%s1912 + $0x30] sm:$0xf]
  %v2070 = vld [vmem:[%s1912 + $0x34] sm:$0xf]
  %v2071 = vld [vmem:[%s1912 + $0x38] sm:$0x1]
  %v2072 = vld [vmem:[%s1912 + $0x3c] sm:$0xf]
  %v2073 = vld [vmem:[%s1912 + $0x40] sm:$0xf]
  %v2074 = vld [vmem:[%s1912 + $0x44] sm:$0x1]
  %v2075 = vld [vmem:[%s1912 + $0x48] sm:$0xf]
  %v2076 = vld [vmem:[%s1912 + $0x4c] sm:$0xf]
  %v2077 = vld [vmem:[%s1912 + $0x50] sm:$0x1]
  %v2078 = vld [vmem:[%s1912 + $0x54] sm:$0xf]
  %v2079 = vld [vmem:[%s1912 + $0x58] sm:$0xf]
  %v2080 = vld [vmem:[%s1912 + $0x5c] sm:$0x1]
  %v2081 = vld [vmem:[%s1912 + $0x60] sm:$0xf]
  %v2082 = vld [vmem:[%s1912 + $0x64] sm:$0xf]
  %v2083 = vld [vmem:[%s1912 + $0x68] sm:$0x1]
  %v2084 = vld [vmem:[%s1912 + $0x6c] sm:$0xf]
  %v2085 = vld [vmem:[%s1912 + $0x70] sm:$0xf]
  %v2086 = vld [vmem:[%s1912 + $0x74] sm:$0x1]
  %v2087 = vld [vmem:[%s1912 + $0x78] sm:$0xf]
  %v2088 = vld [vmem:[%s1912 + $0x7c] sm:$0xf]
  %v2089 = vld [vmem:[%s1912 + $0x80] sm:$0x1]
  %v2090 = vld [vmem:[%s1912 + $0x84] sm:$0xf]
  %v2091 = vld [vmem:[%s1912 + $0x88] sm:$0xf]
  %v2092 = vld [vmem:[%s1912 + $0x8c] sm:$0x1]
  %v2093 = vld [vmem:[%s1912 + $0x90] sm:$0xf]
  %v2094 = vld [vmem:[%s1912 + $0x94] sm:$0xf]
  %v2095 = vld [vmem:[%s1912 + $0x98] sm:$0x1]
  %v2096 = vld [vmem:[%s1912 + $0x9c] sm:$0xf]
  %v2097 = vld [vmem:[%s1912 + $0xa0] sm:$0xf]
  %v2098 = vld [vmem:[%s1912 + $0xa4] sm:$0x1]
  %v2099 = vld [vmem:[%s1912 + $0xa8] sm:$0xf]
  %v2100 = vld [vmem:[%s1912 + $0xac] sm:$0xf]
  %v2101 = vld [vmem:[%s1912 + $0xb0] sm:$0x1]
  %v2102 = vld [vmem:[%s1912 + $0xb4] sm:$0xf]
  %v2103 = vld [vmem:[%s1912 + $0xb8] sm:$0xf]
  %v2104 = vld [vmem:[%s1912 + $0xbc] sm:$0x1]
  %v2106 = vshrl.u32 %v2057, 16
  %v2108 = vrot.slane %v2106, 4
  %v2109 = vshll.u32 %v2057, 16
  %v2111 = vrot.slane %v2109, 5
  %v2112 = vor.u32 %v2108, %v2111
  %v2113 = vrot.slane %v2112, 4
  %v2115 = vshll.u32 %v2058, 16
  %v2117 = vrot.slane %v2115, 5
  %v2118 = vsel %vm211, %v2113, %v2117
  %v2119 = vshrl.u32 %v2058, 16
  %v2121 = vrot.slane %v2119, 4
  %v2122 = vor.u32 %v2121, %v2117
  %v2123 = vrot.slane %v2122, 4
  %v2125 = vshll.u32 %v2059, 16
  %v2127 = vrot.slane %v2125, 5
  %v2128 = vsel %vm211, %v2123, %v2127
  %v2130 = vshrl.u32 %v2060, 16
  %v2132 = vrot.slane %v2130, 4
  %v2133 = vshll.u32 %v2060, 16
  %v2135 = vrot.slane %v2133, 5
  %v2136 = vor.u32 %v2132, %v2135
  %v2137 = vrot.slane %v2136, 4
  %v2139 = vshll.u32 %v2061, 16
  %v2141 = vrot.slane %v2139, 5
  %v2142 = vsel %vm211, %v2137, %v2141
  %v2143 = vshrl.u32 %v2061, 16
  %v2145 = vrot.slane %v2143, 4
  %v2146 = vor.u32 %v2145, %v2141
  %v2147 = vrot.slane %v2146, 4
  %v2149 = vshll.u32 %v2062, 16
  %v2151 = vrot.slane %v2149, 5
  %v2152 = vsel %vm211, %v2147, %v2151
  %v2154 = vshrl.u32 %v2063, 16
  %v2156 = vrot.slane %v2154, 4
  %v2157 = vshll.u32 %v2063, 16
  %v2159 = vrot.slane %v2157, 5
  %v2160 = vor.u32 %v2156, %v2159
  %v2161 = vrot.slane %v2160, 4
  %v2163 = vshll.u32 %v2064, 16
  %v2165 = vrot.slane %v2163, 5
  %v2166 = vsel %vm211, %v2161, %v2165
  %v2167 = vshrl.u32 %v2064, 16
  %v2169 = vrot.slane %v2167, 4
  %v2170 = vor.u32 %v2169, %v2165
  %v2171 = vrot.slane %v2170, 4
  %v2173 = vshll.u32 %v2065, 16
  %v2175 = vrot.slane %v2173, 5
  %v2176 = vsel %vm211, %v2171, %v2175
  %v2178 = vshrl.u32 %v2066, 16
  %v2180 = vrot.slane %v2178, 4
  %v2181 = vshll.u32 %v2066, 16
  %v2183 = vrot.slane %v2181, 5
  %v2184 = vor.u32 %v2180, %v2183
  %v2185 = vrot.slane %v2184, 4
  %v2187 = vshll.u32 %v2067, 16
  %v2189 = vrot.slane %v2187, 5
  %v2190 = vsel %vm211, %v2185, %v2189
  %v2191 = vshrl.u32 %v2067, 16
  %v2193 = vrot.slane %v2191, 4
  %v2194 = vor.u32 %v2193, %v2189
  %v2195 = vrot.slane %v2194, 4
  %v2197 = vshll.u32 %v2068, 16
  %v2199 = vrot.slane %v2197, 5
  %v2200 = vsel %vm211, %v2195, %v2199
  %v2202 = vshrl.u32 %v2069, 16
  %v2204 = vrot.slane %v2202, 4
  %v2205 = vshll.u32 %v2069, 16
  %v2207 = vrot.slane %v2205, 5
  %v2208 = vor.u32 %v2204, %v2207
  %v2209 = vrot.slane %v2208, 4
  %v2211 = vshll.u32 %v2070, 16
  %v2213 = vrot.slane %v2211, 5
  %v2214 = vsel %vm211, %v2209, %v2213
  %v2215 = vshrl.u32 %v2070, 16
  %v2217 = vrot.slane %v2215, 4
  %v2218 = vor.u32 %v2217, %v2213
  %v2219 = vrot.slane %v2218, 4
  %v2221 = vshll.u32 %v2071, 16
  %v2223 = vrot.slane %v2221, 5
  %v2224 = vsel %vm211, %v2219, %v2223
  %v2226 = vshrl.u32 %v2072, 16
  %v2228 = vrot.slane %v2226, 4
  %v2229 = vshll.u32 %v2072, 16
  %v2231 = vrot.slane %v2229, 5
  %v2232 = vor.u32 %v2228, %v2231
  %v2233 = vrot.slane %v2232, 4
  %v2235 = vshll.u32 %v2073, 16
  %v2237 = vrot.slane %v2235, 5
  %v2238 = vsel %vm211, %v2233, %v2237
  %v2239 = vshrl.u32 %v2073, 16
  %v2241 = vrot.slane %v2239, 4
  %v2242 = vor.u32 %v2241, %v2237
  %v2243 = vrot.slane %v2242, 4
  %v2245 = vshll.u32 %v2074, 16
  %v2247 = vrot.slane %v2245, 5
  %v2248 = vsel %vm211, %v2243, %v2247
  %v2250 = vshrl.u32 %v2075, 16
  %v2252 = vrot.slane %v2250, 4
  %v2253 = vshll.u32 %v2075, 16
  %v2255 = vrot.slane %v2253, 5
  %v2256 = vor.u32 %v2252, %v2255
  %v2257 = vrot.slane %v2256, 4
  %v2259 = vshll.u32 %v2076, 16
  %v2261 = vrot.slane %v2259, 5
  %v2262 = vsel %vm211, %v2257, %v2261
  %v2263 = vshrl.u32 %v2076, 16
  %v2265 = vrot.slane %v2263, 4
  %v2266 = vor.u32 %v2265, %v2261
  %v2267 = vrot.slane %v2266, 4
  %v2269 = vshll.u32 %v2077, 16
  %v2271 = vrot.slane %v2269, 5
  %v2272 = vsel %vm211, %v2267, %v2271
  %v2274 = vshrl.u32 %v2078, 16
  %v2276 = vrot.slane %v2274, 4
  %v2277 = vshll.u32 %v2078, 16
  %v2279 = vrot.slane %v2277, 5
  %v2280 = vor.u32 %v2276, %v2279
  %v2281 = vrot.slane %v2280, 4
  %v2283 = vshll.u32 %v2079, 16
  %v2285 = vrot.slane %v2283, 5
  %v2286 = vsel %vm211, %v2281, %v2285
  %v2287 = vshrl.u32 %v2079, 16
  %v2289 = vrot.slane %v2287, 4
  %v2290 = vor.u32 %v2289, %v2285
  %v2291 = vrot.slane %v2290, 4
  %v2293 = vshll.u32 %v2080, 16
  %v2295 = vrot.slane %v2293, 5
  %v2296 = vsel %vm211, %v2291, %v2295
  %v2298 = vshrl.u32 %v2081, 16
  %v2300 = vrot.slane %v2298, 4
  %v2301 = vshll.u32 %v2081, 16
  %v2303 = vrot.slane %v2301, 5
  %v2304 = vor.u32 %v2300, %v2303
  %v2305 = vrot.slane %v2304, 4
  %v2307 = vshll.u32 %v2082, 16
  %v2309 = vrot.slane %v2307, 5
  %v2310 = vsel %vm211, %v2305, %v2309
  %v2311 = vshrl.u32 %v2082, 16
  %v2313 = vrot.slane %v2311, 4
  %v2314 = vor.u32 %v2313, %v2309
  %v2315 = vrot.slane %v2314, 4
  %v2317 = vshll.u32 %v2083, 16
  %v2319 = vrot.slane %v2317, 5
  %v2320 = vsel %vm211, %v2315, %v2319
  %v2322 = vshrl.u32 %v2084, 16
  %v2324 = vrot.slane %v2322, 4
  %v2325 = vshll.u32 %v2084, 16
  %v2327 = vrot.slane %v2325, 5
  %v2328 = vor.u32 %v2324, %v2327
  %v2329 = vrot.slane %v2328, 4
  %v2331 = vshll.u32 %v2085, 16
  %v2333 = vrot.slane %v2331, 5
  %v2334 = vsel %vm211, %v2329, %v2333
  %v2335 = vshrl.u32 %v2085, 16
  %v2337 = vrot.slane %v2335, 4
  %v2338 = vor.u32 %v2337, %v2333
  %v2339 = vrot.slane %v2338, 4
  %v2341 = vshll.u32 %v2086, 16
  %v2343 = vrot.slane %v2341, 5
  %v2344 = vsel %vm211, %v2339, %v2343
  %v2346 = vshrl.u32 %v2087, 16
  %v2348 = vrot.slane %v2346, 4
  %v2349 = vshll.u32 %v2087, 16
  %v2351 = vrot.slane %v2349, 5
  %v2352 = vor.u32 %v2348, %v2351
  %v2353 = vrot.slane %v2352, 4
  %v2355 = vshll.u32 %v2088, 16
  %v2357 = vrot.slane %v2355, 5
  %v2358 = vsel %vm211, %v2353, %v2357
  %v2359 = vshrl.u32 %v2088, 16
  %v2361 = vrot.slane %v2359, 4
  %v2362 = vor.u32 %v2361, %v2357
  %v2363 = vrot.slane %v2362, 4
  %v2365 = vshll.u32 %v2089, 16
  %v2367 = vrot.slane %v2365, 5
  %v2368 = vsel %vm211, %v2363, %v2367
  %v2370 = vshrl.u32 %v2090, 16
  %v2372 = vrot.slane %v2370, 4
  %v2373 = vshll.u32 %v2090, 16
  %v2375 = vrot.slane %v2373, 5
  %v2376 = vor.u32 %v2372, %v2375
  %v2377 = vrot.slane %v2376, 4
  %v2379 = vshll.u32 %v2091, 16
  %v2381 = vrot.slane %v2379, 5
  %v2382 = vsel %vm211, %v2377, %v2381
  %v2383 = vshrl.u32 %v2091, 16
  %v2385 = vrot.slane %v2383, 4
  %v2386 = vor.u32 %v2385, %v2381
  %v2387 = vrot.slane %v2386, 4
  %v2389 = vshll.u32 %v2092, 16
  %v2391 = vrot.slane %v2389, 5
  %v2392 = vsel %vm211, %v2387, %v2391
  %v2394 = vshrl.u32 %v2093, 16
  %v2396 = vrot.slane %v2394, 4
  %v2397 = vshll.u32 %v2093, 16
  %v2399 = vrot.slane %v2397, 5
  %v2400 = vor.u32 %v2396, %v2399
  %v2401 = vrot.slane %v2400, 4
  %v2403 = vshll.u32 %v2094, 16
  %v2405 = vrot.slane %v2403, 5
  %v2406 = vsel %vm211, %v2401, %v2405
  %v2407 = vshrl.u32 %v2094, 16
  %v2409 = vrot.slane %v2407, 4
  %v2410 = vor.u32 %v2409, %v2405
  %v2411 = vrot.slane %v2410, 4
  %v2413 = vshll.u32 %v2095, 16
  %v2415 = vrot.slane %v2413, 5
  %v2416 = vsel %vm211, %v2411, %v2415
  %v2418 = vshrl.u32 %v2096, 16
  %v2420 = vrot.slane %v2418, 4
  %v2421 = vshll.u32 %v2096, 16
  %v2423 = vrot.slane %v2421, 5
  %v2424 = vor.u32 %v2420, %v2423
  %v2425 = vrot.slane %v2424, 4
  %v2427 = vshll.u32 %v2097, 16
  %v2429 = vrot.slane %v2427, 5
  %v2430 = vsel %vm211, %v2425, %v2429
  %v2431 = vshrl.u32 %v2097, 16
  %v2433 = vrot.slane %v2431, 4
  %v2434 = vor.u32 %v2433, %v2429
  %v2435 = vrot.slane %v2434, 4
  %v2437 = vshll.u32 %v2098, 16
  %v2439 = vrot.slane %v2437, 5
  %v2440 = vsel %vm211, %v2435, %v2439
  %v2442 = vshrl.u32 %v2099, 16
  %v2444 = vrot.slane %v2442, 4
  %v2445 = vshll.u32 %v2099, 16
  %v2447 = vrot.slane %v2445, 5
  %v2448 = vor.u32 %v2444, %v2447
  %v2449 = vrot.slane %v2448, 4
  %v2451 = vshll.u32 %v2100, 16
  %v2453 = vrot.slane %v2451, 5
  %v2454 = vsel %vm211, %v2449, %v2453
  %v2455 = vshrl.u32 %v2100, 16
  %v2457 = vrot.slane %v2455, 4
  %v2458 = vor.u32 %v2457, %v2453
  %v2459 = vrot.slane %v2458, 4
  %v2461 = vshll.u32 %v2101, 16
  %v2463 = vrot.slane %v2461, 5
  %v2464 = vsel %vm211, %v2459, %v2463
  %v2466 = vshrl.u32 %v2102, 16
  %v2468 = vrot.slane %v2466, 4
  %v2469 = vshll.u32 %v2102, 16
  %v2471 = vrot.slane %v2469, 5
  %v2472 = vor.u32 %v2468, %v2471
  %v2473 = vrot.slane %v2472, 4
  %v2475 = vshll.u32 %v2103, 16
  %v2477 = vrot.slane %v2475, 5
  %v2478 = vsel %vm211, %v2473, %v2477
  %v2479 = vshrl.u32 %v2103, 16
  %v2481 = vrot.slane %v2479, 4
  %v2482 = vor.u32 %v2481, %v2477
  %v2483 = vrot.slane %v2482, 4
  %v2485 = vshll.u32 %v2104, 16
  %v2487 = vrot.slane %v2485, 5
  %v2488 = vsel %vm211, %v2483, %v2487
  %v2489 = vunpack.c.l.b16 %v2118
  %v2490 = vunpack.c.l.b16 %v2128
  %v2491 = vunpack.c.l.b16 %v2142
  %v2492 = vunpack.c.l.b16 %v2152
  %v2493 = vunpack.c.l.b16 %v2166
  %v2494 = vunpack.c.l.b16 %v2176
  %v2495 = vunpack.c.l.b16 %v2190
  %v2496 = vunpack.c.l.b16 %v2200
  %v2497 = vunpack.c.l.b16 %v2214
  %v2498 = vunpack.c.l.b16 %v2224
  %v2499 = vunpack.c.l.b16 %v2238
  %v2500 = vunpack.c.l.b16 %v2248
  %v2501 = vunpack.c.l.b16 %v2262
  %v2502 = vunpack.c.l.b16 %v2272
  %v2503 = vunpack.c.l.b16 %v2286
  %v2504 = vunpack.c.l.b16 %v2296
  %v2505 = vunpack.c.l.b16 %v2310
  %v2506 = vunpack.c.l.b16 %v2320
  %v2507 = vunpack.c.l.b16 %v2334
  %v2508 = vunpack.c.l.b16 %v2344
  %v2509 = vunpack.c.l.b16 %v2358
  %v2510 = vunpack.c.l.b16 %v2368
  %v2511 = vunpack.c.l.b16 %v2382
  %v2512 = vunpack.c.l.b16 %v2392
  %v2513 = vunpack.c.l.b16 %v2406
  %v2514 = vunpack.c.l.b16 %v2416
  %v2515 = vunpack.c.l.b16 %v2430
  %v2516 = vunpack.c.l.b16 %v2440
  %v2517 = vunpack.c.l.b16 %v2454
  %v2518 = vunpack.c.l.b16 %v2464
  %v2519 = vunpack.c.l.b16 %v2478
  %v2520 = vunpack.c.l.b16 %v2488
  %v2521 = vpack.c.b16 %v2490, %v2489
  %v2522 = vpack.c.b16 %v2492, %v2491
  %v2523 = vpack.c.b16 %v2494, %v2493
  %v2524 = vpack.c.b16 %v2496, %v2495
  %v2525 = vpack.c.b16 %v2498, %v2497
  %v2526 = vpack.c.b16 %v2500, %v2499
  %v2527 = vpack.c.b16 %v2502, %v2501
  %v2528 = vpack.c.b16 %v2504, %v2503
  %v2529 = vpack.c.b16 %v2506, %v2505
  %v2530 = vpack.c.b16 %v2508, %v2507
  %v2531 = vpack.c.b16 %v2510, %v2509
  %v2532 = vpack.c.b16 %v2512, %v2511
  %v2533 = vpack.c.b16 %v2514, %v2513
  %v2534 = vpack.c.b16 %v2516, %v2515
  %v2535 = vpack.c.b16 %v2518, %v2517
  %v2536 = vpack.c.b16 %v2520, %v2519
  %2553 = vst [vmem:[#allocation2 + $0x38] sm:$0xff] %v2521
  %2554 = vst [vmem:[#allocation2 + $0x80] sm:$0xff] %v2522
  %2555 = vst [vmem:[#allocation2 + $0xc8] sm:$0xff] %v2523
  %2556 = vst [vmem:[#allocation2 + $0x110] sm:$0xff] %v2524
  %2557 = vst [vmem:[#allocation2 + $0x158] sm:$0xff] %v2525
  %2558 = vst [vmem:[#allocation2 + $0x1a0] sm:$0xff] %v2526
  %2559 = vst [vmem:[#allocation2 + $0x1e8] sm:$0xff] %v2527
  %2560 = vst [vmem:[#allocation2 + $0x230] sm:$0xff] %v2528
  %2561 = vst [vmem:[#allocation2 + $0x278] sm:$0xff] %v2529
  %2562 = vst [vmem:[#allocation2 + $0x2c0] sm:$0xff] %v2530
  %2563 = vst [vmem:[#allocation2 + $0x308] sm:$0xff] %v2531
  %2564 = vst [vmem:[#allocation2 + $0x350] sm:$0xff] %v2532
  %2565 = vst [vmem:[#allocation2 + $0x398] sm:$0xff] %v2533
  %2566 = vst [vmem:[#allocation2 + $0x3e0] sm:$0xff] %v2534
  %2567 = vst [vmem:[#allocation2 + $0x428] sm:$0xff] %v2535
  %2568 = vst [vmem:[#allocation2 + $0x470] sm:$0xff] %v2536
  %v2569 = vld [vmem:[%s1912] sm:$0xe]
  %v2570 = vld [vmem:[%s1912 + $0x4] sm:$0xf]
  %v2571 = vld [vmem:[%s1912 + $0x8] sm:$0x1]
  %v2572 = vld [vmem:[%s1912 + $0xc] sm:$0xe]
  %v2573 = vld [vmem:[%s1912 + $0x10] sm:$0xf]
  %v2574 = vld [vmem:[%s1912 + $0x14] sm:$0x1]
  %v2575 = vld [vmem:[%s1912 + $0x18] sm:$0xe]
  %v2576 = vld [vmem:[%s1912 + $0x1c] sm:$0xf]
  %v2577 = vld [vmem:[%s1912 + $0x20] sm:$0x1]
  %v2578 = vld [vmem:[%s1912 + $0x24] sm:$0xe]
  %v2579 = vld [vmem:[%s1912 + $0x28] sm:$0xf]
  %v2580 = vld [vmem:[%s1912 + $0x2c] sm:$0x1]
  %v2581 = vld [vmem:[%s1912 + $0x30] sm:$0xe]
  %v2582 = vld [vmem:[%s1912 + $0x34] sm:$0xf]
  %v2583 = vld [vmem:[%s1912 + $0x38] sm:$0x1]
  %v2584 = vld [vmem:[%s1912 + $0x3c] sm:$0xe]
  %v2585 = vld [vmem:[%s1912 + $0x40] sm:$0xf]
  %v2586 = vld [vmem:[%s1912 + $0x44] sm:$0x1]
  %v2587 = vld [vmem:[%s1912 + $0x48] sm:$0xe]
  %v2588 = vld [vmem:[%s1912 + $0x4c] sm:$0xf]
  %v2589 = vld [vmem:[%s1912 + $0x50] sm:$0x1]
  %v2590 = vld [vmem:[%s1912 + $0x54] sm:$0xe]
  %v2591 = vld [vmem:[%s1912 + $0x58] sm:$0xf]
  %v2592 = vld [vmem:[%s1912 + $0x5c] sm:$0x1]
  %v2593 = vld [vmem:[%s1912 + $0x60] sm:$0xe]
  %v2594 = vld [vmem:[%s1912 + $0x64] sm:$0xf]
  %v2595 = vld [vmem:[%s1912 + $0x68] sm:$0x1]
  %v2596 = vld [vmem:[%s1912 + $0x6c] sm:$0xe]
  %v2597 = vld [vmem:[%s1912 + $0x70] sm:$0xf]
  %v2598 = vld [vmem:[%s1912 + $0x74] sm:$0x1]
  %v2599 = vld [vmem:[%s1912 + $0x78] sm:$0xe]
  %v2600 = vld [vmem:[%s1912 + $0x7c] sm:$0xf]
  %v2601 = vld [vmem:[%s1912 + $0x80] sm:$0x1]
  %v2602 = vld [vmem:[%s1912 + $0x84] sm:$0xe]
  %v2603 = vld [vmem:[%s1912 + $0x88] sm:$0xf]
  %v2604 = vld [vmem:[%s1912 + $0x8c] sm:$0x1]
  %v2605 = vld [vmem:[%s1912 + $0x90] sm:$0xe]
  %v2606 = vld [vmem:[%s1912 + $0x94] sm:$0xf]
  %v2607 = vld [vmem:[%s1912 + $0x98] sm:$0x1]
  %v2608 = vld [vmem:[%s1912 + $0x9c] sm:$0xe]
  %v2609 = vld [vmem:[%s1912 + $0xa0] sm:$0xf]
  %v2610 = vld [vmem:[%s1912 + $0xa4] sm:$0x1]
  %v2611 = vld [vmem:[%s1912 + $0xa8] sm:$0xe]
  %v2612 = vld [vmem:[%s1912 + $0xac] sm:$0xf]
  %v2613 = vld [vmem:[%s1912 + $0xb0] sm:$0x1]
  %v2614 = vld [vmem:[%s1912 + $0xb4] sm:$0xe]
  %v2615 = vld [vmem:[%s1912 + $0xb8] sm:$0xf]
  %v2616 = vld [vmem:[%s1912 + $0xbc] sm:$0x1]
  %v2665 = vrot.slane %v2569, 5
  %v2666 = vrot.slane %v2665, 4
  %v2667 = vrot.slane %v2570, 5
  %v2668 = vsel %vm774, %v2666, %v2667
  %v2669 = vrot.slane %v2667, 4
  %v2670 = vrot.slane %v2571, 5
  %v2671 = vsel %vm774, %v2669, %v2670
  %v2672 = vrot.slane %v2572, 5
  %v2673 = vrot.slane %v2672, 4
  %v2674 = vrot.slane %v2573, 5
  %v2675 = vsel %vm774, %v2673, %v2674
  %v2676 = vrot.slane %v2674, 4
  %v2677 = vrot.slane %v2574, 5
  %v2678 = vsel %vm774, %v2676, %v2677
  %v2679 = vrot.slane %v2575, 5
  %v2680 = vrot.slane %v2679, 4
  %v2681 = vrot.slane %v2576, 5
  %v2682 = vsel %vm774, %v2680, %v2681
  %v2683 = vrot.slane %v2681, 4
  %v2684 = vrot.slane %v2577, 5
  %v2685 = vsel %vm774, %v2683, %v2684
  %v2686 = vrot.slane %v2578, 5
  %v2687 = vrot.slane %v2686, 4
  %v2688 = vrot.slane %v2579, 5
  %v2689 = vsel %vm774, %v2687, %v2688
  %v2690 = vrot.slane %v2688, 4
  %v2691 = vrot.slane %v2580, 5
  %v2692 = vsel %vm774, %v2690, %v2691
  %v2693 = vrot.slane %v2581, 5
  %v2694 = vrot.slane %v2693, 4
  %v2695 = vrot.slane %v2582, 5
  %v2696 = vsel %vm774, %v2694, %v2695
  %v2697 = vrot.slane %v2695, 4
  %v2698 = vrot.slane %v2583, 5
  %v2699 = vsel %vm774, %v2697, %v2698
  %v2700 = vrot.slane %v2584, 5
  %v2701 = vrot.slane %v2700, 4
  %v2702 = vrot.slane %v2585, 5
  %v2703 = vsel %vm774, %v2701, %v2702
  %v2704 = vrot.slane %v2702, 4
  %v2705 = vrot.slane %v2586, 5
  %v2706 = vsel %vm774, %v2704, %v2705
  %v2707 = vrot.slane %v2587, 5
  %v2708 = vrot.slane %v2707, 4
  %v2709 = vrot.slane %v2588, 5
  %v2710 = vsel %vm774, %v2708, %v2709
  %v2711 = vrot.slane %v2709, 4
  %v2712 = vrot.slane %v2589, 5
  %v2713 = vsel %vm774, %v2711, %v2712
  %v2714 = vrot.slane %v2590, 5
  %v2715 = vrot.slane %v2714, 4
  %v2716 = vrot.slane %v2591, 5
  %v2717 = vsel %vm774, %v2715, %v2716
  %v2718 = vrot.slane %v2716, 4
  %v2719 = vrot.slane %v2592, 5
  %v2720 = vsel %vm774, %v2718, %v2719
  %v2721 = vrot.slane %v2593, 5
  %v2722 = vrot.slane %v2721, 4
  %v2723 = vrot.slane %v2594, 5
  %v2724 = vsel %vm774, %v2722, %v2723
  %v2725 = vrot.slane %v2723, 4
  %v2726 = vrot.slane %v2595, 5
  %v2727 = vsel %vm774, %v2725, %v2726
  %v2728 = vrot.slane %v2596, 5
  %v2729 = vrot.slane %v2728, 4
  %v2730 = vrot.slane %v2597, 5
  %v2731 = vsel %vm774, %v2729, %v2730
  %v2732 = vrot.slane %v2730, 4
  %v2733 = vrot.slane %v2598, 5
  %v2734 = vsel %vm774, %v2732, %v2733
  %v2735 = vrot.slane %v2599, 5
  %v2736 = vrot.slane %v2735, 4
  %v2737 = vrot.slane %v2600, 5
  %v2738 = vsel %vm774, %v2736, %v2737
  %v2739 = vrot.slane %v2737, 4
  %v2740 = vrot.slane %v2601, 5
  %v2741 = vsel %vm774, %v2739, %v2740
  %v2742 = vrot.slane %v2602, 5
  %v2743 = vrot.slane %v2742, 4
  %v2744 = vrot.slane %v2603, 5
  %v2745 = vsel %vm774, %v2743, %v2744
  %v2746 = vrot.slane %v2744, 4
  %v2747 = vrot.slane %v2604, 5
  %v2748 = vsel %vm774, %v2746, %v2747
  %v2749 = vrot.slane %v2605, 5
  %v2750 = vrot.slane %v2749, 4
  %v2751 = vrot.slane %v2606, 5
  %v2752 = vsel %vm774, %v2750, %v2751
  %v2753 = vrot.slane %v2751, 4
  %v2754 = vrot.slane %v2607, 5
  %v2755 = vsel %vm774, %v2753, %v2754
  %v2756 = vrot.slane %v2608, 5
  %v2757 = vrot.slane %v2756, 4
  %v2758 = vrot.slane %v2609, 5
  %v2759 = vsel %vm774, %v2757, %v2758
  %v2760 = vrot.slane %v2758, 4
  %v2761 = vrot.slane %v2610, 5
  %v2762 = vsel %vm774, %v2760, %v2761
  %v2763 = vrot.slane %v2611, 5
  %v2764 = vrot.slane %v2763, 4
  %v2765 = vrot.slane %v2612, 5
  %v2766 = vsel %vm774, %v2764, %v2765
  %v2767 = vrot.slane %v2765, 4
  %v2768 = vrot.slane %v2613, 5
  %v2769 = vsel %vm774, %v2767, %v2768
  %v2770 = vrot.slane %v2614, 5
  %v2771 = vrot.slane %v2770, 4
  %v2772 = vrot.slane %v2615, 5
  %v2773 = vsel %vm774, %v2771, %v2772
  %v2774 = vrot.slane %v2772, 4
  %v2775 = vrot.slane %v2616, 5
  %v2776 = vsel %vm774, %v2774, %v2775
  %v2777 = vunpack.c.l.b16 %v2668
  %v2778 = vunpack.c.l.b16 %v2671
  %v2779 = vunpack.c.l.b16 %v2675
  %v2780 = vunpack.c.l.b16 %v2678
  %v2781 = vunpack.c.l.b16 %v2682
  %v2782 = vunpack.c.l.b16 %v2685
  %v2783 = vunpack.c.l.b16 %v2689
  %v2784 = vunpack.c.l.b16 %v2692
  %v2785 = vunpack.c.l.b16 %v2696
  %v2786 = vunpack.c.l.b16 %v2699
  %v2787 = vunpack.c.l.b16 %v2703
  %v2788 = vunpack.c.l.b16 %v2706
  %v2789 = vunpack.c.l.b16 %v2710
  %v2790 = vunpack.c.l.b16 %v2713
  %v2791 = vunpack.c.l.b16 %v2717
  %v2792 = vunpack.c.l.b16 %v2720
  %v2793 = vunpack.c.l.b16 %v2724
  %v2794 = vunpack.c.l.b16 %v2727
  %v2795 = vunpack.c.l.b16 %v2731
  %v2796 = vunpack.c.l.b16 %v2734
  %v2797 = vunpack.c.l.b16 %v2738
  %v2798 = vunpack.c.l.b16 %v2741
  %v2799 = vunpack.c.l.b16 %v2745
  %v2800 = vunpack.c.l.b16 %v2748
  %v2801 = vunpack.c.l.b16 %v2752
  %v2802 = vunpack.c.l.b16 %v2755
  %v2803 = vunpack.c.l.b16 %v2759
  %v2804 = vunpack.c.l.b16 %v2762
  %v2805 = vunpack.c.l.b16 %v2766
  %v2806 = vunpack.c.l.b16 %v2769
  %v2807 = vunpack.c.l.b16 %v2773
  %v2808 = vunpack.c.l.b16 %v2776
  %v2809 = vpack.c.b16 %v2778, %v2777
  %v2810 = vpack.c.b16 %v2780, %v2779
  %v2811 = vpack.c.b16 %v2782, %v2781
  %v2812 = vpack.c.b16 %v2784, %v2783
  %v2813 = vpack.c.b16 %v2786, %v2785
  %v2814 = vpack.c.b16 %v2788, %v2787
  %v2815 = vpack.c.b16 %v2790, %v2789
  %v2816 = vpack.c.b16 %v2792, %v2791
  %v2817 = vpack.c.b16 %v2794, %v2793
  %v2818 = vpack.c.b16 %v2796, %v2795
  %v2819 = vpack.c.b16 %v2798, %v2797
  %v2820 = vpack.c.b16 %v2800, %v2799
  %v2821 = vpack.c.b16 %v2802, %v2801
  %v2822 = vpack.c.b16 %v2804, %v2803
  %v2823 = vpack.c.b16 %v2806, %v2805
  %v2824 = vpack.c.b16 %v2808, %v2807
  %2841 = vst [vmem:[#allocation2 + $0x40] sm:$0xff] %v2809
  %2842 = vst [vmem:[#allocation2 + $0x88] sm:$0xff] %v2810
  %2843 = vst [vmem:[#allocation2 + $0xd0] sm:$0xff] %v2811
  %2844 = vst [vmem:[#allocation2 + $0x118] sm:$0xff] %v2812
  %2845 = vst [vmem:[#allocation2 + $0x160] sm:$0xff] %v2813
  %2846 = vst [vmem:[#allocation2 + $0x1a8] sm:$0xff] %v2814
  %2847 = vst [vmem:[#allocation2 + $0x1f0] sm:$0xff] %v2815
  %2848 = vst [vmem:[#allocation2 + $0x238] sm:$0xff] %v2816
  %2849 = vst [vmem:[#allocation2 + $0x280] sm:$0xff] %v2817
  %2850 = vst [vmem:[#allocation2 + $0x2c8] sm:$0xff] %v2818
  %2851 = vst [vmem:[#allocation2 + $0x310] sm:$0xff] %v2819
  %2852 = vst [vmem:[#allocation2 + $0x358] sm:$0xff] %v2820
  %2853 = vst [vmem:[#allocation2 + $0x3a0] sm:$0xff] %v2821
  %2854 = vst [vmem:[#allocation2 + $0x3e8] sm:$0xff] %v2822
  %2855 = vst [vmem:[#allocation2 + $0x430] sm:$0xff] %v2823
  %2856 = vst [vmem:[#allocation2 + $0x478] sm:$0xff] %v2824
  %s2857 = scalar_lea.vmem %s0, 216
  %v2858 = vld [vmem:[%s2857] sm:$0xf]
  %v2859 = vld [vmem:[%s2857 + $0x4] sm:$0xf]
  %v2860 = vld [vmem:[%s2857 + $0xc] sm:$0xf]
  %v2861 = vld [vmem:[%s2857 + $0x10] sm:$0xf]
  %v2862 = vld [vmem:[%s2857 + $0x18] sm:$0xf]
  %v2863 = vld [vmem:[%s2857 + $0x1c] sm:$0xf]
  %v2864 = vld [vmem:[%s2857 + $0x24] sm:$0xf]
  %v2865 = vld [vmem:[%s2857 + $0x28] sm:$0xf]
  %v2866 = vld [vmem:[%s2857 + $0x30] sm:$0xf]
  %v2867 = vld [vmem:[%s2857 + $0x34] sm:$0xf]
  %v2868 = vld [vmem:[%s2857 + $0x3c] sm:$0xf]
  %v2869 = vld [vmem:[%s2857 + $0x40] sm:$0xf]
  %v2870 = vld [vmem:[%s2857 + $0x48] sm:$0xf]
  %v2871 = vld [vmem:[%s2857 + $0x4c] sm:$0xf]
  %v2872 = vld [vmem:[%s2857 + $0x54] sm:$0xf]
  %v2873 = vld [vmem:[%s2857 + $0x58] sm:$0xf]
  %v2874 = vld [vmem:[%s2857 + $0x60] sm:$0xf]
  %v2875 = vld [vmem:[%s2857 + $0x64] sm:$0xf]
  %v2876 = vld [vmem:[%s2857 + $0x6c] sm:$0xf]
  %v2877 = vld [vmem:[%s2857 + $0x70] sm:$0xf]
  %v2878 = vld [vmem:[%s2857 + $0x78] sm:$0xf]
  %v2879 = vld [vmem:[%s2857 + $0x7c] sm:$0xf]
  %v2880 = vld [vmem:[%s2857 + $0x84] sm:$0xf]
  %v2881 = vld [vmem:[%s2857 + $0x88] sm:$0xf]
  %v2882 = vld [vmem:[%s2857 + $0x90] sm:$0xf]
  %v2883 = vld [vmem:[%s2857 + $0x94] sm:$0xf]
  %v2884 = vld [vmem:[%s2857 + $0x9c] sm:$0xf]
  %v2885 = vld [vmem:[%s2857 + $0xa0] sm:$0xf]
  %v2886 = vld [vmem:[%s2857 + $0xa8] sm:$0xf]
  %v2887 = vld [vmem:[%s2857 + $0xac] sm:$0xf]
  %v2888 = vld [vmem:[%s2857 + $0xb4] sm:$0xf]
  %v2889 = vld [vmem:[%s2857 + $0xb8] sm:$0xf]
  %v2922 = vunpack.c.l.b16 %v2858
  %v2923 = vunpack.c.l.b16 %v2859
  %v2924 = vunpack.c.l.b16 %v2860
  %v2925 = vunpack.c.l.b16 %v2861
  %v2926 = vunpack.c.l.b16 %v2862
  %v2927 = vunpack.c.l.b16 %v2863
  %v2928 = vunpack.c.l.b16 %v2864
  %v2929 = vunpack.c.l.b16 %v2865
  %v2930 = vunpack.c.l.b16 %v2866
  %v2931 = vunpack.c.l.b16 %v2867
  %v2932 = vunpack.c.l.b16 %v2868
  %v2933 = vunpack.c.l.b16 %v2869
  %v2934 = vunpack.c.l.b16 %v2870
  %v2935 = vunpack.c.l.b16 %v2871
  %v2936 = vunpack.c.l.b16 %v2872
  %v2937 = vunpack.c.l.b16 %v2873
  %v2938 = vunpack.c.l.b16 %v2874
  %v2939 = vunpack.c.l.b16 %v2875
  %v2940 = vunpack.c.l.b16 %v2876
  %v2941 = vunpack.c.l.b16 %v2877
  %v2942 = vunpack.c.l.b16 %v2878
  %v2943 = vunpack.c.l.b16 %v2879
  %v2944 = vunpack.c.l.b16 %v2880
  %v2945 = vunpack.c.l.b16 %v2881
  %v2946 = vunpack.c.l.b16 %v2882
  %v2947 = vunpack.c.l.b16 %v2883
  %v2948 = vunpack.c.l.b16 %v2884
  %v2949 = vunpack.c.l.b16 %v2885
  %v2950 = vunpack.c.l.b16 %v2886
  %v2951 = vunpack.c.l.b16 %v2887
  %v2952 = vunpack.c.l.b16 %v2888
  %v2953 = vunpack.c.l.b16 %v2889
  %v2954 = vpack.c.b16 %v2923, %v2922
  %v2955 = vpack.c.b16 %v2925, %v2924
  %v2956 = vpack.c.b16 %v2927, %v2926
  %v2957 = vpack.c.b16 %v2929, %v2928
  %v2958 = vpack.c.b16 %v2931, %v2930
  %v2959 = vpack.c.b16 %v2933, %v2932
  %v2960 = vpack.c.b16 %v2935, %v2934
  %v2961 = vpack.c.b16 %v2937, %v2936
  %v2962 = vpack.c.b16 %v2939, %v2938
  %v2963 = vpack.c.b16 %v2941, %v2940
  %v2964 = vpack.c.b16 %v2943, %v2942
  %v2965 = vpack.c.b16 %v2945, %v2944
  %v2966 = vpack.c.b16 %v2947, %v2946
  %v2967 = vpack.c.b16 %v2949, %v2948
  %v2968 = vpack.c.b16 %v2951, %v2950
  %v2969 = vpack.c.b16 %v2953, %v2952
  %2986 = vst [vmem:[#allocation2 + $0x480] sm:$0xff] %v2954
  %2987 = vst [vmem:[#allocation2 + $0x4c8] sm:$0xff] %v2955
  %2988 = vst [vmem:[#allocation2 + $0x510] sm:$0xff] %v2956
  %2989 = vst [vmem:[#allocation2 + $0x558] sm:$0xff] %v2957
  %2990 = vst [vmem:[#allocation2 + $0x5a0] sm:$0xff] %v2958
  %2991 = vst [vmem:[#allocation2 + $0x5e8] sm:$0xff] %v2959
  %2992 = vst [vmem:[#allocation2 + $0x630] sm:$0xff] %v2960
  %2993 = vst [vmem:[#allocation2 + $0x678] sm:$0xff] %v2961
  %2994 = vst [vmem:[#allocation2 + $0x6c0] sm:$0xff] %v2962
  %2995 = vst [vmem:[#allocation2 + $0x708] sm:$0xff] %v2963
  %2996 = vst [vmem:[#allocation2 + $0x750] sm:$0xff] %v2964
  %2997 = vst [vmem:[#allocation2 + $0x798] sm:$0xff] %v2965
  %2998 = vst [vmem:[#allocation2 + $0x7e0] sm:$0xff] %v2966
  %2999 = vst [vmem:[#allocation2 + $0x828] sm:$0xff] %v2967
  %3000 = vst [vmem:[#allocation2 + $0x870] sm:$0xff] %v2968
  %3001 = vst [vmem:[#allocation2 + $0x8b8] sm:$0xff] %v2969
  %v3002 = vld [vmem:[%s2857] sm:$0xf]
  %v3003 = vld [vmem:[%s2857 + $0x4] sm:$0xf]
  %v3004 = vld [vmem:[%s2857 + $0x8] sm:$0x1]
  %v3005 = vld [vmem:[%s2857 + $0xc] sm:$0xf]
  %v3006 = vld [vmem:[%s2857 + $0x10] sm:$0xf]
  %v3007 = vld [vmem:[%s2857 + $0x14] sm:$0x1]
  %v3008 = vld [vmem:[%s2857 + $0x18] sm:$0xf]
  %v3009 = vld [vmem:[%s2857 + $0x1c] sm:$0xf]
  %v3010 = vld [vmem:[%s2857 + $0x20] sm:$0x1]
  %v3011 = vld [vmem:[%s2857 + $0x24] sm:$0xf]
  %v3012 = vld [vmem:[%s2857 + $0x28] sm:$0xf]
  %v3013 = vld [vmem:[%s2857 + $0x2c] sm:$0x1]
  %v3014 = vld [vmem:[%s2857 + $0x30] sm:$0xf]
  %v3015 = vld [vmem:[%s2857 + $0x34] sm:$0xf]
  %v3016 = vld [vmem:[%s2857 + $0x38] sm:$0x1]
  %v3017 = vld [vmem:[%s2857 + $0x3c] sm:$0xf]
  %v3018 = vld [vmem:[%s2857 + $0x40] sm:$0xf]
  %v3019 = vld [vmem:[%s2857 + $0x44] sm:$0x1]
  %v3020 = vld [vmem:[%s2857 + $0x48] sm:$0xf]
  %v3021 = vld [vmem:[%s2857 + $0x4c] sm:$0xf]
  %v3022 = vld [vmem:[%s2857 + $0x50] sm:$0x1]
  %v3023 = vld [vmem:[%s2857 + $0x54] sm:$0xf]
  %v3024 = vld [vmem:[%s2857 + $0x58] sm:$0xf]
  %v3025 = vld [vmem:[%s2857 + $0x5c] sm:$0x1]
  %v3026 = vld [vmem:[%s2857 + $0x60] sm:$0xf]
  %v3027 = vld [vmem:[%s2857 + $0x64] sm:$0xf]
  %v3028 = vld [vmem:[%s2857 + $0x68] sm:$0x1]
  %v3029 = vld [vmem:[%s2857 + $0x6c] sm:$0xf]
  %v3030 = vld [vmem:[%s2857 + $0x70] sm:$0xf]
  %v3031 = vld [vmem:[%s2857 + $0x74] sm:$0x1]
  %v3032 = vld [vmem:[%s2857 + $0x78] sm:$0xf]
  %v3033 = vld [vmem:[%s2857 + $0x7c] sm:$0xf]
  %v3034 = vld [vmem:[%s2857 + $0x80] sm:$0x1]
  %v3035 = vld [vmem:[%s2857 + $0x84] sm:$0xf]
  %v3036 = vld [vmem:[%s2857 + $0x88] sm:$0xf]
  %v3037 = vld [vmem:[%s2857 + $0x8c] sm:$0x1]
  %v3038 = vld [vmem:[%s2857 + $0x90] sm:$0xf]
  %v3039 = vld [vmem:[%s2857 + $0x94] sm:$0xf]
  %v3040 = vld [vmem:[%s2857 + $0x98] sm:$0x1]
  %v3041 = vld [vmem:[%s2857 + $0x9c] sm:$0xf]
  %v3042 = vld [vmem:[%s2857 + $0xa0] sm:$0xf]
  %v3043 = vld [vmem:[%s2857 + $0xa4] sm:$0x1]
  %v3044 = vld [vmem:[%s2857 + $0xa8] sm:$0xf]
  %v3045 = vld [vmem:[%s2857 + $0xac] sm:$0xf]
  %v3046 = vld [vmem:[%s2857 + $0xb0] sm:$0x1]
  %v3047 = vld [vmem:[%s2857 + $0xb4] sm:$0xf]
  %v3048 = vld [vmem:[%s2857 + $0xb8] sm:$0xf]
  %v3049 = vld [vmem:[%s2857 + $0xbc] sm:$0x1]
  %v3051 = vshrl.u32 %v3002, 16
  %v3053 = vrot.slane %v3051, 4
  %v3054 = vshll.u32 %v3002, 16
  %v3056 = vrot.slane %v3054, 5
  %v3057 = vor.u32 %v3053, %v3056
  %v3058 = vrot.slane %v3057, 4
  %v3060 = vshll.u32 %v3003, 16
  %v3062 = vrot.slane %v3060, 5
  %v3063 = vsel %vm211, %v3058, %v3062
  %v3064 = vshrl.u32 %v3003, 16
  %v3066 = vrot.slane %v3064, 4
  %v3067 = vor.u32 %v3066, %v3062
  %v3068 = vrot.slane %v3067, 4
  %v3070 = vshll.u32 %v3004, 16
  %v3072 = vrot.slane %v3070, 5
  %v3073 = vsel %vm211, %v3068, %v3072
  %v3075 = vshrl.u32 %v3005, 16
  %v3077 = vrot.slane %v3075, 4
  %v3078 = vshll.u32 %v3005, 16
  %v3080 = vrot.slane %v3078, 5
  %v3081 = vor.u32 %v3077, %v3080
  %v3082 = vrot.slane %v3081, 4
  %v3084 = vshll.u32 %v3006, 16
  %v3086 = vrot.slane %v3084, 5
  %v3087 = vsel %vm211, %v3082, %v3086
  %v3088 = vshrl.u32 %v3006, 16
  %v3090 = vrot.slane %v3088, 4
  %v3091 = vor.u32 %v3090, %v3086
  %v3092 = vrot.slane %v3091, 4
  %v3094 = vshll.u32 %v3007, 16
  %v3096 = vrot.slane %v3094, 5
  %v3097 = vsel %vm211, %v3092, %v3096
  %v3099 = vshrl.u32 %v3008, 16
  %v3101 = vrot.slane %v3099, 4
  %v3102 = vshll.u32 %v3008, 16
  %v3104 = vrot.slane %v3102, 5
  %v3105 = vor.u32 %v3101, %v3104
  %v3106 = vrot.slane %v3105, 4
  %v3108 = vshll.u32 %v3009, 16
  %v3110 = vrot.slane %v3108, 5
  %v3111 = vsel %vm211, %v3106, %v3110
  %v3112 = vshrl.u32 %v3009, 16
  %v3114 = vrot.slane %v3112, 4
  %v3115 = vor.u32 %v3114, %v3110
  %v3116 = vrot.slane %v3115, 4
  %v3118 = vshll.u32 %v3010, 16
  %v3120 = vrot.slane %v3118, 5
  %v3121 = vsel %vm211, %v3116, %v3120
  %v3123 = vshrl.u32 %v3011, 16
  %v3125 = vrot.slane %v3123, 4
  %v3126 = vshll.u32 %v3011, 16
  %v3128 = vrot.slane %v3126, 5
  %v3129 = vor.u32 %v3125, %v3128
  %v3130 = vrot.slane %v3129, 4
  %v3132 = vshll.u32 %v3012, 16
  %v3134 = vrot.slane %v3132, 5
  %v3135 = vsel %vm211, %v3130, %v3134
  %v3136 = vshrl.u32 %v3012, 16
  %v3138 = vrot.slane %v3136, 4
  %v3139 = vor.u32 %v3138, %v3134
  %v3140 = vrot.slane %v3139, 4
  %v3142 = vshll.u32 %v3013, 16
  %v3144 = vrot.slane %v3142, 5
  %v3145 = vsel %vm211, %v3140, %v3144
  %v3147 = vshrl.u32 %v3014, 16
  %v3149 = vrot.slane %v3147, 4
  %v3150 = vshll.u32 %v3014, 16
  %v3152 = vrot.slane %v3150, 5
  %v3153 = vor.u32 %v3149, %v3152
  %v3154 = vrot.slane %v3153, 4
  %v3156 = vshll.u32 %v3015, 16
  %v3158 = vrot.slane %v3156, 5
  %v3159 = vsel %vm211, %v3154, %v3158
  %v3160 = vshrl.u32 %v3015, 16
  %v3162 = vrot.slane %v3160, 4
  %v3163 = vor.u32 %v3162, %v3158
  %v3164 = vrot.slane %v3163, 4
  %v3166 = vshll.u32 %v3016, 16
  %v3168 = vrot.slane %v3166, 5
  %v3169 = vsel %vm211, %v3164, %v3168
  %v3171 = vshrl.u32 %v3017, 16
  %v3173 = vrot.slane %v3171, 4
  %v3174 = vshll.u32 %v3017, 16
  %v3176 = vrot.slane %v3174, 5
  %v3177 = vor.u32 %v3173, %v3176
  %v3178 = vrot.slane %v3177, 4
  %v3180 = vshll.u32 %v3018, 16
  %v3182 = vrot.slane %v3180, 5
  %v3183 = vsel %vm211, %v3178, %v3182
  %v3184 = vshrl.u32 %v3018, 16
  %v3186 = vrot.slane %v3184, 4
  %v3187 = vor.u32 %v3186, %v3182
  %v3188 = vrot.slane %v3187, 4
  %v3190 = vshll.u32 %v3019, 16
  %v3192 = vrot.slane %v3190, 5
  %v3193 = vsel %vm211, %v3188, %v3192
  %v3195 = vshrl.u32 %v3020, 16
  %v3197 = vrot.slane %v3195, 4
  %v3198 = vshll.u32 %v3020, 16
  %v3200 = vrot.slane %v3198, 5
  %v3201 = vor.u32 %v3197, %v3200
  %v3202 = vrot.slane %v3201, 4
  %v3204 = vshll.u32 %v3021, 16
  %v3206 = vrot.slane %v3204, 5
  %v3207 = vsel %vm211, %v3202, %v3206
  %v3208 = vshrl.u32 %v3021, 16
  %v3210 = vrot.slane %v3208, 4
  %v3211 = vor.u32 %v3210, %v3206
  %v3212 = vrot.slane %v3211, 4
  %v3214 = vshll.u32 %v3022, 16
  %v3216 = vrot.slane %v3214, 5
  %v3217 = vsel %vm211, %v3212, %v3216
  %v3219 = vshrl.u32 %v3023, 16
  %v3221 = vrot.slane %v3219, 4
  %v3222 = vshll.u32 %v3023, 16
  %v3224 = vrot.slane %v3222, 5
  %v3225 = vor.u32 %v3221, %v3224
  %v3226 = vrot.slane %v3225, 4
  %v3228 = vshll.u32 %v3024, 16
  %v3230 = vrot.slane %v3228, 5
  %v3231 = vsel %vm211, %v3226, %v3230
  %v3232 = vshrl.u32 %v3024, 16
  %v3234 = vrot.slane %v3232, 4
  %v3235 = vor.u32 %v3234, %v3230
  %v3236 = vrot.slane %v3235, 4
  %v3238 = vshll.u32 %v3025, 16
  %v3240 = vrot.slane %v3238, 5
  %v3241 = vsel %vm211, %v3236, %v3240
  %v3243 = vshrl.u32 %v3026, 16
  %v3245 = vrot.slane %v3243, 4
  %v3246 = vshll.u32 %v3026, 16
  %v3248 = vrot.slane %v3246, 5
  %v3249 = vor.u32 %v3245, %v3248
  %v3250 = vrot.slane %v3249, 4
  %v3252 = vshll.u32 %v3027, 16
  %v3254 = vrot.slane %v3252, 5
  %v3255 = vsel %vm211, %v3250, %v3254
  %v3256 = vshrl.u32 %v3027, 16
  %v3258 = vrot.slane %v3256, 4
  %v3259 = vor.u32 %v3258, %v3254
  %v3260 = vrot.slane %v3259, 4
  %v3262 = vshll.u32 %v3028, 16
  %v3264 = vrot.slane %v3262, 5
  %v3265 = vsel %vm211, %v3260, %v3264
  %v3267 = vshrl.u32 %v3029, 16
  %v3269 = vrot.slane %v3267, 4
  %v3270 = vshll.u32 %v3029, 16
  %v3272 = vrot.slane %v3270, 5
  %v3273 = vor.u32 %v3269, %v3272
  %v3274 = vrot.slane %v3273, 4
  %v3276 = vshll.u32 %v3030, 16
  %v3278 = vrot.slane %v3276, 5
  %v3279 = vsel %vm211, %v3274, %v3278
  %v3280 = vshrl.u32 %v3030, 16
  %v3282 = vrot.slane %v3280, 4
  %v3283 = vor.u32 %v3282, %v3278
  %v3284 = vrot.slane %v3283, 4
  %v3286 = vshll.u32 %v3031, 16
  %v3288 = vrot.slane %v3286, 5
  %v3289 = vsel %vm211, %v3284, %v3288
  %v3291 = vshrl.u32 %v3032, 16
  %v3293 = vrot.slane %v3291, 4
  %v3294 = vshll.u32 %v3032, 16
  %v3296 = vrot.slane %v3294, 5
  %v3297 = vor.u32 %v3293, %v3296
  %v3298 = vrot.slane %v3297, 4
  %v3300 = vshll.u32 %v3033, 16
  %v3302 = vrot.slane %v3300, 5
  %v3303 = vsel %vm211, %v3298, %v3302
  %v3304 = vshrl.u32 %v3033, 16
  %v3306 = vrot.slane %v3304, 4
  %v3307 = vor.u32 %v3306, %v3302
  %v3308 = vrot.slane %v3307, 4
  %v3310 = vshll.u32 %v3034, 16
  %v3312 = vrot.slane %v3310, 5
  %v3313 = vsel %vm211, %v3308, %v3312
  %v3315 = vshrl.u32 %v3035, 16
  %v3317 = vrot.slane %v3315, 4
  %v3318 = vshll.u32 %v3035, 16
  %v3320 = vrot.slane %v3318, 5
  %v3321 = vor.u32 %v3317, %v3320
  %v3322 = vrot.slane %v3321, 4
  %v3324 = vshll.u32 %v3036, 16
  %v3326 = vrot.slane %v3324, 5
  %v3327 = vsel %vm211, %v3322, %v3326
  %v3328 = vshrl.u32 %v3036, 16
  %v3330 = vrot.slane %v3328, 4
  %v3331 = vor.u32 %v3330, %v3326
  %v3332 = vrot.slane %v3331, 4
  %v3334 = vshll.u32 %v3037, 16
  %v3336 = vrot.slane %v3334, 5
  %v3337 = vsel %vm211, %v3332, %v3336
  %v3339 = vshrl.u32 %v3038, 16
  %v3341 = vrot.slane %v3339, 4
  %v3342 = vshll.u32 %v3038, 16
  %v3344 = vrot.slane %v3342, 5
  %v3345 = vor.u32 %v3341, %v3344
  %v3346 = vrot.slane %v3345, 4
  %v3348 = vshll.u32 %v3039, 16
  %v3350 = vrot.slane %v3348, 5
  %v3351 = vsel %vm211, %v3346, %v3350
  %v3352 = vshrl.u32 %v3039, 16
  %v3354 = vrot.slane %v3352, 4
  %v3355 = vor.u32 %v3354, %v3350
  %v3356 = vrot.slane %v3355, 4
  %v3358 = vshll.u32 %v3040, 16
  %v3360 = vrot.slane %v3358, 5
  %v3361 = vsel %vm211, %v3356, %v3360
  %v3363 = vshrl.u32 %v3041, 16
  %v3365 = vrot.slane %v3363, 4
  %v3366 = vshll.u32 %v3041, 16
  %v3368 = vrot.slane %v3366, 5
  %v3369 = vor.u32 %v3365, %v3368
  %v3370 = vrot.slane %v3369, 4
  %v3372 = vshll.u32 %v3042, 16
  %v3374 = vrot.slane %v3372, 5
  %v3375 = vsel %vm211, %v3370, %v3374
  %v3376 = vshrl.u32 %v3042, 16
  %v3378 = vrot.slane %v3376, 4
  %v3379 = vor.u32 %v3378, %v3374
  %v3380 = vrot.slane %v3379, 4
  %v3382 = vshll.u32 %v3043, 16
  %v3384 = vrot.slane %v3382, 5
  %v3385 = vsel %vm211, %v3380, %v3384
  %v3387 = vshrl.u32 %v3044, 16
  %v3389 = vrot.slane %v3387, 4
  %v3390 = vshll.u32 %v3044, 16
  %v3392 = vrot.slane %v3390, 5
  %v3393 = vor.u32 %v3389, %v3392
  %v3394 = vrot.slane %v3393, 4
  %v3396 = vshll.u32 %v3045, 16
  %v3398 = vrot.slane %v3396, 5
  %v3399 = vsel %vm211, %v3394, %v3398
  %v3400 = vshrl.u32 %v3045, 16
  %v3402 = vrot.slane %v3400, 4
  %v3403 = vor.u32 %v3402, %v3398
  %v3404 = vrot.slane %v3403, 4
  %v3406 = vshll.u32 %v3046, 16
  %v3408 = vrot.slane %v3406, 5
  %v3409 = vsel %vm211, %v3404, %v3408
  %v3411 = vshrl.u32 %v3047, 16
  %v3413 = vrot.slane %v3411, 4
  %v3414 = vshll.u32 %v3047, 16
  %v3416 = vrot.slane %v3414, 5
  %v3417 = vor.u32 %v3413, %v3416
  %v3418 = vrot.slane %v3417, 4
  %v3420 = vshll.u32 %v3048, 16
  %v3422 = vrot.slane %v3420, 5
  %v3423 = vsel %vm211, %v3418, %v3422
  %v3424 = vshrl.u32 %v3048, 16
  %v3426 = vrot.slane %v3424, 4
  %v3427 = vor.u32 %v3426, %v3422
  %v3428 = vrot.slane %v3427, 4
  %v3430 = vshll.u32 %v3049, 16
  %v3432 = vrot.slane %v3430, 5
  %v3433 = vsel %vm211, %v3428, %v3432
  %v3434 = vunpack.c.l.b16 %v3063
  %v3435 = vunpack.c.l.b16 %v3073
  %v3436 = vunpack.c.l.b16 %v3087
  %v3437 = vunpack.c.l.b16 %v3097
  %v3438 = vunpack.c.l.b16 %v3111
  %v3439 = vunpack.c.l.b16 %v3121
  %v3440 = vunpack.c.l.b16 %v3135
  %v3441 = vunpack.c.l.b16 %v3145
  %v3442 = vunpack.c.l.b16 %v3159
  %v3443 = vunpack.c.l.b16 %v3169
  %v3444 = vunpack.c.l.b16 %v3183
  %v3445 = vunpack.c.l.b16 %v3193
  %v3446 = vunpack.c.l.b16 %v3207
  %v3447 = vunpack.c.l.b16 %v3217
  %v3448 = vunpack.c.l.b16 %v3231
  %v3449 = vunpack.c.l.b16 %v3241
  %v3450 = vunpack.c.l.b16 %v3255
  %v3451 = vunpack.c.l.b16 %v3265
  %v3452 = vunpack.c.l.b16 %v3279
  %v3453 = vunpack.c.l.b16 %v3289
  %v3454 = vunpack.c.l.b16 %v3303
  %v3455 = vunpack.c.l.b16 %v3313
  %v3456 = vunpack.c.l.b16 %v3327
  %v3457 = vunpack.c.l.b16 %v3337
  %v3458 = vunpack.c.l.b16 %v3351
  %v3459 = vunpack.c.l.b16 %v3361
  %v3460 = vunpack.c.l.b16 %v3375
  %v3461 = vunpack.c.l.b16 %v3385
  %v3462 = vunpack.c.l.b16 %v3399
  %v3463 = vunpack.c.l.b16 %v3409
  %v3464 = vunpack.c.l.b16 %v3423
  %v3465 = vunpack.c.l.b16 %v3433
  %v3466 = vpack.c.b16 %v3435, %v3434
  %v3467 = vpack.c.b16 %v3437, %v3436
  %v3468 = vpack.c.b16 %v3439, %v3438
  %v3469 = vpack.c.b16 %v3441, %v3440
  %v3470 = vpack.c.b16 %v3443, %v3442
  %v3471 = vpack.c.b16 %v3445, %v3444
  %v3472 = vpack.c.b16 %v3447, %v3446
  %v3473 = vpack.c.b16 %v3449, %v3448
  %v3474 = vpack.c.b16 %v3451, %v3450
  %v3475 = vpack.c.b16 %v3453, %v3452
  %v3476 = vpack.c.b16 %v3455, %v3454
  %v3477 = vpack.c.b16 %v3457, %v3456
  %v3478 = vpack.c.b16 %v3459, %v3458
  %v3479 = vpack.c.b16 %v3461, %v3460
  %v3480 = vpack.c.b16 %v3463, %v3462
  %v3481 = vpack.c.b16 %v3465, %v3464
  %3498 = vst [vmem:[#allocation2 + $0x488] sm:$0xff] %v3466
  %3499 = vst [vmem:[#allocation2 + $0x4d0] sm:$0xff] %v3467
  %3500 = vst [vmem:[#allocation2 + $0x518] sm:$0xff] %v3468
  %3501 = vst [vmem:[#allocation2 + $0x560] sm:$0xff] %v3469
  %3502 = vst [vmem:[#allocation2 + $0x5a8] sm:$0xff] %v3470
  %3503 = vst [vmem:[#allocation2 + $0x5f0] sm:$0xff] %v3471
  %3504 = vst [vmem:[#allocation2 + $0x638] sm:$0xff] %v3472
  %3505 = vst [vmem:[#allocation2 + $0x680] sm:$0xff] %v3473
  %3506 = vst [vmem:[#allocation2 + $0x6c8] sm:$0xff] %v3474
  %3507 = vst [vmem:[#allocation2 + $0x710] sm:$0xff] %v3475
  %3508 = vst [vmem:[#allocation2 + $0x758] sm:$0xff] %v3476
  %3509 = vst [vmem:[#allocation2 + $0x7a0] sm:$0xff] %v3477
  %3510 = vst [vmem:[#allocation2 + $0x7e8] sm:$0xff] %v3478
  %3511 = vst [vmem:[#allocation2 + $0x830] sm:$0xff] %v3479
  %3512 = vst [vmem:[#allocation2 + $0x878] sm:$0xff] %v3480
  %3513 = vst [vmem:[#allocation2 + $0x8c0] sm:$0xff] %v3481
  %v3514 = vld [vmem:[%s2857] sm:$0xe]
  %v3515 = vld [vmem:[%s2857 + $0x4] sm:$0xf]
  %v3516 = vld [vmem:[%s2857 + $0x8] sm:$0x1]
  %v3517 = vld [vmem:[%s2857 + $0xc] sm:$0xe]
  %v3518 = vld [vmem:[%s2857 + $0x10] sm:$0xf]
  %v3519 = vld [vmem:[%s2857 + $0x14] sm:$0x1]
  %v3520 = vld [vmem:[%s2857 + $0x18] sm:$0xe]
  %v3521 = vld [vmem:[%s2857 + $0x1c] sm:$0xf]
  %v3522 = vld [vmem:[%s2857 + $0x20] sm:$0x1]
  %v3523 = vld [vmem:[%s2857 + $0x24] sm:$0xe]
  %v3524 = vld [vmem:[%s2857 + $0x28] sm:$0xf]
  %v3525 = vld [vmem:[%s2857 + $0x2c] sm:$0x1]
  %v3526 = vld [vmem:[%s2857 + $0x30] sm:$0xe]
  %v3527 = vld [vmem:[%s2857 + $0x34] sm:$0xf]
  %v3528 = vld [vmem:[%s2857 + $0x38] sm:$0x1]
  %v3529 = vld [vmem:[%s2857 + $0x3c] sm:$0xe]
  %v3530 = vld [vmem:[%s2857 + $0x40] sm:$0xf]
  %v3531 = vld [vmem:[%s2857 + $0x44] sm:$0x1]
  %v3532 = vld [vmem:[%s2857 + $0x48] sm:$0xe]
  %v3533 = vld [vmem:[%s2857 + $0x4c] sm:$0xf]
  %v3534 = vld [vmem:[%s2857 + $0x50] sm:$0x1]
  %v3535 = vld [vmem:[%s2857 + $0x54] sm:$0xe]
  %v3536 = vld [vmem:[%s2857 + $0x58] sm:$0xf]
  %v3537 = vld [vmem:[%s2857 + $0x5c] sm:$0x1]
  %v3538 = vld [vmem:[%s2857 + $0x60] sm:$0xe]
  %v3539 = vld [vmem:[%s2857 + $0x64] sm:$0xf]
  %v3540 = vld [vmem:[%s2857 + $0x68] sm:$0x1]
  %v3541 = vld [vmem:[%s2857 + $0x6c] sm:$0xe]
  %v3542 = vld [vmem:[%s2857 + $0x70] sm:$0xf]
  %v3543 = vld [vmem:[%s2857 + $0x74] sm:$0x1]
  %v3544 = vld [vmem:[%s2857 + $0x78] sm:$0xe]
  %v3545 = vld [vmem:[%s2857 + $0x7c] sm:$0xf]
  %v3546 = vld [vmem:[%s2857 + $0x80] sm:$0x1]
  %v3547 = vld [vmem:[%s2857 + $0x84] sm:$0xe]
  %v3548 = vld [vmem:[%s2857 + $0x88] sm:$0xf]
  %v3549 = vld [vmem:[%s2857 + $0x8c] sm:$0x1]
  %v3550 = vld [vmem:[%s2857 + $0x90] sm:$0xe]
  %v3551 = vld [vmem:[%s2857 + $0x94] sm:$0xf]
  %v3552 = vld [vmem:[%s2857 + $0x98] sm:$0x1]
  %v3553 = vld [vmem:[%s2857 + $0x9c] sm:$0xe]
  %v3554 = vld [vmem:[%s2857 + $0xa0] sm:$0xf]
  %v3555 = vld [vmem:[%s2857 + $0xa4] sm:$0x1]
  %v3556 = vld [vmem:[%s2857 + $0xa8] sm:$0xe]
  %v3557 = vld [vmem:[%s2857 + $0xac] sm:$0xf]
  %v3558 = vld [vmem:[%s2857 + $0xb0] sm:$0x1]
  %v3559 = vld [vmem:[%s2857 + $0xb4] sm:$0xe]
  %v3560 = vld [vmem:[%s2857 + $0xb8] sm:$0xf]
  %v3561 = vld [vmem:[%s2857 + $0xbc] sm:$0x1]
  %v3610 = vrot.slane %v3514, 5
  %v3611 = vrot.slane %v3610, 4
  %v3612 = vrot.slane %v3515, 5
  %v3613 = vsel %vm774, %v3611, %v3612
  %v3614 = vrot.slane %v3612, 4
  %v3615 = vrot.slane %v3516, 5
  %v3616 = vsel %vm774, %v3614, %v3615
  %v3617 = vrot.slane %v3517, 5
  %v3618 = vrot.slane %v3617, 4
  %v3619 = vrot.slane %v3518, 5
  %v3620 = vsel %vm774, %v3618, %v3619
  %v3621 = vrot.slane %v3619, 4
  %v3622 = vrot.slane %v3519, 5
  %v3623 = vsel %vm774, %v3621, %v3622
  %v3624 = vrot.slane %v3520, 5
  %v3625 = vrot.slane %v3624, 4
  %v3626 = vrot.slane %v3521, 5
  %v3627 = vsel %vm774, %v3625, %v3626
  %v3628 = vrot.slane %v3626, 4
  %v3629 = vrot.slane %v3522, 5
  %v3630 = vsel %vm774, %v3628, %v3629
  %v3631 = vrot.slane %v3523, 5
  %v3632 = vrot.slane %v3631, 4
  %v3633 = vrot.slane %v3524, 5
  %v3634 = vsel %vm774, %v3632, %v3633
  %v3635 = vrot.slane %v3633, 4
  %v3636 = vrot.slane %v3525, 5
  %v3637 = vsel %vm774, %v3635, %v3636
  %v3638 = vrot.slane %v3526, 5
  %v3639 = vrot.slane %v3638, 4
  %v3640 = vrot.slane %v3527, 5
  %v3641 = vsel %vm774, %v3639, %v3640
  %v3642 = vrot.slane %v3640, 4
  %v3643 = vrot.slane %v3528, 5
  %v3644 = vsel %vm774, %v3642, %v3643
  %v3645 = vrot.slane %v3529, 5
  %v3646 = vrot.slane %v3645, 4
  %v3647 = vrot.slane %v3530, 5
  %v3648 = vsel %vm774, %v3646, %v3647
  %v3649 = vrot.slane %v3647, 4
  %v3650 = vrot.slane %v3531, 5
  %v3651 = vsel %vm774, %v3649, %v3650
  %v3652 = vrot.slane %v3532, 5
  %v3653 = vrot.slane %v3652, 4
  %v3654 = vrot.slane %v3533, 5
  %v3655 = vsel %vm774, %v3653, %v3654
  %v3656 = vrot.slane %v3654, 4
  %v3657 = vrot.slane %v3534, 5
  %v3658 = vsel %vm774, %v3656, %v3657
  %v3659 = vrot.slane %v3535, 5
  %v3660 = vrot.slane %v3659, 4
  %v3661 = vrot.slane %v3536, 5
  %v3662 = vsel %vm774, %v3660, %v3661
  %v3663 = vrot.slane %v3661, 4
  %v3664 = vrot.slane %v3537, 5
  %v3665 = vsel %vm774, %v3663, %v3664
  %v3666 = vrot.slane %v3538, 5
  %v3667 = vrot.slane %v3666, 4
  %v3668 = vrot.slane %v3539, 5
  %v3669 = vsel %vm774, %v3667, %v3668
  %v3670 = vrot.slane %v3668, 4
  %v3671 = vrot.slane %v3540, 5
  %v3672 = vsel %vm774, %v3670, %v3671
  %v3673 = vrot.slane %v3541, 5
  %v3674 = vrot.slane %v3673, 4
  %v3675 = vrot.slane %v3542, 5
  %v3676 = vsel %vm774, %v3674, %v3675
  %v3677 = vrot.slane %v3675, 4
  %v3678 = vrot.slane %v3543, 5
  %v3679 = vsel %vm774, %v3677, %v3678
  %v3680 = vrot.slane %v3544, 5
  %v3681 = vrot.slane %v3680, 4
  %v3682 = vrot.slane %v3545, 5
  %v3683 = vsel %vm774, %v3681, %v3682
  %v3684 = vrot.slane %v3682, 4
  %v3685 = vrot.slane %v3546, 5
  %v3686 = vsel %vm774, %v3684, %v3685
  %v3687 = vrot.slane %v3547, 5
  %v3688 = vrot.slane %v3687, 4
  %v3689 = vrot.slane %v3548, 5
  %v3690 = vsel %vm774, %v3688, %v3689
  %v3691 = vrot.slane %v3689, 4
  %v3692 = vrot.slane %v3549, 5
  %v3693 = vsel %vm774, %v3691, %v3692
  %v3694 = vrot.slane %v3550, 5
  %v3695 = vrot.slane %v3694, 4
  %v3696 = vrot.slane %v3551, 5
  %v3697 = vsel %vm774, %v3695, %v3696
  %v3698 = vrot.slane %v3696, 4
  %v3699 = vrot.slane %v3552, 5
  %v3700 = vsel %vm774, %v3698, %v3699
  %v3701 = vrot.slane %v3553, 5
  %v3702 = vrot.slane %v3701, 4
  %v3703 = vrot.slane %v3554, 5
  %v3704 = vsel %vm774, %v3702, %v3703
  %v3705 = vrot.slane %v3703, 4
  %v3706 = vrot.slane %v3555, 5
  %v3707 = vsel %vm774, %v3705, %v3706
  %v3708 = vrot.slane %v3556, 5
  %v3709 = vrot.slane %v3708, 4
  %v3710 = vrot.slane %v3557, 5
  %v3711 = vsel %vm774, %v3709, %v3710
  %v3712 = vrot.slane %v3710, 4
  %v3713 = vrot.slane %v3558, 5
  %v3714 = vsel %vm774, %v3712, %v3713
  %v3715 = vrot.slane %v3559, 5
  %v3716 = vrot.slane %v3715, 4
  %v3717 = vrot.slane %v3560, 5
  %v3718 = vsel %vm774, %v3716, %v3717
  %v3719 = vrot.slane %v3717, 4
  %v3720 = vrot.slane %v3561, 5
  %v3721 = vsel %vm774, %v3719, %v3720
  %v3722 = vunpack.c.l.b16 %v3613
  %v3723 = vunpack.c.l.b16 %v3616
  %v3724 = vunpack.c.l.b16 %v3620
  %v3725 = vunpack.c.l.b16 %v3623
  %v3726 = vunpack.c.l.b16 %v3627
  %v3727 = vunpack.c.l.b16 %v3630
  %v3728 = vunpack.c.l.b16 %v3634
  %v3729 = vunpack.c.l.b16 %v3637
  %v3730 = vunpack.c.l.b16 %v3641
  %v3731 = vunpack.c.l.b16 %v3644
  %v3732 = vunpack.c.l.b16 %v3648
  %v3733 = vunpack.c.l.b16 %v3651
  %v3734 = vunpack.c.l.b16 %v3655
  %v3735 = vunpack.c.l.b16 %v3658
  %v3736 = vunpack.c.l.b16 %v3662
  %v3737 = vunpack.c.l.b16 %v3665
  %v3738 = vunpack.c.l.b16 %v3669
  %v3739 = vunpack.c.l.b16 %v3672
  %v3740 = vunpack.c.l.b16 %v3676
  %v3741 = vunpack.c.l.b16 %v3679
  %v3742 = vunpack.c.l.b16 %v3683
  %v3743 = vunpack.c.l.b16 %v3686
  %v3744 = vunpack.c.l.b16 %v3690
  %v3745 = vunpack.c.l.b16 %v3693
  %v3746 = vunpack.c.l.b16 %v3697
  %v3747 = vunpack.c.l.b16 %v3700
  %v3748 = vunpack.c.l.b16 %v3704
  %v3749 = vunpack.c.l.b16 %v3707
  %v3750 = vunpack.c.l.b16 %v3711
  %v3751 = vunpack.c.l.b16 %v3714
  %v3752 = vunpack.c.l.b16 %v3718
  %v3753 = vunpack.c.l.b16 %v3721
  %v3754 = vpack.c.b16 %v3723, %v3722
  %v3755 = vpack.c.b16 %v3725, %v3724
  %v3756 = vpack.c.b16 %v3727, %v3726
  %v3757 = vpack.c.b16 %v3729, %v3728
  %v3758 = vpack.c.b16 %v3731, %v3730
  %v3759 = vpack.c.b16 %v3733, %v3732
  %v3760 = vpack.c.b16 %v3735, %v3734
  %v3761 = vpack.c.b16 %v3737, %v3736
  %v3762 = vpack.c.b16 %v3739, %v3738
  %v3763 = vpack.c.b16 %v3741, %v3740
  %v3764 = vpack.c.b16 %v3743, %v3742
  %v3765 = vpack.c.b16 %v3745, %v3744
  %v3766 = vpack.c.b16 %v3747, %v3746
  %v3767 = vpack.c.b16 %v3749, %v3748
  %v3768 = vpack.c.b16 %v3751, %v3750
  %v3769 = vpack.c.b16 %v3753, %v3752
  %3786 = vst [vmem:[#allocation2 + $0x490] sm:$0xff] %v3754
  %3787 = vst [vmem:[#allocation2 + $0x4d8] sm:$0xff] %v3755
  %3788 = vst [vmem:[#allocation2 + $0x520] sm:$0xff] %v3756
  %3789 = vst [vmem:[#allocation2 + $0x568] sm:$0xff] %v3757
  %3790 = vst [vmem:[#allocation2 + $0x5b0] sm:$0xff] %v3758
  %3791 = vst [vmem:[#allocation2 + $0x5f8] sm:$0xff] %v3759
  %3792 = vst [vmem:[#allocation2 + $0x640] sm:$0xff] %v3760
  %3793 = vst [vmem:[#allocation2 + $0x688] sm:$0xff] %v3761
  %3794 = vst [vmem:[#allocation2 + $0x6d0] sm:$0xff] %v3762
  %3795 = vst [vmem:[#allocation2 + $0x718] sm:$0xff] %v3763
  %3796 = vst [vmem:[#allocation2 + $0x760] sm:$0xff] %v3764
  %3797 = vst [vmem:[#allocation2 + $0x7a8] sm:$0xff] %v3765
  %3798 = vst [vmem:[#allocation2 + $0x7f0] sm:$0xff] %v3766
  %3799 = vst [vmem:[#allocation2 + $0x838] sm:$0xff] %v3767
  %3800 = vst [vmem:[#allocation2 + $0x880] sm:$0xff] %v3768
  %3801 = vst [vmem:[#allocation2 + $0x8c8] sm:$0xff] %v3769
  %s3802 = scalar_lea.vmem %s0, 228
  %v3803 = vld [vmem:[%s3802] sm:$0xf]
  %v3804 = vld [vmem:[%s3802 + $0x4] sm:$0xf]
  %v3805 = vld [vmem:[%s3802 + $0xc] sm:$0xf]
  %v3806 = vld [vmem:[%s3802 + $0x10] sm:$0xf]
  %v3807 = vld [vmem:[%s3802 + $0x18] sm:$0xf]
  %v3808 = vld [vmem:[%s3802 + $0x1c] sm:$0xf]
  %v3809 = vld [vmem:[%s3802 + $0x24] sm:$0xf]
  %v3810 = vld [vmem:[%s3802 + $0x28] sm:$0xf]
  %v3811 = vld [vmem:[%s3802 + $0x30] sm:$0xf]
  %v3812 = vld [vmem:[%s3802 + $0x34] sm:$0xf]
  %v3813 = vld [vmem:[%s3802 + $0x3c] sm:$0xf]
  %v3814 = vld [vmem:[%s3802 + $0x40] sm:$0xf]
  %v3815 = vld [vmem:[%s3802 + $0x48] sm:$0xf]
  %v3816 = vld [vmem:[%s3802 + $0x4c] sm:$0xf]
  %v3817 = vld [vmem:[%s3802 + $0x54] sm:$0xf]
  %v3818 = vld [vmem:[%s3802 + $0x58] sm:$0xf]
  %v3819 = vld [vmem:[%s3802 + $0x60] sm:$0xf]
  %v3820 = vld [vmem:[%s3802 + $0x64] sm:$0xf]
  %v3821 = vld [vmem:[%s3802 + $0x6c] sm:$0xf]
  %v3822 = vld [vmem:[%s3802 + $0x70] sm:$0xf]
  %v3823 = vld [vmem:[%s3802 + $0x78] sm:$0xf]
  %v3824 = vld [vmem:[%s3802 + $0x7c] sm:$0xf]
  %v3825 = vld [vmem:[%s3802 + $0x84] sm:$0xf]
  %v3826 = vld [vmem:[%s3802 + $0x88] sm:$0xf]
  %v3827 = vld [vmem:[%s3802 + $0x90] sm:$0xf]
  %v3828 = vld [vmem:[%s3802 + $0x94] sm:$0xf]
  %v3829 = vld [vmem:[%s3802 + $0x9c] sm:$0xf]
  %v3830 = vld [vmem:[%s3802 + $0xa0] sm:$0xf]
  %v3831 = vld [vmem:[%s3802 + $0xa8] sm:$0xf]
  %v3832 = vld [vmem:[%s3802 + $0xac] sm:$0xf]
  %v3833 = vld [vmem:[%s3802 + $0xb4] sm:$0xf]
  %v3834 = vld [vmem:[%s3802 + $0xb8] sm:$0xf]
  %v3867 = vunpack.c.l.b16 %v3803
  %v3868 = vunpack.c.l.b16 %v3804
  %v3869 = vunpack.c.l.b16 %v3805
  %v3870 = vunpack.c.l.b16 %v3806
  %v3871 = vunpack.c.l.b16 %v3807
  %v3872 = vunpack.c.l.b16 %v3808
  %v3873 = vunpack.c.l.b16 %v3809
  %v3874 = vunpack.c.l.b16 %v3810
  %v3875 = vunpack.c.l.b16 %v3811
  %v3876 = vunpack.c.l.b16 %v3812
  %v3877 = vunpack.c.l.b16 %v3813
  %v3878 = vunpack.c.l.b16 %v3814
  %v3879 = vunpack.c.l.b16 %v3815
  %v3880 = vunpack.c.l.b16 %v3816
  %v3881 = vunpack.c.l.b16 %v3817
  %v3882 = vunpack.c.l.b16 %v3818
  %v3883 = vunpack.c.l.b16 %v3819
  %v3884 = vunpack.c.l.b16 %v3820
  %v3885 = vunpack.c.l.b16 %v3821
  %v3886 = vunpack.c.l.b16 %v3822
  %v3887 = vunpack.c.l.b16 %v3823
  %v3888 = vunpack.c.l.b16 %v3824
  %v3889 = vunpack.c.l.b16 %v3825
  %v3890 = vunpack.c.l.b16 %v3826
  %v3891 = vunpack.c.l.b16 %v3827
  %v3892 = vunpack.c.l.b16 %v3828
  %v3893 = vunpack.c.l.b16 %v3829
  %v3894 = vunpack.c.l.b16 %v3830
  %v3895 = vunpack.c.l.b16 %v3831
  %v3896 = vunpack.c.l.b16 %v3832
  %v3897 = vunpack.c.l.b16 %v3833
  %v3898 = vunpack.c.l.b16 %v3834
  %v3899 = vpack.c.b16 %v3868, %v3867
  %v3900 = vpack.c.b16 %v3870, %v3869
  %v3901 = vpack.c.b16 %v3872, %v3871
  %v3902 = vpack.c.b16 %v3874, %v3873
  %v3903 = vpack.c.b16 %v3876, %v3875
  %v3904 = vpack.c.b16 %v3878, %v3877
  %v3905 = vpack.c.b16 %v3880, %v3879
  %v3906 = vpack.c.b16 %v3882, %v3881
  %v3907 = vpack.c.b16 %v3884, %v3883
  %v3908 = vpack.c.b16 %v3886, %v3885
  %v3909 = vpack.c.b16 %v3888, %v3887
  %v3910 = vpack.c.b16 %v3890, %v3889
  %v3911 = vpack.c.b16 %v3892, %v3891
  %v3912 = vpack.c.b16 %v3894, %v3893
  %v3913 = vpack.c.b16 %v3896, %v3895
  %v3914 = vpack.c.b16 %v3898, %v3897
  %3931 = vst [vmem:[#allocation2 + $0x498] sm:$0xff] %v3899
  %3932 = vst [vmem:[#allocation2 + $0x4e0] sm:$0xff] %v3900
  %3933 = vst [vmem:[#allocation2 + $0x528] sm:$0xff] %v3901
  %3934 = vst [vmem:[#allocation2 + $0x570] sm:$0xff] %v3902
  %3935 = vst [vmem:[#allocation2 + $0x5b8] sm:$0xff] %v3903
  %3936 = vst [vmem:[#allocation2 + $0x600] sm:$0xff] %v3904
  %3937 = vst [vmem:[#allocation2 + $0x648] sm:$0xff] %v3905
  %3938 = vst [vmem:[#allocation2 + $0x690] sm:$0xff] %v3906
  %3939 = vst [vmem:[#allocation2 + $0x6d8] sm:$0xff] %v3907
  %3940 = vst [vmem:[#allocation2 + $0x720] sm:$0xff] %v3908
  %3941 = vst [vmem:[#allocation2 + $0x768] sm:$0xff] %v3909
  %3942 = vst [vmem:[#allocation2 + $0x7b0] sm:$0xff] %v3910
  %3943 = vst [vmem:[#allocation2 + $0x7f8] sm:$0xff] %v3911
  %3944 = vst [vmem:[#allocation2 + $0x840] sm:$0xff] %v3912
  %3945 = vst [vmem:[#allocation2 + $0x888] sm:$0xff] %v3913
  %3946 = vst [vmem:[#allocation2 + $0x8d0] sm:$0xff] %v3914
  %v3947 = vld [vmem:[%s3802] sm:$0xf]
  %v3948 = vld [vmem:[%s3802 + $0x4] sm:$0xf]
  %v3949 = vld [vmem:[%s3802 + $0x8] sm:$0x1]
  %v3950 = vld [vmem:[%s3802 + $0xc] sm:$0xf]
  %v3951 = vld [vmem:[%s3802 + $0x10] sm:$0xf]
  %v3952 = vld [vmem:[%s3802 + $0x14] sm:$0x1]
  %v3953 = vld [vmem:[%s3802 + $0x18] sm:$0xf]
  %v3954 = vld [vmem:[%s3802 + $0x1c] sm:$0xf]
  %v3955 = vld [vmem:[%s3802 + $0x20] sm:$0x1]
  %v3956 = vld [vmem:[%s3802 + $0x24] sm:$0xf]
  %v3957 = vld [vmem:[%s3802 + $0x28] sm:$0xf]
  %v3958 = vld [vmem:[%s3802 + $0x2c] sm:$0x1]
  %v3959 = vld [vmem:[%s3802 + $0x30] sm:$0xf]
  %v3960 = vld [vmem:[%s3802 + $0x34] sm:$0xf]
  %v3961 = vld [vmem:[%s3802 + $0x38] sm:$0x1]
  %v3962 = vld [vmem:[%s3802 + $0x3c] sm:$0xf]
  %v3963 = vld [vmem:[%s3802 + $0x40] sm:$0xf]
  %v3964 = vld [vmem:[%s3802 + $0x44] sm:$0x1]
  %v3965 = vld [vmem:[%s3802 + $0x48] sm:$0xf]
  %v3966 = vld [vmem:[%s3802 + $0x4c] sm:$0xf]
  %v3967 = vld [vmem:[%s3802 + $0x50] sm:$0x1]
  %v3968 = vld [vmem:[%s3802 + $0x54] sm:$0xf]
  %v3969 = vld [vmem:[%s3802 + $0x58] sm:$0xf]
  %v3970 = vld [vmem:[%s3802 + $0x5c] sm:$0x1]
  %v3971 = vld [vmem:[%s3802 + $0x60] sm:$0xf]
  %v3972 = vld [vmem:[%s3802 + $0x64] sm:$0xf]
  %v3973 = vld [vmem:[%s3802 + $0x68] sm:$0x1]
  %v3974 = vld [vmem:[%s3802 + $0x6c] sm:$0xf]
  %v3975 = vld [vmem:[%s3802 + $0x70] sm:$0xf]
  %v3976 = vld [vmem:[%s3802 + $0x74] sm:$0x1]
  %v3977 = vld [vmem:[%s3802 + $0x78] sm:$0xf]
  %v3978 = vld [vmem:[%s3802 + $0x7c] sm:$0xf]
  %v3979 = vld [vmem:[%s3802 + $0x80] sm:$0x1]
  %v3980 = vld [vmem:[%s3802 + $0x84] sm:$0xf]
  %v3981 = vld [vmem:[%s3802 + $0x88] sm:$0xf]
  %v3982 = vld [vmem:[%s3802 + $0x8c] sm:$0x1]
  %v3983 = vld [vmem:[%s3802 + $0x90] sm:$0xf]
  %v3984 = vld [vmem:[%s3802 + $0x94] sm:$0xf]
  %v3985 = vld [vmem:[%s3802 + $0x98] sm:$0x1]
  %v3986 = vld [vmem:[%s3802 + $0x9c] sm:$0xf]
  %v3987 = vld [vmem:[%s3802 + $0xa0] sm:$0xf]
  %v3988 = vld [vmem:[%s3802 + $0xa4] sm:$0x1]
  %v3989 = vld [vmem:[%s3802 + $0xa8] sm:$0xf]
  %v3990 = vld [vmem:[%s3802 + $0xac] sm:$0xf]
  %v3991 = vld [vmem:[%s3802 + $0xb0] sm:$0x1]
  %v3992 = vld [vmem:[%s3802 + $0xb4] sm:$0xf]
  %v3993 = vld [vmem:[%s3802 + $0xb8] sm:$0xf]
  %v3994 = vld [vmem:[%s3802 + $0xbc] sm:$0x1]
  %v3996 = vshrl.u32 %v3947, 16
  %v3998 = vrot.slane %v3996, 4
  %v3999 = vshll.u32 %v3947, 16
  %v4001 = vrot.slane %v3999, 5
  %v4002 = vor.u32 %v3998, %v4001
  %v4003 = vrot.slane %v4002, 4
  %v4005 = vshll.u32 %v3948, 16
  %v4007 = vrot.slane %v4005, 5
  %v4008 = vsel %vm211, %v4003, %v4007
  %v4009 = vshrl.u32 %v3948, 16
  %v4011 = vrot.slane %v4009, 4
  %v4012 = vor.u32 %v4011, %v4007
  %v4013 = vrot.slane %v4012, 4
  %v4015 = vshll.u32 %v3949, 16
  %v4017 = vrot.slane %v4015, 5
  %v4018 = vsel %vm211, %v4013, %v4017
  %v4020 = vshrl.u32 %v3950, 16
  %v4022 = vrot.slane %v4020, 4
  %v4023 = vshll.u32 %v3950, 16
  %v4025 = vrot.slane %v4023, 5
  %v4026 = vor.u32 %v4022, %v4025
  %v4027 = vrot.slane %v4026, 4
  %v4029 = vshll.u32 %v3951, 16
  %v4031 = vrot.slane %v4029, 5
  %v4032 = vsel %vm211, %v4027, %v4031
  %v4033 = vshrl.u32 %v3951, 16
  %v4035 = vrot.slane %v4033, 4
  %v4036 = vor.u32 %v4035, %v4031
  %v4037 = vrot.slane %v4036, 4
  %v4039 = vshll.u32 %v3952, 16
  %v4041 = vrot.slane %v4039, 5
  %v4042 = vsel %vm211, %v4037, %v4041
  %v4044 = vshrl.u32 %v3953, 16
  %v4046 = vrot.slane %v4044, 4
  %v4047 = vshll.u32 %v3953, 16
  %v4049 = vrot.slane %v4047, 5
  %v4050 = vor.u32 %v4046, %v4049
  %v4051 = vrot.slane %v4050, 4
  %v4053 = vshll.u32 %v3954, 16
  %v4055 = vrot.slane %v4053, 5
  %v4056 = vsel %vm211, %v4051, %v4055
  %v4057 = vshrl.u32 %v3954, 16
  %v4059 = vrot.slane %v4057, 4
  %v4060 = vor.u32 %v4059, %v4055
  %v4061 = vrot.slane %v4060, 4
  %v4063 = vshll.u32 %v3955, 16
  %v4065 = vrot.slane %v4063, 5
  %v4066 = vsel %vm211, %v4061, %v4065
  %v4068 = vshrl.u32 %v3956, 16
  %v4070 = vrot.slane %v4068, 4
  %v4071 = vshll.u32 %v3956, 16
  %v4073 = vrot.slane %v4071, 5
  %v4074 = vor.u32 %v4070, %v4073
  %v4075 = vrot.slane %v4074, 4
  %v4077 = vshll.u32 %v3957, 16
  %v4079 = vrot.slane %v4077, 5
  %v4080 = vsel %vm211, %v4075, %v4079
  %v4081 = vshrl.u32 %v3957, 16
  %v4083 = vrot.slane %v4081, 4
  %v4084 = vor.u32 %v4083, %v4079
  %v4085 = vrot.slane %v4084, 4
  %v4087 = vshll.u32 %v3958, 16
  %v4089 = vrot.slane %v4087, 5
  %v4090 = vsel %vm211, %v4085, %v4089
  %v4092 = vshrl.u32 %v3959, 16
  %v4094 = vrot.slane %v4092, 4
  %v4095 = vshll.u32 %v3959, 16
  %v4097 = vrot.slane %v4095, 5
  %v4098 = vor.u32 %v4094, %v4097
  %v4099 = vrot.slane %v4098, 4
  %v4101 = vshll.u32 %v3960, 16
  %v4103 = vrot.slane %v4101, 5
  %v4104 = vsel %vm211, %v4099, %v4103
  %v4105 = vshrl.u32 %v3960, 16
  %v4107 = vrot.slane %v4105, 4
  %v4108 = vor.u32 %v4107, %v4103
  %v4109 = vrot.slane %v4108, 4
  %v4111 = vshll.u32 %v3961, 16
  %v4113 = vrot.slane %v4111, 5
  %v4114 = vsel %vm211, %v4109, %v4113
  %v4116 = vshrl.u32 %v3962, 16
  %v4118 = vrot.slane %v4116, 4
  %v4119 = vshll.u32 %v3962, 16
  %v4121 = vrot.slane %v4119, 5
  %v4122 = vor.u32 %v4118, %v4121
  %v4123 = vrot.slane %v4122, 4
  %v4125 = vshll.u32 %v3963, 16
  %v4127 = vrot.slane %v4125, 5
  %v4128 = vsel %vm211, %v4123, %v4127
  %v4129 = vshrl.u32 %v3963, 16
  %v4131 = vrot.slane %v4129, 4
  %v4132 = vor.u32 %v4131, %v4127
  %v4133 = vrot.slane %v4132, 4
  %v4135 = vshll.u32 %v3964, 16
  %v4137 = vrot.slane %v4135, 5
  %v4138 = vsel %vm211, %v4133, %v4137
  %v4140 = vshrl.u32 %v3965, 16
  %v4142 = vrot.slane %v4140, 4
  %v4143 = vshll.u32 %v3965, 16
  %v4145 = vrot.slane %v4143, 5
  %v4146 = vor.u32 %v4142, %v4145
  %v4147 = vrot.slane %v4146, 4
  %v4149 = vshll.u32 %v3966, 16
  %v4151 = vrot.slane %v4149, 5
  %v4152 = vsel %vm211, %v4147, %v4151
  %v4153 = vshrl.u32 %v3966, 16
  %v4155 = vrot.slane %v4153, 4
  %v4156 = vor.u32 %v4155, %v4151
  %v4157 = vrot.slane %v4156, 4
  %v4159 = vshll.u32 %v3967, 16
  %v4161 = vrot.slane %v4159, 5
  %v4162 = vsel %vm211, %v4157, %v4161
  %v4164 = vshrl.u32 %v3968, 16
  %v4166 = vrot.slane %v4164, 4
  %v4167 = vshll.u32 %v3968, 16
  %v4169 = vrot.slane %v4167, 5
  %v4170 = vor.u32 %v4166, %v4169
  %v4171 = vrot.slane %v4170, 4
  %v4173 = vshll.u32 %v3969, 16
  %v4175 = vrot.slane %v4173, 5
  %v4176 = vsel %vm211, %v4171, %v4175
  %v4177 = vshrl.u32 %v3969, 16
  %v4179 = vrot.slane %v4177, 4
  %v4180 = vor.u32 %v4179, %v4175
  %v4181 = vrot.slane %v4180, 4
  %v4183 = vshll.u32 %v3970, 16
  %v4185 = vrot.slane %v4183, 5
  %v4186 = vsel %vm211, %v4181, %v4185
  %v4188 = vshrl.u32 %v3971, 16
  %v4190 = vrot.slane %v4188, 4
  %v4191 = vshll.u32 %v3971, 16
  %v4193 = vrot.slane %v4191, 5
  %v4194 = vor.u32 %v4190, %v4193
  %v4195 = vrot.slane %v4194, 4
  %v4197 = vshll.u32 %v3972, 16
  %v4199 = vrot.slane %v4197, 5
  %v4200 = vsel %vm211, %v4195, %v4199
  %v4201 = vshrl.u32 %v3972, 16
  %v4203 = vrot.slane %v4201, 4
  %v4204 = vor.u32 %v4203, %v4199
  %v4205 = vrot.slane %v4204, 4
  %v4207 = vshll.u32 %v3973, 16
  %v4209 = vrot.slane %v4207, 5
  %v4210 = vsel %vm211, %v4205, %v4209
  %v4212 = vshrl.u32 %v3974, 16
  %v4214 = vrot.slane %v4212, 4
  %v4215 = vshll.u32 %v3974, 16
  %v4217 = vrot.slane %v4215, 5
  %v4218 = vor.u32 %v4214, %v4217
  %v4219 = vrot.slane %v4218, 4
  %v4221 = vshll.u32 %v3975, 16
  %v4223 = vrot.slane %v4221, 5
  %v4224 = vsel %vm211, %v4219, %v4223
  %v4225 = vshrl.u32 %v3975, 16
  %v4227 = vrot.slane %v4225, 4
  %v4228 = vor.u32 %v4227, %v4223
  %v4229 = vrot.slane %v4228, 4
  %v4231 = vshll.u32 %v3976, 16
  %v4233 = vrot.slane %v4231, 5
  %v4234 = vsel %vm211, %v4229, %v4233
  %v4236 = vshrl.u32 %v3977, 16
  %v4238 = vrot.slane %v4236, 4
  %v4239 = vshll.u32 %v3977, 16
  %v4241 = vrot.slane %v4239, 5
  %v4242 = vor.u32 %v4238, %v4241
  %v4243 = vrot.slane %v4242, 4
  %v4245 = vshll.u32 %v3978, 16
  %v4247 = vrot.slane %v4245, 5
  %v4248 = vsel %vm211, %v4243, %v4247
  %v4249 = vshrl.u32 %v3978, 16
  %v4251 = vrot.slane %v4249, 4
  %v4252 = vor.u32 %v4251, %v4247
  %v4253 = vrot.slane %v4252, 4
  %v4255 = vshll.u32 %v3979, 16
  %v4257 = vrot.slane %v4255, 5
  %v4258 = vsel %vm211, %v4253, %v4257
  %v4260 = vshrl.u32 %v3980, 16
  %v4262 = vrot.slane %v4260, 4
  %v4263 = vshll.u32 %v3980, 16
  %v4265 = vrot.slane %v4263, 5
  %v4266 = vor.u32 %v4262, %v4265
  %v4267 = vrot.slane %v4266, 4
  %v4269 = vshll.u32 %v3981, 16
  %v4271 = vrot.slane %v4269, 5
  %v4272 = vsel %vm211, %v4267, %v4271
  %v4273 = vshrl.u32 %v3981, 16
  %v4275 = vrot.slane %v4273, 4
  %v4276 = vor.u32 %v4275, %v4271
  %v4277 = vrot.slane %v4276, 4
  %v4279 = vshll.u32 %v3982, 16
  %v4281 = vrot.slane %v4279, 5
  %v4282 = vsel %vm211, %v4277, %v4281
  %v4284 = vshrl.u32 %v3983, 16
  %v4286 = vrot.slane %v4284, 4
  %v4287 = vshll.u32 %v3983, 16
  %v4289 = vrot.slane %v4287, 5
  %v4290 = vor.u32 %v4286, %v4289
  %v4291 = vrot.slane %v4290, 4
  %v4293 = vshll.u32 %v3984, 16
  %v4295 = vrot.slane %v4293, 5
  %v4296 = vsel %vm211, %v4291, %v4295
  %v4297 = vshrl.u32 %v3984, 16
  %v4299 = vrot.slane %v4297, 4
  %v4300 = vor.u32 %v4299, %v4295
  %v4301 = vrot.slane %v4300, 4
  %v4303 = vshll.u32 %v3985, 16
  %v4305 = vrot.slane %v4303, 5
  %v4306 = vsel %vm211, %v4301, %v4305
  %v4308 = vshrl.u32 %v3986, 16
  %v4310 = vrot.slane %v4308, 4
  %v4311 = vshll.u32 %v3986, 16
  %v4313 = vrot.slane %v4311, 5
  %v4314 = vor.u32 %v4310, %v4313
  %v4315 = vrot.slane %v4314, 4
  %v4317 = vshll.u32 %v3987, 16
  %v4319 = vrot.slane %v4317, 5
  %v4320 = vsel %vm211, %v4315, %v4319
  %v4321 = vshrl.u32 %v3987, 16
  %v4323 = vrot.slane %v4321, 4
  %v4324 = vor.u32 %v4323, %v4319
  %v4325 = vrot.slane %v4324, 4
  %v4327 = vshll.u32 %v3988, 16
  %v4329 = vrot.slane %v4327, 5
  %v4330 = vsel %vm211, %v4325, %v4329
  %v4332 = vshrl.u32 %v3989, 16
  %v4334 = vrot.slane %v4332, 4
  %v4335 = vshll.u32 %v3989, 16
  %v4337 = vrot.slane %v4335, 5
  %v4338 = vor.u32 %v4334, %v4337
  %v4339 = vrot.slane %v4338, 4
  %v4341 = vshll.u32 %v3990, 16
  %v4343 = vrot.slane %v4341, 5
  %v4344 = vsel %vm211, %v4339, %v4343
  %v4345 = vshrl.u32 %v3990, 16
  %v4347 = vrot.slane %v4345, 4
  %v4348 = vor.u32 %v4347, %v4343
  %v4349 = vrot.slane %v4348, 4
  %v4351 = vshll.u32 %v3991, 16
  %v4353 = vrot.slane %v4351, 5
  %v4354 = vsel %vm211, %v4349, %v4353
  %v4356 = vshrl.u32 %v3992, 16
  %v4358 = vrot.slane %v4356, 4
  %v4359 = vshll.u32 %v3992, 16
  %v4361 = vrot.slane %v4359, 5
  %v4362 = vor.u32 %v4358, %v4361
  %v4363 = vrot.slane %v4362, 4
  %v4365 = vshll.u32 %v3993, 16
  %v4367 = vrot.slane %v4365, 5
  %v4368 = vsel %vm211, %v4363, %v4367
  %v4369 = vshrl.u32 %v3993, 16
  %v4371 = vrot.slane %v4369, 4
  %v4372 = vor.u32 %v4371, %v4367
  %v4373 = vrot.slane %v4372, 4
  %v4375 = vshll.u32 %v3994, 16
  %v4377 = vrot.slane %v4375, 5
  %v4378 = vsel %vm211, %v4373, %v4377
  %v4379 = vunpack.c.l.b16 %v4008
  %v4380 = vunpack.c.l.b16 %v4018
  %v4381 = vunpack.c.l.b16 %v4032
  %v4382 = vunpack.c.l.b16 %v4042
  %v4383 = vunpack.c.l.b16 %v4056
  %v4384 = vunpack.c.l.b16 %v4066
  %v4385 = vunpack.c.l.b16 %v4080
  %v4386 = vunpack.c.l.b16 %v4090
  %v4387 = vunpack.c.l.b16 %v4104
  %v4388 = vunpack.c.l.b16 %v4114
  %v4389 = vunpack.c.l.b16 %v4128
  %v4390 = vunpack.c.l.b16 %v4138
  %v4391 = vunpack.c.l.b16 %v4152
  %v4392 = vunpack.c.l.b16 %v4162
  %v4393 = vunpack.c.l.b16 %v4176
  %v4394 = vunpack.c.l.b16 %v4186
  %v4395 = vunpack.c.l.b16 %v4200
  %v4396 = vunpack.c.l.b16 %v4210
  %v4397 = vunpack.c.l.b16 %v4224
  %v4398 = vunpack.c.l.b16 %v4234
  %v4399 = vunpack.c.l.b16 %v4248
  %v4400 = vunpack.c.l.b16 %v4258
  %v4401 = vunpack.c.l.b16 %v4272
  %v4402 = vunpack.c.l.b16 %v4282
  %v4403 = vunpack.c.l.b16 %v4296
  %v4404 = vunpack.c.l.b16 %v4306
  %v4405 = vunpack.c.l.b16 %v4320
  %v4406 = vunpack.c.l.b16 %v4330
  %v4407 = vunpack.c.l.b16 %v4344
  %v4408 = vunpack.c.l.b16 %v4354
  %v4409 = vunpack.c.l.b16 %v4368
  %v4410 = vunpack.c.l.b16 %v4378
  %v4411 = vpack.c.b16 %v4380, %v4379
  %v4412 = vpack.c.b16 %v4382, %v4381
  %v4413 = vpack.c.b16 %v4384, %v4383
  %v4414 = vpack.c.b16 %v4386, %v4385
  %v4415 = vpack.c.b16 %v4388, %v4387
  %v4416 = vpack.c.b16 %v4390, %v4389
  %v4417 = vpack.c.b16 %v4392, %v4391
  %v4418 = vpack.c.b16 %v4394, %v4393
  %v4419 = vpack.c.b16 %v4396, %v4395
  %v4420 = vpack.c.b16 %v4398, %v4397
  %v4421 = vpack.c.b16 %v4400, %v4399
  %v4422 = vpack.c.b16 %v4402, %v4401
  %v4423 = vpack.c.b16 %v4404, %v4403
  %v4424 = vpack.c.b16 %v4406, %v4405
  %v4425 = vpack.c.b16 %v4408, %v4407
  %v4426 = vpack.c.b16 %v4410, %v4409
  %4443 = vst [vmem:[#allocation2 + $0x4a0] sm:$0xff] %v4411
  %4444 = vst [vmem:[#allocation2 + $0x4e8] sm:$0xff] %v4412
  %4445 = vst [vmem:[#allocation2 + $0x530] sm:$0xff] %v4413
  %4446 = vst [vmem:[#allocation2 + $0x578] sm:$0xff] %v4414
  %4447 = vst [vmem:[#allocation2 + $0x5c0] sm:$0xff] %v4415
  %4448 = vst [vmem:[#allocation2 + $0x608] sm:$0xff] %v4416
  %4449 = vst [vmem:[#allocation2 + $0x650] sm:$0xff] %v4417
  %4450 = vst [vmem:[#allocation2 + $0x698] sm:$0xff] %v4418
  %4451 = vst [vmem:[#allocation2 + $0x6e0] sm:$0xff] %v4419
  %4452 = vst [vmem:[#allocation2 + $0x728] sm:$0xff] %v4420
  %4453 = vst [vmem:[#allocation2 + $0x770] sm:$0xff] %v4421
  %4454 = vst [vmem:[#allocation2 + $0x7b8] sm:$0xff] %v4422
  %4455 = vst [vmem:[#allocation2 + $0x800] sm:$0xff] %v4423
  %4456 = vst [vmem:[#allocation2 + $0x848] sm:$0xff] %v4424
  %4457 = vst [vmem:[#allocation2 + $0x890] sm:$0xff] %v4425
  %4458 = vst [vmem:[#allocation2 + $0x8d8] sm:$0xff] %v4426
  %v4459 = vld [vmem:[%s3802] sm:$0xe]
  %v4460 = vld [vmem:[%s3802 + $0x4] sm:$0xf]
  %v4461 = vld [vmem:[%s3802 + $0x8] sm:$0x1]
  %v4462 = vld [vmem:[%s3802 + $0xc] sm:$0xe]
  %v4463 = vld [vmem:[%s3802 + $0x10] sm:$0xf]
  %v4464 = vld [vmem:[%s3802 + $0x14] sm:$0x1]
  %v4465 = vld [vmem:[%s3802 + $0x18] sm:$0xe]
  %v4466 = vld [vmem:[%s3802 + $0x1c] sm:$0xf]
  %v4467 = vld [vmem:[%s3802 + $0x20] sm:$0x1]
  %v4468 = vld [vmem:[%s3802 + $0x24] sm:$0xe]
  %v4469 = vld [vmem:[%s3802 + $0x28] sm:$0xf]
  %v4470 = vld [vmem:[%s3802 + $0x2c] sm:$0x1]
  %v4471 = vld [vmem:[%s3802 + $0x30] sm:$0xe]
  %v4472 = vld [vmem:[%s3802 + $0x34] sm:$0xf]
  %v4473 = vld [vmem:[%s3802 + $0x38] sm:$0x1]
  %v4474 = vld [vmem:[%s3802 + $0x3c] sm:$0xe]
  %v4475 = vld [vmem:[%s3802 + $0x40] sm:$0xf]
  %v4476 = vld [vmem:[%s3802 + $0x44] sm:$0x1]
  %v4477 = vld [vmem:[%s3802 + $0x48] sm:$0xe]
  %v4478 = vld [vmem:[%s3802 + $0x4c] sm:$0xf]
  %v4479 = vld [vmem:[%s3802 + $0x50] sm:$0x1]
  %v4480 = vld [vmem:[%s3802 + $0x54] sm:$0xe]
  %v4481 = vld [vmem:[%s3802 + $0x58] sm:$0xf]
  %v4482 = vld [vmem:[%s3802 + $0x5c] sm:$0x1]
  %v4483 = vld [vmem:[%s3802 + $0x60] sm:$0xe]
  %v4484 = vld [vmem:[%s3802 + $0x64] sm:$0xf]
  %v4485 = vld [vmem:[%s3802 + $0x68] sm:$0x1]
  %v4486 = vld [vmem:[%s3802 + $0x6c] sm:$0xe]
  %v4487 = vld [vmem:[%s3802 + $0x70] sm:$0xf]
  %v4488 = vld [vmem:[%s3802 + $0x74] sm:$0x1]
  %v4489 = vld [vmem:[%s3802 + $0x78] sm:$0xe]
  %v4490 = vld [vmem:[%s3802 + $0x7c] sm:$0xf]
  %v4491 = vld [vmem:[%s3802 + $0x80] sm:$0x1]
  %v4492 = vld [vmem:[%s3802 + $0x84] sm:$0xe]
  %v4493 = vld [vmem:[%s3802 + $0x88] sm:$0xf]
  %v4494 = vld [vmem:[%s3802 + $0x8c] sm:$0x1]
  %v4495 = vld [vmem:[%s3802 + $0x90] sm:$0xe]
  %v4496 = vld [vmem:[%s3802 + $0x94] sm:$0xf]
  %v4497 = vld [vmem:[%s3802 + $0x98] sm:$0x1]
  %v4498 = vld [vmem:[%s3802 + $0x9c] sm:$0xe]
  %v4499 = vld [vmem:[%s3802 + $0xa0] sm:$0xf]
  %v4500 = vld [vmem:[%s3802 + $0xa4] sm:$0x1]
  %v4501 = vld [vmem:[%s3802 + $0xa8] sm:$0xe]
  %v4502 = vld [vmem:[%s3802 + $0xac] sm:$0xf]
  %v4503 = vld [vmem:[%s3802 + $0xb0] sm:$0x1]
  %v4504 = vld [vmem:[%s3802 + $0xb4] sm:$0xe]
  %v4505 = vld [vmem:[%s3802 + $0xb8] sm:$0xf]
  %v4506 = vld [vmem:[%s3802 + $0xbc] sm:$0x1]
  %v4555 = vrot.slane %v4459, 5
  %v4556 = vrot.slane %v4555, 4
  %v4557 = vrot.slane %v4460, 5
  %v4558 = vsel %vm774, %v4556, %v4557
  %v4559 = vrot.slane %v4557, 4
  %v4560 = vrot.slane %v4461, 5
  %v4561 = vsel %vm774, %v4559, %v4560
  %v4562 = vrot.slane %v4462, 5
  %v4563 = vrot.slane %v4562, 4
  %v4564 = vrot.slane %v4463, 5
  %v4565 = vsel %vm774, %v4563, %v4564
  %v4566 = vrot.slane %v4564, 4
  %v4567 = vrot.slane %v4464, 5
  %v4568 = vsel %vm774, %v4566, %v4567
  %v4569 = vrot.slane %v4465, 5
  %v4570 = vrot.slane %v4569, 4
  %v4571 = vrot.slane %v4466, 5
  %v4572 = vsel %vm774, %v4570, %v4571
  %v4573 = vrot.slane %v4571, 4
  %v4574 = vrot.slane %v4467, 5
  %v4575 = vsel %vm774, %v4573, %v4574
  %v4576 = vrot.slane %v4468, 5
  %v4577 = vrot.slane %v4576, 4
  %v4578 = vrot.slane %v4469, 5
  %v4579 = vsel %vm774, %v4577, %v4578
  %v4580 = vrot.slane %v4578, 4
  %v4581 = vrot.slane %v4470, 5
  %v4582 = vsel %vm774, %v4580, %v4581
  %v4583 = vrot.slane %v4471, 5
  %v4584 = vrot.slane %v4583, 4
  %v4585 = vrot.slane %v4472, 5
  %v4586 = vsel %vm774, %v4584, %v4585
  %v4587 = vrot.slane %v4585, 4
  %v4588 = vrot.slane %v4473, 5
  %v4589 = vsel %vm774, %v4587, %v4588
  %v4590 = vrot.slane %v4474, 5
  %v4591 = vrot.slane %v4590, 4
  %v4592 = vrot.slane %v4475, 5
  %v4593 = vsel %vm774, %v4591, %v4592
  %v4594 = vrot.slane %v4592, 4
  %v4595 = vrot.slane %v4476, 5
  %v4596 = vsel %vm774, %v4594, %v4595
  %v4597 = vrot.slane %v4477, 5
  %v4598 = vrot.slane %v4597, 4
  %v4599 = vrot.slane %v4478, 5
  %v4600 = vsel %vm774, %v4598, %v4599
  %v4601 = vrot.slane %v4599, 4
  %v4602 = vrot.slane %v4479, 5
  %v4603 = vsel %vm774, %v4601, %v4602
  %v4604 = vrot.slane %v4480, 5
  %v4605 = vrot.slane %v4604, 4
  %v4606 = vrot.slane %v4481, 5
  %v4607 = vsel %vm774, %v4605, %v4606
  %v4608 = vrot.slane %v4606, 4
  %v4609 = vrot.slane %v4482, 5
  %v4610 = vsel %vm774, %v4608, %v4609
  %v4611 = vrot.slane %v4483, 5
  %v4612 = vrot.slane %v4611, 4
  %v4613 = vrot.slane %v4484, 5
  %v4614 = vsel %vm774, %v4612, %v4613
  %v4615 = vrot.slane %v4613, 4
  %v4616 = vrot.slane %v4485, 5
  %v4617 = vsel %vm774, %v4615, %v4616
  %v4618 = vrot.slane %v4486, 5
  %v4619 = vrot.slane %v4618, 4
  %v4620 = vrot.slane %v4487, 5
  %v4621 = vsel %vm774, %v4619, %v4620
  %v4622 = vrot.slane %v4620, 4
  %v4623 = vrot.slane %v4488, 5
  %v4624 = vsel %vm774, %v4622, %v4623
  %v4625 = vrot.slane %v4489, 5
  %v4626 = vrot.slane %v4625, 4
  %v4627 = vrot.slane %v4490, 5
  %v4628 = vsel %vm774, %v4626, %v4627
  %v4629 = vrot.slane %v4627, 4
  %v4630 = vrot.slane %v4491, 5
  %v4631 = vsel %vm774, %v4629, %v4630
  %v4632 = vrot.slane %v4492, 5
  %v4633 = vrot.slane %v4632, 4
  %v4634 = vrot.slane %v4493, 5
  %v4635 = vsel %vm774, %v4633, %v4634
  %v4636 = vrot.slane %v4634, 4
  %v4637 = vrot.slane %v4494, 5
  %v4638 = vsel %vm774, %v4636, %v4637
  %v4639 = vrot.slane %v4495, 5
  %v4640 = vrot.slane %v4639, 4
  %v4641 = vrot.slane %v4496, 5
  %v4642 = vsel %vm774, %v4640, %v4641
  %v4643 = vrot.slane %v4641, 4
  %v4644 = vrot.slane %v4497, 5
  %v4645 = vsel %vm774, %v4643, %v4644
  %v4646 = vrot.slane %v4498, 5
  %v4647 = vrot.slane %v4646, 4
  %v4648 = vrot.slane %v4499, 5
  %v4649 = vsel %vm774, %v4647, %v4648
  %v4650 = vrot.slane %v4648, 4
  %v4651 = vrot.slane %v4500, 5
  %v4652 = vsel %vm774, %v4650, %v4651
  %v4653 = vrot.slane %v4501, 5
  %v4654 = vrot.slane %v4653, 4
  %v4655 = vrot.slane %v4502, 5
  %v4656 = vsel %vm774, %v4654, %v4655
  %v4657 = vrot.slane %v4655, 4
  %v4658 = vrot.slane %v4503, 5
  %v4659 = vsel %vm774, %v4657, %v4658
  %v4660 = vrot.slane %v4504, 5
  %v4661 = vrot.slane %v4660, 4
  %v4662 = vrot.slane %v4505, 5
  %v4663 = vsel %vm774, %v4661, %v4662
  %v4664 = vrot.slane %v4662, 4
  %v4665 = vrot.slane %v4506, 5
  %v4666 = vsel %vm774, %v4664, %v4665
  %v4667 = vunpack.c.l.b16 %v4558
  %v4668 = vunpack.c.l.b16 %v4561
  %v4669 = vunpack.c.l.b16 %v4565
  %v4670 = vunpack.c.l.b16 %v4568
  %v4671 = vunpack.c.l.b16 %v4572
  %v4672 = vunpack.c.l.b16 %v4575
  %v4673 = vunpack.c.l.b16 %v4579
  %v4674 = vunpack.c.l.b16 %v4582
  %v4675 = vunpack.c.l.b16 %v4586
  %v4676 = vunpack.c.l.b16 %v4589
  %v4677 = vunpack.c.l.b16 %v4593
  %v4678 = vunpack.c.l.b16 %v4596
  %v4679 = vunpack.c.l.b16 %v4600
  %v4680 = vunpack.c.l.b16 %v4603
  %v4681 = vunpack.c.l.b16 %v4607
  %v4682 = vunpack.c.l.b16 %v4610
  %v4683 = vunpack.c.l.b16 %v4614
  %v4684 = vunpack.c.l.b16 %v4617
  %v4685 = vunpack.c.l.b16 %v4621
  %v4686 = vunpack.c.l.b16 %v4624
  %v4687 = vunpack.c.l.b16 %v4628
  %v4688 = vunpack.c.l.b16 %v4631
  %v4689 = vunpack.c.l.b16 %v4635
  %v4690 = vunpack.c.l.b16 %v4638
  %v4691 = vunpack.c.l.b16 %v4642
  %v4692 = vunpack.c.l.b16 %v4645
  %v4693 = vunpack.c.l.b16 %v4649
  %v4694 = vunpack.c.l.b16 %v4652
  %v4695 = vunpack.c.l.b16 %v4656
  %v4696 = vunpack.c.l.b16 %v4659
  %v4697 = vunpack.c.l.b16 %v4663
  %v4698 = vunpack.c.l.b16 %v4666
  %v4699 = vpack.c.b16 %v4668, %v4667
  %v4700 = vpack.c.b16 %v4670, %v4669
  %v4701 = vpack.c.b16 %v4672, %v4671
  %v4702 = vpack.c.b16 %v4674, %v4673
  %v4703 = vpack.c.b16 %v4676, %v4675
  %v4704 = vpack.c.b16 %v4678, %v4677
  %v4705 = vpack.c.b16 %v4680, %v4679
  %v4706 = vpack.c.b16 %v4682, %v4681
  %v4707 = vpack.c.b16 %v4684, %v4683
  %v4708 = vpack.c.b16 %v4686, %v4685
  %v4709 = vpack.c.b16 %v4688, %v4687
  %v4710 = vpack.c.b16 %v4690, %v4689
  %v4711 = vpack.c.b16 %v4692, %v4691
  %v4712 = vpack.c.b16 %v4694, %v4693
  %v4713 = vpack.c.b16 %v4696, %v4695
  %v4714 = vpack.c.b16 %v4698, %v4697
  %4731 = vst [vmem:[#allocation2 + $0x4a8] sm:$0xff] %v4699
  %4732 = vst [vmem:[#allocation2 + $0x4f0] sm:$0xff] %v4700
  %4733 = vst [vmem:[#allocation2 + $0x538] sm:$0xff] %v4701
  %4734 = vst [vmem:[#allocation2 + $0x580] sm:$0xff] %v4702
  %4735 = vst [vmem:[#allocation2 + $0x5c8] sm:$0xff] %v4703
  %4736 = vst [vmem:[#allocation2 + $0x610] sm:$0xff] %v4704
  %4737 = vst [vmem:[#allocation2 + $0x658] sm:$0xff] %v4705
  %4738 = vst [vmem:[#allocation2 + $0x6a0] sm:$0xff] %v4706
  %4739 = vst [vmem:[#allocation2 + $0x6e8] sm:$0xff] %v4707
  %4740 = vst [vmem:[#allocation2 + $0x730] sm:$0xff] %v4708
  %4741 = vst [vmem:[#allocation2 + $0x778] sm:$0xff] %v4709
  %4742 = vst [vmem:[#allocation2 + $0x7c0] sm:$0xff] %v4710
  %4743 = vst [vmem:[#allocation2 + $0x808] sm:$0xff] %v4711
  %4744 = vst [vmem:[#allocation2 + $0x850] sm:$0xff] %v4712
  %4745 = vst [vmem:[#allocation2 + $0x898] sm:$0xff] %v4713
  %4746 = vst [vmem:[#allocation2 + $0x8e0] sm:$0xff] %v4714
  %s4747 = scalar_lea.vmem %s0, 240
  %v4748 = vld [vmem:[%s4747] sm:$0xf]
  %v4749 = vld [vmem:[%s4747 + $0x4] sm:$0xf]
  %v4750 = vld [vmem:[%s4747 + $0xc] sm:$0xf]
  %v4751 = vld [vmem:[%s4747 + $0x10] sm:$0xf]
  %v4752 = vld [vmem:[%s4747 + $0x18] sm:$0xf]
  %v4753 = vld [vmem:[%s4747 + $0x1c] sm:$0xf]
  %v4754 = vld [vmem:[%s4747 + $0x24] sm:$0xf]
  %v4755 = vld [vmem:[%s4747 + $0x28] sm:$0xf]
  %v4756 = vld [vmem:[%s4747 + $0x30] sm:$0xf]
  %v4757 = vld [vmem:[%s4747 + $0x34] sm:$0xf]
  %v4758 = vld [vmem:[%s4747 + $0x3c] sm:$0xf]
  %v4759 = vld [vmem:[%s4747 + $0x40] sm:$0xf]
  %v4760 = vld [vmem:[%s4747 + $0x48] sm:$0xf]
  %v4761 = vld [vmem:[%s4747 + $0x4c] sm:$0xf]
  %v4762 = vld [vmem:[%s4747 + $0x54] sm:$0xf]
  %v4763 = vld [vmem:[%s4747 + $0x58] sm:$0xf]
  %v4764 = vld [vmem:[%s4747 + $0x60] sm:$0xf]
  %v4765 = vld [vmem:[%s4747 + $0x64] sm:$0xf]
  %v4766 = vld [vmem:[%s4747 + $0x6c] sm:$0xf]
  %v4767 = vld [vmem:[%s4747 + $0x70] sm:$0xf]
  %v4768 = vld [vmem:[%s4747 + $0x78] sm:$0xf]
  %v4769 = vld [vmem:[%s4747 + $0x7c] sm:$0xf]
  %v4770 = vld [vmem:[%s4747 + $0x84] sm:$0xf]
  %v4771 = vld [vmem:[%s4747 + $0x88] sm:$0xf]
  %v4772 = vld [vmem:[%s4747 + $0x90] sm:$0xf]
  %v4773 = vld [vmem:[%s4747 + $0x94] sm:$0xf]
  %v4774 = vld [vmem:[%s4747 + $0x9c] sm:$0xf]
  %v4775 = vld [vmem:[%s4747 + $0xa0] sm:$0xf]
  %v4776 = vld [vmem:[%s4747 + $0xa8] sm:$0xf]
  %v4777 = vld [vmem:[%s4747 + $0xac] sm:$0xf]
  %v4778 = vld [vmem:[%s4747 + $0xb4] sm:$0xf]
  %v4779 = vld [vmem:[%s4747 + $0xb8] sm:$0xf]
  %v4812 = vunpack.c.l.b16 %v4748
  %v4813 = vunpack.c.l.b16 %v4749
  %v4814 = vunpack.c.l.b16 %v4750
  %v4815 = vunpack.c.l.b16 %v4751
  %v4816 = vunpack.c.l.b16 %v4752
  %v4817 = vunpack.c.l.b16 %v4753
  %v4818 = vunpack.c.l.b16 %v4754
  %v4819 = vunpack.c.l.b16 %v4755
  %v4820 = vunpack.c.l.b16 %v4756
  %v4821 = vunpack.c.l.b16 %v4757
  %v4822 = vunpack.c.l.b16 %v4758
  %v4823 = vunpack.c.l.b16 %v4759
  %v4824 = vunpack.c.l.b16 %v4760
  %v4825 = vunpack.c.l.b16 %v4761
  %v4826 = vunpack.c.l.b16 %v4762
  %v4827 = vunpack.c.l.b16 %v4763
  %v4828 = vunpack.c.l.b16 %v4764
  %v4829 = vunpack.c.l.b16 %v4765
  %v4830 = vunpack.c.l.b16 %v4766
  %v4831 = vunpack.c.l.b16 %v4767
  %v4832 = vunpack.c.l.b16 %v4768
  %v4833 = vunpack.c.l.b16 %v4769
  %v4834 = vunpack.c.l.b16 %v4770
  %v4835 = vunpack.c.l.b16 %v4771
  %v4836 = vunpack.c.l.b16 %v4772
  %v4837 = vunpack.c.l.b16 %v4773
  %v4838 = vunpack.c.l.b16 %v4774
  %v4839 = vunpack.c.l.b16 %v4775
  %v4840 = vunpack.c.l.b16 %v4776
  %v4841 = vunpack.c.l.b16 %v4777
  %v4842 = vunpack.c.l.b16 %v4778
  %v4843 = vunpack.c.l.b16 %v4779
  %v4844 = vpack.c.b16 %v4813, %v4812
  %v4845 = vpack.c.b16 %v4815, %v4814
  %v4846 = vpack.c.b16 %v4817, %v4816
  %v4847 = vpack.c.b16 %v4819, %v4818
  %v4848 = vpack.c.b16 %v4821, %v4820
  %v4849 = vpack.c.b16 %v4823, %v4822
  %v4850 = vpack.c.b16 %v4825, %v4824
  %v4851 = vpack.c.b16 %v4827, %v4826
  %v4852 = vpack.c.b16 %v4829, %v4828
  %v4853 = vpack.c.b16 %v4831, %v4830
  %v4854 = vpack.c.b16 %v4833, %v4832
  %v4855 = vpack.c.b16 %v4835, %v4834
  %v4856 = vpack.c.b16 %v4837, %v4836
  %v4857 = vpack.c.b16 %v4839, %v4838
  %v4858 = vpack.c.b16 %v4841, %v4840
  %v4859 = vpack.c.b16 %v4843, %v4842
  %4876 = vst [vmem:[#allocation2 + $0x4b0] sm:$0xff] %v4844
  %4877 = vst [vmem:[#allocation2 + $0x4f8] sm:$0xff] %v4845
  %4878 = vst [vmem:[#allocation2 + $0x540] sm:$0xff] %v4846
  %4879 = vst [vmem:[#allocation2 + $0x588] sm:$0xff] %v4847
  %4880 = vst [vmem:[#allocation2 + $0x5d0] sm:$0xff] %v4848
  %4881 = vst [vmem:[#allocation2 + $0x618] sm:$0xff] %v4849
  %4882 = vst [vmem:[#allocation2 + $0x660] sm:$0xff] %v4850
  %4883 = vst [vmem:[#allocation2 + $0x6a8] sm:$0xff] %v4851
  %4884 = vst [vmem:[#allocation2 + $0x6f0] sm:$0xff] %v4852
  %4885 = vst [vmem:[#allocation2 + $0x738] sm:$0xff] %v4853
  %4886 = vst [vmem:[#allocation2 + $0x780] sm:$0xff] %v4854
  %4887 = vst [vmem:[#allocation2 + $0x7c8] sm:$0xff] %v4855
  %4888 = vst [vmem:[#allocation2 + $0x810] sm:$0xff] %v4856
  %4889 = vst [vmem:[#allocation2 + $0x858] sm:$0xff] %v4857
  %4890 = vst [vmem:[#allocation2 + $0x8a0] sm:$0xff] %v4858
  %4891 = vst [vmem:[#allocation2 + $0x8e8] sm:$0xff] %v4859
  %v4892 = vld [vmem:[%s4747] sm:$0xf]
  %v4893 = vld [vmem:[%s4747 + $0x4] sm:$0xf]
  %v4894 = vld [vmem:[%s4747 + $0x8] sm:$0x1]
  %v4895 = vld [vmem:[%s4747 + $0xc] sm:$0xf]
  %v4896 = vld [vmem:[%s4747 + $0x10] sm:$0xf]
  %v4897 = vld [vmem:[%s4747 + $0x14] sm:$0x1]
  %v4898 = vld [vmem:[%s4747 + $0x18] sm:$0xf]
  %v4899 = vld [vmem:[%s4747 + $0x1c] sm:$0xf]
  %v4900 = vld [vmem:[%s4747 + $0x20] sm:$0x1]
  %v4901 = vld [vmem:[%s4747 + $0x24] sm:$0xf]
  %v4902 = vld [vmem:[%s4747 + $0x28] sm:$0xf]
  %v4903 = vld [vmem:[%s4747 + $0x2c] sm:$0x1]
  %v4904 = vld [vmem:[%s4747 + $0x30] sm:$0xf]
  %v4905 = vld [vmem:[%s4747 + $0x34] sm:$0xf]
  %v4906 = vld [vmem:[%s4747 + $0x38] sm:$0x1]
  %v4907 = vld [vmem:[%s4747 + $0x3c] sm:$0xf]
  %v4908 = vld [vmem:[%s4747 + $0x40] sm:$0xf]
  %v4909 = vld [vmem:[%s4747 + $0x44] sm:$0x1]
  %v4910 = vld [vmem:[%s4747 + $0x48] sm:$0xf]
  %v4911 = vld [vmem:[%s4747 + $0x4c] sm:$0xf]
  %v4912 = vld [vmem:[%s4747 + $0x50] sm:$0x1]
  %v4913 = vld [vmem:[%s4747 + $0x54] sm:$0xf]
  %v4914 = vld [vmem:[%s4747 + $0x58] sm:$0xf]
  %v4915 = vld [vmem:[%s4747 + $0x5c] sm:$0x1]
  %v4916 = vld [vmem:[%s4747 + $0x60] sm:$0xf]
  %v4917 = vld [vmem:[%s4747 + $0x64] sm:$0xf]
  %v4918 = vld [vmem:[%s4747 + $0x68] sm:$0x1]
  %v4919 = vld [vmem:[%s4747 + $0x6c] sm:$0xf]
  %v4920 = vld [vmem:[%s4747 + $0x70] sm:$0xf]
  %v4921 = vld [vmem:[%s4747 + $0x74] sm:$0x1]
  %v4922 = vld [vmem:[%s4747 + $0x78] sm:$0xf]
  %v4923 = vld [vmem:[%s4747 + $0x7c] sm:$0xf]
  %v4924 = vld [vmem:[%s4747 + $0x80] sm:$0x1]
  %v4925 = vld [vmem:[%s4747 + $0x84] sm:$0xf]
  %v4926 = vld [vmem:[%s4747 + $0x88] sm:$0xf]
  %v4927 = vld [vmem:[%s4747 + $0x8c] sm:$0x1]
  %v4928 = vld [vmem:[%s4747 + $0x90] sm:$0xf]
  %v4929 = vld [vmem:[%s4747 + $0x94] sm:$0xf]
  %v4930 = vld [vmem:[%s4747 + $0x98] sm:$0x1]
  %v4931 = vld [vmem:[%s4747 + $0x9c] sm:$0xf]
  %v4932 = vld [vmem:[%s4747 + $0xa0] sm:$0xf]
  %v4933 = vld [vmem:[%s4747 + $0xa4] sm:$0x1]
  %v4934 = vld [vmem:[%s4747 + $0xa8] sm:$0xf]
  %v4935 = vld [vmem:[%s4747 + $0xac] sm:$0xf]
  %v4936 = vld [vmem:[%s4747 + $0xb0] sm:$0x1]
  %v4937 = vld [vmem:[%s4747 + $0xb4] sm:$0xf]
  %v4938 = vld [vmem:[%s4747 + $0xb8] sm:$0xf]
  %v4939 = vld [vmem:[%s4747 + $0xbc] sm:$0x1]
  %v4941 = vshrl.u32 %v4892, 16
  %v4943 = vrot.slane %v4941, 4
  %v4944 = vshll.u32 %v4892, 16
  %v4946 = vrot.slane %v4944, 5
  %v4947 = vor.u32 %v4943, %v4946
  %v4948 = vrot.slane %v4947, 4
  %v4950 = vshll.u32 %v4893, 16
  %v4952 = vrot.slane %v4950, 5
  %v4953 = vsel %vm211, %v4948, %v4952
  %v4954 = vshrl.u32 %v4893, 16
  %v4956 = vrot.slane %v4954, 4
  %v4957 = vor.u32 %v4956, %v4952
  %v4958 = vrot.slane %v4957, 4
  %v4960 = vshll.u32 %v4894, 16
  %v4962 = vrot.slane %v4960, 5
  %v4963 = vsel %vm211, %v4958, %v4962
  %v4965 = vshrl.u32 %v4895, 16
  %v4967 = vrot.slane %v4965, 4
  %v4968 = vshll.u32 %v4895, 16
  %v4970 = vrot.slane %v4968, 5
  %v4971 = vor.u32 %v4967, %v4970
  %v4972 = vrot.slane %v4971, 4
  %v4974 = vshll.u32 %v4896, 16
  %v4976 = vrot.slane %v4974, 5
  %v4977 = vsel %vm211, %v4972, %v4976
  %v4978 = vshrl.u32 %v4896, 16
  %v4980 = vrot.slane %v4978, 4
  %v4981 = vor.u32 %v4980, %v4976
  %v4982 = vrot.slane %v4981, 4
  %v4984 = vshll.u32 %v4897, 16
  %v4986 = vrot.slane %v4984, 5
  %v4987 = vsel %vm211, %v4982, %v4986
  %v4989 = vshrl.u32 %v4898, 16
  %v4991 = vrot.slane %v4989, 4
  %v4992 = vshll.u32 %v4898, 16
  %v4994 = vrot.slane %v4992, 5
  %v4995 = vor.u32 %v4991, %v4994
  %v4996 = vrot.slane %v4995, 4
  %v4998 = vshll.u32 %v4899, 16
  %v5000 = vrot.slane %v4998, 5
  %v5001 = vsel %vm211, %v4996, %v5000
  %v5002 = vshrl.u32 %v4899, 16
  %v5004 = vrot.slane %v5002, 4
  %v5005 = vor.u32 %v5004, %v5000
  %v5006 = vrot.slane %v5005, 4
  %v5008 = vshll.u32 %v4900, 16
  %v5010 = vrot.slane %v5008, 5
  %v5011 = vsel %vm211, %v5006, %v5010
  %v5013 = vshrl.u32 %v4901, 16
  %v5015 = vrot.slane %v5013, 4
  %v5016 = vshll.u32 %v4901, 16
  %v5018 = vrot.slane %v5016, 5
  %v5019 = vor.u32 %v5015, %v5018
  %v5020 = vrot.slane %v5019, 4
  %v5022 = vshll.u32 %v4902, 16
  %v5024 = vrot.slane %v5022, 5
  %v5025 = vsel %vm211, %v5020, %v5024
  %v5026 = vshrl.u32 %v4902, 16
  %v5028 = vrot.slane %v5026, 4
  %v5029 = vor.u32 %v5028, %v5024
  %v5030 = vrot.slane %v5029, 4
  %v5032 = vshll.u32 %v4903, 16
  %v5034 = vrot.slane %v5032, 5
  %v5035 = vsel %vm211, %v5030, %v5034
  %v5037 = vshrl.u32 %v4904, 16
  %v5039 = vrot.slane %v5037, 4
  %v5040 = vshll.u32 %v4904, 16
  %v5042 = vrot.slane %v5040, 5
  %v5043 = vor.u32 %v5039, %v5042
  %v5044 = vrot.slane %v5043, 4
  %v5046 = vshll.u32 %v4905, 16
  %v5048 = vrot.slane %v5046, 5
  %v5049 = vsel %vm211, %v5044, %v5048
  %v5050 = vshrl.u32 %v4905, 16
  %v5052 = vrot.slane %v5050, 4
  %v5053 = vor.u32 %v5052, %v5048
  %v5054 = vrot.slane %v5053, 4
  %v5056 = vshll.u32 %v4906, 16
  %v5058 = vrot.slane %v5056, 5
  %v5059 = vsel %vm211, %v5054, %v5058
  %v5061 = vshrl.u32 %v4907, 16
  %v5063 = vrot.slane %v5061, 4
  %v5064 = vshll.u32 %v4907, 16
  %v5066 = vrot.slane %v5064, 5
  %v5067 = vor.u32 %v5063, %v5066
  %v5068 = vrot.slane %v5067, 4
  %v5070 = vshll.u32 %v4908, 16
  %v5072 = vrot.slane %v5070, 5
  %v5073 = vsel %vm211, %v5068, %v5072
  %v5074 = vshrl.u32 %v4908, 16
  %v5076 = vrot.slane %v5074, 4
  %v5077 = vor.u32 %v5076, %v5072
  %v5078 = vrot.slane %v5077, 4
  %v5080 = vshll.u32 %v4909, 16
  %v5082 = vrot.slane %v5080, 5
  %v5083 = vsel %vm211, %v5078, %v5082
  %v5085 = vshrl.u32 %v4910, 16
  %v5087 = vrot.slane %v5085, 4
  %v5088 = vshll.u32 %v4910, 16
  %v5090 = vrot.slane %v5088, 5
  %v5091 = vor.u32 %v5087, %v5090
  %v5092 = vrot.slane %v5091, 4
  %v5094 = vshll.u32 %v4911, 16
  %v5096 = vrot.slane %v5094, 5
  %v5097 = vsel %vm211, %v5092, %v5096
  %v5098 = vshrl.u32 %v4911, 16
  %v5100 = vrot.slane %v5098, 4
  %v5101 = vor.u32 %v5100, %v5096
  %v5102 = vrot.slane %v5101, 4
  %v5104 = vshll.u32 %v4912, 16
  %v5106 = vrot.slane %v5104, 5
  %v5107 = vsel %vm211, %v5102, %v5106
  %v5109 = vshrl.u32 %v4913, 16
  %v5111 = vrot.slane %v5109, 4
  %v5112 = vshll.u32 %v4913, 16
  %v5114 = vrot.slane %v5112, 5
  %v5115 = vor.u32 %v5111, %v5114
  %v5116 = vrot.slane %v5115, 4
  %v5118 = vshll.u32 %v4914, 16
  %v5120 = vrot.slane %v5118, 5
  %v5121 = vsel %vm211, %v5116, %v5120
  %v5122 = vshrl.u32 %v4914, 16
  %v5124 = vrot.slane %v5122, 4
  %v5125 = vor.u32 %v5124, %v5120
  %v5126 = vrot.slane %v5125, 4
  %v5128 = vshll.u32 %v4915, 16
  %v5130 = vrot.slane %v5128, 5
  %v5131 = vsel %vm211, %v5126, %v5130
  %v5133 = vshrl.u32 %v4916, 16
  %v5135 = vrot.slane %v5133, 4
  %v5136 = vshll.u32 %v4916, 16
  %v5138 = vrot.slane %v5136, 5
  %v5139 = vor.u32 %v5135, %v5138
  %v5140 = vrot.slane %v5139, 4
  %v5142 = vshll.u32 %v4917, 16
  %v5144 = vrot.slane %v5142, 5
  %v5145 = vsel %vm211, %v5140, %v5144
  %v5146 = vshrl.u32 %v4917, 16
  %v5148 = vrot.slane %v5146, 4
  %v5149 = vor.u32 %v5148, %v5144
  %v5150 = vrot.slane %v5149, 4
  %v5152 = vshll.u32 %v4918, 16
  %v5154 = vrot.slane %v5152, 5
  %v5155 = vsel %vm211, %v5150, %v5154
  %v5157 = vshrl.u32 %v4919, 16
  %v5159 = vrot.slane %v5157, 4
  %v5160 = vshll.u32 %v4919, 16
  %v5162 = vrot.slane %v5160, 5
  %v5163 = vor.u32 %v5159, %v5162
  %v5164 = vrot.slane %v5163, 4
  %v5166 = vshll.u32 %v4920, 16
  %v5168 = vrot.slane %v5166, 5
  %v5169 = vsel %vm211, %v5164, %v5168
  %v5170 = vshrl.u32 %v4920, 16
  %v5172 = vrot.slane %v5170, 4
  %v5173 = vor.u32 %v5172, %v5168
  %v5174 = vrot.slane %v5173, 4
  %v5176 = vshll.u32 %v4921, 16
  %v5178 = vrot.slane %v5176, 5
  %v5179 = vsel %vm211, %v5174, %v5178
  %v5181 = vshrl.u32 %v4922, 16
  %v5183 = vrot.slane %v5181, 4
  %v5184 = vshll.u32 %v4922, 16
  %v5186 = vrot.slane %v5184, 5
  %v5187 = vor.u32 %v5183, %v5186
  %v5188 = vrot.slane %v5187, 4
  %v5190 = vshll.u32 %v4923, 16
  %v5192 = vrot.slane %v5190, 5
  %v5193 = vsel %vm211, %v5188, %v5192
  %v5194 = vshrl.u32 %v4923, 16
  %v5196 = vrot.slane %v5194, 4
  %v5197 = vor.u32 %v5196, %v5192
  %v5198 = vrot.slane %v5197, 4
  %v5200 = vshll.u32 %v4924, 16
  %v5202 = vrot.slane %v5200, 5
  %v5203 = vsel %vm211, %v5198, %v5202
  %v5205 = vshrl.u32 %v4925, 16
  %v5207 = vrot.slane %v5205, 4
  %v5208 = vshll.u32 %v4925, 16
  %v5210 = vrot.slane %v5208, 5
  %v5211 = vor.u32 %v5207, %v5210
  %v5212 = vrot.slane %v5211, 4
  %v5214 = vshll.u32 %v4926, 16
  %v5216 = vrot.slane %v5214, 5
  %v5217 = vsel %vm211, %v5212, %v5216
  %v5218 = vshrl.u32 %v4926, 16
  %v5220 = vrot.slane %v5218, 4
  %v5221 = vor.u32 %v5220, %v5216
  %v5222 = vrot.slane %v5221, 4
  %v5224 = vshll.u32 %v4927, 16
  %v5226 = vrot.slane %v5224, 5
  %v5227 = vsel %vm211, %v5222, %v5226
  %v5229 = vshrl.u32 %v4928, 16
  %v5231 = vrot.slane %v5229, 4
  %v5232 = vshll.u32 %v4928, 16
  %v5234 = vrot.slane %v5232, 5
  %v5235 = vor.u32 %v5231, %v5234
  %v5236 = vrot.slane %v5235, 4
  %v5238 = vshll.u32 %v4929, 16
  %v5240 = vrot.slane %v5238, 5
  %v5241 = vsel %vm211, %v5236, %v5240
  %v5242 = vshrl.u32 %v4929, 16
  %v5244 = vrot.slane %v5242, 4
  %v5245 = vor.u32 %v5244, %v5240
  %v5246 = vrot.slane %v5245, 4
  %v5248 = vshll.u32 %v4930, 16
  %v5250 = vrot.slane %v5248, 5
  %v5251 = vsel %vm211, %v5246, %v5250
  %v5253 = vshrl.u32 %v4931, 16
  %v5255 = vrot.slane %v5253, 4
  %v5256 = vshll.u32 %v4931, 16
  %v5258 = vrot.slane %v5256, 5
  %v5259 = vor.u32 %v5255, %v5258
  %v5260 = vrot.slane %v5259, 4
  %v5262 = vshll.u32 %v4932, 16
  %v5264 = vrot.slane %v5262, 5
  %v5265 = vsel %vm211, %v5260, %v5264
  %v5266 = vshrl.u32 %v4932, 16
  %v5268 = vrot.slane %v5266, 4
  %v5269 = vor.u32 %v5268, %v5264
  %v5270 = vrot.slane %v5269, 4
  %v5272 = vshll.u32 %v4933, 16
  %v5274 = vrot.slane %v5272, 5
  %v5275 = vsel %vm211, %v5270, %v5274
  %v5277 = vshrl.u32 %v4934, 16
  %v5279 = vrot.slane %v5277, 4
  %v5280 = vshll.u32 %v4934, 16
  %v5282 = vrot.slane %v5280, 5
  %v5283 = vor.u32 %v5279, %v5282
  %v5284 = vrot.slane %v5283, 4
  %v5286 = vshll.u32 %v4935, 16
  %v5288 = vrot.slane %v5286, 5
  %v5289 = vsel %vm211, %v5284, %v5288
  %v5290 = vshrl.u32 %v4935, 16
  %v5292 = vrot.slane %v5290, 4
  %v5293 = vor.u32 %v5292, %v5288
  %v5294 = vrot.slane %v5293, 4
  %v5296 = vshll.u32 %v4936, 16
  %v5298 = vrot.slane %v5296, 5
  %v5299 = vsel %vm211, %v5294, %v5298
  %v5301 = vshrl.u32 %v4937, 16
  %v5303 = vrot.slane %v5301, 4
  %v5304 = vshll.u32 %v4937, 16
  %v5306 = vrot.slane %v5304, 5
  %v5307 = vor.u32 %v5303, %v5306
  %v5308 = vrot.slane %v5307, 4
  %v5310 = vshll.u32 %v4938, 16
  %v5312 = vrot.slane %v5310, 5
  %v5313 = vsel %vm211, %v5308, %v5312
  %v5314 = vshrl.u32 %v4938, 16
  %v5316 = vrot.slane %v5314, 4
  %v5317 = vor.u32 %v5316, %v5312
  %v5318 = vrot.slane %v5317, 4
  %v5320 = vshll.u32 %v4939, 16
  %v5322 = vrot.slane %v5320, 5
  %v5323 = vsel %vm211, %v5318, %v5322
  %v5324 = vunpack.c.l.b16 %v4953
  %v5325 = vunpack.c.l.b16 %v4963
  %v5326 = vunpack.c.l.b16 %v4977
  %v5327 = vunpack.c.l.b16 %v4987
  %v5328 = vunpack.c.l.b16 %v5001
  %v5329 = vunpack.c.l.b16 %v5011
  %v5330 = vunpack.c.l.b16 %v5025
  %v5331 = vunpack.c.l.b16 %v5035
  %v5332 = vunpack.c.l.b16 %v5049
  %v5333 = vunpack.c.l.b16 %v5059
  %v5334 = vunpack.c.l.b16 %v5073
  %v5335 = vunpack.c.l.b16 %v5083
  %v5336 = vunpack.c.l.b16 %v5097
  %v5337 = vunpack.c.l.b16 %v5107
  %v5338 = vunpack.c.l.b16 %v5121
  %v5339 = vunpack.c.l.b16 %v5131
  %v5340 = vunpack.c.l.b16 %v5145
  %v5341 = vunpack.c.l.b16 %v5155
  %v5342 = vunpack.c.l.b16 %v5169
  %v5343 = vunpack.c.l.b16 %v5179
  %v5344 = vunpack.c.l.b16 %v5193
  %v5345 = vunpack.c.l.b16 %v5203
  %v5346 = vunpack.c.l.b16 %v5217
  %v5347 = vunpack.c.l.b16 %v5227
  %v5348 = vunpack.c.l.b16 %v5241
  %v5349 = vunpack.c.l.b16 %v5251
  %v5350 = vunpack.c.l.b16 %v5265
  %v5351 = vunpack.c.l.b16 %v5275
  %v5352 = vunpack.c.l.b16 %v5289
  %v5353 = vunpack.c.l.b16 %v5299
  %v5354 = vunpack.c.l.b16 %v5313
  %v5355 = vunpack.c.l.b16 %v5323
  %v5356 = vpack.c.b16 %v5325, %v5324
  %v5357 = vpack.c.b16 %v5327, %v5326
  %v5358 = vpack.c.b16 %v5329, %v5328
  %v5359 = vpack.c.b16 %v5331, %v5330
  %v5360 = vpack.c.b16 %v5333, %v5332
  %v5361 = vpack.c.b16 %v5335, %v5334
  %v5362 = vpack.c.b16 %v5337, %v5336
  %v5363 = vpack.c.b16 %v5339, %v5338
  %v5364 = vpack.c.b16 %v5341, %v5340
  %v5365 = vpack.c.b16 %v5343, %v5342
  %v5366 = vpack.c.b16 %v5345, %v5344
  %v5367 = vpack.c.b16 %v5347, %v5346
  %v5368 = vpack.c.b16 %v5349, %v5348
  %v5369 = vpack.c.b16 %v5351, %v5350
  %v5370 = vpack.c.b16 %v5353, %v5352
  %v5371 = vpack.c.b16 %v5355, %v5354
  %5388 = vst [vmem:[#allocation2 + $0x4b8] sm:$0xff] %v5356
  %5389 = vst [vmem:[#allocation2 + $0x500] sm:$0xff] %v5357
  %5390 = vst [vmem:[#allocation2 + $0x548] sm:$0xff] %v5358
  %5391 = vst [vmem:[#allocation2 + $0x590] sm:$0xff] %v5359
  %5392 = vst [vmem:[#allocation2 + $0x5d8] sm:$0xff] %v5360
  %5393 = vst [vmem:[#allocation2 + $0x620] sm:$0xff] %v5361
  %5394 = vst [vmem:[#allocation2 + $0x668] sm:$0xff] %v5362
  %5395 = vst [vmem:[#allocation2 + $0x6b0] sm:$0xff] %v5363
  %5396 = vst [vmem:[#allocation2 + $0x6f8] sm:$0xff] %v5364
  %5397 = vst [vmem:[#allocation2 + $0x740] sm:$0xff] %v5365
  %5398 = vst [vmem:[#allocation2 + $0x788] sm:$0xff] %v5366
  %5399 = vst [vmem:[#allocation2 + $0x7d0] sm:$0xff] %v5367
  %5400 = vst [vmem:[#allocation2 + $0x818] sm:$0xff] %v5368
  %5401 = vst [vmem:[#allocation2 + $0x860] sm:$0xff] %v5369
  %5402 = vst [vmem:[#allocation2 + $0x8a8] sm:$0xff] %v5370
  %5403 = vst [vmem:[#allocation2 + $0x8f0] sm:$0xff] %v5371
  %v5404 = vld [vmem:[%s4747] sm:$0xe]
  %v5405 = vld [vmem:[%s4747 + $0x4] sm:$0xf]
  %v5406 = vld [vmem:[%s4747 + $0x8] sm:$0x1]
  %v5407 = vld [vmem:[%s4747 + $0xc] sm:$0xe]
  %v5408 = vld [vmem:[%s4747 + $0x10] sm:$0xf]
  %v5409 = vld [vmem:[%s4747 + $0x14] sm:$0x1]
  %v5410 = vld [vmem:[%s4747 + $0x18] sm:$0xe]
  %v5411 = vld [vmem:[%s4747 + $0x1c] sm:$0xf]
  %v5412 = vld [vmem:[%s4747 + $0x20] sm:$0x1]
  %v5413 = vld [vmem:[%s4747 + $0x24] sm:$0xe]
  %v5414 = vld [vmem:[%s4747 + $0x28] sm:$0xf]
  %v5415 = vld [vmem:[%s4747 + $0x2c] sm:$0x1]
  %v5416 = vld [vmem:[%s4747 + $0x30] sm:$0xe]
  %v5417 = vld [vmem:[%s4747 + $0x34] sm:$0xf]
  %v5418 = vld [vmem:[%s4747 + $0x38] sm:$0x1]
  %v5419 = vld [vmem:[%s4747 + $0x3c] sm:$0xe]
  %v5420 = vld [vmem:[%s4747 + $0x40] sm:$0xf]
  %v5421 = vld [vmem:[%s4747 + $0x44] sm:$0x1]
  %v5422 = vld [vmem:[%s4747 + $0x48] sm:$0xe]
  %v5423 = vld [vmem:[%s4747 + $0x4c] sm:$0xf]
  %v5424 = vld [vmem:[%s4747 + $0x50] sm:$0x1]
  %v5425 = vld [vmem:[%s4747 + $0x54] sm:$0xe]
  %v5426 = vld [vmem:[%s4747 + $0x58] sm:$0xf]
  %v5427 = vld [vmem:[%s4747 + $0x5c] sm:$0x1]
  %v5428 = vld [vmem:[%s4747 + $0x60] sm:$0xe]
  %v5429 = vld [vmem:[%s4747 + $0x64] sm:$0xf]
  %v5430 = vld [vmem:[%s4747 + $0x68] sm:$0x1]
  %v5431 = vld [vmem:[%s4747 + $0x6c] sm:$0xe]
  %v5432 = vld [vmem:[%s4747 + $0x70] sm:$0xf]
  %v5433 = vld [vmem:[%s4747 + $0x74] sm:$0x1]
  %v5434 = vld [vmem:[%s4747 + $0x78] sm:$0xe]
  %v5435 = vld [vmem:[%s4747 + $0x7c] sm:$0xf]
  %v5436 = vld [vmem:[%s4747 + $0x80] sm:$0x1]
  %v5437 = vld [vmem:[%s4747 + $0x84] sm:$0xe]
  %v5438 = vld [vmem:[%s4747 + $0x88] sm:$0xf]
  %v5439 = vld [vmem:[%s4747 + $0x8c] sm:$0x1]
  %v5440 = vld [vmem:[%s4747 + $0x90] sm:$0xe]
  %v5441 = vld [vmem:[%s4747 + $0x94] sm:$0xf]
  %v5442 = vld [vmem:[%s4747 + $0x98] sm:$0x1]
  %v5443 = vld [vmem:[%s4747 + $0x9c] sm:$0xe]
  %v5444 = vld [vmem:[%s4747 + $0xa0] sm:$0xf]
  %v5445 = vld [vmem:[%s4747 + $0xa4] sm:$0x1]
  %v5446 = vld [vmem:[%s4747 + $0xa8] sm:$0xe]
  %v5447 = vld [vmem:[%s4747 + $0xac] sm:$0xf]
  %v5448 = vld [vmem:[%s4747 + $0xb0] sm:$0x1]
  %v5449 = vld [vmem:[%s4747 + $0xb4] sm:$0xe]
  %v5450 = vld [vmem:[%s4747 + $0xb8] sm:$0xf]
  %v5451 = vld [vmem:[%s4747 + $0xbc] sm:$0x1]
  %v5500 = vrot.slane %v5404, 5
  %v5501 = vrot.slane %v5500, 4
  %v5502 = vrot.slane %v5405, 5
  %v5503 = vsel %vm774, %v5501, %v5502
  %v5504 = vrot.slane %v5502, 4
  %v5505 = vrot.slane %v5406, 5
  %v5506 = vsel %vm774, %v5504, %v5505
  %v5507 = vrot.slane %v5407, 5
  %v5508 = vrot.slane %v5507, 4
  %v5509 = vrot.slane %v5408, 5
  %v5510 = vsel %vm774, %v5508, %v5509
  %v5511 = vrot.slane %v5509, 4
  %v5512 = vrot.slane %v5409, 5
  %v5513 = vsel %vm774, %v5511, %v5512
  %v5514 = vrot.slane %v5410, 5
  %v5515 = vrot.slane %v5514, 4
  %v5516 = vrot.slane %v5411, 5
  %v5517 = vsel %vm774, %v5515, %v5516
  %v5518 = vrot.slane %v5516, 4
  %v5519 = vrot.slane %v5412, 5
  %v5520 = vsel %vm774, %v5518, %v5519
  %v5521 = vrot.slane %v5413, 5
  %v5522 = vrot.slane %v5521, 4
  %v5523 = vrot.slane %v5414, 5
  %v5524 = vsel %vm774, %v5522, %v5523
  %v5525 = vrot.slane %v5523, 4
  %v5526 = vrot.slane %v5415, 5
  %v5527 = vsel %vm774, %v5525, %v5526
  %v5528 = vrot.slane %v5416, 5
  %v5529 = vrot.slane %v5528, 4
  %v5530 = vrot.slane %v5417, 5
  %v5531 = vsel %vm774, %v5529, %v5530
  %v5532 = vrot.slane %v5530, 4
  %v5533 = vrot.slane %v5418, 5
  %v5534 = vsel %vm774, %v5532, %v5533
  %v5535 = vrot.slane %v5419, 5
  %v5536 = vrot.slane %v5535, 4
  %v5537 = vrot.slane %v5420, 5
  %v5538 = vsel %vm774, %v5536, %v5537
  %v5539 = vrot.slane %v5537, 4
  %v5540 = vrot.slane %v5421, 5
  %v5541 = vsel %vm774, %v5539, %v5540
  %v5542 = vrot.slane %v5422, 5
  %v5543 = vrot.slane %v5542, 4
  %v5544 = vrot.slane %v5423, 5
  %v5545 = vsel %vm774, %v5543, %v5544
  %v5546 = vrot.slane %v5544, 4
  %v5547 = vrot.slane %v5424, 5
  %v5548 = vsel %vm774, %v5546, %v5547
  %v5549 = vrot.slane %v5425, 5
  %v5550 = vrot.slane %v5549, 4
  %v5551 = vrot.slane %v5426, 5
  %v5552 = vsel %vm774, %v5550, %v5551
  %v5553 = vrot.slane %v5551, 4
  %v5554 = vrot.slane %v5427, 5
  %v5555 = vsel %vm774, %v5553, %v5554
  %v5556 = vrot.slane %v5428, 5
  %v5557 = vrot.slane %v5556, 4
  %v5558 = vrot.slane %v5429, 5
  %v5559 = vsel %vm774, %v5557, %v5558
  %v5560 = vrot.slane %v5558, 4
  %v5561 = vrot.slane %v5430, 5
  %v5562 = vsel %vm774, %v5560, %v5561
  %v5563 = vrot.slane %v5431, 5
  %v5564 = vrot.slane %v5563, 4
  %v5565 = vrot.slane %v5432, 5
  %v5566 = vsel %vm774, %v5564, %v5565
  %v5567 = vrot.slane %v5565, 4
  %v5568 = vrot.slane %v5433, 5
  %v5569 = vsel %vm774, %v5567, %v5568
  %v5570 = vrot.slane %v5434, 5
  %v5571 = vrot.slane %v5570, 4
  %v5572 = vrot.slane %v5435, 5
  %v5573 = vsel %vm774, %v5571, %v5572
  %v5574 = vrot.slane %v5572, 4
  %v5575 = vrot.slane %v5436, 5
  %v5576 = vsel %vm774, %v5574, %v5575
  %v5577 = vrot.slane %v5437, 5
  %v5578 = vrot.slane %v5577, 4
  %v5579 = vrot.slane %v5438, 5
  %v5580 = vsel %vm774, %v5578, %v5579
  %v5581 = vrot.slane %v5579, 4
  %v5582 = vrot.slane %v5439, 5
  %v5583 = vsel %vm774, %v5581, %v5582
  %v5584 = vrot.slane %v5440, 5
  %v5585 = vrot.slane %v5584, 4
  %v5586 = vrot.slane %v5441, 5
  %v5587 = vsel %vm774, %v5585, %v5586
  %v5588 = vrot.slane %v5586, 4
  %v5589 = vrot.slane %v5442, 5
  %v5590 = vsel %vm774, %v5588, %v5589
  %v5591 = vrot.slane %v5443, 5
  %v5592 = vrot.slane %v5591, 4
  %v5593 = vrot.slane %v5444, 5
  %v5594 = vsel %vm774, %v5592, %v5593
  %v5595 = vrot.slane %v5593, 4
  %v5596 = vrot.slane %v5445, 5
  %v5597 = vsel %vm774, %v5595, %v5596
  %v5598 = vrot.slane %v5446, 5
  %v5599 = vrot.slane %v5598, 4
  %v5600 = vrot.slane %v5447, 5
  %v5601 = vsel %vm774, %v5599, %v5600
  %v5602 = vrot.slane %v5600, 4
  %v5603 = vrot.slane %v5448, 5
  %v5604 = vsel %vm774, %v5602, %v5603
  %v5605 = vrot.slane %v5449, 5
  %v5606 = vrot.slane %v5605, 4
  %v5607 = vrot.slane %v5450, 5
  %v5608 = vsel %vm774, %v5606, %v5607
  %v5609 = vrot.slane %v5607, 4
  %v5610 = vrot.slane %v5451, 5
  %v5611 = vsel %vm774, %v5609, %v5610
  %v5612 = vunpack.c.l.b16 %v5503
  %v5613 = vunpack.c.l.b16 %v5506
  %v5614 = vunpack.c.l.b16 %v5510
  %v5615 = vunpack.c.l.b16 %v5513
  %v5616 = vunpack.c.l.b16 %v5517
  %v5617 = vunpack.c.l.b16 %v5520
  %v5618 = vunpack.c.l.b16 %v5524
  %v5619 = vunpack.c.l.b16 %v5527
  %v5620 = vunpack.c.l.b16 %v5531
  %v5621 = vunpack.c.l.b16 %v5534
  %v5622 = vunpack.c.l.b16 %v5538
  %v5623 = vunpack.c.l.b16 %v5541
  %v5624 = vunpack.c.l.b16 %v5545
  %v5625 = vunpack.c.l.b16 %v5548
  %v5626 = vunpack.c.l.b16 %v5552
  %v5627 = vunpack.c.l.b16 %v5555
  %v5628 = vunpack.c.l.b16 %v5559
  %v5629 = vunpack.c.l.b16 %v5562
  %v5630 = vunpack.c.l.b16 %v5566
  %v5631 = vunpack.c.l.b16 %v5569
  %v5632 = vunpack.c.l.b16 %v5573
  %v5633 = vunpack.c.l.b16 %v5576
  %v5634 = vunpack.c.l.b16 %v5580
  %v5635 = vunpack.c.l.b16 %v5583
  %v5636 = vunpack.c.l.b16 %v5587
  %v5637 = vunpack.c.l.b16 %v5590
  %v5638 = vunpack.c.l.b16 %v5594
  %v5639 = vunpack.c.l.b16 %v5597
  %v5640 = vunpack.c.l.b16 %v5601
  %v5641 = vunpack.c.l.b16 %v5604
  %v5642 = vunpack.c.l.b16 %v5608
  %v5643 = vunpack.c.l.b16 %v5611
  %v5644 = vpack.c.b16 %v5613, %v5612
  %v5645 = vpack.c.b16 %v5615, %v5614
  %v5646 = vpack.c.b16 %v5617, %v5616
  %v5647 = vpack.c.b16 %v5619, %v5618
  %v5648 = vpack.c.b16 %v5621, %v5620
  %v5649 = vpack.c.b16 %v5623, %v5622
  %v5650 = vpack.c.b16 %v5625, %v5624
  %v5651 = vpack.c.b16 %v5627, %v5626
  %v5652 = vpack.c.b16 %v5629, %v5628
  %v5653 = vpack.c.b16 %v5631, %v5630
  %v5654 = vpack.c.b16 %v5633, %v5632
  %v5655 = vpack.c.b16 %v5635, %v5634
  %v5656 = vpack.c.b16 %v5637, %v5636
  %v5657 = vpack.c.b16 %v5639, %v5638
  %v5658 = vpack.c.b16 %v5641, %v5640
  %v5659 = vpack.c.b16 %v5643, %v5642
  %5676 = vst [vmem:[#allocation2 + $0x4c0] sm:$0xff] %v5644
  %5677 = vst [vmem:[#allocation2 + $0x508] sm:$0xff] %v5645
  %5678 = vst [vmem:[#allocation2 + $0x550] sm:$0xff] %v5646
  %5679 = vst [vmem:[#allocation2 + $0x598] sm:$0xff] %v5647
  %5680 = vst [vmem:[#allocation2 + $0x5e0] sm:$0xff] %v5648
  %5681 = vst [vmem:[#allocation2 + $0x628] sm:$0xff] %v5649
  %5682 = vst [vmem:[#allocation2 + $0x670] sm:$0xff] %v5650
  %5683 = vst [vmem:[#allocation2 + $0x6b8] sm:$0xff] %v5651
  %5684 = vst [vmem:[#allocation2 + $0x700] sm:$0xff] %v5652
  %5685 = vst [vmem:[#allocation2 + $0x748] sm:$0xff] %v5653
  %5686 = vst [vmem:[#allocation2 + $0x790] sm:$0xff] %v5654
  %5687 = vst [vmem:[#allocation2 + $0x7d8] sm:$0xff] %v5655
  %5688 = vst [vmem:[#allocation2 + $0x820] sm:$0xff] %v5656
  %5689 = vst [vmem:[#allocation2 + $0x868] sm:$0xff] %v5657
  %5690 = vst [vmem:[#allocation2 + $0x8b0] sm:$0xff] %v5658
  %5691 = vst [vmem:[#allocation2 + $0x8f8] sm:$0xff] %v5659
  %v5692 = vld [vmem:[#allocation2] sm:$0xff]
  %v5693 = vld [vmem:[#allocation2 + $0x8] sm:$0xff]
  %v5694 = vld [vmem:[#allocation2 + $0x10] sm:$0xff]
  %v5695 = vld [vmem:[#allocation2 + $0x18] sm:$0xff]
  %v5696 = vld [vmem:[#allocation2 + $0x20] sm:$0xff]
  %v5697 = vld [vmem:[#allocation2 + $0x28] sm:$0xff]
  %v5698 = vld [vmem:[#allocation2 + $0x30] sm:$0xff]
  %v5699 = vld [vmem:[#allocation2 + $0x38] sm:$0xff]
  %v5700 = vld [vmem:[#allocation2 + $0x40] sm:$0xff]
  %v5701 = vld [vmem:[#allocation2 + $0x48] sm:$0xff]
  %v5702 = vld [vmem:[#allocation2 + $0x50] sm:$0xff]
  %v5703 = vld [vmem:[#allocation2 + $0x58] sm:$0xff]
  %v5704 = vld [vmem:[#allocation2 + $0x60] sm:$0xff]
  %v5705 = vld [vmem:[#allocation2 + $0x68] sm:$0xff]
  %v5706 = vld [vmem:[#allocation2 + $0x70] sm:$0xff]
  %v5707 = vld [vmem:[#allocation2 + $0x78] sm:$0xff]
  %v5708 = vld [vmem:[#allocation2 + $0x80] sm:$0xff]
  %v5709 = vld [vmem:[#allocation2 + $0x88] sm:$0xff]
  %v5710 = vld [vmem:[#allocation2 + $0x90] sm:$0xff]
  %v5711 = vld [vmem:[#allocation2 + $0x98] sm:$0xff]
  %v5712 = vld [vmem:[#allocation2 + $0xa0] sm:$0xff]
  %v5713 = vld [vmem:[#allocation2 + $0xa8] sm:$0xff]
  %v5714 = vld [vmem:[#allocation2 + $0xb0] sm:$0xff]
  %v5715 = vld [vmem:[#allocation2 + $0xb8] sm:$0xff]
  %v5716 = vld [vmem:[#allocation2 + $0xc0] sm:$0xff]
  %v5717 = vld [vmem:[#allocation2 + $0xc8] sm:$0xff]
  %v5718 = vld [vmem:[#allocation2 + $0xd0] sm:$0xff]
  %v5719 = vld [vmem:[#allocation2 + $0xd8] sm:$0xff]
  %v5720 = vld [vmem:[#allocation2 + $0xe0] sm:$0xff]
  %v5721 = vld [vmem:[#allocation2 + $0xe8] sm:$0xff]
  %v5722 = vld [vmem:[#allocation2 + $0xf0] sm:$0xff]
  %v5723 = vld [vmem:[#allocation2 + $0xf8] sm:$0xff]
  %v5724 = vld [vmem:[#allocation2 + $0x100] sm:$0xff]
  %v5725 = vld [vmem:[#allocation2 + $0x108] sm:$0xff]
  %v5726 = vld [vmem:[#allocation2 + $0x110] sm:$0xff]
  %v5727 = vld [vmem:[#allocation2 + $0x118] sm:$0xff]
  %v5728 = vld [vmem:[#allocation2 + $0x120] sm:$0xff]
  %v5729 = vld [vmem:[#allocation2 + $0x128] sm:$0xff]
  %v5730 = vld [vmem:[#allocation2 + $0x130] sm:$0xff]
  %v5731 = vld [vmem:[#allocation2 + $0x138] sm:$0xff]
  %v5732 = vld [vmem:[#allocation2 + $0x140] sm:$0xff]
  %v5733 = vld [vmem:[#allocation2 + $0x148] sm:$0xff]
  %v5734 = vld [vmem:[#allocation2 + $0x150] sm:$0xff]
  %v5735 = vld [vmem:[#allocation2 + $0x158] sm:$0xff]
  %v5736 = vld [vmem:[#allocation2 + $0x160] sm:$0xff]
  %v5737 = vld [vmem:[#allocation2 + $0x168] sm:$0xff]
  %v5738 = vld [vmem:[#allocation2 + $0x170] sm:$0xff]
  %v5739 = vld [vmem:[#allocation2 + $0x178] sm:$0xff]
  %v5740 = vld [vmem:[#allocation2 + $0x180] sm:$0xff]
  %v5741 = vld [vmem:[#allocation2 + $0x188] sm:$0xff]
  %v5742 = vld [vmem:[#allocation2 + $0x190] sm:$0xff]
  %v5743 = vld [vmem:[#allocation2 + $0x198] sm:$0xff]
  %v5744 = vld [vmem:[#allocation2 + $0x1a0] sm:$0xff]
  %v5745 = vld [vmem:[#allocation2 + $0x1a8] sm:$0xff]
  %v5746 = vld [vmem:[#allocation2 + $0x1b0] sm:$0xff]
  %v5747 = vld [vmem:[#allocation2 + $0x1b8] sm:$0xff]
  %v5748 = vld [vmem:[#allocation2 + $0x1c0] sm:$0xff]
  %v5749 = vld [vmem:[#allocation2 + $0x1c8] sm:$0xff]
  %v5750 = vld [vmem:[#allocation2 + $0x1d0] sm:$0xff]
  %v5751 = vld [vmem:[#allocation2 + $0x1d8] sm:$0xff]
  %v5752 = vld [vmem:[#allocation2 + $0x1e0] sm:$0xff]
  %v5753 = vld [vmem:[#allocation2 + $0x1e8] sm:$0xff]
  %v5754 = vld [vmem:[#allocation2 + $0x1f0] sm:$0xff]
  %v5755 = vld [vmem:[#allocation2 + $0x1f8] sm:$0xff]
  %v5756 = vld [vmem:[#allocation2 + $0x200] sm:$0xff]
  %v5757 = vld [vmem:[#allocation2 + $0x208] sm:$0xff]
  %v5758 = vld [vmem:[#allocation2 + $0x210] sm:$0xff]
  %v5759 = vld [vmem:[#allocation2 + $0x218] sm:$0xff]
  %v5760 = vld [vmem:[#allocation2 + $0x220] sm:$0xff]
  %v5761 = vld [vmem:[#allocation2 + $0x228] sm:$0xff]
  %v5762 = vld [vmem:[#allocation2 + $0x230] sm:$0xff]
  %v5763 = vld [vmem:[#allocation2 + $0x238] sm:$0xff]
  %v5764 = vld [vmem:[#allocation2 + $0x240] sm:$0xff]
  %v5765 = vld [vmem:[#allocation2 + $0x248] sm:$0xff]
  %v5766 = vld [vmem:[#allocation2 + $0x250] sm:$0xff]
  %v5767 = vld [vmem:[#allocation2 + $0x258] sm:$0xff]
  %v5768 = vld [vmem:[#allocation2 + $0x260] sm:$0xff]
  %v5769 = vld [vmem:[#allocation2 + $0x268] sm:$0xff]
  %v5770 = vld [vmem:[#allocation2 + $0x270] sm:$0xff]
  %v5771 = vld [vmem:[#allocation2 + $0x278] sm:$0xff]
  %v5772 = vld [vmem:[#allocation2 + $0x280] sm:$0xff]
  %v5773 = vld [vmem:[#allocation2 + $0x288] sm:$0xff]
  %v5774 = vld [vmem:[#allocation2 + $0x290] sm:$0xff]
  %v5775 = vld [vmem:[#allocation2 + $0x298] sm:$0xff]
  %v5776 = vld [vmem:[#allocation2 + $0x2a0] sm:$0xff]
  %v5777 = vld [vmem:[#allocation2 + $0x2a8] sm:$0xff]
  %v5778 = vld [vmem:[#allocation2 + $0x2b0] sm:$0xff]
  %v5779 = vld [vmem:[#allocation2 + $0x2b8] sm:$0xff]
  %v5780 = vld [vmem:[#allocation2 + $0x2c0] sm:$0xff]
  %v5781 = vld [vmem:[#allocation2 + $0x2c8] sm:$0xff]
  %v5782 = vld [vmem:[#allocation2 + $0x2d0] sm:$0xff]
  %v5783 = vld [vmem:[#allocation2 + $0x2d8] sm:$0xff]
  %v5784 = vld [vmem:[#allocation2 + $0x2e0] sm:$0xff]
  %v5785 = vld [vmem:[#allocation2 + $0x2e8] sm:$0xff]
  %v5786 = vld [vmem:[#allocation2 + $0x2f0] sm:$0xff]
  %v5787 = vld [vmem:[#allocation2 + $0x2f8] sm:$0xff]
  %v5788 = vld [vmem:[#allocation2 + $0x300] sm:$0xff]
  %v5789 = vld [vmem:[#allocation2 + $0x308] sm:$0xff]
  %v5790 = vld [vmem:[#allocation2 + $0x310] sm:$0xff]
  %v5791 = vld [vmem:[#allocation2 + $0x318] sm:$0xff]
  %v5792 = vld [vmem:[#allocation2 + $0x320] sm:$0xff]
  %v5793 = vld [vmem:[#allocation2 + $0x328] sm:$0xff]
  %v5794 = vld [vmem:[#allocation2 + $0x330] sm:$0xff]
  %v5795 = vld [vmem:[#allocation2 + $0x338] sm:$0xff]
  %v5796 = vld [vmem:[#allocation2 + $0x340] sm:$0xff]
  %v5797 = vld [vmem:[#allocation2 + $0x348] sm:$0xff]
  %v5798 = vld [vmem:[#allocation2 + $0x350] sm:$0xff]
  %v5799 = vld [vmem:[#allocation2 + $0x358] sm:$0xff]
  %v5800 = vld [vmem:[#allocation2 + $0x360] sm:$0xff]
  %v5801 = vld [vmem:[#allocation2 + $0x368] sm:$0xff]
  %v5802 = vld [vmem:[#allocation2 + $0x370] sm:$0xff]
  %v5803 = vld [vmem:[#allocation2 + $0x378] sm:$0xff]
  %v5804 = vld [vmem:[#allocation2 + $0x380] sm:$0xff]
  %v5805 = vld [vmem:[#allocation2 + $0x388] sm:$0xff]
  %v5806 = vld [vmem:[#allocation2 + $0x390] sm:$0xff]
  %v5807 = vld [vmem:[#allocation2 + $0x398] sm:$0xff]
  %v5808 = vld [vmem:[#allocation2 + $0x3a0] sm:$0xff]
  %v5809 = vld [vmem:[#allocation2 + $0x3a8] sm:$0xff]
  %v5810 = vld [vmem:[#allocation2 + $0x3b0] sm:$0xff]
  %v5811 = vld [vmem:[#allocation2 + $0x3b8] sm:$0xff]
  %v5812 = vld [vmem:[#allocation2 + $0x3c0] sm:$0xff]
  %v5813 = vld [vmem:[#allocation2 + $0x3c8] sm:$0xff]
  %v5814 = vld [vmem:[#allocation2 + $0x3d0] sm:$0xff]
  %v5815 = vld [vmem:[#allocation2 + $0x3d8] sm:$0xff]
  %v5816 = vld [vmem:[#allocation2 + $0x3e0] sm:$0xff]
  %v5817 = vld [vmem:[#allocation2 + $0x3e8] sm:$0xff]
  %v5818 = vld [vmem:[#allocation2 + $0x3f0] sm:$0xff]
  %v5819 = vld [vmem:[#allocation2 + $0x3f8] sm:$0xff]
  %v5820 = vld [vmem:[#allocation2 + $0x400] sm:$0xff]
  %v5821 = vld [vmem:[#allocation2 + $0x408] sm:$0xff]
  %v5822 = vld [vmem:[#allocation2 + $0x410] sm:$0xff]
  %v5823 = vld [vmem:[#allocation2 + $0x418] sm:$0xff]
  %v5824 = vld [vmem:[#allocation2 + $0x420] sm:$0xff]
  %v5825 = vld [vmem:[#allocation2 + $0x428] sm:$0xff]
  %v5826 = vld [vmem:[#allocation2 + $0x430] sm:$0xff]
  %v5827 = vld [vmem:[#allocation2 + $0x438] sm:$0xff]
  %v5828 = vld [vmem:[#allocation2 + $0x440] sm:$0xff]
  %v5829 = vld [vmem:[#allocation2 + $0x448] sm:$0xff]
  %v5830 = vld [vmem:[#allocation2 + $0x450] sm:$0xff]
  %v5831 = vld [vmem:[#allocation2 + $0x458] sm:$0xff]
  %v5832 = vld [vmem:[#allocation2 + $0x460] sm:$0xff]
  %v5833 = vld [vmem:[#allocation2 + $0x468] sm:$0xff]
  %v5834 = vld [vmem:[#allocation2 + $0x470] sm:$0xff]
  %v5835 = vld [vmem:[#allocation2 + $0x478] sm:$0xff]
  %v5836 = vld [vmem:[#allocation2 + $0x480] sm:$0xff]
  %v5837 = vld [vmem:[#allocation2 + $0x488] sm:$0xff]
  %v5838 = vld [vmem:[#allocation2 + $0x490] sm:$0xff]
  %v5839 = vld [vmem:[#allocation2 + $0x498] sm:$0xff]
  %v5840 = vld [vmem:[#allocation2 + $0x4a0] sm:$0xff]
  %v5841 = vld [vmem:[#allocation2 + $0x4a8] sm:$0xff]
  %v5842 = vld [vmem:[#allocation2 + $0x4b0] sm:$0xff]
  %v5843 = vld [vmem:[#allocation2 + $0x4b8] sm:$0xff]
  %v5844 = vld [vmem:[#allocation2 + $0x4c0] sm:$0xff]
  %v5845 = vld [vmem:[#allocation2 + $0x4c8] sm:$0xff]
  %v5846 = vld [vmem:[#allocation2 + $0x4d0] sm:$0xff]
  %v5847 = vld [vmem:[#allocation2 + $0x4d8] sm:$0xff]
  %v5848 = vld [vmem:[#allocation2 + $0x4e0] sm:$0xff]
  %v5849 = vld [vmem:[#allocation2 + $0x4e8] sm:$0xff]
  %v5850 = vld [vmem:[#allocation2 + $0x4f0] sm:$0xff]
  %v5851 = vld [vmem:[#allocation2 + $0x4f8] sm:$0xff]
  %v5852 = vld [vmem:[#allocation2 + $0x500] sm:$0xff]
  %v5853 = vld [vmem:[#allocation2 + $0x508] sm:$0xff]
  %v5854 = vld [vmem:[#allocation2 + $0x510] sm:$0xff]
  %v5855 = vld [vmem:[#allocation2 + $0x518] sm:$0xff]
  %v5856 = vld [vmem:[#allocation2 + $0x520] sm:$0xff]
  %v5857 = vld [vmem:[#allocation2 + $0x528] sm:$0xff]
  %v5858 = vld [vmem:[#allocation2 + $0x530] sm:$0xff]
  %v5859 = vld [vmem:[#allocation2 + $0x538] sm:$0xff]
  %v5860 = vld [vmem:[#allocation2 + $0x540] sm:$0xff]
  %v5861 = vld [vmem:[#allocation2 + $0x548] sm:$0xff]
  %v5862 = vld [vmem:[#allocation2 + $0x550] sm:$0xff]
  %v5863 = vld [vmem:[#allocation2 + $0x558] sm:$0xff]
  %v5864 = vld [vmem:[#allocation2 + $0x560] sm:$0xff]
  %v5865 = vld [vmem:[#allocation2 + $0x568] sm:$0xff]
  %v5866 = vld [vmem:[#allocation2 + $0x570] sm:$0xff]
  %v5867 = vld [vmem:[#allocation2 + $0x578] sm:$0xff]
  %v5868 = vld [vmem:[#allocation2 + $0x580] sm:$0xff]
  %v5869 = vld [vmem:[#allocation2 + $0x588] sm:$0xff]
  %v5870 = vld [vmem:[#allocation2 + $0x590] sm:$0xff]
  %v5871 = vld [vmem:[#allocation2 + $0x598] sm:$0xff]
  %v5872 = vld [vmem:[#allocation2 + $0x5a0] sm:$0xff]
  %v5873 = vld [vmem:[#allocation2 + $0x5a8] sm:$0xff]
  %v5874 = vld [vmem:[#allocation2 + $0x5b0] sm:$0xff]
  %v5875 = vld [vmem:[#allocation2 + $0x5b8] sm:$0xff]
  %v5876 = vld [vmem:[#allocation2 + $0x5c0] sm:$0xff]
  %v5877 = vld [vmem:[#allocation2 + $0x5c8] sm:$0xff]
  %v5878 = vld [vmem:[#allocation2 + $0x5d0] sm:$0xff]
  %v5879 = vld [vmem:[#allocation2 + $0x5d8] sm:$0xff]
  %v5880 = vld [vmem:[#allocation2 + $0x5e0] sm:$0xff]
  %v5881 = vld [vmem:[#allocation2 + $0x5e8] sm:$0xff]
  %v5882 = vld [vmem:[#allocation2 + $0x5f0] sm:$0xff]
  %v5883 = vld [vmem:[#allocation2 + $0x5f8] sm:$0xff]
  %v5884 = vld [vmem:[#allocation2 + $0x600] sm:$0xff]
  %v5885 = vld [vmem:[#allocation2 + $0x608] sm:$0xff]
  %v5886 = vld [vmem:[#allocation2 + $0x610] sm:$0xff]
  %v5887 = vld [vmem:[#allocation2 + $0x618] sm:$0xff]
  %v5888 = vld [vmem:[#allocation2 + $0x620] sm:$0xff]
  %v5889 = vld [vmem:[#allocation2 + $0x628] sm:$0xff]
  %v5890 = vld [vmem:[#allocation2 + $0x630] sm:$0xff]
  %v5891 = vld [vmem:[#allocation2 + $0x638] sm:$0xff]
  %v5892 = vld [vmem:[#allocation2 + $0x640] sm:$0xff]
  %v5893 = vld [vmem:[#allocation2 + $0x648] sm:$0xff]
  %v5894 = vld [vmem:[#allocation2 + $0x650] sm:$0xff]
  %v5895 = vld [vmem:[#allocation2 + $0x658] sm:$0xff]
  %v5896 = vld [vmem:[#allocation2 + $0x660] sm:$0xff]
  %v5897 = vld [vmem:[#allocation2 + $0x668] sm:$0xff]
  %v5898 = vld [vmem:[#allocation2 + $0x670] sm:$0xff]
  %v5899 = vld [vmem:[#allocation2 + $0x678] sm:$0xff]
  %v5900 = vld [vmem:[#allocation2 + $0x680] sm:$0xff]
  %v5901 = vld [vmem:[#allocation2 + $0x688] sm:$0xff]
  %v5902 = vld [vmem:[#allocation2 + $0x690] sm:$0xff]
  %v5903 = vld [vmem:[#allocation2 + $0x698] sm:$0xff]
  %v5904 = vld [vmem:[#allocation2 + $0x6a0] sm:$0xff]
  %v5905 = vld [vmem:[#allocation2 + $0x6a8] sm:$0xff]
  %v5906 = vld [vmem:[#allocation2 + $0x6b0] sm:$0xff]
  %v5907 = vld [vmem:[#allocation2 + $0x6b8] sm:$0xff]
  %v5908 = vld [vmem:[#allocation2 + $0x6c0] sm:$0xff]
  %v5909 = vld [vmem:[#allocation2 + $0x6c8] sm:$0xff]
  %v5910 = vld [vmem:[#allocation2 + $0x6d0] sm:$0xff]
  %v5911 = vld [vmem:[#allocation2 + $0x6d8] sm:$0xff]
  %v5912 = vld [vmem:[#allocation2 + $0x6e0] sm:$0xff]
  %v5913 = vld [vmem:[#allocation2 + $0x6e8] sm:$0xff]
  %v5914 = vld [vmem:[#allocation2 + $0x6f0] sm:$0xff]
  %v5915 = vld [vmem:[#allocation2 + $0x6f8] sm:$0xff]
  %v5916 = vld [vmem:[#allocation2 + $0x700] sm:$0xff]
  %v5917 = vld [vmem:[#allocation2 + $0x708] sm:$0xff]
  %v5918 = vld [vmem:[#allocation2 + $0x710] sm:$0xff]
  %v5919 = vld [vmem:[#allocation2 + $0x718] sm:$0xff]
  %v5920 = vld [vmem:[#allocation2 + $0x720] sm:$0xff]
  %v5921 = vld [vmem:[#allocation2 + $0x728] sm:$0xff]
  %v5922 = vld [vmem:[#allocation2 + $0x730] sm:$0xff]
  %v5923 = vld [vmem:[#allocation2 + $0x738] sm:$0xff]
  %v5924 = vld [vmem:[#allocation2 + $0x740] sm:$0xff]
  %v5925 = vld [vmem:[#allocation2 + $0x748] sm:$0xff]
  %v5926 = vld [vmem:[#allocation2 + $0x750] sm:$0xff]
  %v5927 = vld [vmem:[#allocation2 + $0x758] sm:$0xff]
  %v5928 = vld [vmem:[#allocation2 + $0x760] sm:$0xff]
  %v5929 = vld [vmem:[#allocation2 + $0x768] sm:$0xff]
  %v5930 = vld [vmem:[#allocation2 + $0x770] sm:$0xff]
  %v5931 = vld [vmem:[#allocation2 + $0x778] sm:$0xff]
  %v5932 = vld [vmem:[#allocation2 + $0x780] sm:$0xff]
  %v5933 = vld [vmem:[#allocation2 + $0x788] sm:$0xff]
  %v5934 = vld [vmem:[#allocation2 + $0x790] sm:$0xff]
  %v5935 = vld [vmem:[#allocation2 + $0x798] sm:$0xff]
  %v5936 = vld [vmem:[#allocation2 + $0x7a0] sm:$0xff]
  %v5937 = vld [vmem:[#allocation2 + $0x7a8] sm:$0xff]
  %v5938 = vld [vmem:[#allocation2 + $0x7b0] sm:$0xff]
  %v5939 = vld [vmem:[#allocation2 + $0x7b8] sm:$0xff]
  %v5940 = vld [vmem:[#allocation2 + $0x7c0] sm:$0xff]
  %v5941 = vld [vmem:[#allocation2 + $0x7c8] sm:$0xff]
  %v5942 = vld [vmem:[#allocation2 + $0x7d0] sm:$0xff]
  %v5943 = vld [vmem:[#allocation2 + $0x7d8] sm:$0xff]
  %v5944 = vld [vmem:[#allocation2 + $0x7e0] sm:$0xff]
  %v5945 = vld [vmem:[#allocation2 + $0x7e8] sm:$0xff]
  %v5946 = vld [vmem:[#allocation2 + $0x7f0] sm:$0xff]
  %v5947 = vld [vmem:[#allocation2 + $0x7f8] sm:$0xff]
  %v5948 = vld [vmem:[#allocation2 + $0x800] sm:$0xff]
  %v5949 = vld [vmem:[#allocation2 + $0x808] sm:$0xff]
  %v5950 = vld [vmem:[#allocation2 + $0x810] sm:$0xff]
  %v5951 = vld [vmem:[#allocation2 + $0x818] sm:$0xff]
  %v5952 = vld [vmem:[#allocation2 + $0x820] sm:$0xff]
  %v5953 = vld [vmem:[#allocation2 + $0x828] sm:$0xff]
  %v5954 = vld [vmem:[#allocation2 + $0x830] sm:$0xff]
  %v5955 = vld [vmem:[#allocation2 + $0x838] sm:$0xff]
  %v5956 = vld [vmem:[#allocation2 + $0x840] sm:$0xff]
  %v5957 = vld [vmem:[#allocation2 + $0x848] sm:$0xff]
  %v5958 = vld [vmem:[#allocation2 + $0x850] sm:$0xff]
  %v5959 = vld [vmem:[#allocation2 + $0x858] sm:$0xff]
  %v5960 = vld [vmem:[#allocation2 + $0x860] sm:$0xff]
  %v5961 = vld [vmem:[#allocation2 + $0x868] sm:$0xff]
  %v5962 = vld [vmem:[#allocation2 + $0x870] sm:$0xff]
  %v5963 = vld [vmem:[#allocation2 + $0x878] sm:$0xff]
  %v5964 = vld [vmem:[#allocation2 + $0x880] sm:$0xff]
  %v5965 = vld [vmem:[#allocation2 + $0x888] sm:$0xff]
  %v5966 = vld [vmem:[#allocation2 + $0x890] sm:$0xff]
  %v5967 = vld [vmem:[#allocation2 + $0x898] sm:$0xff]
  %v5968 = vld [vmem:[#allocation2 + $0x8a0] sm:$0xff]
  %v5969 = vld [vmem:[#allocation2 + $0x8a8] sm:$0xff]
  %v5970 = vld [vmem:[#allocation2 + $0x8b0] sm:$0xff]
  %v5971 = vld [vmem:[#allocation2 + $0x8b8] sm:$0xff]
  %v5972 = vld [vmem:[#allocation2 + $0x8c0] sm:$0xff]
  %v5973 = vld [vmem:[#allocation2 + $0x8c8] sm:$0xff]
  %v5974 = vld [vmem:[#allocation2 + $0x8d0] sm:$0xff]
  %v5975 = vld [vmem:[#allocation2 + $0x8d8] sm:$0xff]
  %v5976 = vld [vmem:[#allocation2 + $0x8e0] sm:$0xff]
  %v5977 = vld [vmem:[#allocation2 + $0x8e8] sm:$0xff]
  %v5978 = vld [vmem:[#allocation2 + $0x8f0] sm:$0xff]
  %v5979 = vld [vmem:[#allocation2 + $0x8f8] sm:$0xff]
  %v5980 = vld [vmem:[%s2] sm:$0xf]
  %v5981 = vld [vmem:[%s2 + $0x4] sm:$0xf]
  %v5982 = vld [vmem:[%s2 + $0x8] sm:$0xf]
  %v5983 = vld [vmem:[%s2 + $0xc] sm:$0xf]
  %v5984 = vld [vmem:[%s2 + $0x10] sm:$0xf]
  %v5985 = vld [vmem:[%s2 + $0x14] sm:$0xf]
  %v5986 = vld [vmem:[%s2 + $0x18] sm:$0xf]
  %v5987 = vld [vmem:[%s2 + $0x1c] sm:$0xf]
  %v5988 = vld [vmem:[%s2 + $0x20] sm:$0xf]
  %v5989 = vld [vmem:[%s2 + $0x24] sm:$0xf]
  %v5990 = vld [vmem:[%s2 + $0x28] sm:$0xf]
  %v5991 = vld [vmem:[%s2 + $0x2c] sm:$0xf]
  %v5992 = vld [vmem:[%s2 + $0x30] sm:$0xf]
  %v5993 = vld [vmem:[%s2 + $0x34] sm:$0xf]
  %v5994 = vld [vmem:[%s2 + $0x38] sm:$0xf]
  %v5995 = vld [vmem:[%s2 + $0x3c] sm:$0xf]
  %v5996 = vld [vmem:[%s2 + $0x40] sm:$0xf]
  %v5997 = vld [vmem:[%s2 + $0x44] sm:$0xf]
  %v5998 = vld [vmem:[%s2 + $0x48] sm:$0xf]
  %v5999 = vld [vmem:[%s2 + $0x4c] sm:$0xf]
  %v6000 = vld [vmem:[%s2 + $0x50] sm:$0xf]
  %v6001 = vld [vmem:[%s2 + $0x54] sm:$0xf]
  %v6002 = vld [vmem:[%s2 + $0x58] sm:$0xf]
  %v6003 = vld [vmem:[%s2 + $0x5c] sm:$0xf]
  %v6004 = vld [vmem:[%s2 + $0x60] sm:$0xf]
  %v6005 = vld [vmem:[%s2 + $0x64] sm:$0xf]
  %v6006 = vld [vmem:[%s2 + $0x68] sm:$0xf]
  %v6007 = vld [vmem:[%s2 + $0x6c] sm:$0xf]
  %v6008 = vld [vmem:[%s2 + $0x70] sm:$0xf]
  %v6009 = vld [vmem:[%s2 + $0x74] sm:$0xf]
  %v6010 = vld [vmem:[%s2 + $0x78] sm:$0xf]
  %v6011 = vld [vmem:[%s2 + $0x7c] sm:$0xf]
  %v6012 = vld [vmem:[%s2 + $0x80] sm:$0xf]
  %v6013 = vld [vmem:[%s2 + $0x84] sm:$0xf]
  %v6014 = vld [vmem:[%s2 + $0x88] sm:$0xf]
  %v6015 = vld [vmem:[%s2 + $0x8c] sm:$0xf]
  %v6016 = vld [vmem:[%s2 + $0x90] sm:$0xf]
  %v6017 = vld [vmem:[%s2 + $0x94] sm:$0xf]
  %v6018 = vld [vmem:[%s2 + $0x98] sm:$0xf]
  %v6019 = vld [vmem:[%s2 + $0x9c] sm:$0xf]
  %v6020 = vld [vmem:[%s2 + $0xa0] sm:$0xf]
  %v6021 = vld [vmem:[%s2 + $0xa4] sm:$0xf]
  %v6022 = vld [vmem:[%s2 + $0xa8] sm:$0xf]
  %v6023 = vld [vmem:[%s2 + $0xac] sm:$0xf]
  %v6024 = vld [vmem:[%s2 + $0xb0] sm:$0xf]
  %v6025 = vld [vmem:[%s2 + $0xb4] sm:$0xf]
  %v6026 = vld [vmem:[%s2 + $0xb8] sm:$0xf]
  %v6027 = vld [vmem:[%s2 + $0xbc] sm:$0xf]
  %v6028 = vld [vmem:[%s2 + $0xc0] sm:$0xf]
  %v6029 = vld [vmem:[%s2 + $0xc4] sm:$0xf]
  %v6030 = vld [vmem:[%s2 + $0xc8] sm:$0xf]
  %v6031 = vld [vmem:[%s2 + $0xcc] sm:$0xf]
  %v6032 = vld [vmem:[%s2 + $0xd0] sm:$0xf]
  %v6033 = vld [vmem:[%s2 + $0xd4] sm:$0xf]
  %v6034 = vld [vmem:[%s2 + $0xd8] sm:$0xf]
  %v6035 = vld [vmem:[%s2 + $0xdc] sm:$0xf]
  %v6036 = vld [vmem:[%s2 + $0xe0] sm:$0xf]
  %v6037 = vld [vmem:[%s2 + $0xe4] sm:$0xf]
  %v6038 = vld [vmem:[%s2 + $0xe8] sm:$0xf]
  %v6039 = vld [vmem:[%s2 + $0xec] sm:$0xf]
  %v6040 = vld [vmem:[%s2 + $0xf0] sm:$0xf]
  %v6041 = vld [vmem:[%s2 + $0xf4] sm:$0xf]
  %v6042 = vld [vmem:[%s2 + $0xf8] sm:$0xf]
  %v6043 = vld [vmem:[%s2 + $0xfc] sm:$0xf]
  %v6044 = vld [vmem:[%s2 + $0x100] sm:$0xf]
  %v6045 = vld [vmem:[%s2 + $0x104] sm:$0xf]
  %v6046 = vld [vmem:[%s2 + $0x108] sm:$0xf]
  %v6047 = vld [vmem:[%s2 + $0x10c] sm:$0xf]
  %v6048 = vld [vmem:[%s2 + $0x110] sm:$0xf]
  %v6049 = vld [vmem:[%s2 + $0x114] sm:$0xf]
  %v6050 = vld [vmem:[%s2 + $0x118] sm:$0xf]
  %v6051 = vld [vmem:[%s2 + $0x11c] sm:$0xf]
  %v6052 = vld [vmem:[%s2 + $0x120] sm:$0xf]
  %v6053 = vld [vmem:[%s2 + $0x124] sm:$0xf]
  %v6054 = vld [vmem:[%s2 + $0x128] sm:$0xf]
  %v6055 = vld [vmem:[%s2 + $0x12c] sm:$0xf]
  %v6056 = vld [vmem:[%s2 + $0x130] sm:$0xf]
  %v6057 = vld [vmem:[%s2 + $0x134] sm:$0xf]
  %v6058 = vld [vmem:[%s2 + $0x138] sm:$0xf]
  %v6059 = vld [vmem:[%s2 + $0x13c] sm:$0xf]
  %v6060 = vld [vmem:[%s2 + $0x140] sm:$0xf]
  %v6061 = vld [vmem:[%s2 + $0x144] sm:$0xf]
  %v6062 = vld [vmem:[%s2 + $0x148] sm:$0xf]
  %v6063 = vld [vmem:[%s2 + $0x14c] sm:$0xf]
  %v6064 = vld [vmem:[%s2 + $0x150] sm:$0xf]
  %v6065 = vld [vmem:[%s2 + $0x154] sm:$0xf]
  %v6066 = vld [vmem:[%s2 + $0x158] sm:$0xf]
  %v6067 = vld [vmem:[%s2 + $0x15c] sm:$0xf]
  %v6068 = vld [vmem:[%s2 + $0x160] sm:$0xf]
  %v6069 = vld [vmem:[%s2 + $0x164] sm:$0xf]
  %v6070 = vld [vmem:[%s2 + $0x168] sm:$0xf]
  %v6071 = vld [vmem:[%s2 + $0x16c] sm:$0xf]
  %v6072 = vld [vmem:[%s2 + $0x170] sm:$0xf]
  %v6073 = vld [vmem:[%s2 + $0x174] sm:$0xf]
  %v6074 = vld [vmem:[%s2 + $0x178] sm:$0xf]
  %v6075 = vld [vmem:[%s2 + $0x17c] sm:$0xf]
  %v6076 = vld [vmem:[%s2 + $0x180] sm:$0xf]
  %v6077 = vld [vmem:[%s2 + $0x184] sm:$0xf]
  %v6078 = vld [vmem:[%s2 + $0x188] sm:$0xf]
  %v6079 = vld [vmem:[%s2 + $0x18c] sm:$0xf]
  %v6080 = vld [vmem:[%s2 + $0x190] sm:$0xf]
  %v6081 = vld [vmem:[%s2 + $0x194] sm:$0xf]
  %v6082 = vld [vmem:[%s2 + $0x198] sm:$0xf]
  %v6083 = vld [vmem:[%s2 + $0x19c] sm:$0xf]
  %v6084 = vld [vmem:[%s2 + $0x1a0] sm:$0xf]
  %v6085 = vld [vmem:[%s2 + $0x1a4] sm:$0xf]
  %v6086 = vld [vmem:[%s2 + $0x1a8] sm:$0xf]
  %v6087 = vld [vmem:[%s2 + $0x1ac] sm:$0xf]
  %v6088 = vld [vmem:[%s2 + $0x1b0] sm:$0xf]
  %v6089 = vld [vmem:[%s2 + $0x1b4] sm:$0xf]
  %v6090 = vld [vmem:[%s2 + $0x1b8] sm:$0xf]
  %v6091 = vld [vmem:[%s2 + $0x1bc] sm:$0xf]
  %v6092 = vld [vmem:[%s2 + $0x1c0] sm:$0xf]
  %v6093 = vld [vmem:[%s2 + $0x1c4] sm:$0xf]
  %v6094 = vld [vmem:[%s2 + $0x1c8] sm:$0xf]
  %v6095 = vld [vmem:[%s2 + $0x1cc] sm:$0xf]
  %v6096 = vld [vmem:[%s2 + $0x1d0] sm:$0xf]
  %v6097 = vld [vmem:[%s2 + $0x1d4] sm:$0xf]
  %v6098 = vld [vmem:[%s2 + $0x1d8] sm:$0xf]
  %v6099 = vld [vmem:[%s2 + $0x1dc] sm:$0xf]
  %v6100 = vld [vmem:[%s2 + $0x1e0] sm:$0xf]
  %v6101 = vld [vmem:[%s2 + $0x1e4] sm:$0xf]
  %v6102 = vld [vmem:[%s2 + $0x1e8] sm:$0xf]
  %v6103 = vld [vmem:[%s2 + $0x1ec] sm:$0xf]
  %v6104 = vld [vmem:[%s2 + $0x1f0] sm:$0xf]
  %v6105 = vld [vmem:[%s2 + $0x1f4] sm:$0xf]
  %v6106 = vld [vmem:[%s2 + $0x1f8] sm:$0xf]
  %v6107 = vld [vmem:[%s2 + $0x1fc] sm:$0xf]
  %v6108 = vld [vmem:[%s2 + $0x200] sm:$0xf]
  %v6109 = vld [vmem:[%s2 + $0x204] sm:$0xf]
  %v6110 = vld [vmem:[%s2 + $0x208] sm:$0xf]
  %v6111 = vld [vmem:[%s2 + $0x20c] sm:$0xf]
  %v6112 = vld [vmem:[%s2 + $0x210] sm:$0xf]
  %v6113 = vld [vmem:[%s2 + $0x214] sm:$0xf]
  %v6114 = vld [vmem:[%s2 + $0x218] sm:$0xf]
  %v6115 = vld [vmem:[%s2 + $0x21c] sm:$0xf]
  %v6116 = vld [vmem:[%s2 + $0x220] sm:$0xf]
  %v6117 = vld [vmem:[%s2 + $0x224] sm:$0xf]
  %v6118 = vld [vmem:[%s2 + $0x228] sm:$0xf]
  %v6119 = vld [vmem:[%s2 + $0x22c] sm:$0xf]
  %v6120 = vld [vmem:[%s2 + $0x230] sm:$0xf]
  %v6121 = vld [vmem:[%s2 + $0x234] sm:$0xf]
  %v6122 = vld [vmem:[%s2 + $0x238] sm:$0xf]
  %v6123 = vld [vmem:[%s2 + $0x23c] sm:$0xf]
  %v6268 = vunpack.c.l.b16 %v5980
  %v6269 = vunpack.c.l.b16 %v5981
  %v6270 = vunpack.c.l.b16 %v5982
  %v6271 = vunpack.c.l.b16 %v5983
  %v6272 = vunpack.c.l.b16 %v5984
  %v6273 = vunpack.c.l.b16 %v5985
  %v6274 = vunpack.c.l.b16 %v5986
  %v6275 = vunpack.c.l.b16 %v5987
  %v6276 = vunpack.c.l.b16 %v5988
  %v6277 = vunpack.c.l.b16 %v5989
  %v6278 = vunpack.c.l.b16 %v5990
  %v6279 = vunpack.c.l.b16 %v5991
  %v6280 = vunpack.c.l.b16 %v5992
  %v6281 = vunpack.c.l.b16 %v5993
  %v6282 = vunpack.c.l.b16 %v5994
  %v6283 = vunpack.c.l.b16 %v5995
  %v6284 = vunpack.c.l.b16 %v5996
  %v6285 = vunpack.c.l.b16 %v5997
  %v6286 = vunpack.c.l.b16 %v5998
  %v6287 = vunpack.c.l.b16 %v5999
  %v6288 = vunpack.c.l.b16 %v6000
  %v6289 = vunpack.c.l.b16 %v6001
  %v6290 = vunpack.c.l.b16 %v6002
  %v6291 = vunpack.c.l.b16 %v6003
  %v6292 = vunpack.c.l.b16 %v6004
  %v6293 = vunpack.c.l.b16 %v6005
  %v6294 = vunpack.c.l.b16 %v6006
  %v6295 = vunpack.c.l.b16 %v6007
  %v6296 = vunpack.c.l.b16 %v6008
  %v6297 = vunpack.c.l.b16 %v6009
  %v6298 = vunpack.c.l.b16 %v6010
  %v6299 = vunpack.c.l.b16 %v6011
  %v6300 = vunpack.c.l.b16 %v6012
  %v6301 = vunpack.c.l.b16 %v6013
  %v6302 = vunpack.c.l.b16 %v6014
  %v6303 = vunpack.c.l.b16 %v6015
  %v6304 = vunpack.c.l.b16 %v6016
  %v6305 = vunpack.c.l.b16 %v6017
  %v6306 = vunpack.c.l.b16 %v6018
  %v6307 = vunpack.c.l.b16 %v6019
  %v6308 = vunpack.c.l.b16 %v6020
  %v6309 = vunpack.c.l.b16 %v6021
  %v6310 = vunpack.c.l.b16 %v6022
  %v6311 = vunpack.c.l.b16 %v6023
  %v6312 = vunpack.c.l.b16 %v6024
  %v6313 = vunpack.c.l.b16 %v6025
  %v6314 = vunpack.c.l.b16 %v6026
  %v6315 = vunpack.c.l.b16 %v6027
  %v6316 = vunpack.c.l.b16 %v6028
  %v6317 = vunpack.c.l.b16 %v6029
  %v6318 = vunpack.c.l.b16 %v6030
  %v6319 = vunpack.c.l.b16 %v6031
  %v6320 = vunpack.c.l.b16 %v6032
  %v6321 = vunpack.c.l.b16 %v6033
  %v6322 = vunpack.c.l.b16 %v6034
  %v6323 = vunpack.c.l.b16 %v6035
  %v6324 = vunpack.c.l.b16 %v6036
  %v6325 = vunpack.c.l.b16 %v6037
  %v6326 = vunpack.c.l.b16 %v6038
  %v6327 = vunpack.c.l.b16 %v6039
  %v6328 = vunpack.c.l.b16 %v6040
  %v6329 = vunpack.c.l.b16 %v6041
  %v6330 = vunpack.c.l.b16 %v6042
  %v6331 = vunpack.c.l.b16 %v6043
  %v6332 = vunpack.c.l.b16 %v6044
  %v6333 = vunpack.c.l.b16 %v6045
  %v6334 = vunpack.c.l.b16 %v6046
  %v6335 = vunpack.c.l.b16 %v6047
  %v6336 = vunpack.c.l.b16 %v6048
  %v6337 = vunpack.c.l.b16 %v6049
  %v6338 = vunpack.c.l.b16 %v6050
  %v6339 = vunpack.c.l.b16 %v6051
  %v6340 = vunpack.c.l.b16 %v6052
  %v6341 = vunpack.c.l.b16 %v6053
  %v6342 = vunpack.c.l.b16 %v6054
  %v6343 = vunpack.c.l.b16 %v6055
  %v6344 = vunpack.c.l.b16 %v6056
  %v6345 = vunpack.c.l.b16 %v6057
  %v6346 = vunpack.c.l.b16 %v6058
  %v6347 = vunpack.c.l.b16 %v6059
  %v6348 = vunpack.c.l.b16 %v6060
  %v6349 = vunpack.c.l.b16 %v6061
  %v6350 = vunpack.c.l.b16 %v6062
  %v6351 = vunpack.c.l.b16 %v6063
  %v6352 = vunpack.c.l.b16 %v6064
  %v6353 = vunpack.c.l.b16 %v6065
  %v6354 = vunpack.c.l.b16 %v6066
  %v6355 = vunpack.c.l.b16 %v6067
  %v6356 = vunpack.c.l.b16 %v6068
  %v6357 = vunpack.c.l.b16 %v6069
  %v6358 = vunpack.c.l.b16 %v6070
  %v6359 = vunpack.c.l.b16 %v6071
  %v6360 = vunpack.c.l.b16 %v6072
  %v6361 = vunpack.c.l.b16 %v6073
  %v6362 = vunpack.c.l.b16 %v6074
  %v6363 = vunpack.c.l.b16 %v6075
  %v6364 = vunpack.c.l.b16 %v6076
  %v6365 = vunpack.c.l.b16 %v6077
  %v6366 = vunpack.c.l.b16 %v6078
  %v6367 = vunpack.c.l.b16 %v6079
  %v6368 = vunpack.c.l.b16 %v6080
  %v6369 = vunpack.c.l.b16 %v6081
  %v6370 = vunpack.c.l.b16 %v6082
  %v6371 = vunpack.c.l.b16 %v6083
  %v6372 = vunpack.c.l.b16 %v6084
  %v6373 = vunpack.c.l.b16 %v6085
  %v6374 = vunpack.c.l.b16 %v6086
  %v6375 = vunpack.c.l.b16 %v6087
  %v6376 = vunpack.c.l.b16 %v6088
  %v6377 = vunpack.c.l.b16 %v6089
  %v6378 = vunpack.c.l.b16 %v6090
  %v6379 = vunpack.c.l.b16 %v6091
  %v6380 = vunpack.c.l.b16 %v6092
  %v6381 = vunpack.c.l.b16 %v6093
  %v6382 = vunpack.c.l.b16 %v6094
  %v6383 = vunpack.c.l.b16 %v6095
  %v6384 = vunpack.c.l.b16 %v6096
  %v6385 = vunpack.c.l.b16 %v6097
  %v6386 = vunpack.c.l.b16 %v6098
  %v6387 = vunpack.c.l.b16 %v6099
  %v6388 = vunpack.c.l.b16 %v6100
  %v6389 = vunpack.c.l.b16 %v6101
  %v6390 = vunpack.c.l.b16 %v6102
  %v6391 = vunpack.c.l.b16 %v6103
  %v6392 = vunpack.c.l.b16 %v6104
  %v6393 = vunpack.c.l.b16 %v6105
  %v6394 = vunpack.c.l.b16 %v6106
  %v6395 = vunpack.c.l.b16 %v6107
  %v6396 = vunpack.c.l.b16 %v6108
  %v6397 = vunpack.c.l.b16 %v6109
  %v6398 = vunpack.c.l.b16 %v6110
  %v6399 = vunpack.c.l.b16 %v6111
  %v6400 = vunpack.c.l.b16 %v6112
  %v6401 = vunpack.c.l.b16 %v6113
  %v6402 = vunpack.c.l.b16 %v6114
  %v6403 = vunpack.c.l.b16 %v6115
  %v6404 = vunpack.c.l.b16 %v6116
  %v6405 = vunpack.c.l.b16 %v6117
  %v6406 = vunpack.c.l.b16 %v6118
  %v6407 = vunpack.c.l.b16 %v6119
  %v6408 = vunpack.c.l.b16 %v6120
  %v6409 = vunpack.c.l.b16 %v6121
  %v6410 = vunpack.c.l.b16 %v6122
  %v6411 = vunpack.c.l.b16 %v6123
  %v6412 = vpack.c.b16 %v6269, %v6268
  %v6413 = vpack.c.b16 %v6271, %v6270
  %v6414 = vpack.c.b16 %v6273, %v6272
  %v6415 = vpack.c.b16 %v6275, %v6274
  %v6416 = vpack.c.b16 %v6277, %v6276
  %v6417 = vpack.c.b16 %v6279, %v6278
  %v6418 = vpack.c.b16 %v6281, %v6280
  %v6419 = vpack.c.b16 %v6283, %v6282
  %v6420 = vpack.c.b16 %v6285, %v6284
  %v6421 = vpack.c.b16 %v6287, %v6286
  %v6422 = vpack.c.b16 %v6289, %v6288
  %v6423 = vpack.c.b16 %v6291, %v6290
  %v6424 = vpack.c.b16 %v6293, %v6292
  %v6425 = vpack.c.b16 %v6295, %v6294
  %v6426 = vpack.c.b16 %v6297, %v6296
  %v6427 = vpack.c.b16 %v6299, %v6298
  %v6428 = vpack.c.b16 %v6301, %v6300
  %v6429 = vpack.c.b16 %v6303, %v6302
  %v6430 = vpack.c.b16 %v6305, %v6304
  %v6431 = vpack.c.b16 %v6307, %v6306
  %v6432 = vpack.c.b16 %v6309, %v6308
  %v6433 = vpack.c.b16 %v6311, %v6310
  %v6434 = vpack.c.b16 %v6313, %v6312
  %v6435 = vpack.c.b16 %v6315, %v6314
  %v6436 = vpack.c.b16 %v6317, %v6316
  %v6437 = vpack.c.b16 %v6319, %v6318
  %v6438 = vpack.c.b16 %v6321, %v6320
  %v6439 = vpack.c.b16 %v6323, %v6322
  %v6440 = vpack.c.b16 %v6325, %v6324
  %v6441 = vpack.c.b16 %v6327, %v6326
  %v6442 = vpack.c.b16 %v6329, %v6328
  %v6443 = vpack.c.b16 %v6331, %v6330
  %v6444 = vpack.c.b16 %v6333, %v6332
  %v6445 = vpack.c.b16 %v6335, %v6334
  %v6446 = vpack.c.b16 %v6337, %v6336
  %v6447 = vpack.c.b16 %v6339, %v6338
  %v6448 = vpack.c.b16 %v6341, %v6340
  %v6449 = vpack.c.b16 %v6343, %v6342
  %v6450 = vpack.c.b16 %v6345, %v6344
  %v6451 = vpack.c.b16 %v6347, %v6346
  %v6452 = vpack.c.b16 %v6349, %v6348
  %v6453 = vpack.c.b16 %v6351, %v6350
  %v6454 = vpack.c.b16 %v6353, %v6352
  %v6455 = vpack.c.b16 %v6355, %v6354
  %v6456 = vpack.c.b16 %v6357, %v6356
  %v6457 = vpack.c.b16 %v6359, %v6358
  %v6458 = vpack.c.b16 %v6361, %v6360
  %v6459 = vpack.c.b16 %v6363, %v6362
  %v6460 = vpack.c.b16 %v6365, %v6364
  %v6461 = vpack.c.b16 %v6367, %v6366
  %v6462 = vpack.c.b16 %v6369, %v6368
  %v6463 = vpack.c.b16 %v6371, %v6370
  %v6464 = vpack.c.b16 %v6373, %v6372
  %v6465 = vpack.c.b16 %v6375, %v6374
  %v6466 = vpack.c.b16 %v6377, %v6376
  %v6467 = vpack.c.b16 %v6379, %v6378
  %v6468 = vpack.c.b16 %v6381, %v6380
  %v6469 = vpack.c.b16 %v6383, %v6382
  %v6470 = vpack.c.b16 %v6385, %v6384
  %v6471 = vpack.c.b16 %v6387, %v6386
  %v6472 = vpack.c.b16 %v6389, %v6388
  %v6473 = vpack.c.b16 %v6391, %v6390
  %v6474 = vpack.c.b16 %v6393, %v6392
  %v6475 = vpack.c.b16 %v6395, %v6394
  %v6476 = vpack.c.b16 %v6397, %v6396
  %v6477 = vpack.c.b16 %v6399, %v6398
  %v6478 = vpack.c.b16 %v6401, %v6400
  %v6479 = vpack.c.b16 %v6403, %v6402
  %v6480 = vpack.c.b16 %v6405, %v6404
  %v6481 = vpack.c.b16 %v6407, %v6406
  %v6482 = vpack.c.b16 %v6409, %v6408
  %v6483 = vpack.c.b16 %v6411, %v6410
  %6556 = vmatprep.subr.bf16.mxu0 0
  %6557 = vmatpush1.bf16.msra.mxu0 %v6412
  %6558 = vmatprep.subr.bf16.mxu0 0
  %6559 = vmatpush1.bf16.msra.mxu0 %v6413
  %6560 = vmatprep.subr.bf16.mxu0 0
  %6561 = vmatpush1.bf16.msra.mxu0 %v6414
  %6562 = vmatprep.subr.bf16.mxu0 0
  %6563 = vmatpush1.bf16.msra.mxu0 %v6415
  %6564 = vmatprep.subr.bf16.mxu0 0
  %6565 = vmatpush1.bf16.msra.mxu0 %v6416
  %6566 = vmatprep.subr.bf16.mxu0 0
  %6567 = vmatpush1.bf16.msra.mxu0 %v6417
  %6568 = vmatprep.subr.bf16.mxu0 0
  %6569 = vmatpush1.bf16.msra.mxu0 %v6418
  %6570 = vmatprep.subr.bf16.mxu0 0
  %6571 = vmatpush1.bf16.msra.mxu0 %v6419
  %6572 = vmatprep.subr.bf16.mxu0 0
  %6573 = vmatpush1.bf16.msra.mxu0 %v6420
  %6574 = vmatprep.subr.bf16.mxu0 0
  %6575 = vmatpush1.bf16.msra.mxu0 %v6421
  %6576 = vmatprep.subr.bf16.mxu0 0
  %6577 = vmatpush1.bf16.msra.mxu0 %v6422
  %6578 = vmatprep.subr.bf16.mxu0 0
  %6579 = vmatpush1.bf16.msra.mxu0 %v6423
  %6580 = vmatprep.subr.bf16.mxu0 0
  %6581 = vmatpush1.bf16.msra.mxu0 %v6424
  %6582 = vmatprep.subr.bf16.mxu0 0
  %6583 = vmatpush1.bf16.msra.mxu0 %v6425
  %6584 = vmatprep.subr.bf16.mxu0 0
  %6585 = vmatpush1.bf16.msra.mxu0 %v6426
  %6586 = vmatprep.subr.bf16.mxu0 0
  %6587 = vmatpush1.bf16.msra.mxu0 %v6427
  %6588 = vmatprep.mubr.bf16.mxu0 %v5693
  %6589 = vmatmul.mubr.bf16.gmra.mrb[0].mxu0 %v5692
  %v6590 = vpop.f32.mrb[0].mxu0
  %v6591 = vadd.f32 0.0, %v6590
  %v6592 = vpop.f32.mrb[0].mxu0
  %v6593 = vpop.f32.mrb[0].mxu0
  %v6594 = vadd.f32 0.0, %v6593
  %v6595 = vpop.f32.mrb[0].mxu0
  %6596 = vmatprep.mubr.bf16.mxu0 %v5702
  %6597 = vmatmul.mubr.bf16.gmra.mrb[0].mxu0 %v5701
  %v6598 = vpop.f32.mrb[0].mxu0
  %v6599 = vadd.f32 0.0, %v6598
  %v6600 = vpop.f32.mrb[0].mxu0
  %v6601 = vpop.f32.mrb[0].mxu0
  %v6602 = vadd.f32 0.0, %v6601
  %v6603 = vpop.f32.mrb[0].mxu0
  %6604 = vmatprep.mubr.bf16.mxu0 %v5711
  %6605 = vmatmul.mubr.bf16.gmra.mrb[0].mxu0 %v5710
  %v6606 = vpop.f32.mrb[0].mxu0
  %v6607 = vadd.f32 0.0, %v6606
  %v6608 = vpop.f32.mrb[0].mxu0
  %v6609 = vpop.f32.mrb[0].mxu0
  %v6610 = vadd.f32 0.0, %v6609
  %v6611 = vpop.f32.mrb[0].mxu0
  %6612 = vmatprep.mubr.bf16.mxu0 %v5720
  %6613 = vmatmul.mubr.bf16.gmra.mrb[0].mxu0 %v5719
  %v6614 = vpop.f32.mrb[0].mxu0
  %v6615 = vadd.f32 0.0, %v6614
  %v6616 = vpop.f32.mrb[0].mxu0
  %v6617 = vpop.f32.mrb[0].mxu0
  %v6618 = vadd.f32 0.0, %v6617
  %v6619 = vpop.f32.mrb[0].mxu0
  %6620 = vmatprep.mubr.bf16.mxu0 %v5729
  %6621 = vmatmul.mubr.bf16.gmra.mrb[0].mxu0 %v5728
  %v6622 = vpop.f32.mrb[0].mxu0
  %v6623 = vadd.f32 0.0, %v6622
  %v6624 = vpop.f32.mrb[0].mxu0
  %v6625 = vpop.f32.mrb[0].mxu0
  %v6626 = vadd.f32 0.0, %v6625
  %v6627 = vpop.f32.mrb[0].mxu0
  %6628 = vmatprep.mubr.bf16.mxu0 %v5738
  %6629 = vmatmul.mubr.bf16.gmra.mrb[0].mxu0 %v5737
  %v6630 = vpop.f32.mrb[0].mxu0
  %v6631 = vadd.f32 0.0, %v6630
  %v6632 = vpop.f32.mrb[0].mxu0
  %v6633 = vpop.f32.mrb[0].mxu0
  %v6634 = vadd.f32 0.0, %v6633
  %v6635 = vpop.f32.mrb[0].mxu0
  %6636 = vmatprep.mubr.bf16.mxu0 %v5747
  %6637 = vmatmul.mubr.bf16.gmra.mrb[0].mxu0 %v5746
  %v6638 = vpop.f32.mrb[0].mxu0
  %v6639 = vadd.f32 0.0, %v6638
  %v6640 = vpop.f32.mrb[0].mxu0
  %v6641 = vpop.f32.mrb[0].mxu0
  %v6642 = vadd.f32 0.0, %v6641
  %v6643 = vpop.f32.mrb[0].mxu0
  %6644 = vmatprep.mubr.bf16.mxu0 %v5756
  %6645 = vmatmul.mubr.bf16.gmra.mrb[0].mxu0 %v5755
  %v6646 = vpop.f32.mrb[0].mxu0
  %v6647 = vadd.f32 0.0, %v6646
  %v6648 = vpop.f32.mrb[0].mxu0
  %v6649 = vpop.f32.mrb[0].mxu0
  %v6650 = vadd.f32 0.0, %v6649
  %v6651 = vpop.f32.mrb[0].mxu0
  %6652 = vmatprep.mubr.bf16.mxu0 %v5765
  %6653 = vmatmul.mubr.bf16.gmra.mrb[0].mxu0 %v5764
  %v6654 = vpop.f32.mrb[0].mxu0
  %v6655 = vadd.f32 0.0, %v6654
  %v6656 = vpop.f32.mrb[0].mxu0
  %v6657 = vpop.f32.mrb[0].mxu0
  %v6658 = vadd.f32 0.0, %v6657
  %v6659 = vpop.f32.mrb[0].mxu0
  %6660 = vmatprep.mubr.bf16.mxu0 %v5774
  %6661 = vmatmul.mubr.bf16.gmra.mrb[0].mxu0 %v5773
  %v6662 = vpop.f32.mrb[0].mxu0
  %v6663 = vadd.f32 0.0, %v6662
  %v6664 = vpop.f32.mrb[0].mxu0
  %v6665 = vpop.f32.mrb[0].mxu0
  %v6666 = vadd.f32 0.0, %v6665
  %v6667 = vpop.f32.mrb[0].mxu0
  %6668 = vmatprep.mubr.bf16.mxu0 %v5783
  %6669 = vmatmul.mubr.bf16.gmra.mrb[0].mxu0 %v5782
  %v6670 = vpop.f32.mrb[0].mxu0
  %v6671 = vadd.f32 0.0, %v6670
  %v6672 = vpop.f32.mrb[0].mxu0
  %v6673 = vpop.f32.mrb[0].mxu0
  %v6674 = vadd.f32 0.0, %v6673
  %v6675 = vpop.f32.mrb[0].mxu0
  %6676 = vmatprep.mubr.bf16.mxu0 %v5792
  %6677 = vmatmul.mubr.bf16.gmra.mrb[0].mxu0 %v5791
  %v6678 = vpop.f32.mrb[0].mxu0
  %v6679 = vadd.f32 0.0, %v6678
  %v6680 = vpop.f32.mrb[0].mxu0
  %v6681 = vpop.f32.mrb[0].mxu0
  %v6682 = vadd.f32 0.0, %v6681
  %v6683 = vpop.f32.mrb[0].mxu0
  %6684 = vmatprep.mubr.bf16.mxu0 %v5801
  %6685 = vmatmul.mubr.bf16.gmra.mrb[0].mxu0 %v5800
  %v6686 = vpop.f32.mrb[0].mxu0
  %v6687 = vadd.f32 0.0, %v6686
  %v6688 = vpop.f32.mrb[0].mxu0
  %v6689 = vpop.f32.mrb[0].mxu0
  %v6690 = vadd.f32 0.0, %v6689
  %v6691 = vpop.f32.mrb[0].mxu0
  %6692 = vmatprep.mubr.bf16.mxu0 %v5810
  %6693 = vmatmul.mubr.bf16.gmra.mrb[0].mxu0 %v5809
  %v6694 = vpop.f32.mrb[0].mxu0
  %v6695 = vadd.f32 0.0, %v6694
  %v6696 = vpop.f32.mrb[0].mxu0
  %v6697 = vpop.f32.mrb[0].mxu0
  %v6698 = vadd.f32 0.0, %v6697
  %v6699 = vpop.f32.mrb[0].mxu0
  %6700 = vmatprep.mubr.bf16.mxu0 %v5819
  %6701 = vmatmul.mubr.bf16.gmra.mrb[0].mxu0 %v5818
  %v6702 = vpop.f32.mrb[0].mxu0
  %v6703 = vadd.f32 0.0, %v6702
  %v6704 = vpop.f32.mrb[0].mxu0
  %v6705 = vpop.f32.mrb[0].mxu0
  %v6706 = vadd.f32 0.0, %v6705
  %v6707 = vpop.f32.mrb[0].mxu0
  %6708 = vmatprep.mubr.bf16.mxu0 %v5828
  %6709 = vmatmul.mubr.bf16.gmra.mrb[0].mxu0 %v5827
  %v6710 = vpop.f32.mrb[0].mxu0
  %v6711 = vadd.f32 0.0, %v6710
  %v6712 = vpop.f32.mrb[0].mxu0
  %v6713 = vpop.f32.mrb[0].mxu0
  %v6714 = vadd.f32 0.0, %v6713
  %v6715 = vpop.f32.mrb[0].mxu0
  %6716 = vmatprep.mubr.bf16.mxu0 %v5837
  %6717 = vmatmul.mubr.bf16.gmra.mrb[0].mxu0 %v5836
  %v6718 = vpop.f32.mrb[0].mxu0
  %v6719 = vadd.f32 0.0, %v6718
  %v6720 = vpop.f32.mrb[0].mxu0
  %v6721 = vpop.f32.mrb[0].mxu0
  %v6722 = vadd.f32 0.0, %v6721
  %v6723 = vpop.f32.mrb[0].mxu0
  %6724 = vmatprep.mubr.bf16.mxu0 %v5846
  %6725 = vmatmul.mubr.bf16.gmra.mrb[0].mxu0 %v5845
  %v6726 = vpop.f32.mrb[0].mxu0
  %v6727 = vadd.f32 0.0, %v6726
  %v6728 = vpop.f32.mrb[0].mxu0
  %v6729 = vpop.f32.mrb[0].mxu0
  %v6730 = vadd.f32 0.0, %v6729
  %v6731 = vpop.f32.mrb[0].mxu0
  %6732 = vmatprep.mubr.bf16.mxu0 %v5855
  %6733 = vmatmul.mubr.bf16.gmra.mrb[0].mxu0 %v5854
  %v6734 = vpop.f32.mrb[0].mxu0
  %v6735 = vadd.f32 0.0, %v6734
  %v6736 = vpop.f32.mrb[0].mxu0
  %v6737 = vpop.f32.mrb[0].mxu0
  %v6738 = vadd.f32 0.0, %v6737
  %v6739 = vpop.f32.mrb[0].mxu0
  %6740 = vmatprep.mubr.bf16.mxu0 %v5864
  %6741 = vmatmul.mubr.bf16.gmra.mrb[0].mxu0 %v5863
  %v6742 = vpop.f32.mrb[0].mxu0
  %v6743 = vadd.f32 0.0, %v6742
  %v6744 = vpop.f32.mrb[0].mxu0
  %v6745 = vpop.f32.mrb[0].mxu0
  %v6746 = vadd.f32 0.0, %v6745
  %v6747 = vpop.f32.mrb[0].mxu0
  %6748 = vmatprep.mubr.bf16.mxu0 %v5873
  %6749 = vmatmul.mubr.bf16.gmra.mrb[0].mxu0 %v5872
  %v6750 = vpop.f32.mrb[0].mxu0
  %v6751 = vadd.f32 0.0, %v6750
  %v6752 = vpop.f32.mrb[0].mxu0
  %v6753 = vpop.f32.mrb[0].mxu0
  %v6754 = vadd.f32 0.0, %v6753
  %v6755 = vpop.f32.mrb[0].mxu0
  %6756 = vmatprep.mubr.bf16.mxu0 %v5882
  %6757 = vmatmul.mubr.bf16.gmra.mrb[0].mxu0 %v5881
  %v6758 = vpop.f32.mrb[0].mxu0
  %v6759 = vadd.f32 0.0, %v6758
  %v6760 = vpop.f32.mrb[0].mxu0
  %v6761 = vpop.f32.mrb[0].mxu0
  %v6762 = vadd.f32 0.0, %v6761
  %v6763 = vpop.f32.mrb[0].mxu0
  %6764 = vmatprep.mubr.bf16.mxu0 %v5891
  %6765 = vmatmul.mubr.bf16.gmra.mrb[0].mxu0 %v5890
  %v6766 = vpop.f32.mrb[0].mxu0
  %v6767 = vadd.f32 0.0, %v6766
  %v6768 = vpop.f32.mrb[0].mxu0
  %v6769 = vpop.f32.mrb[0].mxu0
  %v6770 = vadd.f32 0.0, %v6769
  %v6771 = vpop.f32.mrb[0].mxu0
  %6772 = vmatprep.mubr.bf16.mxu0 %v5900
  %6773 = vmatmul.mubr.bf16.gmra.mrb[0].mxu0 %v5899
  %v6774 = vpop.f32.mrb[0].mxu0
  %v6775 = vadd.f32 0.0, %v6774
  %v6776 = vpop.f32.mrb[0].mxu0
  %v6777 = vpop.f32.mrb[0].mxu0
  %v6778 = vadd.f32 0.0, %v6777
  %v6779 = vpop.f32.mrb[0].mxu0
  %6780 = vmatprep.mubr.bf16.mxu0 %v5909
  %6781 = vmatmul.mubr.bf16.gmra.mrb[0].mxu0 %v5908
  %v6782 = vpop.f32.mrb[0].mxu0
  %v6783 = vadd.f32 0.0, %v6782
  %v6784 = vpop.f32.mrb[0].mxu0
  %v6785 = vpop.f32.mrb[0].mxu0
  %v6786 = vadd.f32 0.0, %v6785
  %v6787 = vpop.f32.mrb[0].mxu0
  %6788 = vmatprep.mubr.bf16.mxu0 %v5918
  %6789 = vmatmul.mubr.bf16.gmra.mrb[0].mxu0 %v5917
  %v6790 = vpop.f32.mrb[0].mxu0
  %v6791 = vadd.f32 0.0, %v6790
  %v6792 = vpop.f32.mrb[0].mxu0
  %v6793 = vpop.f32.mrb[0].mxu0
  %v6794 = vadd.f32 0.0, %v6793
  %v6795 = vpop.f32.mrb[0].mxu0
  %6796 = vmatprep.mubr.bf16.mxu0 %v5927
  %6797 = vmatmul.mubr.bf16.gmra.mrb[0].mxu0 %v5926
  %v6798 = vpop.f32.mrb[0].mxu0
  %v6799 = vadd.f32 0.0, %v6798
  %v6800 = vpop.f32.mrb[0].mxu0
  %v6801 = vpop.f32.mrb[0].mxu0
  %v6802 = vadd.f32 0.0, %v6801
  %v6803 = vpop.f32.mrb[0].mxu0
  %6804 = vmatprep.mubr.bf16.mxu0 %v5936
  %6805 = vmatmul.mubr.bf16.gmra.mrb[0].mxu0 %v5935
  %v6806 = vpop.f32.mrb[0].mxu0
  %v6807 = vadd.f32 0.0, %v6806
  %v6808 = vpop.f32.mrb[0].mxu0
  %v6809 = vpop.f32.mrb[0].mxu0
  %v6810 = vadd.f32 0.0, %v6809
  %v6811 = vpop.f32.mrb[0].mxu0
  %6812 = vmatprep.mubr.bf16.mxu0 %v5945
  %6813 = vmatmul.mubr.bf16.gmra.mrb[0].mxu0 %v5944
  %v6814 = vpop.f32.mrb[0].mxu0
  %v6815 = vadd.f32 0.0, %v6814
  %v6816 = vpop.f32.mrb[0].mxu0
  %v6817 = vpop.f32.mrb[0].mxu0
  %v6818 = vadd.f32 0.0, %v6817
  %v6819 = vpop.f32.mrb[0].mxu0
  %6820 = vmatprep.mubr.bf16.mxu0 %v5954
  %6821 = vmatmul.mubr.bf16.gmra.mrb[0].mxu0 %v5953
  %v6822 = vpop.f32.mrb[0].mxu0
  %v6823 = vadd.f32 0.0, %v6822
  %v6824 = vpop.f32.mrb[0].mxu0
  %v6825 = vpop.f32.mrb[0].mxu0
  %v6826 = vadd.f32 0.0, %v6825
  %v6827 = vpop.f32.mrb[0].mxu0
  %6828 = vmatprep.mubr.bf16.mxu0 %v5963
  %6829 = vmatmul.mubr.bf16.gmra.mrb[0].mxu0 %v5962
  %v6830 = vpop.f32.mrb[0].mxu0
  %v6831 = vadd.f32 0.0, %v6830
  %v6832 = vpop.f32.mrb[0].mxu0
  %v6833 = vpop.f32.mrb[0].mxu0
  %v6834 = vadd.f32 0.0, %v6833
  %v6835 = vpop.f32.mrb[0].mxu0
  %6836 = vmatprep.mubr.bf16.mxu0 %v5972
  %6837 = vmatmul.mubr.bf16.gmra.mrb[0].mxu0 %v5971
  %v6838 = vpop.f32.mrb[0].mxu0
  %v6839 = vadd.f32 0.0, %v6838
  %v6840 = vpop.f32.mrb[0].mxu0
  %v6841 = vpop.f32.mrb[0].mxu0
  %v6842 = vadd.f32 0.0, %v6841
  %v6843 = vpop.f32.mrb[0].mxu0
  %6844 = vdwg.mxu0
  %6845 = vmatprep.subr.bf16.mxu0 0
  %6846 = vmatpush1.bf16.msra.mxu0 %v6428
  %6847 = vmatprep.subr.bf16.mxu0 0
  %6848 = vmatpush1.bf16.msra.mxu0 %v6429
  %6849 = vmatprep.subr.bf16.mxu0 0
  %6850 = vmatpush1.bf16.msra.mxu0 %v6430
  %6851 = vmatprep.subr.bf16.mxu0 0
  %6852 = vmatpush1.bf16.msra.mxu0 %v6431
  %6853 = vmatprep.subr.bf16.mxu0 0
  %6854 = vmatpush1.bf16.msra.mxu0 %v6432
  %6855 = vmatprep.subr.bf16.mxu0 0
  %6856 = vmatpush1.bf16.msra.mxu0 %v6433
  %6857 = vmatprep.subr.bf16.mxu0 0
  %6858 = vmatpush1.bf16.msra.mxu0 %v6434
  %6859 = vmatprep.subr.bf16.mxu0 0
  %6860 = vmatpush1.bf16.msra.mxu0 %v6435
  %6861 = vmatprep.subr.bf16.mxu0 0
  %6862 = vmatpush1.bf16.msra.mxu0 %v6436
  %6863 = vmatprep.subr.bf16.mxu0 0
  %6864 = vmatpush1.bf16.msra.mxu0 %v6437
  %6865 = vmatprep.subr.bf16.mxu0 0
  %6866 = vmatpush1.bf16.msra.mxu0 %v6438
  %6867 = vmatprep.subr.bf16.mxu0 0
  %6868 = vmatpush1.bf16.msra.mxu0 %v6439
  %6869 = vmatprep.subr.bf16.mxu0 0
  %6870 = vmatpush1.bf16.msra.mxu0 %v6440
  %6871 = vmatprep.subr.bf16.mxu0 0
  %6872 = vmatpush1.bf16.msra.mxu0 %v6441
  %6873 = vmatprep.subr.bf16.mxu0 0
  %6874 = vmatpush1.bf16.msra.mxu0 %v6442
  %6875 = vmatprep.subr.bf16.mxu0 0
  %6876 = vmatpush1.bf16.msra.mxu0 %v6443
  %6877 = vmatprep.mubr.bf16.mxu0 %v5695
  %6878 = vmatmul.mubr.bf16.gmra.mrb[0].mxu0 %v5694
  %v6879 = vpop.f32.mrb[0].mxu0
  %v6880 = vadd.f32 %v6591, %v6879
  %v6881 = vpop.f32.mrb[0].mxu0
  %v6882 = vpop.f32.mrb[0].mxu0
  %v6883 = vadd.f32 %v6594, %v6882
  %v6884 = vpop.f32.mrb[0].mxu0
  %6885 = vmatprep.mubr.bf16.mxu0 %v5704
  %6886 = vmatmul.mubr.bf16.gmra.mrb[0].mxu0 %v5703
  %v6887 = vpop.f32.mrb[0].mxu0
  %v6888 = vadd.f32 %v6599, %v6887
  %v6889 = vpop.f32.mrb[0].mxu0
  %v6890 = vpop.f32.mrb[0].mxu0
  %v6891 = vadd.f32 %v6602, %v6890
  %v6892 = vpop.f32.mrb[0].mxu0
  %6893 = vmatprep.mubr.bf16.mxu0 %v5713
  %6894 = vmatmul.mubr.bf16.gmra.mrb[0].mxu0 %v5712
  %v6895 = vpop.f32.mrb[0].mxu0
  %v6896 = vadd.f32 %v6607, %v6895
  %v6897 = vpop.f32.mrb[0].mxu0
  %v6898 = vpop.f32.mrb[0].mxu0
  %v6899 = vadd.f32 %v6610, %v6898
  %v6900 = vpop.f32.mrb[0].mxu0
  %6901 = vmatprep.mubr.bf16.mxu0 %v5722
  %6902 = vmatmul.mubr.bf16.gmra.mrb[0].mxu0 %v5721
  %v6903 = vpop.f32.mrb[0].mxu0
  %v6904 = vadd.f32 %v6615, %v6903
  %v6905 = vpop.f32.mrb[0].mxu0
  %v6906 = vpop.f32.mrb[0].mxu0
  %v6907 = vadd.f32 %v6618, %v6906
  %v6908 = vpop.f32.mrb[0].mxu0
  %6909 = vmatprep.mubr.bf16.mxu0 %v5731
  %6910 = vmatmul.mubr.bf16.gmra.mrb[0].mxu0 %v5730
  %v6911 = vpop.f32.mrb[0].mxu0
  %v6912 = vadd.f32 %v6623, %v6911
  %v6913 = vpop.f32.mrb[0].mxu0
  %v6914 = vpop.f32.mrb[0].mxu0
  %v6915 = vadd.f32 %v6626, %v6914
  %v6916 = vpop.f32.mrb[0].mxu0
  %6917 = vmatprep.mubr.bf16.mxu0 %v5740
  %6918 = vmatmul.mubr.bf16.gmra.mrb[0].mxu0 %v5739
  %v6919 = vpop.f32.mrb[0].mxu0
  %v6920 = vadd.f32 %v6631, %v6919
  %v6921 = vpop.f32.mrb[0].mxu0
  %v6922 = vpop.f32.mrb[0].mxu0
  %v6923 = vadd.f32 %v6634, %v6922
  %v6924 = vpop.f32.mrb[0].mxu0
  %6925 = vmatprep.mubr.bf16.mxu0 %v5749
  %6926 = vmatmul.mubr.bf16.gmra.mrb[0].mxu0 %v5748
  %v6927 = vpop.f32.mrb[0].mxu0
  %v6928 = vadd.f32 %v6639, %v6927
  %v6929 = vpop.f32.mrb[0].mxu0
  %v6930 = vpop.f32.mrb[0].mxu0
  %v6931 = vadd.f32 %v6642, %v6930
  %v6932 = vpop.f32.mrb[0].mxu0
  %6933 = vmatprep.mubr.bf16.mxu0 %v5758
  %6934 = vmatmul.mubr.bf16.gmra.mrb[0].mxu0 %v5757
  %v6935 = vpop.f32.mrb[0].mxu0
  %v6936 = vadd.f32 %v6647, %v6935
  %v6937 = vpop.f32.mrb[0].mxu0
  %v6938 = vpop.f32.mrb[0].mxu0
  %v6939 = vadd.f32 %v6650, %v6938
  %v6940 = vpop.f32.mrb[0].mxu0
  %6941 = vmatprep.mubr.bf16.mxu0 %v5767
  %6942 = vmatmul.mubr.bf16.gmra.mrb[0].mxu0 %v5766
  %v6943 = vpop.f32.mrb[0].mxu0
  %v6944 = vadd.f32 %v6655, %v6943
  %v6945 = vpop.f32.mrb[0].mxu0
  %v6946 = vpop.f32.mrb[0].mxu0
  %v6947 = vadd.f32 %v6658, %v6946
  %v6948 = vpop.f32.mrb[0].mxu0
  %6949 = vmatprep.mubr.bf16.mxu0 %v5776
  %6950 = vmatmul.mubr.bf16.gmra.mrb[0].mxu0 %v5775
  %v6951 = vpop.f32.mrb[0].mxu0
  %v6952 = vadd.f32 %v6663, %v6951
  %v6953 = vpop.f32.mrb[0].mxu0
  %v6954 = vpop.f32.mrb[0].mxu0
  %v6955 = vadd.f32 %v6666, %v6954
  %v6956 = vpop.f32.mrb[0].mxu0
  %6957 = vmatprep.mubr.bf16.mxu0 %v5785
  %6958 = vmatmul.mubr.bf16.gmra.mrb[0].mxu0 %v5784
  %v6959 = vpop.f32.mrb[0].mxu0
  %v6960 = vadd.f32 %v6671, %v6959
  %v6961 = vpop.f32.mrb[0].mxu0
  %v6962 = vpop.f32.mrb[0].mxu0
  %v6963 = vadd.f32 %v6674, %v6962
  %v6964 = vpop.f32.mrb[0].mxu0
  %6965 = vmatprep.mubr.bf16.mxu0 %v5794
  %6966 = vmatmul.mubr.bf16.gmra.mrb[0].mxu0 %v5793
  %v6967 = vpop.f32.mrb[0].mxu0
  %v6968 = vadd.f32 %v6679, %v6967
  %v6969 = vpop.f32.mrb[0].mxu0
  %v6970 = vpop.f32.mrb[0].mxu0
  %v6971 = vadd.f32 %v6682, %v6970
  %v6972 = vpop.f32.mrb[0].mxu0
  %6973 = vmatprep.mubr.bf16.mxu0 %v5803
  %6974 = vmatmul.mubr.bf16.gmra.mrb[0].mxu0 %v5802
  %v6975 = vpop.f32.mrb[0].mxu0
  %v6976 = vadd.f32 %v6687, %v6975
  %v6977 = vpop.f32.mrb[0].mxu0
  %v6978 = vpop.f32.mrb[0].mxu0
  %v6979 = vadd.f32 %v6690, %v6978
  %v6980 = vpop.f32.mrb[0].mxu0
  %6981 = vmatprep.mubr.bf16.mxu0 %v5812
  %6982 = vmatmul.mubr.bf16.gmra.mrb[0].mxu0 %v5811
  %v6983 = vpop.f32.mrb[0].mxu0
  %v6984 = vadd.f32 %v6695, %v6983
  %v6985 = vpop.f32.mrb[0].mxu0
  %v6986 = vpop.f32.mrb[0].mxu0
  %v6987 = vadd.f32 %v6698, %v6986
  %v6988 = vpop.f32.mrb[0].mxu0
  %6989 = vmatprep.mubr.bf16.mxu0 %v5821
  %6990 = vmatmul.mubr.bf16.gmra.mrb[0].mxu0 %v5820
  %v6991 = vpop.f32.mrb[0].mxu0
  %v6992 = vadd.f32 %v6703, %v6991
  %v6993 = vpop.f32.mrb[0].mxu0
  %v6994 = vpop.f32.mrb[0].mxu0
  %v6995 = vadd.f32 %v6706, %v6994
  %v6996 = vpop.f32.mrb[0].mxu0
  %6997 = vmatprep.mubr.bf16.mxu0 %v5830
  %6998 = vmatmul.mubr.bf16.gmra.mrb[0].mxu0 %v5829
  %v6999 = vpop.f32.mrb[0].mxu0
  %v7000 = vadd.f32 %v6711, %v6999
  %v7001 = vpop.f32.mrb[0].mxu0
  %v7002 = vpop.f32.mrb[0].mxu0
  %v7003 = vadd.f32 %v6714, %v7002
  %v7004 = vpop.f32.mrb[0].mxu0
  %7005 = vmatprep.mubr.bf16.mxu0 %v5839
  %7006 = vmatmul.mubr.bf16.gmra.mrb[0].mxu0 %v5838
  %v7007 = vpop.f32.mrb[0].mxu0
  %v7008 = vadd.f32 %v6719, %v7007
  %v7009 = vpop.f32.mrb[0].mxu0
  %v7010 = vpop.f32.mrb[0].mxu0
  %v7011 = vadd.f32 %v6722, %v7010
  %v7012 = vpop.f32.mrb[0].mxu0
  %7013 = vmatprep.mubr.bf16.mxu0 %v5848
  %7014 = vmatmul.mubr.bf16.gmra.mrb[0].mxu0 %v5847
  %v7015 = vpop.f32.mrb[0].mxu0
  %v7016 = vadd.f32 %v6727, %v7015
  %v7017 = vpop.f32.mrb[0].mxu0
  %v7018 = vpop.f32.mrb[0].mxu0
  %v7019 = vadd.f32 %v6730, %v7018
  %v7020 = vpop.f32.mrb[0].mxu0
  %7021 = vmatprep.mubr.bf16.mxu0 %v5857
  %7022 = vmatmul.mubr.bf16.gmra.mrb[0].mxu0 %v5856
  %v7023 = vpop.f32.mrb[0].mxu0
  %v7024 = vadd.f32 %v6735, %v7023
  %v7025 = vpop.f32.mrb[0].mxu0
  %v7026 = vpop.f32.mrb[0].mxu0
  %v7027 = vadd.f32 %v6738, %v7026
  %v7028 = vpop.f32.mrb[0].mxu0
  %7029 = vmatprep.mubr.bf16.mxu0 %v5866
  %7030 = vmatmul.mubr.bf16.gmra.mrb[0].mxu0 %v5865
  %v7031 = vpop.f32.mrb[0].mxu0
  %v7032 = vadd.f32 %v6743, %v7031
  %v7033 = vpop.f32.mrb[0].mxu0
  %v7034 = vpop.f32.mrb[0].mxu0
  %v7035 = vadd.f32 %v6746, %v7034
  %v7036 = vpop.f32.mrb[0].mxu0
  %7037 = vmatprep.mubr.bf16.mxu0 %v5875
  %7038 = vmatmul.mubr.bf16.gmra.mrb[0].mxu0 %v5874
  %v7039 = vpop.f32.mrb[0].mxu0
  %v7040 = vadd.f32 %v6751, %v7039
  %v7041 = vpop.f32.mrb[0].mxu0
  %v7042 = vpop.f32.mrb[0].mxu0
  %v7043 = vadd.f32 %v6754, %v7042
  %v7044 = vpop.f32.mrb[0].mxu0
  %7045 = vmatprep.mubr.bf16.mxu0 %v5884
  %7046 = vmatmul.mubr.bf16.gmra.mrb[0].mxu0 %v5883
  %v7047 = vpop.f32.mrb[0].mxu0
  %v7048 = vadd.f32 %v6759, %v7047
  %v7049 = vpop.f32.mrb[0].mxu0
  %v7050 = vpop.f32.mrb[0].mxu0
  %v7051 = vadd.f32 %v6762, %v7050
  %v7052 = vpop.f32.mrb[0].mxu0
  %7053 = vmatprep.mubr.bf16.mxu0 %v5893
  %7054 = vmatmul.mubr.bf16.gmra.mrb[0].mxu0 %v5892
  %v7055 = vpop.f32.mrb[0].mxu0
  %v7056 = vadd.f32 %v6767, %v7055
  %v7057 = vpop.f32.mrb[0].mxu0
  %v7058 = vpop.f32.mrb[0].mxu0
  %v7059 = vadd.f32 %v6770, %v7058
  %v7060 = vpop.f32.mrb[0].mxu0
  %7061 = vmatprep.mubr.bf16.mxu0 %v5902
  %7062 = vmatmul.mubr.bf16.gmra.mrb[0].mxu0 %v5901
  %v7063 = vpop.f32.mrb[0].mxu0
  %v7064 = vadd.f32 %v6775, %v7063
  %v7065 = vpop.f32.mrb[0].mxu0
  %v7066 = vpop.f32.mrb[0].mxu0
  %v7067 = vadd.f32 %v6778, %v7066
  %v7068 = vpop.f32.mrb[0].mxu0
  %7069 = vmatprep.mubr.bf16.mxu0 %v5911
  %7070 = vmatmul.mubr.bf16.gmra.mrb[0].mxu0 %v5910
  %v7071 = vpop.f32.mrb[0].mxu0
  %v7072 = vadd.f32 %v6783, %v7071
  %v7073 = vpop.f32.mrb[0].mxu0
  %v7074 = vpop.f32.mrb[0].mxu0
  %v7075 = vadd.f32 %v6786, %v7074
  %v7076 = vpop.f32.mrb[0].mxu0
  %7077 = vmatprep.mubr.bf16.mxu0 %v5920
  %7078 = vmatmul.mubr.bf16.gmra.mrb[0].mxu0 %v5919
  %v7079 = vpop.f32.mrb[0].mxu0
  %v7080 = vadd.f32 %v6791, %v7079
  %v7081 = vpop.f32.mrb[0].mxu0
  %v7082 = vpop.f32.mrb[0].mxu0
  %v7083 = vadd.f32 %v6794, %v7082
  %v7084 = vpop.f32.mrb[0].mxu0
  %7085 = vmatprep.mubr.bf16.mxu0 %v5929
  %7086 = vmatmul.mubr.bf16.gmra.mrb[0].mxu0 %v5928
  %v7087 = vpop.f32.mrb[0].mxu0
  %v7088 = vadd.f32 %v6799, %v7087
  %v7089 = vpop.f32.mrb[0].mxu0
  %v7090 = vpop.f32.mrb[0].mxu0
  %v7091 = vadd.f32 %v6802, %v7090
  %v7092 = vpop.f32.mrb[0].mxu0
  %7093 = vmatprep.mubr.bf16.mxu0 %v5938
  %7094 = vmatmul.mubr.bf16.gmra.mrb[0].mxu0 %v5937
  %v7095 = vpop.f32.mrb[0].mxu0
  %v7096 = vadd.f32 %v6807, %v7095
  %v7097 = vpop.f32.mrb[0].mxu0
  %v7098 = vpop.f32.mrb[0].mxu0
  %v7099 = vadd.f32 %v6810, %v7098
  %v7100 = vpop.f32.mrb[0].mxu0
  %7101 = vmatprep.mubr.bf16.mxu0 %v5947
  %7102 = vmatmul.mubr.bf16.gmra.mrb[0].mxu0 %v5946
  %v7103 = vpop.f32.mrb[0].mxu0
  %v7104 = vadd.f32 %v6815, %v7103
  %v7105 = vpop.f32.mrb[0].mxu0
  %v7106 = vpop.f32.mrb[0].mxu0
  %v7107 = vadd.f32 %v6818, %v7106
  %v7108 = vpop.f32.mrb[0].mxu0
  %7109 = vmatprep.mubr.bf16.mxu0 %v5956
  %7110 = vmatmul.mubr.bf16.gmra.mrb[0].mxu0 %v5955
  %v7111 = vpop.f32.mrb[0].mxu0
  %v7112 = vadd.f32 %v6823, %v7111
  %v7113 = vpop.f32.mrb[0].mxu0
  %v7114 = vpop.f32.mrb[0].mxu0
  %v7115 = vadd.f32 %v6826, %v7114
  %v7116 = vpop.f32.mrb[0].mxu0
  %7117 = vmatprep.mubr.bf16.mxu0 %v5965
  %7118 = vmatmul.mubr.bf16.gmra.mrb[0].mxu0 %v5964
  %v7119 = vpop.f32.mrb[0].mxu0
  %v7120 = vadd.f32 %v6831, %v7119
  %v7121 = vpop.f32.mrb[0].mxu0
  %v7122 = vpop.f32.mrb[0].mxu0
  %v7123 = vadd.f32 %v6834, %v7122
  %v7124 = vpop.f32.mrb[0].mxu0
  %7125 = vmatprep.mubr.bf16.mxu0 %v5974
  %7126 = vmatmul.mubr.bf16.gmra.mrb[0].mxu0 %v5973
  %v7127 = vpop.f32.mrb[0].mxu0
  %v7128 = vadd.f32 %v6839, %v7127
  %v7129 = vpop.f32.mrb[0].mxu0
  %v7130 = vpop.f32.mrb[0].mxu0
  %v7131 = vadd.f32 %v6842, %v7130
  %v7132 = vpop.f32.mrb[0].mxu0
  %7133 = vdwg.mxu0
  %7134 = vmatprep.subr.bf16.mxu0 0
  %7135 = vmatpush1.bf16.msra.mxu0 %v6444
  %7136 = vmatprep.subr.bf16.mxu0 0
  %7137 = vmatpush1.bf16.msra.mxu0 %v6445
  %7138 = vmatprep.subr.bf16.mxu0 0
  %7139 = vmatpush1.bf16.msra.mxu0 %v6446
  %7140 = vmatprep.subr.bf16.mxu0 0
  %7141 = vmatpush1.bf16.msra.mxu0 %v6447
  %7142 = vmatprep.subr.bf16.mxu0 0
  %7143 = vmatpush1.bf16.msra.mxu0 %v6448
  %7144 = vmatprep.subr.bf16.mxu0 0
  %7145 = vmatpush1.bf16.msra.mxu0 %v6449
  %7146 = vmatprep.subr.bf16.mxu0 0
  %7147 = vmatpush1.bf16.msra.mxu0 %v6450
  %7148 = vmatprep.subr.bf16.mxu0 0
  %7149 = vmatpush1.bf16.msra.mxu0 %v6451
  %7150 = vmatprep.subr.bf16.mxu0 0
  %7151 = vmatpush1.bf16.msra.mxu0 %v6452
  %7152 = vmatprep.subr.bf16.mxu0 0
  %7153 = vmatpush1.bf16.msra.mxu0 %v6453
  %7154 = vmatprep.subr.bf16.mxu0 0
  %7155 = vmatpush1.bf16.msra.mxu0 %v6454
  %7156 = vmatprep.subr.bf16.mxu0 0
  %7157 = vmatpush1.bf16.msra.mxu0 %v6455
  %7158 = vmatprep.subr.bf16.mxu0 0
  %7159 = vmatpush1.bf16.msra.mxu0 %v6456
  %7160 = vmatprep.subr.bf16.mxu0 0
  %7161 = vmatpush1.bf16.msra.mxu0 %v6457
  %7162 = vmatprep.subr.bf16.mxu0 0
  %7163 = vmatpush1.bf16.msra.mxu0 %v6458
  %7164 = vmatprep.subr.bf16.mxu0 0
  %7165 = vmatpush1.bf16.msra.mxu0 %v6459
  %7166 = vmatprep.mubr.bf16.mxu0 %v5697
  %7167 = vmatmul.mubr.bf16.gmra.mrb[0].mxu0 %v5696
  %v7168 = vpop.f32.mrb[0].mxu0
  %v7169 = vadd.f32 %v6880, %v7168
  %v7170 = vpop.f32.mrb[0].mxu0
  %v7171 = vpop.f32.mrb[0].mxu0
  %v7172 = vadd.f32 %v6883, %v7171
  %v7173 = vpop.f32.mrb[0].mxu0
  %7174 = vmatprep.mubr.bf16.mxu0 %v5706
  %7175 = vmatmul.mubr.bf16.gmra.mrb[0].mxu0 %v5705
  %v7176 = vpop.f32.mrb[0].mxu0
  %v7177 = vadd.f32 %v6888, %v7176
  %v7178 = vpop.f32.mrb[0].mxu0
  %v7179 = vpop.f32.mrb[0].mxu0
  %v7180 = vadd.f32 %v6891, %v7179
  %v7181 = vpop.f32.mrb[0].mxu0
  %7182 = vmatprep.mubr.bf16.mxu0 %v5715
  %7183 = vmatmul.mubr.bf16.gmra.mrb[0].mxu0 %v5714
  %v7184 = vpop.f32.mrb[0].mxu0
  %v7185 = vadd.f32 %v6896, %v7184
  %v7186 = vpop.f32.mrb[0].mxu0
  %v7187 = vpop.f32.mrb[0].mxu0
  %v7188 = vadd.f32 %v6899, %v7187
  %v7189 = vpop.f32.mrb[0].mxu0
  %7190 = vmatprep.mubr.bf16.mxu0 %v5724
  %7191 = vmatmul.mubr.bf16.gmra.mrb[0].mxu0 %v5723
  %v7192 = vpop.f32.mrb[0].mxu0
  %v7193 = vadd.f32 %v6904, %v7192
  %v7194 = vpop.f32.mrb[0].mxu0
  %v7195 = vpop.f32.mrb[0].mxu0
  %v7196 = vadd.f32 %v6907, %v7195
  %v7197 = vpop.f32.mrb[0].mxu0
  %7198 = vmatprep.mubr.bf16.mxu0 %v5733
  %7199 = vmatmul.mubr.bf16.gmra.mrb[0].mxu0 %v5732
  %v7200 = vpop.f32.mrb[0].mxu0
  %v7201 = vadd.f32 %v6912, %v7200
  %v7202 = vpop.f32.mrb[0].mxu0
  %v7203 = vpop.f32.mrb[0].mxu0
  %v7204 = vadd.f32 %v6915, %v7203
  %v7205 = vpop.f32.mrb[0].mxu0
  %7206 = vmatprep.mubr.bf16.mxu0 %v5742
  %7207 = vmatmul.mubr.bf16.gmra.mrb[0].mxu0 %v5741
  %v7208 = vpop.f32.mrb[0].mxu0
  %v7209 = vadd.f32 %v6920, %v7208
  %v7210 = vpop.f32.mrb[0].mxu0
  %v7211 = vpop.f32.mrb[0].mxu0
  %v7212 = vadd.f32 %v6923, %v7211
  %v7213 = vpop.f32.mrb[0].mxu0
  %7214 = vmatprep.mubr.bf16.mxu0 %v5751
  %7215 = vmatmul.mubr.bf16.gmra.mrb[0].mxu0 %v5750
  %v7216 = vpop.f32.mrb[0].mxu0
  %v7217 = vadd.f32 %v6928, %v7216
  %v7218 = vpop.f32.mrb[0].mxu0
  %v7219 = vpop.f32.mrb[0].mxu0
  %v7220 = vadd.f32 %v6931, %v7219
  %v7221 = vpop.f32.mrb[0].mxu0
  %7222 = vmatprep.mubr.bf16.mxu0 %v5760
  %7223 = vmatmul.mubr.bf16.gmra.mrb[0].mxu0 %v5759
  %v7224 = vpop.f32.mrb[0].mxu0
  %v7225 = vadd.f32 %v6936, %v7224
  %v7226 = vpop.f32.mrb[0].mxu0
  %v7227 = vpop.f32.mrb[0].mxu0
  %v7228 = vadd.f32 %v6939, %v7227
  %v7229 = vpop.f32.mrb[0].mxu0
  %7230 = vmatprep.mubr.bf16.mxu0 %v5769
  %7231 = vmatmul.mubr.bf16.gmra.mrb[0].mxu0 %v5768
  %v7232 = vpop.f32.mrb[0].mxu0
  %v7233 = vadd.f32 %v6944, %v7232
  %v7234 = vpop.f32.mrb[0].mxu0
  %v7235 = vpop.f32.mrb[0].mxu0
  %v7236 = vadd.f32 %v6947, %v7235
  %v7237 = vpop.f32.mrb[0].mxu0
  %7238 = vmatprep.mubr.bf16.mxu0 %v5778
  %7239 = vmatmul.mubr.bf16.gmra.mrb[0].mxu0 %v5777
  %v7240 = vpop.f32.mrb[0].mxu0
  %v7241 = vadd.f32 %v6952, %v7240
  %v7242 = vpop.f32.mrb[0].mxu0
  %v7243 = vpop.f32.mrb[0].mxu0
  %v7244 = vadd.f32 %v6955, %v7243
  %v7245 = vpop.f32.mrb[0].mxu0
  %7246 = vmatprep.mubr.bf16.mxu0 %v5787
  %7247 = vmatmul.mubr.bf16.gmra.mrb[0].mxu0 %v5786
  %v7248 = vpop.f32.mrb[0].mxu0
  %v7249 = vadd.f32 %v6960, %v7248
  %v7250 = vpop.f32.mrb[0].mxu0
  %v7251 = vpop.f32.mrb[0].mxu0
  %v7252 = vadd.f32 %v6963, %v7251
  %v7253 = vpop.f32.mrb[0].mxu0
  %7254 = vmatprep.mubr.bf16.mxu0 %v5796
  %7255 = vmatmul.mubr.bf16.gmra.mrb[0].mxu0 %v5795
  %v7256 = vpop.f32.mrb[0].mxu0
  %v7257 = vadd.f32 %v6968, %v7256
  %v7258 = vpop.f32.mrb[0].mxu0
  %v7259 = vpop.f32.mrb[0].mxu0
  %v7260 = vadd.f32 %v6971, %v7259
  %v7261 = vpop.f32.mrb[0].mxu0
  %7262 = vmatprep.mubr.bf16.mxu0 %v5805
  %7263 = vmatmul.mubr.bf16.gmra.mrb[0].mxu0 %v5804
  %v7264 = vpop.f32.mrb[0].mxu0
  %v7265 = vadd.f32 %v6976, %v7264
  %v7266 = vpop.f32.mrb[0].mxu0
  %v7267 = vpop.f32.mrb[0].mxu0
  %v7268 = vadd.f32 %v6979, %v7267
  %v7269 = vpop.f32.mrb[0].mxu0
  %7270 = vmatprep.mubr.bf16.mxu0 %v5814
  %7271 = vmatmul.mubr.bf16.gmra.mrb[0].mxu0 %v5813
  %v7272 = vpop.f32.mrb[0].mxu0
  %v7273 = vadd.f32 %v6984, %v7272
  %v7274 = vpop.f32.mrb[0].mxu0
  %v7275 = vpop.f32.mrb[0].mxu0
  %v7276 = vadd.f32 %v6987, %v7275
  %v7277 = vpop.f32.mrb[0].mxu0
  %7278 = vmatprep.mubr.bf16.mxu0 %v5823
  %7279 = vmatmul.mubr.bf16.gmra.mrb[0].mxu0 %v5822
  %v7280 = vpop.f32.mrb[0].mxu0
  %v7281 = vadd.f32 %v6992, %v7280
  %v7282 = vpop.f32.mrb[0].mxu0
  %v7283 = vpop.f32.mrb[0].mxu0
  %v7284 = vadd.f32 %v6995, %v7283
  %v7285 = vpop.f32.mrb[0].mxu0
  %7286 = vmatprep.mubr.bf16.mxu0 %v5832
  %7287 = vmatmul.mubr.bf16.gmra.mrb[0].mxu0 %v5831
  %v7288 = vpop.f32.mrb[0].mxu0
  %v7289 = vadd.f32 %v7000, %v7288
  %v7290 = vpop.f32.mrb[0].mxu0
  %v7291 = vpop.f32.mrb[0].mxu0
  %v7292 = vadd.f32 %v7003, %v7291
  %v7293 = vpop.f32.mrb[0].mxu0
  %7294 = vmatprep.mubr.bf16.mxu0 %v5841
  %7295 = vmatmul.mubr.bf16.gmra.mrb[0].mxu0 %v5840
  %v7296 = vpop.f32.mrb[0].mxu0
  %v7297 = vadd.f32 %v7008, %v7296
  %v7298 = vpop.f32.mrb[0].mxu0
  %v7299 = vpop.f32.mrb[0].mxu0
  %v7300 = vadd.f32 %v7011, %v7299
  %v7301 = vpop.f32.mrb[0].mxu0
  %7302 = vmatprep.mubr.bf16.mxu0 %v5850
  %7303 = vmatmul.mubr.bf16.gmra.mrb[0].mxu0 %v5849
  %v7304 = vpop.f32.mrb[0].mxu0
  %v7305 = vadd.f32 %v7016, %v7304
  %v7306 = vpop.f32.mrb[0].mxu0
  %v7307 = vpop.f32.mrb[0].mxu0
  %v7308 = vadd.f32 %v7019, %v7307
  %v7309 = vpop.f32.mrb[0].mxu0
  %7310 = vmatprep.mubr.bf16.mxu0 %v5859
  %7311 = vmatmul.mubr.bf16.gmra.mrb[0].mxu0 %v5858
  %v7312 = vpop.f32.mrb[0].mxu0
  %v7313 = vadd.f32 %v7024, %v7312
  %v7314 = vpop.f32.mrb[0].mxu0
  %v7315 = vpop.f32.mrb[0].mxu0
  %v7316 = vadd.f32 %v7027, %v7315
  %v7317 = vpop.f32.mrb[0].mxu0
  %7318 = vmatprep.mubr.bf16.mxu0 %v5868
  %7319 = vmatmul.mubr.bf16.gmra.mrb[0].mxu0 %v5867
  %v7320 = vpop.f32.mrb[0].mxu0
  %v7321 = vadd.f32 %v7032, %v7320
  %v7322 = vpop.f32.mrb[0].mxu0
  %v7323 = vpop.f32.mrb[0].mxu0
  %v7324 = vadd.f32 %v7035, %v7323
  %v7325 = vpop.f32.mrb[0].mxu0
  %7326 = vmatprep.mubr.bf16.mxu0 %v5877
  %7327 = vmatmul.mubr.bf16.gmra.mrb[0].mxu0 %v5876
  %v7328 = vpop.f32.mrb[0].mxu0
  %v7329 = vadd.f32 %v7040, %v7328
  %v7330 = vpop.f32.mrb[0].mxu0
  %v7331 = vpop.f32.mrb[0].mxu0
  %v7332 = vadd.f32 %v7043, %v7331
  %v7333 = vpop.f32.mrb[0].mxu0
  %7334 = vmatprep.mubr.bf16.mxu0 %v5886
  %7335 = vmatmul.mubr.bf16.gmra.mrb[0].mxu0 %v5885
  %v7336 = vpop.f32.mrb[0].mxu0
  %v7337 = vadd.f32 %v7048, %v7336
  %v7338 = vpop.f32.mrb[0].mxu0
  %v7339 = vpop.f32.mrb[0].mxu0
  %v7340 = vadd.f32 %v7051, %v7339
  %v7341 = vpop.f32.mrb[0].mxu0
  %7342 = vmatprep.mubr.bf16.mxu0 %v5895
  %7343 = vmatmul.mubr.bf16.gmra.mrb[0].mxu0 %v5894
  %v7344 = vpop.f32.mrb[0].mxu0
  %v7345 = vadd.f32 %v7056, %v7344
  %v7346 = vpop.f32.mrb[0].mxu0
  %v7347 = vpop.f32.mrb[0].mxu0
  %v7348 = vadd.f32 %v7059, %v7347
  %v7349 = vpop.f32.mrb[0].mxu0
  %7350 = vmatprep.mubr.bf16.mxu0 %v5904
  %7351 = vmatmul.mubr.bf16.gmra.mrb[0].mxu0 %v5903
  %v7352 = vpop.f32.mrb[0].mxu0
  %v7353 = vadd.f32 %v7064, %v7352
  %v7354 = vpop.f32.mrb[0].mxu0
  %v7355 = vpop.f32.mrb[0].mxu0
  %v7356 = vadd.f32 %v7067, %v7355
  %v7357 = vpop.f32.mrb[0].mxu0
  %7358 = vmatprep.mubr.bf16.mxu0 %v5913
  %7359 = vmatmul.mubr.bf16.gmra.mrb[0].mxu0 %v5912
  %v7360 = vpop.f32.mrb[0].mxu0
  %v7361 = vadd.f32 %v7072, %v7360
  %v7362 = vpop.f32.mrb[0].mxu0
  %v7363 = vpop.f32.mrb[0].mxu0
  %v7364 = vadd.f32 %v7075, %v7363
  %v7365 = vpop.f32.mrb[0].mxu0
  %7366 = vmatprep.mubr.bf16.mxu0 %v5922
  %7367 = vmatmul.mubr.bf16.gmra.mrb[0].mxu0 %v5921
  %v7368 = vpop.f32.mrb[0].mxu0
  %v7369 = vadd.f32 %v7080, %v7368
  %v7370 = vpop.f32.mrb[0].mxu0
  %v7371 = vpop.f32.mrb[0].mxu0
  %v7372 = vadd.f32 %v7083, %v7371
  %v7373 = vpop.f32.mrb[0].mxu0
  %7374 = vmatprep.mubr.bf16.mxu0 %v5931
  %7375 = vmatmul.mubr.bf16.gmra.mrb[0].mxu0 %v5930
  %v7376 = vpop.f32.mrb[0].mxu0
  %v7377 = vadd.f32 %v7088, %v7376
  %v7378 = vpop.f32.mrb[0].mxu0
  %v7379 = vpop.f32.mrb[0].mxu0
  %v7380 = vadd.f32 %v7091, %v7379
  %v7381 = vpop.f32.mrb[0].mxu0
  %7382 = vmatprep.mubr.bf16.mxu0 %v5940
  %7383 = vmatmul.mubr.bf16.gmra.mrb[0].mxu0 %v5939
  %v7384 = vpop.f32.mrb[0].mxu0
  %v7385 = vadd.f32 %v7096, %v7384
  %v7386 = vpop.f32.mrb[0].mxu0
  %v7387 = vpop.f32.mrb[0].mxu0
  %v7388 = vadd.f32 %v7099, %v7387
  %v7389 = vpop.f32.mrb[0].mxu0
  %7390 = vmatprep.mubr.bf16.mxu0 %v5949
  %7391 = vmatmul.mubr.bf16.gmra.mrb[0].mxu0 %v5948
  %v7392 = vpop.f32.mrb[0].mxu0
  %v7393 = vadd.f32 %v7104, %v7392
  %v7394 = vpop.f32.mrb[0].mxu0
  %v7395 = vpop.f32.mrb[0].mxu0
  %v7396 = vadd.f32 %v7107, %v7395
  %v7397 = vpop.f32.mrb[0].mxu0
  %7398 = vmatprep.mubr.bf16.mxu0 %v5958
  %7399 = vmatmul.mubr.bf16.gmra.mrb[0].mxu0 %v5957
  %v7400 = vpop.f32.mrb[0].mxu0
  %v7401 = vadd.f32 %v7112, %v7400
  %v7402 = vpop.f32.mrb[0].mxu0
  %v7403 = vpop.f32.mrb[0].mxu0
  %v7404 = vadd.f32 %v7115, %v7403
  %v7405 = vpop.f32.mrb[0].mxu0
  %7406 = vmatprep.mubr.bf16.mxu0 %v5967
  %7407 = vmatmul.mubr.bf16.gmra.mrb[0].mxu0 %v5966
  %v7408 = vpop.f32.mrb[0].mxu0
  %v7409 = vadd.f32 %v7120, %v7408
  %v7410 = vpop.f32.mrb[0].mxu0
  %v7411 = vpop.f32.mrb[0].mxu0
  %v7412 = vadd.f32 %v7123, %v7411
  %v7413 = vpop.f32.mrb[0].mxu0
  %7414 = vmatprep.mubr.bf16.mxu0 %v5976
  %7415 = vmatmul.mubr.bf16.gmra.mrb[0].mxu0 %v5975
  %v7416 = vpop.f32.mrb[0].mxu0
  %v7417 = vadd.f32 %v7128, %v7416
  %v7418 = vpop.f32.mrb[0].mxu0
  %v7419 = vpop.f32.mrb[0].mxu0
  %v7420 = vadd.f32 %v7131, %v7419
  %v7421 = vpop.f32.mrb[0].mxu0
  %7422 = vdwg.mxu0
  %7423 = vmatprep.subr.bf16.mxu0 0
  %7424 = vmatpush1.bf16.msra.mxu0 %v6460
  %7425 = vmatprep.subr.bf16.mxu0 0
  %7426 = vmatpush1.bf16.msra.mxu0 %v6461
  %7427 = vmatprep.subr.bf16.mxu0 0
  %7428 = vmatpush1.bf16.msra.mxu0 %v6462
  %7429 = vmatprep.subr.bf16.mxu0 0
  %7430 = vmatpush1.bf16.msra.mxu0 %v6463
  %7431 = vmatprep.subr.bf16.mxu0 0
  %7432 = vmatpush1.bf16.msra.mxu0 %v6464
  %7433 = vmatprep.subr.bf16.mxu0 0
  %7434 = vmatpush1.bf16.msra.mxu0 %v6465
  %7435 = vmatprep.subr.bf16.mxu0 0
  %7436 = vmatpush1.bf16.msra.mxu0 %v6466
  %7437 = vmatprep.subr.bf16.mxu0 0
  %7438 = vmatpush1.bf16.msra.mxu0 %v6467
  %7439 = vmatprep.subr.bf16.mxu0 0
  %7440 = vmatpush1.bf16.msra.mxu0 %v6468
  %7441 = vmatprep.subr.bf16.mxu0 0
  %7442 = vmatpush1.bf16.msra.mxu0 %v6469
  %7443 = vmatprep.subr.bf16.mxu0 0
  %7444 = vmatpush1.bf16.msra.mxu0 %v6470
  %7445 = vmatprep.subr.bf16.mxu0 0
  %7446 = vmatpush1.bf16.msra.mxu0 %v6471
  %7447 = vmatprep.subr.bf16.mxu0 0
  %7448 = vmatpush1.bf16.msra.mxu0 %v6472
  %7449 = vmatprep.subr.bf16.mxu0 0
  %7450 = vmatpush1.bf16.msra.mxu0 %v6473
  %7451 = vmatprep.subr.bf16.mxu0 0
  %7452 = vmatpush1.bf16.msra.mxu0 %v6474
  %7453 = vmatprep.subr.bf16.mxu0 0
  %7454 = vmatpush1.bf16.msra.mxu0 %v6475
  %7455 = vmatprep.mubr.bf16.mxu0 %v5699
  %7456 = vmatmul.mubr.bf16.gmra.mrb[0].mxu0 %v5698
  %v7457 = vpop.f32.mrb[0].mxu0
  %v7458 = vadd.f32 %v7169, %v7457
  %v7459 = vpop.f32.mrb[0].mxu0
  %v7460 = vpop.f32.mrb[0].mxu0
  %v7461 = vadd.f32 %v7172, %v7460
  %v7462 = vpop.f32.mrb[0].mxu0
  %7463 = vmatprep.mubr.bf16.mxu0 %v5708
  %7464 = vmatmul.mubr.bf16.gmra.mrb[0].mxu0 %v5707
  %v7465 = vpop.f32.mrb[0].mxu0
  %v7466 = vadd.f32 %v7177, %v7465
  %v7467 = vpop.f32.mrb[0].mxu0
  %v7468 = vpop.f32.mrb[0].mxu0
  %v7469 = vadd.f32 %v7180, %v7468
  %v7470 = vpop.f32.mrb[0].mxu0
  %7471 = vmatprep.mubr.bf16.mxu0 %v5717
  %7472 = vmatmul.mubr.bf16.gmra.mrb[0].mxu0 %v5716
  %v7473 = vpop.f32.mrb[0].mxu0
  %v7474 = vadd.f32 %v7185, %v7473
  %v7475 = vpop.f32.mrb[0].mxu0
  %v7476 = vpop.f32.mrb[0].mxu0
  %v7477 = vadd.f32 %v7188, %v7476
  %v7478 = vpop.f32.mrb[0].mxu0
  %7479 = vmatprep.mubr.bf16.mxu0 %v5726
  %7480 = vmatmul.mubr.bf16.gmra.mrb[0].mxu0 %v5725
  %v7481 = vpop.f32.mrb[0].mxu0
  %v7482 = vadd.f32 %v7193, %v7481
  %v7483 = vpop.f32.mrb[0].mxu0
  %v7484 = vpop.f32.mrb[0].mxu0
  %v7485 = vadd.f32 %v7196, %v7484
  %v7486 = vpop.f32.mrb[0].mxu0
  %7487 = vmatprep.mubr.bf16.mxu0 %v5735
  %7488 = vmatmul.mubr.bf16.gmra.mrb[0].mxu0 %v5734
  %v7489 = vpop.f32.mrb[0].mxu0
  %v7490 = vadd.f32 %v7201, %v7489
  %v7491 = vpop.f32.mrb[0].mxu0
  %v7492 = vpop.f32.mrb[0].mxu0
  %v7493 = vadd.f32 %v7204, %v7492
  %v7494 = vpop.f32.mrb[0].mxu0
  %7495 = vmatprep.mubr.bf16.mxu0 %v5744
  %7496 = vmatmul.mubr.bf16.gmra.mrb[0].mxu0 %v5743
  %v7497 = vpop.f32.mrb[0].mxu0
  %v7498 = vadd.f32 %v7209, %v7497
  %v7499 = vpop.f32.mrb[0].mxu0
  %v7500 = vpop.f32.mrb[0].mxu0
  %v7501 = vadd.f32 %v7212, %v7500
  %v7502 = vpop.f32.mrb[0].mxu0
  %7503 = vmatprep.mubr.bf16.mxu0 %v5753
  %7504 = vmatmul.mubr.bf16.gmra.mrb[0].mxu0 %v5752
  %v7505 = vpop.f32.mrb[0].mxu0
  %v7506 = vadd.f32 %v7217, %v7505
  %v7507 = vpop.f32.mrb[0].mxu0
  %v7508 = vpop.f32.mrb[0].mxu0
  %v7509 = vadd.f32 %v7220, %v7508
  %v7510 = vpop.f32.mrb[0].mxu0
  %7511 = vmatprep.mubr.bf16.mxu0 %v5762
  %7512 = vmatmul.mubr.bf16.gmra.mrb[0].mxu0 %v5761
  %v7513 = vpop.f32.mrb[0].mxu0
  %v7514 = vadd.f32 %v7225, %v7513
  %v7515 = vpop.f32.mrb[0].mxu0
  %v7516 = vpop.f32.mrb[0].mxu0
  %v7517 = vadd.f32 %v7228, %v7516
  %v7518 = vpop.f32.mrb[0].mxu0
  %7519 = vmatprep.mubr.bf16.mxu0 %v5771
  %7520 = vmatmul.mubr.bf16.gmra.mrb[0].mxu0 %v5770
  %v7521 = vpop.f32.mrb[0].mxu0
  %v7522 = vadd.f32 %v7233, %v7521
  %v7523 = vpop.f32.mrb[0].mxu0
  %v7524 = vpop.f32.mrb[0].mxu0
  %v7525 = vadd.f32 %v7236, %v7524
  %v7526 = vpop.f32.mrb[0].mxu0
  %7527 = vmatprep.mubr.bf16.mxu0 %v5780
  %7528 = vmatmul.mubr.bf16.gmra.mrb[0].mxu0 %v5779
  %v7529 = vpop.f32.mrb[0].mxu0
  %v7530 = vadd.f32 %v7241, %v7529
  %v7531 = vpop.f32.mrb[0].mxu0
  %v7532 = vpop.f32.mrb[0].mxu0
  %v7533 = vadd.f32 %v7244, %v7532
  %v7534 = vpop.f32.mrb[0].mxu0
  %7535 = vmatprep.mubr.bf16.mxu0 %v5789
  %7536 = vmatmul.mubr.bf16.gmra.mrb[0].mxu0 %v5788
  %v7537 = vpop.f32.mrb[0].mxu0
  %v7538 = vadd.f32 %v7249, %v7537
  %v7539 = vpop.f32.mrb[0].mxu0
  %v7540 = vpop.f32.mrb[0].mxu0
  %v7541 = vadd.f32 %v7252, %v7540
  %v7542 = vpop.f32.mrb[0].mxu0
  %7543 = vmatprep.mubr.bf16.mxu0 %v5798
  %7544 = vmatmul.mubr.bf16.gmra.mrb[0].mxu0 %v5797
  %v7545 = vpop.f32.mrb[0].mxu0
  %v7546 = vadd.f32 %v7257, %v7545
  %v7547 = vpop.f32.mrb[0].mxu0
  %v7548 = vpop.f32.mrb[0].mxu0
  %v7549 = vadd.f32 %v7260, %v7548
  %v7550 = vpop.f32.mrb[0].mxu0
  %7551 = vmatprep.mubr.bf16.mxu0 %v5807
  %7552 = vmatmul.mubr.bf16.gmra.mrb[0].mxu0 %v5806
  %v7553 = vpop.f32.mrb[0].mxu0
  %v7554 = vadd.f32 %v7265, %v7553
  %v7555 = vpop.f32.mrb[0].mxu0
  %v7556 = vpop.f32.mrb[0].mxu0
  %v7557 = vadd.f32 %v7268, %v7556
  %v7558 = vpop.f32.mrb[0].mxu0
  %7559 = vmatprep.mubr.bf16.mxu0 %v5816
  %7560 = vmatmul.mubr.bf16.gmra.mrb[0].mxu0 %v5815
  %v7561 = vpop.f32.mrb[0].mxu0
  %v7562 = vadd.f32 %v7273, %v7561
  %v7563 = vpop.f32.mrb[0].mxu0
  %v7564 = vpop.f32.mrb[0].mxu0
  %v7565 = vadd.f32 %v7276, %v7564
  %v7566 = vpop.f32.mrb[0].mxu0
  %7567 = vmatprep.mubr.bf16.mxu0 %v5825
  %7568 = vmatmul.mubr.bf16.gmra.mrb[0].mxu0 %v5824
  %v7569 = vpop.f32.mrb[0].mxu0
  %v7570 = vadd.f32 %v7281, %v7569
  %v7571 = vpop.f32.mrb[0].mxu0
  %v7572 = vpop.f32.mrb[0].mxu0
  %v7573 = vadd.f32 %v7284, %v7572
  %v7574 = vpop.f32.mrb[0].mxu0
  %7575 = vmatprep.mubr.bf16.mxu0 %v5834
  %7576 = vmatmul.mubr.bf16.gmra.mrb[0].mxu0 %v5833
  %v7577 = vpop.f32.mrb[0].mxu0
  %v7578 = vadd.f32 %v7289, %v7577
  %v7579 = vpop.f32.mrb[0].mxu0
  %v7580 = vpop.f32.mrb[0].mxu0
  %v7581 = vadd.f32 %v7292, %v7580
  %v7582 = vpop.f32.mrb[0].mxu0
  %7583 = vmatprep.mubr.bf16.mxu0 %v5843
  %7584 = vmatmul.mubr.bf16.gmra.mrb[0].mxu0 %v5842
  %v7585 = vpop.f32.mrb[0].mxu0
  %v7586 = vadd.f32 %v7297, %v7585
  %v7587 = vpop.f32.mrb[0].mxu0
  %v7588 = vpop.f32.mrb[0].mxu0
  %v7589 = vadd.f32 %v7300, %v7588
  %v7590 = vpop.f32.mrb[0].mxu0
  %7591 = vmatprep.mubr.bf16.mxu0 %v5852
  %7592 = vmatmul.mubr.bf16.gmra.mrb[0].mxu0 %v5851
  %v7593 = vpop.f32.mrb[0].mxu0
  %v7594 = vadd.f32 %v7305, %v7593
  %v7595 = vpop.f32.mrb[0].mxu0
  %v7596 = vpop.f32.mrb[0].mxu0
  %v7597 = vadd.f32 %v7308, %v7596
  %v7598 = vpop.f32.mrb[0].mxu0
  %7599 = vmatprep.mubr.bf16.mxu0 %v5861
  %7600 = vmatmul.mubr.bf16.gmra.mrb[0].mxu0 %v5860
  %v7601 = vpop.f32.mrb[0].mxu0
  %v7602 = vadd.f32 %v7313, %v7601
  %v7603 = vpop.f32.mrb[0].mxu0
  %v7604 = vpop.f32.mrb[0].mxu0
  %v7605 = vadd.f32 %v7316, %v7604
  %v7606 = vpop.f32.mrb[0].mxu0
  %7607 = vmatprep.mubr.bf16.mxu0 %v5870
  %7608 = vmatmul.mubr.bf16.gmra.mrb[0].mxu0 %v5869
  %v7609 = vpop.f32.mrb[0].mxu0
  %v7610 = vadd.f32 %v7321, %v7609
  %v7611 = vpop.f32.mrb[0].mxu0
  %v7612 = vpop.f32.mrb[0].mxu0
  %v7613 = vadd.f32 %v7324, %v7612
  %v7614 = vpop.f32.mrb[0].mxu0
  %7615 = vmatprep.mubr.bf16.mxu0 %v5879
  %7616 = vmatmul.mubr.bf16.gmra.mrb[0].mxu0 %v5878
  %v7617 = vpop.f32.mrb[0].mxu0
  %v7618 = vadd.f32 %v7329, %v7617
  %v7619 = vpop.f32.mrb[0].mxu0
  %v7620 = vpop.f32.mrb[0].mxu0
  %v7621 = vadd.f32 %v7332, %v7620
  %v7622 = vpop.f32.mrb[0].mxu0
  %7623 = vmatprep.mubr.bf16.mxu0 %v5888
  %7624 = vmatmul.mubr.bf16.gmra.mrb[0].mxu0 %v5887
  %v7625 = vpop.f32.mrb[0].mxu0
  %v7626 = vadd.f32 %v7337, %v7625
  %v7627 = vpop.f32.mrb[0].mxu0
  %v7628 = vpop.f32.mrb[0].mxu0
  %v7629 = vadd.f32 %v7340, %v7628
  %v7630 = vpop.f32.mrb[0].mxu0
  %7631 = vmatprep.mubr.bf16.mxu0 %v5897
  %7632 = vmatmul.mubr.bf16.gmra.mrb[0].mxu0 %v5896
  %v7633 = vpop.f32.mrb[0].mxu0
  %v7634 = vadd.f32 %v7345, %v7633
  %v7635 = vpop.f32.mrb[0].mxu0
  %v7636 = vpop.f32.mrb[0].mxu0
  %v7637 = vadd.f32 %v7348, %v7636
  %v7638 = vpop.f32.mrb[0].mxu0
  %7639 = vmatprep.mubr.bf16.mxu0 %v5906
  %7640 = vmatmul.mubr.bf16.gmra.mrb[0].mxu0 %v5905
  %v7641 = vpop.f32.mrb[0].mxu0
  %v7642 = vadd.f32 %v7353, %v7641
  %v7643 = vpop.f32.mrb[0].mxu0
  %v7644 = vpop.f32.mrb[0].mxu0
  %v7645 = vadd.f32 %v7356, %v7644
  %v7646 = vpop.f32.mrb[0].mxu0
  %7647 = vmatprep.mubr.bf16.mxu0 %v5915
  %7648 = vmatmul.mubr.bf16.gmra.mrb[0].mxu0 %v5914
  %v7649 = vpop.f32.mrb[0].mxu0
  %v7650 = vadd.f32 %v7361, %v7649
  %v7651 = vpop.f32.mrb[0].mxu0
  %v7652 = vpop.f32.mrb[0].mxu0
  %v7653 = vadd.f32 %v7364, %v7652
  %v7654 = vpop.f32.mrb[0].mxu0
  %7655 = vmatprep.mubr.bf16.mxu0 %v5924
  %7656 = vmatmul.mubr.bf16.gmra.mrb[0].mxu0 %v5923
  %v7657 = vpop.f32.mrb[0].mxu0
  %v7658 = vadd.f32 %v7369, %v7657
  %v7659 = vpop.f32.mrb[0].mxu0
  %v7660 = vpop.f32.mrb[0].mxu0
  %v7661 = vadd.f32 %v7372, %v7660
  %v7662 = vpop.f32.mrb[0].mxu0
  %7663 = vmatprep.mubr.bf16.mxu0 %v5933
  %7664 = vmatmul.mubr.bf16.gmra.mrb[0].mxu0 %v5932
  %v7665 = vpop.f32.mrb[0].mxu0
  %v7666 = vadd.f32 %v7377, %v7665
  %v7667 = vpop.f32.mrb[0].mxu0
  %v7668 = vpop.f32.mrb[0].mxu0
  %v7669 = vadd.f32 %v7380, %v7668
  %v7670 = vpop.f32.mrb[0].mxu0
  %7671 = vmatprep.mubr.bf16.mxu0 %v5942
  %7672 = vmatmul.mubr.bf16.gmra.mrb[0].mxu0 %v5941
  %v7673 = vpop.f32.mrb[0].mxu0
  %v7674 = vadd.f32 %v7385, %v7673
  %v7675 = vpop.f32.mrb[0].mxu0
  %v7676 = vpop.f32.mrb[0].mxu0
  %v7677 = vadd.f32 %v7388, %v7676
  %v7678 = vpop.f32.mrb[0].mxu0
  %7679 = vmatprep.mubr.bf16.mxu0 %v5951
  %7680 = vmatmul.mubr.bf16.gmra.mrb[0].mxu0 %v5950
  %v7681 = vpop.f32.mrb[0].mxu0
  %v7682 = vadd.f32 %v7393, %v7681
  %v7683 = vpop.f32.mrb[0].mxu0
  %v7684 = vpop.f32.mrb[0].mxu0
  %v7685 = vadd.f32 %v7396, %v7684
  %v7686 = vpop.f32.mrb[0].mxu0
  %7687 = vmatprep.mubr.bf16.mxu0 %v5960
  %7688 = vmatmul.mubr.bf16.gmra.mrb[0].mxu0 %v5959
  %v7689 = vpop.f32.mrb[0].mxu0
  %v7690 = vadd.f32 %v7401, %v7689
  %v7691 = vpop.f32.mrb[0].mxu0
  %v7692 = vpop.f32.mrb[0].mxu0
  %v7693 = vadd.f32 %v7404, %v7692
  %v7694 = vpop.f32.mrb[0].mxu0
  %7695 = vmatprep.mubr.bf16.mxu0 %v5969
  %7696 = vmatmul.mubr.bf16.gmra.mrb[0].mxu0 %v5968
  %v7697 = vpop.f32.mrb[0].mxu0
  %v7698 = vadd.f32 %v7409, %v7697
  %v7699 = vpop.f32.mrb[0].mxu0
  %v7700 = vpop.f32.mrb[0].mxu0
  %v7701 = vadd.f32 %v7412, %v7700
  %v7702 = vpop.f32.mrb[0].mxu0
  %7703 = vmatprep.mubr.bf16.mxu0 %v5978
  %7704 = vmatmul.mubr.bf16.gmra.mrb[0].mxu0 %v5977
  %v7705 = vpop.f32.mrb[0].mxu0
  %v7706 = vadd.f32 %v7417, %v7705
  %v7707 = vpop.f32.mrb[0].mxu0
  %v7708 = vpop.f32.mrb[0].mxu0
  %v7709 = vadd.f32 %v7420, %v7708
  %v7710 = vpop.f32.mrb[0].mxu0
  %7711 = vdwg.mxu0
  %7712 = vmatprep.subr.bf16.mxu0 0
  %7713 = vmatpush1.bf16.msra.mxu0 %v6476
  %7714 = vmatprep.subr.bf16.mxu0 0
  %7715 = vmatpush1.bf16.msra.mxu0 %v6477
  %7716 = vmatprep.subr.bf16.mxu0 0
  %7717 = vmatpush1.bf16.msra.mxu0 %v6478
  %7718 = vmatprep.subr.bf16.mxu0 0
  %7719 = vmatpush1.bf16.msra.mxu0 %v6479
  %7720 = vmatprep.subr.bf16.mxu0 0
  %7721 = vmatpush1.bf16.msra.mxu0 %v6480
  %7722 = vmatprep.subr.bf16.mxu0 0
  %7723 = vmatpush1.bf16.msra.mxu0 %v6481
  %7724 = vmatprep.subr.bf16.mxu0 0
  %7725 = vmatpush1.bf16.msra.mxu0 %v6482
  %7726 = vmatprep.subr.bf16.mxu0 0
  %7727 = vmatpush1.bf16.msra.mxu0 %v6483
  %7728 = vmatprep.subr.bf16.mxu0 0
  %7729 = vmatpush1.bf16.msra.mxu0 0
  %7730 = vmatprep.subr.bf16.mxu0 0
  %7731 = vmatpush1.bf16.msra.mxu0 0
  %7732 = vmatprep.subr.bf16.mxu0 0
  %7733 = vmatpush1.bf16.msra.mxu0 0
  %7734 = vmatprep.subr.bf16.mxu0 0
  %7735 = vmatpush1.bf16.msra.mxu0 0
  %7736 = vmatprep.subr.bf16.mxu0 0
  %7737 = vmatpush1.bf16.msra.mxu0 0
  %7738 = vmatprep.subr.bf16.mxu0 0
  %7739 = vmatpush1.bf16.msra.mxu0 0
  %7740 = vmatprep.subr.bf16.mxu0 0
  %7741 = vmatpush1.bf16.msra.mxu0 0
  %7742 = vmatprep.subr.bf16.mxu0 0
  %7743 = vmatpush1.bf16.msra.mxu0 0
  %7744 = vmatprep.mubr.bf16.mxu0 0
  %7745 = vmatmul.mubr.bf16.gmra.mrb[0].mxu0 %v5700
  %v7746 = vpop.f32.mrb[0].mxu0
  %v7747 = vadd.f32 %v7458, %v7746
  %v7748 = vpop.f32.mrb[0].mxu0
  %v7749 = vpop.f32.mrb[0].mxu0
  %v7750 = vadd.f32 %v7461, %v7749
  %v7751 = vpop.f32.mrb[0].mxu0
  %7752 = vmatprep.mubr.bf16.mxu0 0
  %7753 = vmatmul.mubr.bf16.gmra.mrb[0].mxu0 %v5709
  %v7754 = vpop.f32.mrb[0].mxu0
  %v7755 = vadd.f32 %v7466, %v7754
  %v7756 = vpop.f32.mrb[0].mxu0
  %v7757 = vpop.f32.mrb[0].mxu0
  %v7758 = vadd.f32 %v7469, %v7757
  %v7759 = vpop.f32.mrb[0].mxu0
  %7760 = vmatprep.mubr.bf16.mxu0 0
  %7761 = vmatmul.mubr.bf16.gmra.mrb[0].mxu0 %v5718
  %v7762 = vpop.f32.mrb[0].mxu0
  %v7763 = vadd.f32 %v7474, %v7762
  %v7764 = vpop.f32.mrb[0].mxu0
  %v7765 = vpop.f32.mrb[0].mxu0
  %v7766 = vadd.f32 %v7477, %v7765
  %v7767 = vpop.f32.mrb[0].mxu0
  %7768 = vmatprep.mubr.bf16.mxu0 0
  %7769 = vmatmul.mubr.bf16.gmra.mrb[0].mxu0 %v5727
  %v7770 = vpop.f32.mrb[0].mxu0
  %v7771 = vadd.f32 %v7482, %v7770
  %v7772 = vpop.f32.mrb[0].mxu0
  %v7773 = vpop.f32.mrb[0].mxu0
  %v7774 = vadd.f32 %v7485, %v7773
  %v7775 = vpop.f32.mrb[0].mxu0
  %7776 = vmatprep.mubr.bf16.mxu0 0
  %7777 = vmatmul.mubr.bf16.gmra.mrb[0].mxu0 %v5736
  %v7778 = vpop.f32.mrb[0].mxu0
  %v7779 = vadd.f32 %v7490, %v7778
  %v7780 = vpop.f32.mrb[0].mxu0
  %v7781 = vpop.f32.mrb[0].mxu0
  %v7782 = vadd.f32 %v7493, %v7781
  %v7783 = vpop.f32.mrb[0].mxu0
  %7784 = vmatprep.mubr.bf16.mxu0 0
  %7785 = vmatmul.mubr.bf16.gmra.mrb[0].mxu0 %v5745
  %v7786 = vpop.f32.mrb[0].mxu0
  %v7787 = vadd.f32 %v7498, %v7786
  %v7788 = vpop.f32.mrb[0].mxu0
  %v7789 = vpop.f32.mrb[0].mxu0
  %v7790 = vadd.f32 %v7501, %v7789
  %v7791 = vpop.f32.mrb[0].mxu0
  %7792 = vmatprep.mubr.bf16.mxu0 0
  %7793 = vmatmul.mubr.bf16.gmra.mrb[0].mxu0 %v5754
  %v7794 = vpop.f32.mrb[0].mxu0
  %v7795 = vadd.f32 %v7506, %v7794
  %v7796 = vpop.f32.mrb[0].mxu0
  %v7797 = vpop.f32.mrb[0].mxu0
  %v7798 = vadd.f32 %v7509, %v7797
  %v7799 = vpop.f32.mrb[0].mxu0
  %7800 = vmatprep.mubr.bf16.mxu0 0
  %7801 = vmatmul.mubr.bf16.gmra.mrb[0].mxu0 %v5763
  %v7802 = vpop.f32.mrb[0].mxu0
  %v7803 = vadd.f32 %v7514, %v7802
  %v7804 = vpop.f32.mrb[0].mxu0
  %v7805 = vpop.f32.mrb[0].mxu0
  %v7806 = vadd.f32 %v7517, %v7805
  %v7807 = vpop.f32.mrb[0].mxu0
  %7808 = vmatprep.mubr.bf16.mxu0 0
  %7809 = vmatmul.mubr.bf16.gmra.mrb[0].mxu0 %v5772
  %v7810 = vpop.f32.mrb[0].mxu0
  %v7811 = vadd.f32 %v7522, %v7810
  %v7812 = vpop.f32.mrb[0].mxu0
  %v7813 = vpop.f32.mrb[0].mxu0
  %v7814 = vadd.f32 %v7525, %v7813
  %v7815 = vpop.f32.mrb[0].mxu0
  %7816 = vmatprep.mubr.bf16.mxu0 0
  %7817 = vmatmul.mubr.bf16.gmra.mrb[0].mxu0 %v5781
  %v7818 = vpop.f32.mrb[0].mxu0
  %v7819 = vadd.f32 %v7530, %v7818
  %v7820 = vpop.f32.mrb[0].mxu0
  %v7821 = vpop.f32.mrb[0].mxu0
  %v7822 = vadd.f32 %v7533, %v7821
  %v7823 = vpop.f32.mrb[0].mxu0
  %7824 = vmatprep.mubr.bf16.mxu0 0
  %7825 = vmatmul.mubr.bf16.gmra.mrb[0].mxu0 %v5790
  %v7826 = vpop.f32.mrb[0].mxu0
  %v7827 = vadd.f32 %v7538, %v7826
  %v7828 = vpop.f32.mrb[0].mxu0
  %v7829 = vpop.f32.mrb[0].mxu0
  %v7830 = vadd.f32 %v7541, %v7829
  %v7831 = vpop.f32.mrb[0].mxu0
  %7832 = vmatprep.mubr.bf16.mxu0 0
  %7833 = vmatmul.mubr.bf16.gmra.mrb[0].mxu0 %v5799
  %v7834 = vpop.f32.mrb[0].mxu0
  %v7835 = vadd.f32 %v7546, %v7834
  %v7836 = vpop.f32.mrb[0].mxu0
  %v7837 = vpop.f32.mrb[0].mxu0
  %v7838 = vadd.f32 %v7549, %v7837
  %v7839 = vpop.f32.mrb[0].mxu0
  %7840 = vmatprep.mubr.bf16.mxu0 0
  %7841 = vmatmul.mubr.bf16.gmra.mrb[0].mxu0 %v5808
  %v7842 = vpop.f32.mrb[0].mxu0
  %v7843 = vadd.f32 %v7554, %v7842
  %v7844 = vpop.f32.mrb[0].mxu0
  %v7845 = vpop.f32.mrb[0].mxu0
  %v7846 = vadd.f32 %v7557, %v7845
  %v7847 = vpop.f32.mrb[0].mxu0
  %7848 = vmatprep.mubr.bf16.mxu0 0
  %7849 = vmatmul.mubr.bf16.gmra.mrb[0].mxu0 %v5817
  %v7850 = vpop.f32.mrb[0].mxu0
  %v7851 = vadd.f32 %v7562, %v7850
  %v7852 = vpop.f32.mrb[0].mxu0
  %v7853 = vpop.f32.mrb[0].mxu0
  %v7854 = vadd.f32 %v7565, %v7853
  %v7855 = vpop.f32.mrb[0].mxu0
  %7856 = vmatprep.mubr.bf16.mxu0 0
  %7857 = vmatmul.mubr.bf16.gmra.mrb[0].mxu0 %v5826
  %v7858 = vpop.f32.mrb[0].mxu0
  %v7859 = vadd.f32 %v7570, %v7858
  %v7860 = vpop.f32.mrb[0].mxu0
  %v7861 = vpop.f32.mrb[0].mxu0
  %v7862 = vadd.f32 %v7573, %v7861
  %v7863 = vpop.f32.mrb[0].mxu0
  %7864 = vmatprep.mubr.bf16.mxu0 0
  %7865 = vmatmul.mubr.bf16.gmra.mrb[0].mxu0 %v5835
  %v7866 = vpop.f32.mrb[0].mxu0
  %v7867 = vadd.f32 %v7578, %v7866
  %v7868 = vpop.f32.mrb[0].mxu0
  %v7869 = vpop.f32.mrb[0].mxu0
  %v7870 = vadd.f32 %v7581, %v7869
  %v7871 = vpop.f32.mrb[0].mxu0
  %7872 = vmatprep.mubr.bf16.mxu0 0
  %7873 = vmatmul.mubr.bf16.gmra.mrb[0].mxu0 %v5844
  %v7874 = vpop.f32.mrb[0].mxu0
  %v7875 = vadd.f32 %v7586, %v7874
  %v7876 = vpop.f32.mrb[0].mxu0
  %v7877 = vpop.f32.mrb[0].mxu0
  %v7878 = vadd.f32 %v7589, %v7877
  %v7879 = vpop.f32.mrb[0].mxu0
  %7880 = vmatprep.mubr.bf16.mxu0 0
  %7881 = vmatmul.mubr.bf16.gmra.mrb[0].mxu0 %v5853
  %v7882 = vpop.f32.mrb[0].mxu0
  %v7883 = vadd.f32 %v7594, %v7882
  %v7884 = vpop.f32.mrb[0].mxu0
  %v7885 = vpop.f32.mrb[0].mxu0
  %v7886 = vadd.f32 %v7597, %v7885
  %v7887 = vpop.f32.mrb[0].mxu0
  %7888 = vmatprep.mubr.bf16.mxu0 0
  %7889 = vmatmul.mubr.bf16.gmra.mrb[0].mxu0 %v5862
  %v7890 = vpop.f32.mrb[0].mxu0
  %v7891 = vadd.f32 %v7602, %v7890
  %v7892 = vpop.f32.mrb[0].mxu0
  %v7893 = vpop.f32.mrb[0].mxu0
  %v7894 = vadd.f32 %v7605, %v7893
  %v7895 = vpop.f32.mrb[0].mxu0
  %7896 = vmatprep.mubr.bf16.mxu0 0
  %7897 = vmatmul.mubr.bf16.gmra.mrb[0].mxu0 %v5871
  %v7898 = vpop.f32.mrb[0].mxu0
  %v7899 = vadd.f32 %v7610, %v7898
  %v7900 = vpop.f32.mrb[0].mxu0
  %v7901 = vpop.f32.mrb[0].mxu0
  %v7902 = vadd.f32 %v7613, %v7901
  %v7903 = vpop.f32.mrb[0].mxu0
  %7904 = vmatprep.mubr.bf16.mxu0 0
  %7905 = vmatmul.mubr.bf16.gmra.mrb[0].mxu0 %v5880
  %v7906 = vpop.f32.mrb[0].mxu0
  %v7907 = vadd.f32 %v7618, %v7906
  %v7908 = vpop.f32.mrb[0].mxu0
  %v7909 = vpop.f32.mrb[0].mxu0
  %v7910 = vadd.f32 %v7621, %v7909
  %v7911 = vpop.f32.mrb[0].mxu0
  %7912 = vmatprep.mubr.bf16.mxu0 0
  %7913 = vmatmul.mubr.bf16.gmra.mrb[0].mxu0 %v5889
  %v7914 = vpop.f32.mrb[0].mxu0
  %v7915 = vadd.f32 %v7626, %v7914
  %v7916 = vpop.f32.mrb[0].mxu0
  %v7917 = vpop.f32.mrb[0].mxu0
  %v7918 = vadd.f32 %v7629, %v7917
  %v7919 = vpop.f32.mrb[0].mxu0
  %7920 = vmatprep.mubr.bf16.mxu0 0
  %7921 = vmatmul.mubr.bf16.gmra.mrb[0].mxu0 %v5898
  %v7922 = vpop.f32.mrb[0].mxu0
  %v7923 = vadd.f32 %v7634, %v7922
  %v7924 = vpop.f32.mrb[0].mxu0
  %v7925 = vpop.f32.mrb[0].mxu0
  %v7926 = vadd.f32 %v7637, %v7925
  %v7927 = vpop.f32.mrb[0].mxu0
  %7928 = vmatprep.mubr.bf16.mxu0 0
  %7929 = vmatmul.mubr.bf16.gmra.mrb[0].mxu0 %v5907
  %v7930 = vpop.f32.mrb[0].mxu0
  %v7931 = vadd.f32 %v7642, %v7930
  %v7932 = vpop.f32.mrb[0].mxu0
  %v7933 = vpop.f32.mrb[0].mxu0
  %v7934 = vadd.f32 %v7645, %v7933
  %v7935 = vpop.f32.mrb[0].mxu0
  %7936 = vmatprep.mubr.bf16.mxu0 0
  %7937 = vmatmul.mubr.bf16.gmra.mrb[0].mxu0 %v5916
  %v7938 = vpop.f32.mrb[0].mxu0
  %v7939 = vadd.f32 %v7650, %v7938
  %v7940 = vpop.f32.mrb[0].mxu0
  %v7941 = vpop.f32.mrb[0].mxu0
  %v7942 = vadd.f32 %v7653, %v7941
  %v7943 = vpop.f32.mrb[0].mxu0
  %7944 = vmatprep.mubr.bf16.mxu0 0
  %7945 = vmatmul.mubr.bf16.gmra.mrb[0].mxu0 %v5925
  %v7946 = vpop.f32.mrb[0].mxu0
  %v7947 = vadd.f32 %v7658, %v7946
  %v7948 = vpop.f32.mrb[0].mxu0
  %v7949 = vpop.f32.mrb[0].mxu0
  %v7950 = vadd.f32 %v7661, %v7949
  %v7951 = vpop.f32.mrb[0].mxu0
  %7952 = vmatprep.mubr.bf16.mxu0 0
  %7953 = vmatmul.mubr.bf16.gmra.mrb[0].mxu0 %v5934
  %v7954 = vpop.f32.mrb[0].mxu0
  %v7955 = vadd.f32 %v7666, %v7954
  %v7956 = vpop.f32.mrb[0].mxu0
  %v7957 = vpop.f32.mrb[0].mxu0
  %v7958 = vadd.f32 %v7669, %v7957
  %v7959 = vpop.f32.mrb[0].mxu0
  %7960 = vmatprep.mubr.bf16.mxu0 0
  %7961 = vmatmul.mubr.bf16.gmra.mrb[0].mxu0 %v5943
  %v7962 = vpop.f32.mrb[0].mxu0
  %v7963 = vadd.f32 %v7674, %v7962
  %v7964 = vpop.f32.mrb[0].mxu0
  %v7965 = vpop.f32.mrb[0].mxu0
  %v7966 = vadd.f32 %v7677, %v7965
  %v7967 = vpop.f32.mrb[0].mxu0
  %7968 = vmatprep.mubr.bf16.mxu0 0
  %7969 = vmatmul.mubr.bf16.gmra.mrb[0].mxu0 %v5952
  %v7970 = vpop.f32.mrb[0].mxu0
  %v7971 = vadd.f32 %v7682, %v7970
  %v7972 = vpop.f32.mrb[0].mxu0
  %v7973 = vpop.f32.mrb[0].mxu0
  %v7974 = vadd.f32 %v7685, %v7973
  %v7975 = vpop.f32.mrb[0].mxu0
  %7976 = vmatprep.mubr.bf16.mxu0 0
  %7977 = vmatmul.mubr.bf16.gmra.mrb[0].mxu0 %v5961
  %v7978 = vpop.f32.mrb[0].mxu0
  %v7979 = vadd.f32 %v7690, %v7978
  %v7980 = vpop.f32.mrb[0].mxu0
  %v7981 = vpop.f32.mrb[0].mxu0
  %v7982 = vadd.f32 %v7693, %v7981
  %v7983 = vpop.f32.mrb[0].mxu0
  %7984 = vmatprep.mubr.bf16.mxu0 0
  %7985 = vmatmul.mubr.bf16.gmra.mrb[0].mxu0 %v5970
  %v7986 = vpop.f32.mrb[0].mxu0
  %v7987 = vadd.f32 %v7698, %v7986
  %v7988 = vpop.f32.mrb[0].mxu0
  %v7989 = vpop.f32.mrb[0].mxu0
  %v7990 = vadd.f32 %v7701, %v7989
  %v7991 = vpop.f32.mrb[0].mxu0
  %7992 = vmatprep.mubr.bf16.mxu0 0
  %7993 = vmatmul.mubr.bf16.gmra.mrb[0].mxu0 %v5979
  %v7994 = vpop.f32.mrb[0].mxu0
  %v7995 = vadd.f32 %v7706, %v7994
  %v7996 = vpop.f32.mrb[0].mxu0
  %v7997 = vpop.f32.mrb[0].mxu0
  %v7998 = vadd.f32 %v7709, %v7997
  %v7999 = vpop.f32.mrb[0].mxu0
  %8000 = vdwg.mxu0
  %v8001 = vlaneseq
  %v8002 = vand.u32 %v8001, 127
  %vm8003 = vcmp.lt.s32.totalorder %v8002, 96
  %v8004 = vxor.u32 %v7747, 2147483648
  %v8005 = vxor.u32 %v7750, 2147483648
  %v8006 = vxor.u32 %v7755, 2147483648
  %v8007 = vxor.u32 %v7758, 2147483648
  %v8008 = vxor.u32 %v7763, 2147483648
  %v8009 = vxor.u32 %v7766, 2147483648
  %v8010 = vxor.u32 %v7771, 2147483648
  %v8011 = vxor.u32 %v7774, 2147483648
  %v8012 = vxor.u32 %v7779, 2147483648
  %v8013 = vxor.u32 %v7782, 2147483648
  %v8014 = vxor.u32 %v7787, 2147483648
  %v8015 = vxor.u32 %v7790, 2147483648
  %v8016 = vxor.u32 %v7795, 2147483648
  %v8017 = vxor.u32 %v7798, 2147483648
  %v8018 = vxor.u32 %v7803, 2147483648
  %v8019 = vxor.u32 %v7806, 2147483648
  %v8020 = vxor.u32 %v7811, 2147483648
  %v8021 = vxor.u32 %v7814, 2147483648
  %v8022 = vxor.u32 %v7819, 2147483648
  %v8023 = vxor.u32 %v7822, 2147483648
  %v8024 = vxor.u32 %v7827, 2147483648
  %v8025 = vxor.u32 %v7830, 2147483648
  %v8026 = vxor.u32 %v7835, 2147483648
  %v8027 = vxor.u32 %v7838, 2147483648
  %v8028 = vxor.u32 %v7843, 2147483648
  %v8029 = vxor.u32 %v7846, 2147483648
  %v8030 = vxor.u32 %v7851, 2147483648
  %v8031 = vxor.u32 %v7854, 2147483648
  %v8032 = vxor.u32 %v7859, 2147483648
  %v8033 = vxor.u32 %v7862, 2147483648
  %v8034 = vxor.u32 %v7867, 2147483648
  %v8035 = vxor.u32 %v7870, 2147483648
  %v8036 = vxor.u32 %v7875, 2147483648
  %v8037 = vxor.u32 %v7878, 2147483648
  %v8038 = vxor.u32 %v7883, 2147483648
  %v8039 = vxor.u32 %v7886, 2147483648
  %v8040 = vxor.u32 %v7891, 2147483648
  %v8041 = vxor.u32 %v7894, 2147483648
  %v8042 = vxor.u32 %v7899, 2147483648
  %v8043 = vxor.u32 %v7902, 2147483648
  %v8044 = vxor.u32 %v7907, 2147483648
  %v8045 = vxor.u32 %v7910, 2147483648
  %v8046 = vxor.u32 %v7915, 2147483648
  %v8047 = vxor.u32 %v7918, 2147483648
  %v8048 = vxor.u32 %v7923, 2147483648
  %v8049 = vxor.u32 %v7926, 2147483648
  %v8050 = vxor.u32 %v7931, 2147483648
  %v8051 = vxor.u32 %v7934, 2147483648
  %v8052 = vxor.u32 %v7939, 2147483648
  %v8053 = vxor.u32 %v7942, 2147483648
  %v8054 = vxor.u32 %v7947, 2147483648
  %v8055 = vxor.u32 %v7950, 2147483648
  %v8056 = vxor.u32 %v7955, 2147483648
  %v8057 = vxor.u32 %v7958, 2147483648
  %v8058 = vxor.u32 %v7963, 2147483648
  %v8059 = vxor.u32 %v7966, 2147483648
  %v8060 = vxor.u32 %v7971, 2147483648
  %v8061 = vxor.u32 %v7974, 2147483648
  %v8062 = vxor.u32 %v7979, 2147483648
  %v8063 = vxor.u32 %v7982, 2147483648
  %v8064 = vxor.u32 %v7987, 2147483648
  %v8065 = vxor.u32 %v7990, 2147483648
  %v8066 = vxor.u32 %v7995, 2147483648
  %v8067 = vxor.u32 %v7998, 2147483648
  %v8068 = vmul.f32 %v8004, 1.442695
  %v8069 = vpow.pop %v8068
  %v8070 = vmul.f32 %v8005, 1.442695
  %v8071 = vpow.pop %v8070
  %v8072 = vmul.f32 %v8006, 1.442695
  %v8073 = vpow.pop %v8072
  %v8074 = vmul.f32 %v8007, 1.442695
  %v8075 = vpow.pop %v8074
  %v8076 = vmul.f32 %v8008, 1.442695
  %v8077 = vpow.pop %v8076
  %v8078 = vmul.f32 %v8009, 1.442695
  %v8079 = vpow.pop %v8078
  %v8080 = vmul.f32 %v8010, 1.442695
  %v8081 = vpow.pop %v8080
  %v8082 = vmul.f32 %v8011, 1.442695
  %v8083 = vpow.pop %v8082
  %v8084 = vmul.f32 %v8012, 1.442695
  %v8085 = vpow.pop %v8084
  %v8086 = vmul.f32 %v8013, 1.442695
  %v8087 = vpow.pop %v8086
  %v8088 = vmul.f32 %v8014, 1.442695
  %v8089 = vpow.pop %v8088
  %v8090 = vmul.f32 %v8015, 1.442695
  %v8091 = vpow.pop %v8090
  %v8092 = vmul.f32 %v8016, 1.442695
  %v8093 = vpow.pop %v8092
  %v8094 = vmul.f32 %v8017, 1.442695
  %v8095 = vpow.pop %v8094
  %v8096 = vmul.f32 %v8018, 1.442695
  %v8097 = vpow.pop %v8096
  %v8098 = vmul.f32 %v8019, 1.442695
  %v8099 = vpow.pop %v8098
  %v8100 = vmul.f32 %v8020, 1.442695
  %v8101 = vpow.pop %v8100
  %v8102 = vmul.f32 %v8021, 1.442695
  %v8103 = vpow.pop %v8102
  %v8104 = vmul.f32 %v8022, 1.442695
  %v8105 = vpow.pop %v8104
  %v8106 = vmul.f32 %v8023, 1.442695
  %v8107 = vpow.pop %v8106
  %v8108 = vmul.f32 %v8024, 1.442695
  %v8109 = vpow.pop %v8108
  %v8110 = vmul.f32 %v8025, 1.442695
  %v8111 = vpow.pop %v8110
  %v8112 = vmul.f32 %v8026, 1.442695
  %v8113 = vpow.pop %v8112
  %v8114 = vmul.f32 %v8027, 1.442695
  %v8115 = vpow.pop %v8114
  %v8116 = vmul.f32 %v8028, 1.442695
  %v8117 = vpow.pop %v8116
  %v8118 = vmul.f32 %v8029, 1.442695
  %v8119 = vpow.pop %v8118
  %v8120 = vmul.f32 %v8030, 1.442695
  %v8121 = vpow.pop %v8120
  %v8122 = vmul.f32 %v8031, 1.442695
  %v8123 = vpow.pop %v8122
  %v8124 = vmul.f32 %v8032, 1.442695
  %v8125 = vpow.pop %v8124
  %v8126 = vmul.f32 %v8033, 1.442695
  %v8127 = vpow.pop %v8126
  %v8128 = vmul.f32 %v8034, 1.442695
  %v8129 = vpow.pop %v8128
  %v8130 = vmul.f32 %v8035, 1.442695
  %v8131 = vpow.pop %v8130
  %v8132 = vmul.f32 %v8036, 1.442695
  %v8133 = vpow.pop %v8132
  %v8134 = vmul.f32 %v8037, 1.442695
  %v8135 = vpow.pop %v8134
  %v8136 = vmul.f32 %v8038, 1.442695
  %v8137 = vpow.pop %v8136
  %v8138 = vmul.f32 %v8039, 1.442695
  %v8139 = vpow.pop %v8138
  %v8140 = vmul.f32 %v8040, 1.442695
  %v8141 = vpow.pop %v8140
  %v8142 = vmul.f32 %v8041, 1.442695
  %v8143 = vpow.pop %v8142
  %v8144 = vmul.f32 %v8042, 1.442695
  %v8145 = vpow.pop %v8144
  %v8146 = vmul.f32 %v8043, 1.442695
  %v8147 = vpow.pop %v8146
  %v8148 = vmul.f32 %v8044, 1.442695
  %v8149 = vpow.pop %v8148
  %v8150 = vmul.f32 %v8045, 1.442695
  %v8151 = vpow.pop %v8150
  %v8152 = vmul.f32 %v8046, 1.442695
  %v8153 = vpow.pop %v8152
  %v8154 = vmul.f32 %v8047, 1.442695
  %v8155 = vpow.pop %v8154
  %v8156 = vmul.f32 %v8048, 1.442695
  %v8157 = vpow.pop %v8156
  %v8158 = vmul.f32 %v8049, 1.442695
  %v8159 = vpow.pop %v8158
  %v8160 = vmul.f32 %v8050, 1.442695
  %v8161 = vpow.pop %v8160
  %v8162 = vmul.f32 %v8051, 1.442695
  %v8163 = vpow.pop %v8162
  %v8164 = vmul.f32 %v8052, 1.442695
  %v8165 = vpow.pop %v8164
  %v8166 = vmul.f32 %v8053, 1.442695
  %v8167 = vpow.pop %v8166
  %v8168 = vmul.f32 %v8054, 1.442695
  %v8169 = vpow.pop %v8168
  %v8170 = vmul.f32 %v8055, 1.442695
  %v8171 = vpow.pop %v8170
  %v8172 = vmul.f32 %v8056, 1.442695
  %v8173 = vpow.pop %v8172
  %v8174 = vmul.f32 %v8057, 1.442695
  %v8175 = vpow.pop %v8174
  %v8176 = vmul.f32 %v8058, 1.442695
  %v8177 = vpow.pop %v8176
  %v8178 = vmul.f32 %v8059, 1.442695
  %v8179 = vpow.pop %v8178
  %v8180 = vmul.f32 %v8060, 1.442695
  %v8181 = vpow.pop %v8180
  %v8182 = vmul.f32 %v8061, 1.442695
  %v8183 = vpow.pop %v8182
  %v8184 = vmul.f32 %v8062, 1.442695
  %v8185 = vpow.pop %v8184
  %v8186 = vmul.f32 %v8063, 1.442695
  %v8187 = vpow.pop %v8186
  %v8188 = vmul.f32 %v8064, 1.442695
  %v8189 = vpow.pop %v8188
  %v8190 = vmul.f32 %v8065, 1.442695
  %v8191 = vpow.pop %v8190
  %v8192 = vmul.f32 %v8066, 1.442695
  %v8193 = vpow.pop %v8192
  %v8194 = vmul.f32 %v8067, 1.442695
  %v8195 = vpow.pop %v8194
  %v8196 = vadd.f32 %v8069, 1.0
  %v8197 = vadd.f32 %v8071, 1.0
  %v8198 = vadd.f32 %v8073, 1.0
  %v8199 = vadd.f32 %v8075, 1.0
  %v8200 = vadd.f32 %v8077, 1.0
  %v8201 = vadd.f32 %v8079, 1.0
  %v8202 = vadd.f32 %v8081, 1.0
  %v8203 = vadd.f32 %v8083, 1.0
  %v8204 = vadd.f32 %v8085, 1.0
  %v8205 = vadd.f32 %v8087, 1.0
  %v8206 = vadd.f32 %v8089, 1.0
  %v8207 = vadd.f32 %v8091, 1.0
  %v8208 = vadd.f32 %v8093, 1.0
  %v8209 = vadd.f32 %v8095, 1.0
  %v8210 = vadd.f32 %v8097, 1.0
  %v8211 = vadd.f32 %v8099, 1.0
  %v8212 = vadd.f32 %v8101, 1.0
  %v8213 = vadd.f32 %v8103, 1.0
  %v8214 = vadd.f32 %v8105, 1.0
  %v8215 = vadd.f32 %v8107, 1.0
  %v8216 = vadd.f32 %v8109, 1.0
  %v8217 = vadd.f32 %v8111, 1.0
  %v8218 = vadd.f32 %v8113, 1.0
  %v8219 = vadd.f32 %v8115, 1.0
  %v8220 = vadd.f32 %v8117, 1.0
  %v8221 = vadd.f32 %v8119, 1.0
  %v8222 = vadd.f32 %v8121, 1.0
  %v8223 = vadd.f32 %v8123, 1.0
  %v8224 = vadd.f32 %v8125, 1.0
  %v8225 = vadd.f32 %v8127, 1.0
  %v8226 = vadd.f32 %v8129, 1.0
  %v8227 = vadd.f32 %v8131, 1.0
  %v8228 = vadd.f32 %v8133, 1.0
  %v8229 = vadd.f32 %v8135, 1.0
  %v8230 = vadd.f32 %v8137, 1.0
  %v8231 = vadd.f32 %v8139, 1.0
  %v8232 = vadd.f32 %v8141, 1.0
  %v8233 = vadd.f32 %v8143, 1.0
  %v8234 = vadd.f32 %v8145, 1.0
  %v8235 = vadd.f32 %v8147, 1.0
  %v8236 = vadd.f32 %v8149, 1.0
  %v8237 = vadd.f32 %v8151, 1.0
  %v8238 = vadd.f32 %v8153, 1.0
  %v8239 = vadd.f32 %v8155, 1.0
  %v8240 = vadd.f32 %v8157, 1.0
  %v8241 = vadd.f32 %v8159, 1.0
  %v8242 = vadd.f32 %v8161, 1.0
  %v8243 = vadd.f32 %v8163, 1.0
  %v8244 = vadd.f32 %v8165, 1.0
  %v8245 = vadd.f32 %v8167, 1.0
  %v8246 = vadd.f32 %v8169, 1.0
  %v8247 = vadd.f32 %v8171, 1.0
  %v8248 = vadd.f32 %v8173, 1.0
  %v8249 = vadd.f32 %v8175, 1.0
  %v8250 = vadd.f32 %v8177, 1.0
  %v8251 = vadd.f32 %v8179, 1.0
  %v8252 = vadd.f32 %v8181, 1.0
  %v8253 = vadd.f32 %v8183, 1.0
  %v8254 = vadd.f32 %v8185, 1.0
  %v8255 = vadd.f32 %v8187, 1.0
  %v8256 = vadd.f32 %v8189, 1.0
  %v8257 = vadd.f32 %v8191, 1.0
  %v8258 = vadd.f32 %v8193, 1.0
  %v8259 = vadd.f32 %v8195, 1.0
  %v8260 = vrcp.pop %v8196
  %v8261 = vmul.f32 1.0, %v8260
  %v8262 = vrcp.pop %v8197
  %v8263 = vmul.f32 1.0, %v8262
  %v8264 = vrcp.pop %v8198
  %v8265 = vmul.f32 1.0, %v8264
  %v8266 = vrcp.pop %v8199
  %v8267 = vmul.f32 1.0, %v8266
  %v8268 = vrcp.pop %v8200
  %v8269 = vmul.f32 1.0, %v8268
  %v8270 = vrcp.pop %v8201
  %v8271 = vmul.f32 1.0, %v8270
  %v8272 = vrcp.pop %v8202
  %v8273 = vmul.f32 1.0, %v8272
  %v8274 = vrcp.pop %v8203
  %v8275 = vmul.f32 1.0, %v8274
  %v8276 = vrcp.pop %v8204
  %v8277 = vmul.f32 1.0, %v8276
  %v8278 = vrcp.pop %v8205
  %v8279 = vmul.f32 1.0, %v8278
  %v8280 = vrcp.pop %v8206
  %v8281 = vmul.f32 1.0, %v8280
  %v8282 = vrcp.pop %v8207
  %v8283 = vmul.f32 1.0, %v8282
  %v8284 = vrcp.pop %v8208
  %v8285 = vmul.f32 1.0, %v8284
  %v8286 = vrcp.pop %v8209
  %v8287 = vmul.f32 1.0, %v8286
  %v8288 = vrcp.pop %v8210
  %v8289 = vmul.f32 1.0, %v8288
  %v8290 = vrcp.pop %v8211
  %v8291 = vmul.f32 1.0, %v8290
  %v8292 = vrcp.pop %v8212
  %v8293 = vmul.f32 1.0, %v8292
  %v8294 = vrcp.pop %v8213
  %v8295 = vmul.f32 1.0, %v8294
  %v8296 = vrcp.pop %v8214
  %v8297 = vmul.f32 1.0, %v8296
  %v8298 = vrcp.pop %v8215
  %v8299 = vmul.f32 1.0, %v8298
  %v8300 = vrcp.pop %v8216
  %v8301 = vmul.f32 1.0, %v8300
  %v8302 = vrcp.pop %v8217
  %v8303 = vmul.f32 1.0, %v8302
  %v8304 = vrcp.pop %v8218
  %v8305 = vmul.f32 1.0, %v8304
  %v8306 = vrcp.pop %v8219
  %v8307 = vmul.f32 1.0, %v8306
  %v8308 = vrcp.pop %v8220
  %v8309 = vmul.f32 1.0, %v8308
  %v8310 = vrcp.pop %v8221
  %v8311 = vmul.f32 1.0, %v8310
  %v8312 = vrcp.pop %v8222
  %v8313 = vmul.f32 1.0, %v8312
  %v8314 = vrcp.pop %v8223
  %v8315 = vmul.f32 1.0, %v8314
  %v8316 = vrcp.pop %v8224
  %v8317 = vmul.f32 1.0, %v8316
  %v8318 = vrcp.pop %v8225
  %v8319 = vmul.f32 1.0, %v8318
  %v8320 = vrcp.pop %v8226
  %v8321 = vmul.f32 1.0, %v8320
  %v8322 = vrcp.pop %v8227
  %v8323 = vmul.f32 1.0, %v8322
  %v8324 = vrcp.pop %v8228
  %v8325 = vmul.f32 1.0, %v8324
  %v8326 = vrcp.pop %v8229
  %v8327 = vmul.f32 1.0, %v8326
  %v8328 = vrcp.pop %v8230
  %v8329 = vmul.f32 1.0, %v8328
  %v8330 = vrcp.pop %v8231
  %v8331 = vmul.f32 1.0, %v8330
  %v8332 = vrcp.pop %v8232
  %v8333 = vmul.f32 1.0, %v8332
  %v8334 = vrcp.pop %v8233
  %v8335 = vmul.f32 1.0, %v8334
  %v8336 = vrcp.pop %v8234
  %v8337 = vmul.f32 1.0, %v8336
  %v8338 = vrcp.pop %v8235
  %v8339 = vmul.f32 1.0, %v8338
  %v8340 = vrcp.pop %v8236
  %v8341 = vmul.f32 1.0, %v8340
  %v8342 = vrcp.pop %v8237
  %v8343 = vmul.f32 1.0, %v8342
  %v8344 = vrcp.pop %v8238
  %v8345 = vmul.f32 1.0, %v8344
  %v8346 = vrcp.pop %v8239
  %v8347 = vmul.f32 1.0, %v8346
  %v8348 = vrcp.pop %v8240
  %v8349 = vmul.f32 1.0, %v8348
  %v8350 = vrcp.pop %v8241
  %v8351 = vmul.f32 1.0, %v8350
  %v8352 = vrcp.pop %v8242
  %v8353 = vmul.f32 1.0, %v8352
  %v8354 = vrcp.pop %v8243
  %v8355 = vmul.f32 1.0, %v8354
  %v8356 = vrcp.pop %v8244
  %v8357 = vmul.f32 1.0, %v8356
  %v8358 = vrcp.pop %v8245
  %v8359 = vmul.f32 1.0, %v8358
  %v8360 = vrcp.pop %v8246
  %v8361 = vmul.f32 1.0, %v8360
  %v8362 = vrcp.pop %v8247
  %v8363 = vmul.f32 1.0, %v8362
  %v8364 = vrcp.pop %v8248
  %v8365 = vmul.f32 1.0, %v8364
  %v8366 = vrcp.pop %v8249
  %v8367 = vmul.f32 1.0, %v8366
  %v8368 = vrcp.pop %v8250
  %v8369 = vmul.f32 1.0, %v8368
  %v8370 = vrcp.pop %v8251
  %v8371 = vmul.f32 1.0, %v8370
  %v8372 = vrcp.pop %v8252
  %v8373 = vmul.f32 1.0, %v8372
  %v8374 = vrcp.pop %v8253
  %v8375 = vmul.f32 1.0, %v8374
  %v8376 = vrcp.pop %v8254
  %v8377 = vmul.f32 1.0, %v8376
  %v8378 = vrcp.pop %v8255
  %v8379 = vmul.f32 1.0, %v8378
  %v8380 = vrcp.pop %v8256
  %v8381 = vmul.f32 1.0, %v8380
  %v8382 = vrcp.pop %v8257
  %v8383 = vmul.f32 1.0, %v8382
  %v8384 = vrcp.pop %v8258
  %v8385 = vmul.f32 1.0, %v8384
  %v8386 = vrcp.pop %v8259
  %v8387 = vmul.f32 1.0, %v8386
  %v8388 = vtanh.pop %v7747
  %v8389 = vtanh.pop %v7750
  %v8390 = vtanh.pop %v7755
  %v8391 = vtanh.pop %v7758
  %v8392 = vtanh.pop %v7763
  %v8393 = vtanh.pop %v7766
  %v8394 = vtanh.pop %v7771
  %v8395 = vtanh.pop %v7774
  %v8396 = vtanh.pop %v7779
  %v8397 = vtanh.pop %v7782
  %v8398 = vtanh.pop %v7787
  %v8399 = vtanh.pop %v7790
  %v8400 = vtanh.pop %v7795
  %v8401 = vtanh.pop %v7798
  %v8402 = vtanh.pop %v7803
  %v8403 = vtanh.pop %v7806
  %v8404 = vtanh.pop %v7811
  %v8405 = vtanh.pop %v7814
  %v8406 = vtanh.pop %v7819
  %v8407 = vtanh.pop %v7822
  %v8408 = vtanh.pop %v7827
  %v8409 = vtanh.pop %v7830
  %v8410 = vtanh.pop %v7835
  %v8411 = vtanh.pop %v7838
  %v8412 = vtanh.pop %v7843
  %v8413 = vtanh.pop %v7846
  %v8414 = vtanh.pop %v7851
  %v8415 = vtanh.pop %v7854
  %v8416 = vtanh.pop %v7859
  %v8417 = vtanh.pop %v7862
  %v8418 = vtanh.pop %v7867
  %v8419 = vtanh.pop %v7870
  %v8420 = vtanh.pop %v7875
  %v8421 = vtanh.pop %v7878
  %v8422 = vtanh.pop %v7883
  %v8423 = vtanh.pop %v7886
  %v8424 = vtanh.pop %v7891
  %v8425 = vtanh.pop %v7894
  %v8426 = vtanh.pop %v7899
  %v8427 = vtanh.pop %v7902
  %v8428 = vtanh.pop %v7907
  %v8429 = vtanh.pop %v7910
  %v8430 = vtanh.pop %v7915
  %v8431 = vtanh.pop %v7918
  %v8432 = vtanh.pop %v7923
  %v8433 = vtanh.pop %v7926
  %v8434 = vtanh.pop %v7931
  %v8435 = vtanh.pop %v7934
  %v8436 = vtanh.pop %v7939
  %v8437 = vtanh.pop %v7942
  %v8438 = vtanh.pop %v7947
  %v8439 = vtanh.pop %v7950
  %v8440 = vtanh.pop %v7955
  %v8441 = vtanh.pop %v7958
  %v8442 = vtanh.pop %v7963
  %v8443 = vtanh.pop %v7966
  %v8444 = vtanh.pop %v7971
  %v8445 = vtanh.pop %v7974
  %v8446 = vtanh.pop %v7979
  %v8447 = vtanh.pop %v7982
  %v8448 = vtanh.pop %v7987
  %v8449 = vtanh.pop %v7990
  %v8450 = vtanh.pop %v7995
  %v8451 = vtanh.pop %v7998
  %v8452 = vsel %vm8003, %v8261, %v8388
  %v8453 = vsel %vm8003, %v8263, %v8389
  %v8454 = vsel %vm8003, %v8265, %v8390
  %v8455 = vsel %vm8003, %v8267, %v8391
  %v8456 = vsel %vm8003, %v8269, %v8392
  %v8457 = vsel %vm8003, %v8271, %v8393
  %v8458 = vsel %vm8003, %v8273, %v8394
  %v8459 = vsel %vm8003, %v8275, %v8395
  %v8460 = vsel %vm8003, %v8277, %v8396
  %v8461 = vsel %vm8003, %v8279, %v8397
  %v8462 = vsel %vm8003, %v8281, %v8398
  %v8463 = vsel %vm8003, %v8283, %v8399
  %v8464 = vsel %vm8003, %v8285, %v8400
  %v8465 = vsel %vm8003, %v8287, %v8401
  %v8466 = vsel %vm8003, %v8289, %v8402
  %v8467 = vsel %vm8003, %v8291, %v8403
  %v8468 = vsel %vm8003, %v8293, %v8404
  %v8469 = vsel %vm8003, %v8295, %v8405
  %v8470 = vsel %vm8003, %v8297, %v8406
  %v8471 = vsel %vm8003, %v8299, %v8407
  %v8472 = vsel %vm8003, %v8301, %v8408
  %v8473 = vsel %vm8003, %v8303, %v8409
  %v8474 = vsel %vm8003, %v8305, %v8410
  %v8475 = vsel %vm8003, %v8307, %v8411
  %v8476 = vsel %vm8003, %v8309, %v8412
  %v8477 = vsel %vm8003, %v8311, %v8413
  %v8478 = vsel %vm8003, %v8313, %v8414
  %v8479 = vsel %vm8003, %v8315, %v8415
  %v8480 = vsel %vm8003, %v8317, %v8416
  %v8481 = vsel %vm8003, %v8319, %v8417
  %v8482 = vsel %vm8003, %v8321, %v8418
  %v8483 = vsel %vm8003, %v8323, %v8419
  %v8484 = vsel %vm8003, %v8325, %v8420
  %v8485 = vsel %vm8003, %v8327, %v8421
  %v8486 = vsel %vm8003, %v8329, %v8422
  %v8487 = vsel %vm8003, %v8331, %v8423
  %v8488 = vsel %vm8003, %v8333, %v8424
  %v8489 = vsel %vm8003, %v8335, %v8425
  %v8490 = vsel %vm8003, %v8337, %v8426
  %v8491 = vsel %vm8003, %v8339, %v8427
  %v8492 = vsel %vm8003, %v8341, %v8428
  %v8493 = vsel %vm8003, %v8343, %v8429
  %v8494 = vsel %vm8003, %v8345, %v8430
  %v8495 = vsel %vm8003, %v8347, %v8431
  %v8496 = vsel %vm8003, %v8349, %v8432
  %v8497 = vsel %vm8003, %v8351, %v8433
  %v8498 = vsel %vm8003, %v8353, %v8434
  %v8499 = vsel %vm8003, %v8355, %v8435
  %v8500 = vsel %vm8003, %v8357, %v8436
  %v8501 = vsel %vm8003, %v8359, %v8437
  %v8502 = vsel %vm8003, %v8361, %v8438
  %v8503 = vsel %vm8003, %v8363, %v8439
  %v8504 = vsel %vm8003, %v8365, %v8440
  %v8505 = vsel %vm8003, %v8367, %v8441
  %v8506 = vsel %vm8003, %v8369, %v8442
  %v8507 = vsel %vm8003, %v8371, %v8443
  %v8508 = vsel %vm8003, %v8373, %v8444
  %v8509 = vsel %vm8003, %v8375, %v8445
  %v8510 = vsel %vm8003, %v8377, %v8446
  %v8511 = vsel %vm8003, %v8379, %v8447
  %v8512 = vsel %vm8003, %v8381, %v8448
  %v8513 = vsel %vm8003, %v8383, %v8449
  %v8514 = vsel %vm8003, %v8385, %v8450
  %v8515 = vsel %vm8003, %v8387, %v8451
  %v8516 = vld [vmem:[%s1] sm:$0xff]
  %v8517 = vld [vmem:[%s1 + $0x8] sm:$0xff]
  %v8518 = vld [vmem:[%s1 + $0x10] sm:$0xff]
  %v8519 = vld [vmem:[%s1 + $0x18] sm:$0xff]
  %v8520 = vld [vmem:[%s1 + $0x20] sm:$0xff]
  %v8521 = vld [vmem:[%s1 + $0x28] sm:$0xff]
  %v8522 = vld [vmem:[%s1 + $0x30] sm:$0xff]
  %v8523 = vld [vmem:[%s1 + $0x38] sm:$0xff]
  %v8524 = vld [vmem:[%s1 + $0x40] sm:$0xff]
  %v8525 = vld [vmem:[%s1 + $0x48] sm:$0xff]
  %v8526 = vld [vmem:[%s1 + $0x50] sm:$0xff]
  %v8527 = vld [vmem:[%s1 + $0x58] sm:$0xff]
  %v8528 = vld [vmem:[%s1 + $0x60] sm:$0xff]
  %v8529 = vld [vmem:[%s1 + $0x68] sm:$0xff]
  %v8530 = vld [vmem:[%s1 + $0x70] sm:$0xff]
  %v8531 = vld [vmem:[%s1 + $0x78] sm:$0xff]
  %v8532 = vld [vmem:[%s1 + $0x80] sm:$0xff]
  %v8533 = vld [vmem:[%s1 + $0x88] sm:$0xff]
  %v8534 = vld [vmem:[%s1 + $0x90] sm:$0xff]
  %v8535 = vld [vmem:[%s1 + $0x98] sm:$0xff]
  %v8536 = vld [vmem:[%s1 + $0xa0] sm:$0xff]
  %v8537 = vld [vmem:[%s1 + $0xa8] sm:$0xff]
  %v8538 = vld [vmem:[%s1 + $0xb0] sm:$0xff]
  %v8539 = vld [vmem:[%s1 + $0xb8] sm:$0xff]
  %v8540 = vld [vmem:[%s1 + $0xc0] sm:$0xff]
  %v8541 = vld [vmem:[%s1 + $0xc8] sm:$0xff]
  %v8542 = vld [vmem:[%s1 + $0xd0] sm:$0xff]
  %v8543 = vld [vmem:[%s1 + $0xd8] sm:$0xff]
  %v8544 = vld [vmem:[%s1 + $0xe0] sm:$0xff]
  %v8545 = vld [vmem:[%s1 + $0xe8] sm:$0xff]
  %v8546 = vld [vmem:[%s1 + $0xf0] sm:$0xff]
  %v8547 = vld [vmem:[%s1 + $0xf8] sm:$0xff]
  %v8548 = vld [vmem:[%s1 + $0x100] sm:$0xff]
  %v8549 = vld [vmem:[%s1 + $0x108] sm:$0xff]
  %v8550 = vld [vmem:[%s1 + $0x110] sm:$0xff]
  %v8551 = vld [vmem:[%s1 + $0x118] sm:$0xff]
  %v8552 = vld [vmem:[%s1 + $0x120] sm:$0xff]
  %v8553 = vld [vmem:[%s1 + $0x128] sm:$0xff]
  %v8554 = vld [vmem:[%s1 + $0x130] sm:$0xff]
  %v8555 = vld [vmem:[%s1 + $0x138] sm:$0xff]
  %v8556 = vld [vmem:[%s1 + $0x140] sm:$0xff]
  %v8557 = vld [vmem:[%s1 + $0x148] sm:$0xff]
  %v8558 = vld [vmem:[%s1 + $0x150] sm:$0xff]
  %v8559 = vld [vmem:[%s1 + $0x158] sm:$0xff]
  %v8560 = vld [vmem:[%s1 + $0x160] sm:$0xff]
  %v8561 = vld [vmem:[%s1 + $0x168] sm:$0xff]
  %v8562 = vld [vmem:[%s1 + $0x170] sm:$0xff]
  %v8563 = vld [vmem:[%s1 + $0x178] sm:$0xff]
  %v8564 = vld [vmem:[%s1 + $0x180] sm:$0xff]
  %v8565 = vld [vmem:[%s1 + $0x188] sm:$0xff]
  %v8566 = vld [vmem:[%s1 + $0x190] sm:$0xff]
  %v8567 = vld [vmem:[%s1 + $0x198] sm:$0xff]
  %v8568 = vld [vmem:[%s1 + $0x1a0] sm:$0xff]
  %v8569 = vld [vmem:[%s1 + $0x1a8] sm:$0xff]
  %v8570 = vld [vmem:[%s1 + $0x1b0] sm:$0xff]
  %v8571 = vld [vmem:[%s1 + $0x1b8] sm:$0xff]
  %v8572 = vld [vmem:[%s1 + $0x1c0] sm:$0xff]
  %v8573 = vld [vmem:[%s1 + $0x1c8] sm:$0xff]
  %v8574 = vld [vmem:[%s1 + $0x1d0] sm:$0xff]
  %v8575 = vld [vmem:[%s1 + $0x1d8] sm:$0xff]
  %v8576 = vld [vmem:[%s1 + $0x1e0] sm:$0xff]
  %v8577 = vld [vmem:[%s1 + $0x1e8] sm:$0xff]
  %v8578 = vld [vmem:[%s1 + $0x1f0] sm:$0xff]
  %v8579 = vld [vmem:[%s1 + $0x1f8] sm:$0xff]
  %8644 = vrot.lane.b32.xlu0 %v8516, 32
  %v8645 = vpop.permute.xlu0 %8644
  %8646 = vrot.lane.b32.xlu0 %v8517, 32
  %v8647 = vpop.permute.xlu0 %8646
  %8648 = vrot.lane.b32.xlu0 %v8518, 32
  %v8649 = vpop.permute.xlu0 %8648
  %8650 = vrot.lane.b32.xlu0 %v8519, 32
  %v8651 = vpop.permute.xlu0 %8650
  %8652 = vrot.lane.b32.xlu0 %v8520, 32
  %v8653 = vpop.permute.xlu0 %8652
  %8654 = vrot.lane.b32.xlu0 %v8521, 32
  %v8655 = vpop.permute.xlu0 %8654
  %8656 = vrot.lane.b32.xlu0 %v8522, 32
  %v8657 = vpop.permute.xlu0 %8656
  %8658 = vrot.lane.b32.xlu0 %v8523, 32
  %v8659 = vpop.permute.xlu0 %8658
  %8660 = vrot.lane.b32.xlu0 %v8524, 32
  %v8661 = vpop.permute.xlu0 %8660
  %8662 = vrot.lane.b32.xlu0 %v8525, 32
  %v8663 = vpop.permute.xlu0 %8662
  %8664 = vrot.lane.b32.xlu0 %v8526, 32
  %v8665 = vpop.permute.xlu0 %8664
  %8666 = vrot.lane.b32.xlu0 %v8527, 32
  %v8667 = vpop.permute.xlu0 %8666
  %8668 = vrot.lane.b32.xlu0 %v8528, 32
  %v8669 = vpop.permute.xlu0 %8668
  %8670 = vrot.lane.b32.xlu0 %v8529, 32
  %v8671 = vpop.permute.xlu0 %8670
  %8672 = vrot.lane.b32.xlu0 %v8530, 32
  %v8673 = vpop.permute.xlu0 %8672
  %8674 = vrot.lane.b32.xlu0 %v8531, 32
  %v8675 = vpop.permute.xlu0 %8674
  %8676 = vrot.lane.b32.xlu0 %v8532, 32
  %v8677 = vpop.permute.xlu0 %8676
  %8678 = vrot.lane.b32.xlu0 %v8533, 32
  %v8679 = vpop.permute.xlu0 %8678
  %8680 = vrot.lane.b32.xlu0 %v8534, 32
  %v8681 = vpop.permute.xlu0 %8680
  %8682 = vrot.lane.b32.xlu0 %v8535, 32
  %v8683 = vpop.permute.xlu0 %8682
  %8684 = vrot.lane.b32.xlu0 %v8536, 32
  %v8685 = vpop.permute.xlu0 %8684
  %8686 = vrot.lane.b32.xlu0 %v8537, 32
  %v8687 = vpop.permute.xlu0 %8686
  %8688 = vrot.lane.b32.xlu0 %v8538, 32
  %v8689 = vpop.permute.xlu0 %8688
  %8690 = vrot.lane.b32.xlu0 %v8539, 32
  %v8691 = vpop.permute.xlu0 %8690
  %8692 = vrot.lane.b32.xlu0 %v8540, 32
  %v8693 = vpop.permute.xlu0 %8692
  %8694 = vrot.lane.b32.xlu0 %v8541, 32
  %v8695 = vpop.permute.xlu0 %8694
  %8696 = vrot.lane.b32.xlu0 %v8542, 32
  %v8697 = vpop.permute.xlu0 %8696
  %8698 = vrot.lane.b32.xlu0 %v8543, 32
  %v8699 = vpop.permute.xlu0 %8698
  %8700 = vrot.lane.b32.xlu0 %v8544, 32
  %v8701 = vpop.permute.xlu0 %8700
  %8702 = vrot.lane.b32.xlu0 %v8545, 32
  %v8703 = vpop.permute.xlu0 %8702
  %8704 = vrot.lane.b32.xlu0 %v8546, 32
  %v8705 = vpop.permute.xlu0 %8704
  %8706 = vrot.lane.b32.xlu0 %v8547, 32
  %v8707 = vpop.permute.xlu0 %8706
  %8708 = vrot.lane.b32.xlu0 %v8548, 32
  %v8709 = vpop.permute.xlu0 %8708
  %8710 = vrot.lane.b32.xlu0 %v8549, 32
  %v8711 = vpop.permute.xlu0 %8710
  %8712 = vrot.lane.b32.xlu0 %v8550, 32
  %v8713 = vpop.permute.xlu0 %8712
  %8714 = vrot.lane.b32.xlu0 %v8551, 32
  %v8715 = vpop.permute.xlu0 %8714
  %8716 = vrot.lane.b32.xlu0 %v8552, 32
  %v8717 = vpop.permute.xlu0 %8716
  %8718 = vrot.lane.b32.xlu0 %v8553, 32
  %v8719 = vpop.permute.xlu0 %8718
  %8720 = vrot.lane.b32.xlu0 %v8554, 32
  %v8721 = vpop.permute.xlu0 %8720
  %8722 = vrot.lane.b32.xlu0 %v8555, 32
  %v8723 = vpop.permute.xlu0 %8722
  %8724 = vrot.lane.b32.xlu0 %v8556, 32
  %v8725 = vpop.permute.xlu0 %8724
  %8726 = vrot.lane.b32.xlu0 %v8557, 32
  %v8727 = vpop.permute.xlu0 %8726
  %8728 = vrot.lane.b32.xlu0 %v8558, 32
  %v8729 = vpop.permute.xlu0 %8728
  %8730 = vrot.lane.b32.xlu0 %v8559, 32
  %v8731 = vpop.permute.xlu0 %8730
  %8732 = vrot.lane.b32.xlu0 %v8560, 32
  %v8733 = vpop.permute.xlu0 %8732
  %8734 = vrot.lane.b32.xlu0 %v8561, 32
  %v8735 = vpop.permute.xlu0 %8734
  %8736 = vrot.lane.b32.xlu0 %v8562, 32
  %v8737 = vpop.permute.xlu0 %8736
  %8738 = vrot.lane.b32.xlu0 %v8563, 32
  %v8739 = vpop.permute.xlu0 %8738
  %8740 = vrot.lane.b32.xlu0 %v8564, 32
  %v8741 = vpop.permute.xlu0 %8740
  %8742 = vrot.lane.b32.xlu0 %v8565, 32
  %v8743 = vpop.permute.xlu0 %8742
  %8744 = vrot.lane.b32.xlu0 %v8566, 32
  %v8745 = vpop.permute.xlu0 %8744
  %8746 = vrot.lane.b32.xlu0 %v8567, 32
  %v8747 = vpop.permute.xlu0 %8746
  %8748 = vrot.lane.b32.xlu0 %v8568, 32
  %v8749 = vpop.permute.xlu0 %8748
  %8750 = vrot.lane.b32.xlu0 %v8569, 32
  %v8751 = vpop.permute.xlu0 %8750
  %8752 = vrot.lane.b32.xlu0 %v8570, 32
  %v8753 = vpop.permute.xlu0 %8752
  %8754 = vrot.lane.b32.xlu0 %v8571, 32
  %v8755 = vpop.permute.xlu0 %8754
  %8756 = vrot.lane.b32.xlu0 %v8572, 32
  %v8757 = vpop.permute.xlu0 %8756
  %8758 = vrot.lane.b32.xlu0 %v8573, 32
  %v8759 = vpop.permute.xlu0 %8758
  %8760 = vrot.lane.b32.xlu0 %v8574, 32
  %v8761 = vpop.permute.xlu0 %8760
  %8762 = vrot.lane.b32.xlu0 %v8575, 32
  %v8763 = vpop.permute.xlu0 %8762
  %8764 = vrot.lane.b32.xlu0 %v8576, 32
  %v8765 = vpop.permute.xlu0 %8764
  %8766 = vrot.lane.b32.xlu0 %v8577, 32
  %v8767 = vpop.permute.xlu0 %8766
  %8768 = vrot.lane.b32.xlu0 %v8578, 32
  %v8769 = vpop.permute.xlu0 %8768
  %8770 = vrot.lane.b32.xlu0 %v8579, 32
  %v8771 = vpop.permute.xlu0 %8770
  %v8836 = vmul.f32 %v8452, %v8645
  %v8837 = vmul.f32 %v8453, %v8647
  %v8838 = vmul.f32 %v8454, %v8649
  %v8839 = vmul.f32 %v8455, %v8651
  %v8840 = vmul.f32 %v8456, %v8653
  %v8841 = vmul.f32 %v8457, %v8655
  %v8842 = vmul.f32 %v8458, %v8657
  %v8843 = vmul.f32 %v8459, %v8659
  %v8844 = vmul.f32 %v8460, %v8661
  %v8845 = vmul.f32 %v8461, %v8663
  %v8846 = vmul.f32 %v8462, %v8665
  %v8847 = vmul.f32 %v8463, %v8667
  %v8848 = vmul.f32 %v8464, %v8669
  %v8849 = vmul.f32 %v8465, %v8671
  %v8850 = vmul.f32 %v8466, %v8673
  %v8851 = vmul.f32 %v8467, %v8675
  %v8852 = vmul.f32 %v8468, %v8677
  %v8853 = vmul.f32 %v8469, %v8679
  %v8854 = vmul.f32 %v8470, %v8681
  %v8855 = vmul.f32 %v8471, %v8683
  %v8856 = vmul.f32 %v8472, %v8685
  %v8857 = vmul.f32 %v8473, %v8687
  %v8858 = vmul.f32 %v8474, %v8689
  %v8859 = vmul.f32 %v8475, %v8691
  %v8860 = vmul.f32 %v8476, %v8693
  %v8861 = vmul.f32 %v8477, %v8695
  %v8862 = vmul.f32 %v8478, %v8697
  %v8863 = vmul.f32 %v8479, %v8699
  %v8864 = vmul.f32 %v8480, %v8701
  %v8865 = vmul.f32 %v8481, %v8703
  %v8866 = vmul.f32 %v8482, %v8705
  %v8867 = vmul.f32 %v8483, %v8707
  %v8868 = vmul.f32 %v8484, %v8709
  %v8869 = vmul.f32 %v8485, %v8711
  %v8870 = vmul.f32 %v8486, %v8713
  %v8871 = vmul.f32 %v8487, %v8715
  %v8872 = vmul.f32 %v8488, %v8717
  %v8873 = vmul.f32 %v8489, %v8719
  %v8874 = vmul.f32 %v8490, %v8721
  %v8875 = vmul.f32 %v8491, %v8723
  %v8876 = vmul.f32 %v8492, %v8725
  %v8877 = vmul.f32 %v8493, %v8727
  %v8878 = vmul.f32 %v8494, %v8729
  %v8879 = vmul.f32 %v8495, %v8731
  %v8880 = vmul.f32 %v8496, %v8733
  %v8881 = vmul.f32 %v8497, %v8735
  %v8882 = vmul.f32 %v8498, %v8737
  %v8883 = vmul.f32 %v8499, %v8739
  %v8884 = vmul.f32 %v8500, %v8741
  %v8885 = vmul.f32 %v8501, %v8743
  %v8886 = vmul.f32 %v8502, %v8745
  %v8887 = vmul.f32 %v8503, %v8747
  %v8888 = vmul.f32 %v8504, %v8749
  %v8889 = vmul.f32 %v8505, %v8751
  %v8890 = vmul.f32 %v8506, %v8753
  %v8891 = vmul.f32 %v8507, %v8755
  %v8892 = vmul.f32 %v8508, %v8757
  %v8893 = vmul.f32 %v8509, %v8759
  %v8894 = vmul.f32 %v8510, %v8761
  %v8895 = vmul.f32 %v8511, %v8763
  %v8896 = vmul.f32 %v8512, %v8765
  %v8897 = vmul.f32 %v8513, %v8767
  %v8898 = vmul.f32 %v8514, %v8769
  %v8899 = vmul.f32 %v8515, %v8771
  %8964 = vrot.lane.b32.xlu0 %v8452, 32
  %v8965 = vpop.permute.xlu0 %8964
  %8966 = vrot.lane.b32.xlu0 %v8453, 32
  %v8967 = vpop.permute.xlu0 %8966
  %8968 = vrot.lane.b32.xlu0 %v8454, 32
  %v8969 = vpop.permute.xlu0 %8968
  %8970 = vrot.lane.b32.xlu0 %v8455, 32
  %v8971 = vpop.permute.xlu0 %8970
  %8972 = vrot.lane.b32.xlu0 %v8456, 32
  %v8973 = vpop.permute.xlu0 %8972
  %8974 = vrot.lane.b32.xlu0 %v8457, 32
  %v8975 = vpop.permute.xlu0 %8974
  %8976 = vrot.lane.b32.xlu0 %v8458, 32
  %v8977 = vpop.permute.xlu0 %8976
  %8978 = vrot.lane.b32.xlu0 %v8459, 32
  %v8979 = vpop.permute.xlu0 %8978
  %8980 = vrot.lane.b32.xlu0 %v8460, 32
  %v8981 = vpop.permute.xlu0 %8980
  %8982 = vrot.lane.b32.xlu0 %v8461, 32
  %v8983 = vpop.permute.xlu0 %8982
  %8984 = vrot.lane.b32.xlu0 %v8462, 32
  %v8985 = vpop.permute.xlu0 %8984
  %8986 = vrot.lane.b32.xlu0 %v8463, 32
  %v8987 = vpop.permute.xlu0 %8986
  %8988 = vrot.lane.b32.xlu0 %v8464, 32
  %v8989 = vpop.permute.xlu0 %8988
  %8990 = vrot.lane.b32.xlu0 %v8465, 32
  %v8991 = vpop.permute.xlu0 %8990
  %8992 = vrot.lane.b32.xlu0 %v8466, 32
  %v8993 = vpop.permute.xlu0 %8992
  %8994 = vrot.lane.b32.xlu0 %v8467, 32
  %v8995 = vpop.permute.xlu0 %8994
  %8996 = vrot.lane.b32.xlu0 %v8468, 32
  %v8997 = vpop.permute.xlu0 %8996
  %8998 = vrot.lane.b32.xlu0 %v8469, 32
  %v8999 = vpop.permute.xlu0 %8998
  %9000 = vrot.lane.b32.xlu0 %v8470, 32
  %v9001 = vpop.permute.xlu0 %9000
  %9002 = vrot.lane.b32.xlu0 %v8471, 32
  %v9003 = vpop.permute.xlu0 %9002
  %9004 = vrot.lane.b32.xlu0 %v8472, 32
  %v9005 = vpop.permute.xlu0 %9004
  %9006 = vrot.lane.b32.xlu0 %v8473, 32
  %v9007 = vpop.permute.xlu0 %9006
  %9008 = vrot.lane.b32.xlu0 %v8474, 32
  %v9009 = vpop.permute.xlu0 %9008
  %9010 = vrot.lane.b32.xlu0 %v8475, 32
  %v9011 = vpop.permute.xlu0 %9010
  %9012 = vrot.lane.b32.xlu0 %v8476, 32
  %v9013 = vpop.permute.xlu0 %9012
  %9014 = vrot.lane.b32.xlu0 %v8477, 32
  %v9015 = vpop.permute.xlu0 %9014
  %9016 = vrot.lane.b32.xlu0 %v8478, 32
  %v9017 = vpop.permute.xlu0 %9016
  %9018 = vrot.lane.b32.xlu0 %v8479, 32
  %v9019 = vpop.permute.xlu0 %9018
  %9020 = vrot.lane.b32.xlu0 %v8480, 32
  %v9021 = vpop.permute.xlu0 %9020
  %9022 = vrot.lane.b32.xlu0 %v8481, 32
  %v9023 = vpop.permute.xlu0 %9022
  %9024 = vrot.lane.b32.xlu0 %v8482, 32
  %v9025 = vpop.permute.xlu0 %9024
  %9026 = vrot.lane.b32.xlu0 %v8483, 32
  %v9027 = vpop.permute.xlu0 %9026
  %9028 = vrot.lane.b32.xlu0 %v8484, 32
  %v9029 = vpop.permute.xlu0 %9028
  %9030 = vrot.lane.b32.xlu0 %v8485, 32
  %v9031 = vpop.permute.xlu0 %9030
  %9032 = vrot.lane.b32.xlu0 %v8486, 32
  %v9033 = vpop.permute.xlu0 %9032
  %9034 = vrot.lane.b32.xlu0 %v8487, 32
  %v9035 = vpop.permute.xlu0 %9034
  %9036 = vrot.lane.b32.xlu0 %v8488, 32
  %v9037 = vpop.permute.xlu0 %9036
  %9038 = vrot.lane.b32.xlu0 %v8489, 32
  %v9039 = vpop.permute.xlu0 %9038
  %9040 = vrot.lane.b32.xlu0 %v8490, 32
  %v9041 = vpop.permute.xlu0 %9040
  %9042 = vrot.lane.b32.xlu0 %v8491, 32
  %v9043 = vpop.permute.xlu0 %9042
  %9044 = vrot.lane.b32.xlu0 %v8492, 32
  %v9045 = vpop.permute.xlu0 %9044
  %9046 = vrot.lane.b32.xlu0 %v8493, 32
  %v9047 = vpop.permute.xlu0 %9046
  %9048 = vrot.lane.b32.xlu0 %v8494, 32
  %v9049 = vpop.permute.xlu0 %9048
  %9050 = vrot.lane.b32.xlu0 %v8495, 32
  %v9051 = vpop.permute.xlu0 %9050
  %9052 = vrot.lane.b32.xlu0 %v8496, 32
  %v9053 = vpop.permute.xlu0 %9052
  %9054 = vrot.lane.b32.xlu0 %v8497, 32
  %v9055 = vpop.permute.xlu0 %9054
  %9056 = vrot.lane.b32.xlu0 %v8498, 32
  %v9057 = vpop.permute.xlu0 %9056
  %9058 = vrot.lane.b32.xlu0 %v8499, 32
  %v9059 = vpop.permute.xlu0 %9058
  %9060 = vrot.lane.b32.xlu0 %v8500, 32
  %v9061 = vpop.permute.xlu0 %9060
  %9062 = vrot.lane.b32.xlu0 %v8501, 32
  %v9063 = vpop.permute.xlu0 %9062
  %9064 = vrot.lane.b32.xlu0 %v8502, 32
  %v9065 = vpop.permute.xlu0 %9064
  %9066 = vrot.lane.b32.xlu0 %v8503, 32
  %v9067 = vpop.permute.xlu0 %9066
  %9068 = vrot.lane.b32.xlu0 %v8504, 32
  %v9069 = vpop.permute.xlu0 %9068
  %9070 = vrot.lane.b32.xlu0 %v8505, 32
  %v9071 = vpop.permute.xlu0 %9070
  %9072 = vrot.lane.b32.xlu0 %v8506, 32
  %v9073 = vpop.permute.xlu0 %9072
  %9074 = vrot.lane.b32.xlu0 %v8507, 32
  %v9075 = vpop.permute.xlu0 %9074
  %9076 = vrot.lane.b32.xlu0 %v8508, 32
  %v9077 = vpop.permute.xlu0 %9076
  %9078 = vrot.lane.b32.xlu0 %v8509, 32
  %v9079 = vpop.permute.xlu0 %9078
  %9080 = vrot.lane.b32.xlu0 %v8510, 32
  %v9081 = vpop.permute.xlu0 %9080
  %9082 = vrot.lane.b32.xlu0 %v8511, 32
  %v9083 = vpop.permute.xlu0 %9082
  %9084 = vrot.lane.b32.xlu0 %v8512, 32
  %v9085 = vpop.permute.xlu0 %9084
  %9086 = vrot.lane.b32.xlu0 %v8513, 32
  %v9087 = vpop.permute.xlu0 %9086
  %9088 = vrot.lane.b32.xlu0 %v8514, 32
  %v9089 = vpop.permute.xlu0 %9088
  %9090 = vrot.lane.b32.xlu0 %v8515, 32
  %v9091 = vpop.permute.xlu0 %9090
  %v9156 = vmul.f32 %v8452, %v8965
  %v9157 = vmul.f32 %v8453, %v8967
  %v9158 = vmul.f32 %v8454, %v8969
  %v9159 = vmul.f32 %v8455, %v8971
  %v9160 = vmul.f32 %v8456, %v8973
  %v9161 = vmul.f32 %v8457, %v8975
  %v9162 = vmul.f32 %v8458, %v8977
  %v9163 = vmul.f32 %v8459, %v8979
  %v9164 = vmul.f32 %v8460, %v8981
  %v9165 = vmul.f32 %v8461, %v8983
  %v9166 = vmul.f32 %v8462, %v8985
  %v9167 = vmul.f32 %v8463, %v8987
  %v9168 = vmul.f32 %v8464, %v8989
  %v9169 = vmul.f32 %v8465, %v8991
  %v9170 = vmul.f32 %v8466, %v8993
  %v9171 = vmul.f32 %v8467, %v8995
  %v9172 = vmul.f32 %v8468, %v8997
  %v9173 = vmul.f32 %v8469, %v8999
  %v9174 = vmul.f32 %v8470, %v9001
  %v9175 = vmul.f32 %v8471, %v9003
  %v9176 = vmul.f32 %v8472, %v9005
  %v9177 = vmul.f32 %v8473, %v9007
  %v9178 = vmul.f32 %v8474, %v9009
  %v9179 = vmul.f32 %v8475, %v9011
  %v9180 = vmul.f32 %v8476, %v9013
  %v9181 = vmul.f32 %v8477, %v9015
  %v9182 = vmul.f32 %v8478, %v9017
  %v9183 = vmul.f32 %v8479, %v9019
  %v9184 = vmul.f32 %v8480, %v9021
  %v9185 = vmul.f32 %v8481, %v9023
  %v9186 = vmul.f32 %v8482, %v9025
  %v9187 = vmul.f32 %v8483, %v9027
  %v9188 = vmul.f32 %v8484, %v9029
  %v9189 = vmul.f32 %v8485, %v9031
  %v9190 = vmul.f32 %v8486, %v9033
  %v9191 = vmul.f32 %v8487, %v9035
  %v9192 = vmul.f32 %v8488, %v9037
  %v9193 = vmul.f32 %v8489, %v9039
  %v9194 = vmul.f32 %v8490, %v9041
  %v9195 = vmul.f32 %v8491, %v9043
  %v9196 = vmul.f32 %v8492, %v9045
  %v9197 = vmul.f32 %v8493, %v9047
  %v9198 = vmul.f32 %v8494, %v9049
  %v9199 = vmul.f32 %v8495, %v9051
  %v9200 = vmul.f32 %v8496, %v9053
  %v9201 = vmul.f32 %v8497, %v9055
  %v9202 = vmul.f32 %v8498, %v9057
  %v9203 = vmul.f32 %v8499, %v9059
  %v9204 = vmul.f32 %v8500, %v9061
  %v9205 = vmul.f32 %v8501, %v9063
  %v9206 = vmul.f32 %v8502, %v9065
  %v9207 = vmul.f32 %v8503, %v9067
  %v9208 = vmul.f32 %v8504, %v9069
  %v9209 = vmul.f32 %v8505, %v9071
  %v9210 = vmul.f32 %v8506, %v9073
  %v9211 = vmul.f32 %v8507, %v9075
  %v9212 = vmul.f32 %v8508, %v9077
  %v9213 = vmul.f32 %v8509, %v9079
  %v9214 = vmul.f32 %v8510, %v9081
  %v9215 = vmul.f32 %v8511, %v9083
  %v9216 = vmul.f32 %v8512, %v9085
  %v9217 = vmul.f32 %v8513, %v9087
  %v9218 = vmul.f32 %v8514, %v9089
  %v9219 = vmul.f32 %v8515, %v9091
  %9284 = vrot.lane.b32.xlu0 %v9156, 32
  %v9285 = vpop.permute.xlu0 %9284
  %9286 = vrot.lane.b32.xlu0 %v9157, 32
  %v9287 = vpop.permute.xlu0 %9286
  %9288 = vrot.lane.b32.xlu0 %v9158, 32
  %v9289 = vpop.permute.xlu0 %9288
  %9290 = vrot.lane.b32.xlu0 %v9159, 32
  %v9291 = vpop.permute.xlu0 %9290
  %9292 = vrot.lane.b32.xlu0 %v9160, 32
  %v9293 = vpop.permute.xlu0 %9292
  %9294 = vrot.lane.b32.xlu0 %v9161, 32
  %v9295 = vpop.permute.xlu0 %9294
  %9296 = vrot.lane.b32.xlu0 %v9162, 32
  %v9297 = vpop.permute.xlu0 %9296
  %9298 = vrot.lane.b32.xlu0 %v9163, 32
  %v9299 = vpop.permute.xlu0 %9298
  %9300 = vrot.lane.b32.xlu0 %v9164, 32
  %v9301 = vpop.permute.xlu0 %9300
  %9302 = vrot.lane.b32.xlu0 %v9165, 32
  %v9303 = vpop.permute.xlu0 %9302
  %9304 = vrot.lane.b32.xlu0 %v9166, 32
  %v9305 = vpop.permute.xlu0 %9304
  %9306 = vrot.lane.b32.xlu0 %v9167, 32
  %v9307 = vpop.permute.xlu0 %9306
  %9308 = vrot.lane.b32.xlu0 %v9168, 32
  %v9309 = vpop.permute.xlu0 %9308
  %9310 = vrot.lane.b32.xlu0 %v9169, 32
  %v9311 = vpop.permute.xlu0 %9310
  %9312 = vrot.lane.b32.xlu0 %v9170, 32
  %v9313 = vpop.permute.xlu0 %9312
  %9314 = vrot.lane.b32.xlu0 %v9171, 32
  %v9315 = vpop.permute.xlu0 %9314
  %9316 = vrot.lane.b32.xlu0 %v9172, 32
  %v9317 = vpop.permute.xlu0 %9316
  %9318 = vrot.lane.b32.xlu0 %v9173, 32
  %v9319 = vpop.permute.xlu0 %9318
  %9320 = vrot.lane.b32.xlu0 %v9174, 32
  %v9321 = vpop.permute.xlu0 %9320
  %9322 = vrot.lane.b32.xlu0 %v9175, 32
  %v9323 = vpop.permute.xlu0 %9322
  %9324 = vrot.lane.b32.xlu0 %v9176, 32
  %v9325 = vpop.permute.xlu0 %9324
  %9326 = vrot.lane.b32.xlu0 %v9177, 32
  %v9327 = vpop.permute.xlu0 %9326
  %9328 = vrot.lane.b32.xlu0 %v9178, 32
  %v9329 = vpop.permute.xlu0 %9328
  %9330 = vrot.lane.b32.xlu0 %v9179, 32
  %v9331 = vpop.permute.xlu0 %9330
  %9332 = vrot.lane.b32.xlu0 %v9180, 32
  %v9333 = vpop.permute.xlu0 %9332
  %9334 = vrot.lane.b32.xlu0 %v9181, 32
  %v9335 = vpop.permute.xlu0 %9334
  %9336 = vrot.lane.b32.xlu0 %v9182, 32
  %v9337 = vpop.permute.xlu0 %9336
  %9338 = vrot.lane.b32.xlu0 %v9183, 32
  %v9339 = vpop.permute.xlu0 %9338
  %9340 = vrot.lane.b32.xlu0 %v9184, 32
  %v9341 = vpop.permute.xlu0 %9340
  %9342 = vrot.lane.b32.xlu0 %v9185, 32
  %v9343 = vpop.permute.xlu0 %9342
  %9344 = vrot.lane.b32.xlu0 %v9186, 32
  %v9345 = vpop.permute.xlu0 %9344
  %9346 = vrot.lane.b32.xlu0 %v9187, 32
  %v9347 = vpop.permute.xlu0 %9346
  %9348 = vrot.lane.b32.xlu0 %v9188, 32
  %v9349 = vpop.permute.xlu0 %9348
  %9350 = vrot.lane.b32.xlu0 %v9189, 32
  %v9351 = vpop.permute.xlu0 %9350
  %9352 = vrot.lane.b32.xlu0 %v9190, 32
  %v9353 = vpop.permute.xlu0 %9352
  %9354 = vrot.lane.b32.xlu0 %v9191, 32
  %v9355 = vpop.permute.xlu0 %9354
  %9356 = vrot.lane.b32.xlu0 %v9192, 32
  %v9357 = vpop.permute.xlu0 %9356
  %9358 = vrot.lane.b32.xlu0 %v9193, 32
  %v9359 = vpop.permute.xlu0 %9358
  %9360 = vrot.lane.b32.xlu0 %v9194, 32
  %v9361 = vpop.permute.xlu0 %9360
  %9362 = vrot.lane.b32.xlu0 %v9195, 32
  %v9363 = vpop.permute.xlu0 %9362
  %9364 = vrot.lane.b32.xlu0 %v9196, 32
  %v9365 = vpop.permute.xlu0 %9364
  %9366 = vrot.lane.b32.xlu0 %v9197, 32
  %v9367 = vpop.permute.xlu0 %9366
  %9368 = vrot.lane.b32.xlu0 %v9198, 32
  %v9369 = vpop.permute.xlu0 %9368
  %9370 = vrot.lane.b32.xlu0 %v9199, 32
  %v9371 = vpop.permute.xlu0 %9370
  %9372 = vrot.lane.b32.xlu0 %v9200, 32
  %v9373 = vpop.permute.xlu0 %9372
  %9374 = vrot.lane.b32.xlu0 %v9201, 32
  %v9375 = vpop.permute.xlu0 %9374
  %9376 = vrot.lane.b32.xlu0 %v9202, 32
  %v9377 = vpop.permute.xlu0 %9376
  %9378 = vrot.lane.b32.xlu0 %v9203, 32
  %v9379 = vpop.permute.xlu0 %9378
  %9380 = vrot.lane.b32.xlu0 %v9204, 32
  %v9381 = vpop.permute.xlu0 %9380
  %9382 = vrot.lane.b32.xlu0 %v9205, 32
  %v9383 = vpop.permute.xlu0 %9382
  %9384 = vrot.lane.b32.xlu0 %v9206, 32
  %v9385 = vpop.permute.xlu0 %9384
  %9386 = vrot.lane.b32.xlu0 %v9207, 32
  %v9387 = vpop.permute.xlu0 %9386
  %9388 = vrot.lane.b32.xlu0 %v9208, 32
  %v9389 = vpop.permute.xlu0 %9388
  %9390 = vrot.lane.b32.xlu0 %v9209, 32
  %v9391 = vpop.permute.xlu0 %9390
  %9392 = vrot.lane.b32.xlu0 %v9210, 32
  %v9393 = vpop.permute.xlu0 %9392
  %9394 = vrot.lane.b32.xlu0 %v9211, 32
  %v9395 = vpop.permute.xlu0 %9394
  %9396 = vrot.lane.b32.xlu0 %v9212, 32
  %v9397 = vpop.permute.xlu0 %9396
  %9398 = vrot.lane.b32.xlu0 %v9213, 32
  %v9399 = vpop.permute.xlu0 %9398
  %9400 = vrot.lane.b32.xlu0 %v9214, 32
  %v9401 = vpop.permute.xlu0 %9400
  %9402 = vrot.lane.b32.xlu0 %v9215, 32
  %v9403 = vpop.permute.xlu0 %9402
  %9404 = vrot.lane.b32.xlu0 %v9216, 32
  %v9405 = vpop.permute.xlu0 %9404
  %9406 = vrot.lane.b32.xlu0 %v9217, 32
  %v9407 = vpop.permute.xlu0 %9406
  %9408 = vrot.lane.b32.xlu0 %v9218, 32
  %v9409 = vpop.permute.xlu0 %9408
  %9410 = vrot.lane.b32.xlu0 %v9219, 32
  %v9411 = vpop.permute.xlu0 %9410
  %v9476 = vadd.f32 %v8836, %v9285
  %v9477 = vadd.f32 %v8837, %v9287
  %v9478 = vadd.f32 %v8838, %v9289
  %v9479 = vadd.f32 %v8839, %v9291
  %v9480 = vadd.f32 %v8840, %v9293
  %v9481 = vadd.f32 %v8841, %v9295
  %v9482 = vadd.f32 %v8842, %v9297
  %v9483 = vadd.f32 %v8843, %v9299
  %v9484 = vadd.f32 %v8844, %v9301
  %v9485 = vadd.f32 %v8845, %v9303
  %v9486 = vadd.f32 %v8846, %v9305
  %v9487 = vadd.f32 %v8847, %v9307
  %v9488 = vadd.f32 %v8848, %v9309
  %v9489 = vadd.f32 %v8849, %v9311
  %v9490 = vadd.f32 %v8850, %v9313
  %v9491 = vadd.f32 %v8851, %v9315
  %v9492 = vadd.f32 %v8852, %v9317
  %v9493 = vadd.f32 %v8853, %v9319
  %v9494 = vadd.f32 %v8854, %v9321
  %v9495 = vadd.f32 %v8855, %v9323
  %v9496 = vadd.f32 %v8856, %v9325
  %v9497 = vadd.f32 %v8857, %v9327
  %v9498 = vadd.f32 %v8858, %v9329
  %v9499 = vadd.f32 %v8859, %v9331
  %v9500 = vadd.f32 %v8860, %v9333
  %v9501 = vadd.f32 %v8861, %v9335
  %v9502 = vadd.f32 %v8862, %v9337
  %v9503 = vadd.f32 %v8863, %v9339
  %v9504 = vadd.f32 %v8864, %v9341
  %v9505 = vadd.f32 %v8865, %v9343
  %v9506 = vadd.f32 %v8866, %v9345
  %v9507 = vadd.f32 %v8867, %v9347
  %v9508 = vadd.f32 %v8868, %v9349
  %v9509 = vadd.f32 %v8869, %v9351
  %v9510 = vadd.f32 %v8870, %v9353
  %v9511 = vadd.f32 %v8871, %v9355
  %v9512 = vadd.f32 %v8872, %v9357
  %v9513 = vadd.f32 %v8873, %v9359
  %v9514 = vadd.f32 %v8874, %v9361
  %v9515 = vadd.f32 %v8875, %v9363
  %v9516 = vadd.f32 %v8876, %v9365
  %v9517 = vadd.f32 %v8877, %v9367
  %v9518 = vadd.f32 %v8878, %v9369
  %v9519 = vadd.f32 %v8879, %v9371
  %v9520 = vadd.f32 %v8880, %v9373
  %v9521 = vadd.f32 %v8881, %v9375
  %v9522 = vadd.f32 %v8882, %v9377
  %v9523 = vadd.f32 %v8883, %v9379
  %v9524 = vadd.f32 %v8884, %v9381
  %v9525 = vadd.f32 %v8885, %v9383
  %v9526 = vadd.f32 %v8886, %v9385
  %v9527 = vadd.f32 %v8887, %v9387
  %v9528 = vadd.f32 %v8888, %v9389
  %v9529 = vadd.f32 %v8889, %v9391
  %v9530 = vadd.f32 %v8890, %v9393
  %v9531 = vadd.f32 %v8891, %v9395
  %v9532 = vadd.f32 %v8892, %v9397
  %v9533 = vadd.f32 %v8893, %v9399
  %v9534 = vadd.f32 %v8894, %v9401
  %v9535 = vadd.f32 %v8895, %v9403
  %v9536 = vadd.f32 %v8896, %v9405
  %v9537 = vadd.f32 %v8897, %v9407
  %v9538 = vadd.f32 %v8898, %v9409
  %v9539 = vadd.f32 %v8899, %v9411
  %v9540 = vtanh.pop %v9476
  %v9541 = vtanh.pop %v9477
  %v9542 = vtanh.pop %v9478
  %v9543 = vtanh.pop %v9479
  %v9544 = vtanh.pop %v9480
  %v9545 = vtanh.pop %v9481
  %v9546 = vtanh.pop %v9482
  %v9547 = vtanh.pop %v9483
  %v9548 = vtanh.pop %v9484
  %v9549 = vtanh.pop %v9485
  %v9550 = vtanh.pop %v9486
  %v9551 = vtanh.pop %v9487
  %v9552 = vtanh.pop %v9488
  %v9553 = vtanh.pop %v9489
  %v9554 = vtanh.pop %v9490
  %v9555 = vtanh.pop %v9491
  %v9556 = vtanh.pop %v9492
  %v9557 = vtanh.pop %v9493
  %v9558 = vtanh.pop %v9494
  %v9559 = vtanh.pop %v9495
  %v9560 = vtanh.pop %v9496
  %v9561 = vtanh.pop %v9497
  %v9562 = vtanh.pop %v9498
  %v9563 = vtanh.pop %v9499
  %v9564 = vtanh.pop %v9500
  %v9565 = vtanh.pop %v9501
  %v9566 = vtanh.pop %v9502
  %v9567 = vtanh.pop %v9503
  %v9568 = vtanh.pop %v9504
  %v9569 = vtanh.pop %v9505
  %v9570 = vtanh.pop %v9506
  %v9571 = vtanh.pop %v9507
  %v9572 = vtanh.pop %v9508
  %v9573 = vtanh.pop %v9509
  %v9574 = vtanh.pop %v9510
  %v9575 = vtanh.pop %v9511
  %v9576 = vtanh.pop %v9512
  %v9577 = vtanh.pop %v9513
  %v9578 = vtanh.pop %v9514
  %v9579 = vtanh.pop %v9515
  %v9580 = vtanh.pop %v9516
  %v9581 = vtanh.pop %v9517
  %v9582 = vtanh.pop %v9518
  %v9583 = vtanh.pop %v9519
  %v9584 = vtanh.pop %v9520
  %v9585 = vtanh.pop %v9521
  %v9586 = vtanh.pop %v9522
  %v9587 = vtanh.pop %v9523
  %v9588 = vtanh.pop %v9524
  %v9589 = vtanh.pop %v9525
  %v9590 = vtanh.pop %v9526
  %v9591 = vtanh.pop %v9527
  %v9592 = vtanh.pop %v9528
  %v9593 = vtanh.pop %v9529
  %v9594 = vtanh.pop %v9530
  %v9595 = vtanh.pop %v9531
  %v9596 = vtanh.pop %v9532
  %v9597 = vtanh.pop %v9533
  %v9598 = vtanh.pop %v9534
  %v9599 = vtanh.pop %v9535
  %v9600 = vtanh.pop %v9536
  %v9601 = vtanh.pop %v9537
  %v9602 = vtanh.pop %v9538
  %v9603 = vtanh.pop %v9539
  %9668 = vrot.lane.b32.xlu0 %v9540, 32
  %v9669 = vpop.permute.xlu0 %9668
  %9670 = vrot.lane.b32.xlu0 %v9541, 32
  %v9671 = vpop.permute.xlu0 %9670
  %9672 = vrot.lane.b32.xlu0 %v9542, 32
  %v9673 = vpop.permute.xlu0 %9672
  %9674 = vrot.lane.b32.xlu0 %v9543, 32
  %v9675 = vpop.permute.xlu0 %9674
  %9676 = vrot.lane.b32.xlu0 %v9544, 32
  %v9677 = vpop.permute.xlu0 %9676
  %9678 = vrot.lane.b32.xlu0 %v9545, 32
  %v9679 = vpop.permute.xlu0 %9678
  %9680 = vrot.lane.b32.xlu0 %v9546, 32
  %v9681 = vpop.permute.xlu0 %9680
  %9682 = vrot.lane.b32.xlu0 %v9547, 32
  %v9683 = vpop.permute.xlu0 %9682
  %9684 = vrot.lane.b32.xlu0 %v9548, 32
  %v9685 = vpop.permute.xlu0 %9684
  %9686 = vrot.lane.b32.xlu0 %v9549, 32
  %v9687 = vpop.permute.xlu0 %9686
  %9688 = vrot.lane.b32.xlu0 %v9550, 32
  %v9689 = vpop.permute.xlu0 %9688
  %9690 = vrot.lane.b32.xlu0 %v9551, 32
  %v9691 = vpop.permute.xlu0 %9690
  %9692 = vrot.lane.b32.xlu0 %v9552, 32
  %v9693 = vpop.permute.xlu0 %9692
  %9694 = vrot.lane.b32.xlu0 %v9553, 32
  %v9695 = vpop.permute.xlu0 %9694
  %9696 = vrot.lane.b32.xlu0 %v9554, 32
  %v9697 = vpop.permute.xlu0 %9696
  %9698 = vrot.lane.b32.xlu0 %v9555, 32
  %v9699 = vpop.permute.xlu0 %9698
  %9700 = vrot.lane.b32.xlu0 %v9556, 32
  %v9701 = vpop.permute.xlu0 %9700
  %9702 = vrot.lane.b32.xlu0 %v9557, 32
  %v9703 = vpop.permute.xlu0 %9702
  %9704 = vrot.lane.b32.xlu0 %v9558, 32
  %v9705 = vpop.permute.xlu0 %9704
  %9706 = vrot.lane.b32.xlu0 %v9559, 32
  %v9707 = vpop.permute.xlu0 %9706
  %9708 = vrot.lane.b32.xlu0 %v9560, 32
  %v9709 = vpop.permute.xlu0 %9708
  %9710 = vrot.lane.b32.xlu0 %v9561, 32
  %v9711 = vpop.permute.xlu0 %9710
  %9712 = vrot.lane.b32.xlu0 %v9562, 32
  %v9713 = vpop.permute.xlu0 %9712
  %9714 = vrot.lane.b32.xlu0 %v9563, 32
  %v9715 = vpop.permute.xlu0 %9714
  %9716 = vrot.lane.b32.xlu0 %v9564, 32
  %v9717 = vpop.permute.xlu0 %9716
  %9718 = vrot.lane.b32.xlu0 %v9565, 32
  %v9719 = vpop.permute.xlu0 %9718
  %9720 = vrot.lane.b32.xlu0 %v9566, 32
  %v9721 = vpop.permute.xlu0 %9720
  %9722 = vrot.lane.b32.xlu0 %v9567, 32
  %v9723 = vpop.permute.xlu0 %9722
  %9724 = vrot.lane.b32.xlu0 %v9568, 32
  %v9725 = vpop.permute.xlu0 %9724
  %9726 = vrot.lane.b32.xlu0 %v9569, 32
  %v9727 = vpop.permute.xlu0 %9726
  %9728 = vrot.lane.b32.xlu0 %v9570, 32
  %v9729 = vpop.permute.xlu0 %9728
  %9730 = vrot.lane.b32.xlu0 %v9571, 32
  %v9731 = vpop.permute.xlu0 %9730
  %9732 = vrot.lane.b32.xlu0 %v9572, 32
  %v9733 = vpop.permute.xlu0 %9732
  %9734 = vrot.lane.b32.xlu0 %v9573, 32
  %v9735 = vpop.permute.xlu0 %9734
  %9736 = vrot.lane.b32.xlu0 %v9574, 32
  %v9737 = vpop.permute.xlu0 %9736
  %9738 = vrot.lane.b32.xlu0 %v9575, 32
  %v9739 = vpop.permute.xlu0 %9738
  %9740 = vrot.lane.b32.xlu0 %v9576, 32
  %v9741 = vpop.permute.xlu0 %9740
  %9742 = vrot.lane.b32.xlu0 %v9577, 32
  %v9743 = vpop.permute.xlu0 %9742
  %9744 = vrot.lane.b32.xlu0 %v9578, 32
  %v9745 = vpop.permute.xlu0 %9744
  %9746 = vrot.lane.b32.xlu0 %v9579, 32
  %v9747 = vpop.permute.xlu0 %9746
  %9748 = vrot.lane.b32.xlu0 %v9580, 32
  %v9749 = vpop.permute.xlu0 %9748
  %9750 = vrot.lane.b32.xlu0 %v9581, 32
  %v9751 = vpop.permute.xlu0 %9750
  %9752 = vrot.lane.b32.xlu0 %v9582, 32
  %v9753 = vpop.permute.xlu0 %9752
  %9754 = vrot.lane.b32.xlu0 %v9583, 32
  %v9755 = vpop.permute.xlu0 %9754
  %9756 = vrot.lane.b32.xlu0 %v9584, 32
  %v9757 = vpop.permute.xlu0 %9756
  %9758 = vrot.lane.b32.xlu0 %v9585, 32
  %v9759 = vpop.permute.xlu0 %9758
  %9760 = vrot.lane.b32.xlu0 %v9586, 32
  %v9761 = vpop.permute.xlu0 %9760
  %9762 = vrot.lane.b32.xlu0 %v9587, 32
  %v9763 = vpop.permute.xlu0 %9762
  %9764 = vrot.lane.b32.xlu0 %v9588, 32
  %v9765 = vpop.permute.xlu0 %9764
  %9766 = vrot.lane.b32.xlu0 %v9589, 32
  %v9767 = vpop.permute.xlu0 %9766
  %9768 = vrot.lane.b32.xlu0 %v9590, 32
  %v9769 = vpop.permute.xlu0 %9768
  %9770 = vrot.lane.b32.xlu0 %v9591, 32
  %v9771 = vpop.permute.xlu0 %9770
  %9772 = vrot.lane.b32.xlu0 %v9592, 32
  %v9773 = vpop.permute.xlu0 %9772
  %9774 = vrot.lane.b32.xlu0 %v9593, 32
  %v9775 = vpop.permute.xlu0 %9774
  %9776 = vrot.lane.b32.xlu0 %v9594, 32
  %v9777 = vpop.permute.xlu0 %9776
  %9778 = vrot.lane.b32.xlu0 %v9595, 32
  %v9779 = vpop.permute.xlu0 %9778
  %9780 = vrot.lane.b32.xlu0 %v9596, 32
  %v9781 = vpop.permute.xlu0 %9780
  %9782 = vrot.lane.b32.xlu0 %v9597, 32
  %v9783 = vpop.permute.xlu0 %9782
  %9784 = vrot.lane.b32.xlu0 %v9598, 32
  %v9785 = vpop.permute.xlu0 %9784
  %9786 = vrot.lane.b32.xlu0 %v9599, 32
  %v9787 = vpop.permute.xlu0 %9786
  %9788 = vrot.lane.b32.xlu0 %v9600, 32
  %v9789 = vpop.permute.xlu0 %9788
  %9790 = vrot.lane.b32.xlu0 %v9601, 32
  %v9791 = vpop.permute.xlu0 %9790
  %9792 = vrot.lane.b32.xlu0 %v9602, 32
  %v9793 = vpop.permute.xlu0 %9792
  %9794 = vrot.lane.b32.xlu0 %v9603, 32
  %v9795 = vpop.permute.xlu0 %9794
  %v9860 = vmul.f32 %v8452, %v9669
  %v9861 = vmul.f32 %v8453, %v9671
  %v9862 = vmul.f32 %v8454, %v9673
  %v9863 = vmul.f32 %v8455, %v9675
  %v9864 = vmul.f32 %v8456, %v9677
  %v9865 = vmul.f32 %v8457, %v9679
  %v9866 = vmul.f32 %v8458, %v9681
  %v9867 = vmul.f32 %v8459, %v9683
  %v9868 = vmul.f32 %v8460, %v9685
  %v9869 = vmul.f32 %v8461, %v9687
  %v9870 = vmul.f32 %v8462, %v9689
  %v9871 = vmul.f32 %v8463, %v9691
  %v9872 = vmul.f32 %v8464, %v9693
  %v9873 = vmul.f32 %v8465, %v9695
  %v9874 = vmul.f32 %v8466, %v9697
  %v9875 = vmul.f32 %v8467, %v9699
  %v9876 = vmul.f32 %v8468, %v9701
  %v9877 = vmul.f32 %v8469, %v9703
  %v9878 = vmul.f32 %v8470, %v9705
  %v9879 = vmul.f32 %v8471, %v9707
  %v9880 = vmul.f32 %v8472, %v9709
  %v9881 = vmul.f32 %v8473, %v9711
  %v9882 = vmul.f32 %v8474, %v9713
  %v9883 = vmul.f32 %v8475, %v9715
  %v9884 = vmul.f32 %v8476, %v9717
  %v9885 = vmul.f32 %v8477, %v9719
  %v9886 = vmul.f32 %v8478, %v9721
  %v9887 = vmul.f32 %v8479, %v9723
  %v9888 = vmul.f32 %v8480, %v9725
  %v9889 = vmul.f32 %v8481, %v9727
  %v9890 = vmul.f32 %v8482, %v9729
  %v9891 = vmul.f32 %v8483, %v9731
  %v9892 = vmul.f32 %v8484, %v9733
  %v9893 = vmul.f32 %v8485, %v9735
  %v9894 = vmul.f32 %v8486, %v9737
  %v9895 = vmul.f32 %v8487, %v9739
  %v9896 = vmul.f32 %v8488, %v9741
  %v9897 = vmul.f32 %v8489, %v9743
  %v9898 = vmul.f32 %v8490, %v9745
  %v9899 = vmul.f32 %v8491, %v9747
  %v9900 = vmul.f32 %v8492, %v9749
  %v9901 = vmul.f32 %v8493, %v9751
  %v9902 = vmul.f32 %v8494, %v9753
  %v9903 = vmul.f32 %v8495, %v9755
  %v9904 = vmul.f32 %v8496, %v9757
  %v9905 = vmul.f32 %v8497, %v9759
  %v9906 = vmul.f32 %v8498, %v9761
  %v9907 = vmul.f32 %v8499, %v9763
  %v9908 = vmul.f32 %v8500, %v9765
  %v9909 = vmul.f32 %v8501, %v9767
  %v9910 = vmul.f32 %v8502, %v9769
  %v9911 = vmul.f32 %v8503, %v9771
  %v9912 = vmul.f32 %v8504, %v9773
  %v9913 = vmul.f32 %v8505, %v9775
  %v9914 = vmul.f32 %v8506, %v9777
  %v9915 = vmul.f32 %v8507, %v9779
  %v9916 = vmul.f32 %v8508, %v9781
  %v9917 = vmul.f32 %v8509, %v9783
  %v9918 = vmul.f32 %v8510, %v9785
  %v9919 = vmul.f32 %v8511, %v9787
  %v9920 = vmul.f32 %v8512, %v9789
  %v9921 = vmul.f32 %v8513, %v9791
  %v9922 = vmul.f32 %v8514, %v9793
  %v9923 = vmul.f32 %v8515, %v9795
  %9988 = vrot.lane.b32.xlu0 %v9476, 96
  %v9989 = vpop.permute.xlu0 %9988
  %9990 = vrot.lane.b32.xlu0 %v9477, 96
  %v9991 = vpop.permute.xlu0 %9990
  %9992 = vrot.lane.b32.xlu0 %v9478, 96
  %v9993 = vpop.permute.xlu0 %9992
  %9994 = vrot.lane.b32.xlu0 %v9479, 96
  %v9995 = vpop.permute.xlu0 %9994
  %9996 = vrot.lane.b32.xlu0 %v9480, 96
  %v9997 = vpop.permute.xlu0 %9996
  %9998 = vrot.lane.b32.xlu0 %v9481, 96
  %v9999 = vpop.permute.xlu0 %9998
  %10000 = vrot.lane.b32.xlu0 %v9482, 96
  %v10001 = vpop.permute.xlu0 %10000
  %10002 = vrot.lane.b32.xlu0 %v9483, 96
  %v10003 = vpop.permute.xlu0 %10002
  %10004 = vrot.lane.b32.xlu0 %v9484, 96
  %v10005 = vpop.permute.xlu0 %10004
  %10006 = vrot.lane.b32.xlu0 %v9485, 96
  %v10007 = vpop.permute.xlu0 %10006
  %10008 = vrot.lane.b32.xlu0 %v9486, 96
  %v10009 = vpop.permute.xlu0 %10008
  %10010 = vrot.lane.b32.xlu0 %v9487, 96
  %v10011 = vpop.permute.xlu0 %10010
  %10012 = vrot.lane.b32.xlu0 %v9488, 96
  %v10013 = vpop.permute.xlu0 %10012
  %10014 = vrot.lane.b32.xlu0 %v9489, 96
  %v10015 = vpop.permute.xlu0 %10014
  %10016 = vrot.lane.b32.xlu0 %v9490, 96
  %v10017 = vpop.permute.xlu0 %10016
  %10018 = vrot.lane.b32.xlu0 %v9491, 96
  %v10019 = vpop.permute.xlu0 %10018
  %10020 = vrot.lane.b32.xlu0 %v9492, 96
  %v10021 = vpop.permute.xlu0 %10020
  %10022 = vrot.lane.b32.xlu0 %v9493, 96
  %v10023 = vpop.permute.xlu0 %10022
  %10024 = vrot.lane.b32.xlu0 %v9494, 96
  %v10025 = vpop.permute.xlu0 %10024
  %10026 = vrot.lane.b32.xlu0 %v9495, 96
  %v10027 = vpop.permute.xlu0 %10026
  %10028 = vrot.lane.b32.xlu0 %v9496, 96
  %v10029 = vpop.permute.xlu0 %10028
  %10030 = vrot.lane.b32.xlu0 %v9497, 96
  %v10031 = vpop.permute.xlu0 %10030
  %10032 = vrot.lane.b32.xlu0 %v9498, 96
  %v10033 = vpop.permute.xlu0 %10032
  %10034 = vrot.lane.b32.xlu0 %v9499, 96
  %v10035 = vpop.permute.xlu0 %10034
  %10036 = vrot.lane.b32.xlu0 %v9500, 96
  %v10037 = vpop.permute.xlu0 %10036
  %10038 = vrot.lane.b32.xlu0 %v9501, 96
  %v10039 = vpop.permute.xlu0 %10038
  %10040 = vrot.lane.b32.xlu0 %v9502, 96
  %v10041 = vpop.permute.xlu0 %10040
  %10042 = vrot.lane.b32.xlu0 %v9503, 96
  %v10043 = vpop.permute.xlu0 %10042
  %10044 = vrot.lane.b32.xlu0 %v9504, 96
  %v10045 = vpop.permute.xlu0 %10044
  %10046 = vrot.lane.b32.xlu0 %v9505, 96
  %v10047 = vpop.permute.xlu0 %10046
  %10048 = vrot.lane.b32.xlu0 %v9506, 96
  %v10049 = vpop.permute.xlu0 %10048
  %10050 = vrot.lane.b32.xlu0 %v9507, 96
  %v10051 = vpop.permute.xlu0 %10050
  %10052 = vrot.lane.b32.xlu0 %v9508, 96
  %v10053 = vpop.permute.xlu0 %10052
  %10054 = vrot.lane.b32.xlu0 %v9509, 96
  %v10055 = vpop.permute.xlu0 %10054
  %10056 = vrot.lane.b32.xlu0 %v9510, 96
  %v10057 = vpop.permute.xlu0 %10056
  %10058 = vrot.lane.b32.xlu0 %v9511, 96
  %v10059 = vpop.permute.xlu0 %10058
  %10060 = vrot.lane.b32.xlu0 %v9512, 96
  %v10061 = vpop.permute.xlu0 %10060
  %10062 = vrot.lane.b32.xlu0 %v9513, 96
  %v10063 = vpop.permute.xlu0 %10062
  %10064 = vrot.lane.b32.xlu0 %v9514, 96
  %v10065 = vpop.permute.xlu0 %10064
  %10066 = vrot.lane.b32.xlu0 %v9515, 96
  %v10067 = vpop.permute.xlu0 %10066
  %10068 = vrot.lane.b32.xlu0 %v9516, 96
  %v10069 = vpop.permute.xlu0 %10068
  %10070 = vrot.lane.b32.xlu0 %v9517, 96
  %v10071 = vpop.permute.xlu0 %10070
  %10072 = vrot.lane.b32.xlu0 %v9518, 96
  %v10073 = vpop.permute.xlu0 %10072
  %10074 = vrot.lane.b32.xlu0 %v9519, 96
  %v10075 = vpop.permute.xlu0 %10074
  %10076 = vrot.lane.b32.xlu0 %v9520, 96
  %v10077 = vpop.permute.xlu0 %10076
  %10078 = vrot.lane.b32.xlu0 %v9521, 96
  %v10079 = vpop.permute.xlu0 %10078
  %10080 = vrot.lane.b32.xlu0 %v9522, 96
  %v10081 = vpop.permute.xlu0 %10080
  %10082 = vrot.lane.b32.xlu0 %v9523, 96
  %v10083 = vpop.permute.xlu0 %10082
  %10084 = vrot.lane.b32.xlu0 %v9524, 96
  %v10085 = vpop.permute.xlu0 %10084
  %10086 = vrot.lane.b32.xlu0 %v9525, 96
  %v10087 = vpop.permute.xlu0 %10086
  %10088 = vrot.lane.b32.xlu0 %v9526, 96
  %v10089 = vpop.permute.xlu0 %10088
  %10090 = vrot.lane.b32.xlu0 %v9527, 96
  %v10091 = vpop.permute.xlu0 %10090
  %10092 = vrot.lane.b32.xlu0 %v9528, 96
  %v10093 = vpop.permute.xlu0 %10092
  %10094 = vrot.lane.b32.xlu0 %v9529, 96
  %v10095 = vpop.permute.xlu0 %10094
  %10096 = vrot.lane.b32.xlu0 %v9530, 96
  %v10097 = vpop.permute.xlu0 %10096
  %10098 = vrot.lane.b32.xlu0 %v9531, 96
  %v10099 = vpop.permute.xlu0 %10098
  %10100 = vrot.lane.b32.xlu0 %v9532, 96
  %v10101 = vpop.permute.xlu0 %10100
  %10102 = vrot.lane.b32.xlu0 %v9533, 96
  %v10103 = vpop.permute.xlu0 %10102
  %10104 = vrot.lane.b32.xlu0 %v9534, 96
  %v10105 = vpop.permute.xlu0 %10104
  %10106 = vrot.lane.b32.xlu0 %v9535, 96
  %v10107 = vpop.permute.xlu0 %10106
  %10108 = vrot.lane.b32.xlu0 %v9536, 96
  %v10109 = vpop.permute.xlu0 %10108
  %10110 = vrot.lane.b32.xlu0 %v9537, 96
  %v10111 = vpop.permute.xlu0 %10110
  %10112 = vrot.lane.b32.xlu0 %v9538, 96
  %v10113 = vpop.permute.xlu0 %10112
  %10114 = vrot.lane.b32.xlu0 %v9539, 96
  %v10115 = vpop.permute.xlu0 %10114
  %vm10180 = vcmask 261120
  %10181 = vst.msk [vmem:[%s3] sm:$0xff] %vm10180, %v9989
  %10182 = vst.msk [vmem:[%s3 + $0x8] sm:$0xff] %vm10180, %v9991
  %10183 = vst.msk [vmem:[%s3 + $0x10] sm:$0xff] %vm10180, %v9993
  %10184 = vst.msk [vmem:[%s3 + $0x18] sm:$0xff] %vm10180, %v9995
  %10185 = vst.msk [vmem:[%s3 + $0x20] sm:$0xff] %vm10180, %v9997
  %10186 = vst.msk [vmem:[%s3 + $0x28] sm:$0xff] %vm10180, %v9999
  %10187 = vst.msk [vmem:[%s3 + $0x30] sm:$0xff] %vm10180, %v10001
  %10188 = vst.msk [vmem:[%s3 + $0x38] sm:$0xff] %vm10180, %v10003
  %10189 = vst.msk [vmem:[%s3 + $0x40] sm:$0xff] %vm10180, %v10005
  %10190 = vst.msk [vmem:[%s3 + $0x48] sm:$0xff] %vm10180, %v10007
  %10191 = vst.msk [vmem:[%s3 + $0x50] sm:$0xff] %vm10180, %v10009
  %10192 = vst.msk [vmem:[%s3 + $0x58] sm:$0xff] %vm10180, %v10011
  %10193 = vst.msk [vmem:[%s3 + $0x60] sm:$0xff] %vm10180, %v10013
  %10194 = vst.msk [vmem:[%s3 + $0x68] sm:$0xff] %vm10180, %v10015
  %10195 = vst.msk [vmem:[%s3 + $0x70] sm:$0xff] %vm10180, %v10017
  %10196 = vst.msk [vmem:[%s3 + $0x78] sm:$0xff] %vm10180, %v10019
  %10197 = vst.msk [vmem:[%s3 + $0x80] sm:$0xff] %vm10180, %v10021
  %10198 = vst.msk [vmem:[%s3 + $0x88] sm:$0xff] %vm10180, %v10023
  %10199 = vst.msk [vmem:[%s3 + $0x90] sm:$0xff] %vm10180, %v10025
  %10200 = vst.msk [vmem:[%s3 + $0x98] sm:$0xff] %vm10180, %v10027
  %10201 = vst.msk [vmem:[%s3 + $0xa0] sm:$0xff] %vm10180, %v10029
  %10202 = vst.msk [vmem:[%s3 + $0xa8] sm:$0xff] %vm10180, %v10031
  %10203 = vst.msk [vmem:[%s3 + $0xb0] sm:$0xff] %vm10180, %v10033
  %10204 = vst.msk [vmem:[%s3 + $0xb8] sm:$0xff] %vm10180, %v10035
  %10205 = vst.msk [vmem:[%s3 + $0xc0] sm:$0xff] %vm10180, %v10037
  %10206 = vst.msk [vmem:[%s3 + $0xc8] sm:$0xff] %vm10180, %v10039
  %10207 = vst.msk [vmem:[%s3 + $0xd0] sm:$0xff] %vm10180, %v10041
  %10208 = vst.msk [vmem:[%s3 + $0xd8] sm:$0xff] %vm10180, %v10043
  %10209 = vst.msk [vmem:[%s3 + $0xe0] sm:$0xff] %vm10180, %v10045
  %10210 = vst.msk [vmem:[%s3 + $0xe8] sm:$0xff] %vm10180, %v10047
  %10211 = vst.msk [vmem:[%s3 + $0xf0] sm:$0xff] %vm10180, %v10049
  %10212 = vst.msk [vmem:[%s3 + $0xf8] sm:$0xff] %vm10180, %v10051
  %10213 = vst.msk [vmem:[%s3 + $0x100] sm:$0xff] %vm10180, %v10053
  %10214 = vst.msk [vmem:[%s3 + $0x108] sm:$0xff] %vm10180, %v10055
  %10215 = vst.msk [vmem:[%s3 + $0x110] sm:$0xff] %vm10180, %v10057
  %10216 = vst.msk [vmem:[%s3 + $0x118] sm:$0xff] %vm10180, %v10059
  %10217 = vst.msk [vmem:[%s3 + $0x120] sm:$0xff] %vm10180, %v10061
  %10218 = vst.msk [vmem:[%s3 + $0x128] sm:$0xff] %vm10180, %v10063
  %10219 = vst.msk [vmem:[%s3 + $0x130] sm:$0xff] %vm10180, %v10065
  %10220 = vst.msk [vmem:[%s3 + $0x138] sm:$0xff] %vm10180, %v10067
  %10221 = vst.msk [vmem:[%s3 + $0x140] sm:$0xff] %vm10180, %v10069
  %10222 = vst.msk [vmem:[%s3 + $0x148] sm:$0xff] %vm10180, %v10071
  %10223 = vst.msk [vmem:[%s3 + $0x150] sm:$0xff] %vm10180, %v10073
  %10224 = vst.msk [vmem:[%s3 + $0x158] sm:$0xff] %vm10180, %v10075
  %10225 = vst.msk [vmem:[%s3 + $0x160] sm:$0xff] %vm10180, %v10077
  %10226 = vst.msk [vmem:[%s3 + $0x168] sm:$0xff] %vm10180, %v10079
  %10227 = vst.msk [vmem:[%s3 + $0x170] sm:$0xff] %vm10180, %v10081
  %10228 = vst.msk [vmem:[%s3 + $0x178] sm:$0xff] %vm10180, %v10083
  %10229 = vst.msk [vmem:[%s3 + $0x180] sm:$0xff] %vm10180, %v10085
  %10230 = vst.msk [vmem:[%s3 + $0x188] sm:$0xff] %vm10180, %v10087
  %10231 = vst.msk [vmem:[%s3 + $0x190] sm:$0xff] %vm10180, %v10089
  %10232 = vst.msk [vmem:[%s3 + $0x198] sm:$0xff] %vm10180, %v10091
  %10233 = vst.msk [vmem:[%s3 + $0x1a0] sm:$0xff] %vm10180, %v10093
  %10234 = vst.msk [vmem:[%s3 + $0x1a8] sm:$0xff] %vm10180, %v10095
  %10235 = vst.msk [vmem:[%s3 + $0x1b0] sm:$0xff] %vm10180, %v10097
  %10236 = vst.msk [vmem:[%s3 + $0x1b8] sm:$0xff] %vm10180, %v10099
  %10237 = vst.msk [vmem:[%s3 + $0x1c0] sm:$0xff] %vm10180, %v10101
  %10238 = vst.msk [vmem:[%s3 + $0x1c8] sm:$0xff] %vm10180, %v10103
  %10239 = vst.msk [vmem:[%s3 + $0x1d0] sm:$0xff] %vm10180, %v10105
  %10240 = vst.msk [vmem:[%s3 + $0x1d8] sm:$0xff] %vm10180, %v10107
  %10241 = vst.msk [vmem:[%s3 + $0x1e0] sm:$0xff] %vm10180, %v10109
  %10242 = vst.msk [vmem:[%s3 + $0x1e8] sm:$0xff] %vm10180, %v10111
  %10243 = vst.msk [vmem:[%s3 + $0x1f0] sm:$0xff] %vm10180, %v10113
  %10244 = vst.msk [vmem:[%s3 + $0x1f8] sm:$0xff] %vm10180, %v10115
  %10309 = vrot.lane.b32.xlu0 %v9860, 64
  %v10310 = vpop.permute.xlu0 %10309
  %10311 = vrot.lane.b32.xlu0 %v9861, 64
  %v10312 = vpop.permute.xlu0 %10311
  %10313 = vrot.lane.b32.xlu0 %v9862, 64
  %v10314 = vpop.permute.xlu0 %10313
  %10315 = vrot.lane.b32.xlu0 %v9863, 64
  %v10316 = vpop.permute.xlu0 %10315
  %10317 = vrot.lane.b32.xlu0 %v9864, 64
  %v10318 = vpop.permute.xlu0 %10317
  %10319 = vrot.lane.b32.xlu0 %v9865, 64
  %v10320 = vpop.permute.xlu0 %10319
  %10321 = vrot.lane.b32.xlu0 %v9866, 64
  %v10322 = vpop.permute.xlu0 %10321
  %10323 = vrot.lane.b32.xlu0 %v9867, 64
  %v10324 = vpop.permute.xlu0 %10323
  %10325 = vrot.lane.b32.xlu0 %v9868, 64
  %v10326 = vpop.permute.xlu0 %10325
  %10327 = vrot.lane.b32.xlu0 %v9869, 64
  %v10328 = vpop.permute.xlu0 %10327
  %10329 = vrot.lane.b32.xlu0 %v9870, 64
  %v10330 = vpop.permute.xlu0 %10329
  %10331 = vrot.lane.b32.xlu0 %v9871, 64
  %v10332 = vpop.permute.xlu0 %10331
  %10333 = vrot.lane.b32.xlu0 %v9872, 64
  %v10334 = vpop.permute.xlu0 %10333
  %10335 = vrot.lane.b32.xlu0 %v9873, 64
  %v10336 = vpop.permute.xlu0 %10335
  %10337 = vrot.lane.b32.xlu0 %v9874, 64
  %v10338 = vpop.permute.xlu0 %10337
  %10339 = vrot.lane.b32.xlu0 %v9875, 64
  %v10340 = vpop.permute.xlu0 %10339
  %10341 = vrot.lane.b32.xlu0 %v9876, 64
  %v10342 = vpop.permute.xlu0 %10341
  %10343 = vrot.lane.b32.xlu0 %v9877, 64
  %v10344 = vpop.permute.xlu0 %10343
  %10345 = vrot.lane.b32.xlu0 %v9878, 64
  %v10346 = vpop.permute.xlu0 %10345
  %10347 = vrot.lane.b32.xlu0 %v9879, 64
  %v10348 = vpop.permute.xlu0 %10347
  %10349 = vrot.lane.b32.xlu0 %v9880, 64
  %v10350 = vpop.permute.xlu0 %10349
  %10351 = vrot.lane.b32.xlu0 %v9881, 64
  %v10352 = vpop.permute.xlu0 %10351
  %10353 = vrot.lane.b32.xlu0 %v9882, 64
  %v10354 = vpop.permute.xlu0 %10353
  %10355 = vrot.lane.b32.xlu0 %v9883, 64
  %v10356 = vpop.permute.xlu0 %10355
  %10357 = vrot.lane.b32.xlu0 %v9884, 64
  %v10358 = vpop.permute.xlu0 %10357
  %10359 = vrot.lane.b32.xlu0 %v9885, 64
  %v10360 = vpop.permute.xlu0 %10359
  %10361 = vrot.lane.b32.xlu0 %v9886, 64
  %v10362 = vpop.permute.xlu0 %10361
  %10363 = vrot.lane.b32.xlu0 %v9887, 64
  %v10364 = vpop.permute.xlu0 %10363
  %10365 = vrot.lane.b32.xlu0 %v9888, 64
  %v10366 = vpop.permute.xlu0 %10365
  %10367 = vrot.lane.b32.xlu0 %v9889, 64
  %v10368 = vpop.permute.xlu0 %10367
  %10369 = vrot.lane.b32.xlu0 %v9890, 64
  %v10370 = vpop.permute.xlu0 %10369
  %10371 = vrot.lane.b32.xlu0 %v9891, 64
  %v10372 = vpop.permute.xlu0 %10371
  %10373 = vrot.lane.b32.xlu0 %v9892, 64
  %v10374 = vpop.permute.xlu0 %10373
  %10375 = vrot.lane.b32.xlu0 %v9893, 64
  %v10376 = vpop.permute.xlu0 %10375
  %10377 = vrot.lane.b32.xlu0 %v9894, 64
  %v10378 = vpop.permute.xlu0 %10377
  %10379 = vrot.lane.b32.xlu0 %v9895, 64
  %v10380 = vpop.permute.xlu0 %10379
  %10381 = vrot.lane.b32.xlu0 %v9896, 64
  %v10382 = vpop.permute.xlu0 %10381
  %10383 = vrot.lane.b32.xlu0 %v9897, 64
  %v10384 = vpop.permute.xlu0 %10383
  %10385 = vrot.lane.b32.xlu0 %v9898, 64
  %v10386 = vpop.permute.xlu0 %10385
  %10387 = vrot.lane.b32.xlu0 %v9899, 64
  %v10388 = vpop.permute.xlu0 %10387
  %10389 = vrot.lane.b32.xlu0 %v9900, 64
  %v10390 = vpop.permute.xlu0 %10389
  %10391 = vrot.lane.b32.xlu0 %v9901, 64
  %v10392 = vpop.permute.xlu0 %10391
  %10393 = vrot.lane.b32.xlu0 %v9902, 64
  %v10394 = vpop.permute.xlu0 %10393
  %10395 = vrot.lane.b32.xlu0 %v9903, 64
  %v10396 = vpop.permute.xlu0 %10395
  %10397 = vrot.lane.b32.xlu0 %v9904, 64
  %v10398 = vpop.permute.xlu0 %10397
  %10399 = vrot.lane.b32.xlu0 %v9905, 64
  %v10400 = vpop.permute.xlu0 %10399
  %10401 = vrot.lane.b32.xlu0 %v9906, 64
  %v10402 = vpop.permute.xlu0 %10401
  %10403 = vrot.lane.b32.xlu0 %v9907, 64
  %v10404 = vpop.permute.xlu0 %10403
  %10405 = vrot.lane.b32.xlu0 %v9908, 64
  %v10406 = vpop.permute.xlu0 %10405
  %10407 = vrot.lane.b32.xlu0 %v9909, 64
  %v10408 = vpop.permute.xlu0 %10407
  %10409 = vrot.lane.b32.xlu0 %v9910, 64
  %v10410 = vpop.permute.xlu0 %10409
  %10411 = vrot.lane.b32.xlu0 %v9911, 64
  %v10412 = vpop.permute.xlu0 %10411
  %10413 = vrot.lane.b32.xlu0 %v9912, 64
  %v10414 = vpop.permute.xlu0 %10413
  %10415 = vrot.lane.b32.xlu0 %v9913, 64
  %v10416 = vpop.permute.xlu0 %10415
  %10417 = vrot.lane.b32.xlu0 %v9914, 64
  %v10418 = vpop.permute.xlu0 %10417
  %10419 = vrot.lane.b32.xlu0 %v9915, 64
  %v10420 = vpop.permute.xlu0 %10419
  %10421 = vrot.lane.b32.xlu0 %v9916, 64
  %v10422 = vpop.permute.xlu0 %10421
  %10423 = vrot.lane.b32.xlu0 %v9917, 64
  %v10424 = vpop.permute.xlu0 %10423
  %10425 = vrot.lane.b32.xlu0 %v9918, 64
  %v10426 = vpop.permute.xlu0 %10425
  %10427 = vrot.lane.b32.xlu0 %v9919, 64
  %v10428 = vpop.permute.xlu0 %10427
  %10429 = vrot.lane.b32.xlu0 %v9920, 64
  %v10430 = vpop.permute.xlu0 %10429
  %10431 = vrot.lane.b32.xlu0 %v9921, 64
  %v10432 = vpop.permute.xlu0 %10431
  %10433 = vrot.lane.b32.xlu0 %v9922, 64
  %v10434 = vpop.permute.xlu0 %10433
  %10435 = vrot.lane.b32.xlu0 %v9923, 64
  %v10436 = vpop.permute.xlu0 %10435
  %10501 = vst.msk [vmem:[%s4] sm:$0xff] %vm10180, %v10310
  %10502 = vst.msk [vmem:[%s4 + $0x8] sm:$0xff] %vm10180, %v10312
  %10503 = vst.msk [vmem:[%s4 + $0x10] sm:$0xff] %vm10180, %v10314
  %10504 = vst.msk [vmem:[%s4 + $0x18] sm:$0xff] %vm10180, %v10316
  %10505 = vst.msk [vmem:[%s4 + $0x20] sm:$0xff] %vm10180, %v10318
  %10506 = vst.msk [vmem:[%s4 + $0x28] sm:$0xff] %vm10180, %v10320
  %10507 = vst.msk [vmem:[%s4 + $0x30] sm:$0xff] %vm10180, %v10322
  %10508 = vst.msk [vmem:[%s4 + $0x38] sm:$0xff] %vm10180, %v10324
  %10509 = vst.msk [vmem:[%s4 + $0x40] sm:$0xff] %vm10180, %v10326
  %10510 = vst.msk [vmem:[%s4 + $0x48] sm:$0xff] %vm10180, %v10328
  %10511 = vst.msk [vmem:[%s4 + $0x50] sm:$0xff] %vm10180, %v10330
  %10512 = vst.msk [vmem:[%s4 + $0x58] sm:$0xff] %vm10180, %v10332
  %10513 = vst.msk [vmem:[%s4 + $0x60] sm:$0xff] %vm10180, %v10334
  %10514 = vst.msk [vmem:[%s4 + $0x68] sm:$0xff] %vm10180, %v10336
  %10515 = vst.msk [vmem:[%s4 + $0x70] sm:$0xff] %vm10180, %v10338
  %10516 = vst.msk [vmem:[%s4 + $0x78] sm:$0xff] %vm10180, %v10340
  %10517 = vst.msk [vmem:[%s4 + $0x80] sm:$0xff] %vm10180, %v10342
  %10518 = vst.msk [vmem:[%s4 + $0x88] sm:$0xff] %vm10180, %v10344
  %10519 = vst.msk [vmem:[%s4 + $0x90] sm:$0xff] %vm10180, %v10346
  %10520 = vst.msk [vmem:[%s4 + $0x98] sm:$0xff] %vm10180, %v10348
  %10521 = vst.msk [vmem:[%s4 + $0xa0] sm:$0xff] %vm10180, %v10350
  %10522 = vst.msk [vmem:[%s4 + $0xa8] sm:$0xff] %vm10180, %v10352
  %10523 = vst.msk [vmem:[%s4 + $0xb0] sm:$0xff] %vm10180, %v10354
  %10524 = vst.msk [vmem:[%s4 + $0xb8] sm:$0xff] %vm10180, %v10356
  %10525 = vst.msk [vmem:[%s4 + $0xc0] sm:$0xff] %vm10180, %v10358
  %10526 = vst.msk [vmem:[%s4 + $0xc8] sm:$0xff] %vm10180, %v10360
  %10527 = vst.msk [vmem:[%s4 + $0xd0] sm:$0xff] %vm10180, %v10362
  %10528 = vst.msk [vmem:[%s4 + $0xd8] sm:$0xff] %vm10180, %v10364
  %10529 = vst.msk [vmem:[%s4 + $0xe0] sm:$0xff] %vm10180, %v10366
  %10530 = vst.msk [vmem:[%s4 + $0xe8] sm:$0xff] %vm10180, %v10368
  %10531 = vst.msk [vmem:[%s4 + $0xf0] sm:$0xff] %vm10180, %v10370
  %10532 = vst.msk [vmem:[%s4 + $0xf8] sm:$0xff] %vm10180, %v10372
  %10533 = vst.msk [vmem:[%s4 + $0x100] sm:$0xff] %vm10180, %v10374
  %10534 = vst.msk [vmem:[%s4 + $0x108] sm:$0xff] %vm10180, %v10376
  %10535 = vst.msk [vmem:[%s4 + $0x110] sm:$0xff] %vm10180, %v10378
  %10536 = vst.msk [vmem:[%s4 + $0x118] sm:$0xff] %vm10180, %v10380
  %10537 = vst.msk [vmem:[%s4 + $0x120] sm:$0xff] %vm10180, %v10382
  %10538 = vst.msk [vmem:[%s4 + $0x128] sm:$0xff] %vm10180, %v10384
  %10539 = vst.msk [vmem:[%s4 + $0x130] sm:$0xff] %vm10180, %v10386
  %10540 = vst.msk [vmem:[%s4 + $0x138] sm:$0xff] %vm10180, %v10388
  %10541 = vst.msk [vmem:[%s4 + $0x140] sm:$0xff] %vm10180, %v10390
  %10542 = vst.msk [vmem:[%s4 + $0x148] sm:$0xff] %vm10180, %v10392
  %10543 = vst.msk [vmem:[%s4 + $0x150] sm:$0xff] %vm10180, %v10394
  %10544 = vst.msk [vmem:[%s4 + $0x158] sm:$0xff] %vm10180, %v10396
  %10545 = vst.msk [vmem:[%s4 + $0x160] sm:$0xff] %vm10180, %v10398
  %10546 = vst.msk [vmem:[%s4 + $0x168] sm:$0xff] %vm10180, %v10400
  %10547 = vst.msk [vmem:[%s4 + $0x170] sm:$0xff] %vm10180, %v10402
  %10548 = vst.msk [vmem:[%s4 + $0x178] sm:$0xff] %vm10180, %v10404
  %10549 = vst.msk [vmem:[%s4 + $0x180] sm:$0xff] %vm10180, %v10406
  %10550 = vst.msk [vmem:[%s4 + $0x188] sm:$0xff] %vm10180, %v10408
  %10551 = vst.msk [vmem:[%s4 + $0x190] sm:$0xff] %vm10180, %v10410
  %10552 = vst.msk [vmem:[%s4 + $0x198] sm:$0xff] %vm10180, %v10412
  %10553 = vst.msk [vmem:[%s4 + $0x1a0] sm:$0xff] %vm10180, %v10414
  %10554 = vst.msk [vmem:[%s4 + $0x1a8] sm:$0xff] %vm10180, %v10416
  %10555 = vst.msk [vmem:[%s4 + $0x1b0] sm:$0xff] %vm10180, %v10418
  %10556 = vst.msk [vmem:[%s4 + $0x1b8] sm:$0xff] %vm10180, %v10420
  %10557 = vst.msk [vmem:[%s4 + $0x1c0] sm:$0xff] %vm10180, %v10422
  %10558 = vst.msk [vmem:[%s4 + $0x1c8] sm:$0xff] %vm10180, %v10424
  %10559 = vst.msk [vmem:[%s4 + $0x1d0] sm:$0xff] %vm10180, %v10426
  %10560 = vst.msk [vmem:[%s4 + $0x1d8] sm:$0xff] %vm10180, %v10428
  %10561 = vst.msk [vmem:[%s4 + $0x1e0] sm:$0xff] %vm10180, %v10430
  %10562 = vst.msk [vmem:[%s4 + $0x1e8] sm:$0xff] %vm10180, %v10432
  %10563 = vst.msk [vmem:[%s4 + $0x1f0] sm:$0xff] %vm10180, %v10434
  %10564 = vst.msk [vmem:[%s4 + $0x1f8] sm:$0xff] %vm10180, %v10436
  // Predicated region
  $region14: #{tpu_custom_call.1} parent=0 // pred_check
    _
  $region15: #{tpu_custom_call.1} parent=0 // pred_check_branch
    %10566 = sbr.rel (0) target = $region17
  $region16: #{tpu_custom_call.1} parent=0 // pred_region
    _
  $region17: #{tpu_custom_call.1} parent=0 // pred_fallthru
    _
  // Predicated region
  $region18: #{tpu_custom_call.1} parent=0 // pred_check
    _
  $region19: #{tpu_custom_call.1} parent=0 // pred_check_branch
    %10568 = sbr.rel (0) target = $region21
  $region20: #{tpu_custom_call.1} parent=0 // pred_region
    _
  $region21: #{tpu_custom_call.1} parent=0 // pred_fallthru
    _
  // Predicated region
  $region22: #{tpu_custom_call.1} parent=0 // pred_check
    _
  $region23: #{tpu_custom_call.1} parent=0 // pred_check_branch
    %10570 = sbr.rel (0) target = $region25
  $region24: #{tpu_custom_call.1} parent=0 // pred_region
    _
  $region25: #{tpu_custom_call.1} parent=0 // pred_fallthru
    _
  // Predicated region
  $region26: #{tpu_custom_call.1} parent=0 // pred_check
    _
  $region27: #{tpu_custom_call.1} parent=0 // pred_check_branch
    %10572 = sbr.rel (0) target = $region29
  $region28: #{tpu_custom_call.1} parent=0 // pred_region
    _
  $region29: #{tpu_custom_call.1} parent=0 // pred_fallthru
    _

</llo_original>
